<compile_context>
chip_gen: v5e
topology: v5e:2x2
jax: 0.10.0
libtpu: 0.0.40
codegen_flags: <defaults>
</compile_context>

<pallas_src>
from functools import partial

import jax
import jax.numpy as jnp
from jax.experimental import pallas as pl
from jax.experimental.pallas import tpu as pltpu

D_IN, D_H, D_OUT = 128, 1024, 784
D_OUT_PAD = 896  # 7 * 128: lane-dense output slab


def _round_up(x, m):
    return (x + m - 1) // m * m


# ---------------------------------------------------------------------------
# Kernel: fused 3-layer MLP on one batch tile.  All weights resident in VMEM
# (~4 MiB in bf16), so the three matmuls run back-to-back on the MXU.  Matmul
# operands are bf16; accumulation and elementwise math (bias, ReLU, tanh) are
# f32.  Output stored as bf16 (halves writeback bytes).
# ---------------------------------------------------------------------------
def generator_kernel(x_ref, w1_ref, b1_ref, w2_ref, b2_ref, w3_ref, b3_ref, o_ref):
    x = x_ref[...]                                                     # bf16 (tb, 128)
    h1 = jnp.dot(x, w1_ref[...], preferred_element_type=jnp.float32) + b1_ref[...]
    h1 = jnp.maximum(h1, 0.0).astype(jnp.bfloat16)                     # ReLU
    h2 = jnp.dot(h1, w2_ref[...], preferred_element_type=jnp.float32) + b2_ref[...]
    h2 = jnp.maximum(h2, 0.0).astype(jnp.bfloat16)                     # ReLU
    y = jnp.dot(h2, w3_ref[...], preferred_element_type=jnp.float32) + b3_ref[...]
    o_ref[...] = jnp.tanh(y).astype(o_ref.dtype)                       # Tanh -> bf16


def _build_pallas_call(b_pad, tb):
    def const_spec(shape):
        # Constant block index across the grid -> weights stay resident in
        # VMEM (no re-DMA per step); default double-buffering is fine.
        return pl.BlockSpec(shape, lambda i: (0, 0))

    return pl.pallas_call(
        generator_kernel,
        out_shape=jax.ShapeDtypeStruct((b_pad, D_OUT_PAD), jnp.bfloat16),
        grid_spec=pltpu.PrefetchScalarGridSpec(
            num_scalar_prefetch=0,
            grid=(b_pad // tb,),
            in_specs=[
                pl.BlockSpec((tb, D_IN), lambda i: (i, 0)),   # x tile
                const_spec((D_IN, D_H)),                      # W1 (full, resident)
                const_spec((1, D_H)),                         # b1
                const_spec((D_H, D_H)),                       # W2 (full, resident)
                const_spec((1, D_H)),                         # b2
                const_spec((D_H, D_OUT_PAD)),                 # W3 (padded lanes)
                const_spec((1, D_OUT_PAD)),                   # b3 (padded lanes)
            ],
            out_specs=pl.BlockSpec((tb, D_OUT_PAD), lambda i: (i, 0)),
        ),
        compiler_params=pltpu.CompilerParams(
            dimension_semantics=("parallel",),   # shards batch tiles across TCs on v7x
            vmem_limit_bytes=32 << 20,           # ~13 MiB actual need at tb=256
        ),
    )


# ---------------------------------------------------------------------------
# One-time parameter preparation (hoisted out of the per-call path).
# ---------------------------------------------------------------------------
def prepare_params(w1, b1, w2, b2, w3, b3):
    """Cast weights to bf16, biases to f32, pad layer-3 lanes 784 -> 896 once."""
    w1b = w1.astype(jnp.bfloat16)
    w2b = w2.astype(jnp.bfloat16)
    w3b = jnp.pad(w3, ((0, 0), (0, D_OUT_PAD - D_OUT))).astype(jnp.bfloat16)
    b1f = b1.astype(jnp.float32)
    b2f = b2.astype(jnp.float32)
    b3f = jnp.pad(b3, ((0, 0), (0, D_OUT_PAD - D_OUT))).astype(jnp.float32)
    return w1b, b1f, w2b, b2f, w3b, b3f


# ---------------------------------------------------------------------------
# Device-aware batch-tile selection.
# ---------------------------------------------------------------------------
def _device_kind():
    try:
        return jax.devices()[0].device_kind.lower()
    except Exception:
        return ""


def _pick_tb(B):
    kind = _device_kind()
    is_v5e = ("v5 lite" in kind) or ("v5e" in kind) or ("v5lite" in kind)
    want_multi_step = "v7" in kind          # 2 TensorCores per chip on v7x
    max_tb = 128 if is_v5e else 256         # sweep 512 on v6e/v7x for huge B if desired

    b8 = _round_up(B, 8)
    if b8 <= 64:
        return b8                            # single small tile, no padding waste
    cands = [t for t in (64, 128, 256, 512) if t <= max_tb]
    best_pad = min(_round_up(b8, t) - b8 for t in cands)
    cands = [t for t in cands if _round_up(b8, t) - b8 == best_pad]
    if want_multi_step:
        multi = [t for t in cands if _round_up(b8, t) // t >= 2]
        if multi:
            return max(multi)                # >=2 grid steps -> both v7x TCs busy
    return max(cands)                        # fewest grid steps (amortize step overhead)


# ---------------------------------------------------------------------------
# Forward: single jitted pad -> pallas_call -> slice pipeline.
# ---------------------------------------------------------------------------
@partial(jax.jit, static_argnames=("tb",))
def _generator_fwd_jit(x, w1b, b1f, w2b, b2f, w3b, b3f, *, tb):
    B = x.shape[0]
    b_pad = _round_up(B, tb)
    x_p = x.astype(jnp.bfloat16)
    if b_pad != B:
        x_p = jnp.pad(x_p, ((0, b_pad - B), (0, 0)))
    out = _build_pallas_call(b_pad, tb)(x_p, w1b, b1f, w2b, b2f, w3b, b3f)
    # Padded batch rows / 896->784 lane pad hold tanh(b3) garbage; slice them
    # off (fuses under jit).  Callers consuming the padded slab directly must
    # mask these regions themselves.
    return out[:B, :D_OUT]


def generator_forward(x, prepared_params, *, tb=None):
    """x: [B, 128] f32/bf16; prepared_params from prepare_params(). Returns bf16 [B, 784]."""
    if tb is None:
        tb = _pick_tb(x.shape[0])
    return _generator_fwd_jit(x, *prepared_params, tb=int(tb))


# ---------------------------------------------------------------------------
# Synthetic parameters + pure-JAX reference.
# ---------------------------------------------------------------------------
def init_params(key):
    """Deterministic synthetic parameters matching nn.Linear shapes.

    PyTorch stores weight as (out, in); we store the transpose (in, out)."""
    k1, k2, k3, k4, k5, k6 = jax.random.split(key, 6)
    s1 = 1.0 / jnp.sqrt(D_IN)
    s2 = 1.0 / jnp.sqrt(D_H)
    w1 = jax.random.uniform(k1, (D_IN, D_H), jnp.float32, -s1, s1)
    b1 = jax.random.uniform(k2, (1, D_H), jnp.float32, -s1, s1)
    w2 = jax.random.uniform(k3, (D_H, D_H), jnp.float32, -s2, s2)
    b2 = jax.random.uniform(k4, (1, D_H), jnp.float32, -s2, s2)
    w3 = jax.random.uniform(k5, (D_H, D_OUT), jnp.float32, -s2, s2)
    b3 = jax.random.uniform(k6, (1, D_OUT), jnp.float32, -s2, s2)
    return w1, b1, w2, b2, w3, b3


def reference_forward(x, w1, b1, w2, b2, w3, b3):
    h1 = jnp.maximum(x @ w1 + b1, 0.0)
    h2 = jnp.maximum(h1 @ w2 + b2, 0.0)
    return jnp.tanh(h2 @ w3 + b3)


if __name__ == "__main__":
    key = jax.random.PRNGKey(0)
    kx, kp = jax.random.split(key)

    B = 8  # small batch for the demo; latent dim is fixed at 128 by the module
    x = jax.random.normal(kx, (B, D_IN), dtype=jnp.float32)
    params = init_params(kp)
    prepared = prepare_params(*params)          # one-time bf16 cast / lane pad

    out = generator_forward(x, prepared)
    out = jax.block_until_ready(out)

    ref = reference_forward(x, *params)
    assert out.shape == (B, D_OUT)
    out_f32 = out.astype(jnp.float32)
    max_err = float(jnp.max(jnp.abs(out_f32 - ref)))
    # bf16 matmul operands + bf16 output (f32 accumulate) vs. the f32 reference:
    # tolerance is loose by design; tanh saturation keeps the true error small.
    assert jnp.allclose(out_f32, ref, atol=2.5e-2, rtol=2.5e-2), (
        f"mismatch vs reference (max abs err {max_err})")

    print("KERNEL_OK")
</pallas_src>

<mosaic_0001>
module attributes {stable_mosaic.version = 11 : i64} {
  func.func @generator_kernel(%arg0: i32, %arg1: memref<8x128xbf16, #tpu.memory_space<vmem>>, %arg2: memref<128x1024xbf16, #tpu.memory_space<vmem>>, %arg3: memref<1x1024xf32, #tpu.memory_space<vmem>>, %arg4: memref<1024x1024xbf16, #tpu.memory_space<vmem>>, %arg5: memref<1x1024xf32, #tpu.memory_space<vmem>>, %arg6: memref<1024x896xbf16, #tpu.memory_space<vmem>>, %arg7: memref<1x896xf32, #tpu.memory_space<vmem>>, %arg8: memref<8x896xbf16, #tpu.memory_space<vmem>>) attributes {dimension_semantics = [#tpu.dimension_semantics<parallel>], iteration_bounds = array<i64: 1>, scalar_prefetch = 0 : i64, scratch_operands = 0 : i64, tpu.core_type = #tpu.core_type<tc>, window_params = [{transform_indices = @transform_0, window_bounds = array<i64: 8, 128>}, {pipeline_mode = #tpu.pipeline_mode<synchronous>, transform_indices = @transform_1, window_bounds = array<i64: 128, 1024>}, {pipeline_mode = #tpu.pipeline_mode<synchronous>, transform_indices = @transform_2, window_bounds = array<i64: 1, 1024>}, {pipeline_mode = #tpu.pipeline_mode<synchronous>, transform_indices = @transform_3, window_bounds = array<i64: 1024, 1024>}, {pipeline_mode = #tpu.pipeline_mode<synchronous>, transform_indices = @transform_4, window_bounds = array<i64: 1, 1024>}, {pipeline_mode = #tpu.pipeline_mode<synchronous>, transform_indices = @transform_5, window_bounds = array<i64: 1024, 896>}, {pipeline_mode = #tpu.pipeline_mode<synchronous>, transform_indices = @transform_6, window_bounds = array<i64: 1, 896>}, {transform_indices = @transform_7, window_bounds = array<i64: 8, 896>}]} {
    %c0 = arith.constant 0 : index
    %c0_0 = arith.constant 0 : index
    %0 = vector.load %arg1[%c0, %c0_0] : memref<8x128xbf16, #tpu.memory_space<vmem>>, vector<8x128xbf16>
    %c0_1 = arith.constant 0 : index
    %c0_2 = arith.constant 0 : index
    %1 = vector.load %arg2[%c0_1, %c0_2] : memref<128x1024xbf16, #tpu.memory_space<vmem>>, vector<128x1024xbf16>
    %cst = arith.constant dense<0.000000e+00> : vector<8x1024xf32>
    %2 = tpu.matmul %0, %1, %cst {dimension_numbers = #tpu.dot_dimension_numbers<[1], [0], [0], [1], [0, 0, 1, 1], [], []>} : vector<8x128xbf16>, vector<128x1024xbf16>, vector<8x1024xf32> -> vector<8x1024xf32>
    %c0_3 = arith.constant 0 : index
    %c0_4 = arith.constant 0 : index
    %3 = vector.load %arg3[%c0_3, %c0_4] : memref<1x1024xf32, #tpu.memory_space<vmem>>, vector<1x1024xf32>
    %4 = vector.broadcast %3 : vector<1x1024xf32> to vector<8x1024xf32>
    %5 = arith.addf %2, %4 : vector<8x1024xf32>
    %cst_5 = arith.constant 0.000000e+00 : f32
    %6 = vector.broadcast %cst_5 : f32 to vector<8x1024xf32>
    %7 = arith.maximumf %5, %6 : vector<8x1024xf32>
    %8 = arith.truncf %7 : vector<8x1024xf32> to vector<8x1024xbf16>
    %c0_6 = arith.constant 0 : index
    %c0_7 = arith.constant 0 : index
    %9 = vector.load %arg4[%c0_6, %c0_7] : memref<1024x1024xbf16, #tpu.memory_space<vmem>>, vector<1024x1024xbf16>
    %cst_8 = arith.constant dense<0.000000e+00> : vector<8x1024xf32>
    %10 = tpu.matmul %8, %9, %cst_8 {dimension_numbers = #tpu.dot_dimension_numbers<[1], [0], [0], [1], [0, 0, 1, 1], [], []>} : vector<8x1024xbf16>, vector<1024x1024xbf16>, vector<8x1024xf32> -> vector<8x1024xf32>
    %c0_9 = arith.constant 0 : index
    %c0_10 = arith.constant 0 : index
    %11 = vector.load %arg5[%c0_9, %c0_10] : memref<1x1024xf32, #tpu.memory_space<vmem>>, vector<1x1024xf32>
    %12 = vector.broadcast %11 : vector<1x1024xf32> to vector<8x1024xf32>
    %13 = arith.addf %10, %12 : vector<8x1024xf32>
    %cst_11 = arith.constant 0.000000e+00 : f32
    %14 = vector.broadcast %cst_11 : f32 to vector<8x1024xf32>
    %15 = arith.maximumf %13, %14 : vector<8x1024xf32>
    %16 = arith.truncf %15 : vector<8x1024xf32> to vector<8x1024xbf16>
    %c0_12 = arith.constant 0 : index
    %c0_13 = arith.constant 0 : index
    %17 = vector.load %arg6[%c0_12, %c0_13] : memref<1024x896xbf16, #tpu.memory_space<vmem>>, vector<1024x896xbf16>
    %cst_14 = arith.constant dense<0.000000e+00> : vector<8x896xf32>
    %18 = tpu.matmul %16, %17, %cst_14 {dimension_numbers = #tpu.dot_dimension_numbers<[1], [0], [0], [1], [0, 0, 1, 1], [], []>} : vector<8x1024xbf16>, vector<1024x896xbf16>, vector<8x896xf32> -> vector<8x896xf32>
    %c0_15 = arith.constant 0 : index
    %c0_16 = arith.constant 0 : index
    %19 = vector.load %arg7[%c0_15, %c0_16] : memref<1x896xf32, #tpu.memory_space<vmem>>, vector<1x896xf32>
    %20 = vector.broadcast %19 : vector<1x896xf32> to vector<8x896xf32>
    %21 = arith.addf %18, %20 : vector<8x896xf32>
    %22 = math.tanh %21 : vector<8x896xf32>
    %23 = arith.truncf %22 : vector<8x896xf32> to vector<8x896xbf16>
    %c0_17 = arith.constant 0 : index
    %c0_18 = arith.constant 0 : index
    %24 = vector.load %arg8[%c0_17, %c0_18] : memref<8x896xbf16, #tpu.memory_space<vmem>>, vector<8x896xbf16>
    tpu.vector_store %arg8[%c0_17, %c0_18], %23 {strides = array<i32>} : memref<8x896xbf16, #tpu.memory_space<vmem>>, vector<8x896xbf16>,
    return
  }
  func.func @transform_0(%arg0: i32) -> (i32, i32) {
    %c0_i32 = arith.constant 0 : i32
    %c0_i32_0 = arith.constant 0 : i32
    return %arg0, %c0_i32 : i32, i32
  }
  func.func @transform_1(%arg0: i32) -> (i32, i32) {
    %c0_i32 = arith.constant 0 : i32
    %c0_i32_0 = arith.constant 0 : i32
    %c0_i32_1 = arith.constant 0 : i32
    return %c0_i32, %c0_i32_0 : i32, i32
  }
  func.func @transform_2(%arg0: i32) -> (i32, i32) {
    %c0_i32 = arith.constant 0 : i32
    %c0_i32_0 = arith.constant 0 : i32
    %c0_i32_1 = arith.constant 0 : i32
    return %c0_i32, %c0_i32_0 : i32, i32
  }
  func.func @transform_3(%arg0: i32) -> (i32, i32) {
    %c0_i32 = arith.constant 0 : i32
    %c0_i32_0 = arith.constant 0 : i32
    %c0_i32_1 = arith.constant 0 : i32
    return %c0_i32, %c0_i32_0 : i32, i32
  }
  func.func @transform_4(%arg0: i32) -> (i32, i32) {
    %c0_i32 = arith.constant 0 : i32
    %c0_i32_0 = arith.constant 0 : i32
    %c0_i32_1 = arith.constant 0 : i32
    return %c0_i32, %c0_i32_0 : i32, i32
  }
  func.func @transform_5(%arg0: i32) -> (i32, i32) {
    %c0_i32 = arith.constant 0 : i32
    %c0_i32_0 = arith.constant 0 : i32
    %c0_i32_1 = arith.constant 0 : i32
    return %c0_i32, %c0_i32_0 : i32, i32
  }
  func.func @transform_6(%arg0: i32) -> (i32, i32) {
    %c0_i32 = arith.constant 0 : i32
    %c0_i32_0 = arith.constant 0 : i32
    %c0_i32_1 = arith.constant 0 : i32
    return %c0_i32, %c0_i32_0 : i32, i32
  }
  func.func @transform_7(%arg0: i32) -> (i32, i32) {
    %c0_i32 = arith.constant 0 : i32
    %c0_i32_0 = arith.constant 0 : i32
    return %arg0, %c0_i32 : i32, i32
  }
}

</mosaic_0001>

<llo_original>
// kernel: _generator_fwd_jit.1
$region0: #{_generator_fwd_jit.1}
  #allocation0 [shape = 'u32[]', space=smem, size = 0x4, offset = 0x4, fixed_abs, tag = 'smem constant byte address 0x4 - core index']
  #allocation1 [shape = 'u32[72,128]{1,0:T(1,128)}', space=vmem, size = 0x9000, scoped, tag = 'internal scratch']
  %s0 = inlined_call_operand.vmem [shape: bf16[8,128], index: 0, kind: input, shape index: {}]
  %s1 = inlined_call_operand.hbm [shape: bf16[128,1024], index: 1, kind: input, shape index: {}]
  %s2 = inlined_call_operand.hbm [shape: f32[1,1024], index: 2, kind: input, shape index: {}]
  %s3 = inlined_call_operand.hbm [shape: bf16[1024,1024], index: 3, kind: input, shape index: {}]
  %s4 = inlined_call_operand.hbm [shape: f32[1,1024], index: 4, kind: input, shape index: {}]
  %s5 = inlined_call_operand.hbm [shape: bf16[1024,896], index: 5, kind: input, shape index: {}]
  %s6 = inlined_call_operand.hbm [shape: f32[1,896], index: 6, kind: input, shape index: {}]
  %s7 = inlined_call_operand.hbm [shape: bf16[8,896], index: 7, kind: output, shape index: {}]
  %s8 = sld [smem:[#allocation0]]
  $region62: #{_generator_fwd_jit.1} parent=0
    _
  %s10 = ssub.s32 1, %s8
  %s11 = scalar_select 0, %s10, %s8
  $region1: #{_generator_fwd_jit.1} parent=0
    #allocation2 [shape = 'u8[262144]{0}', space=vmem, size = 0x40000, scoped, tag = 'input window, operand 1, single buffered']
    #allocation3 [shape = 's32[1]{0}', space=sflag, size = 0x4, scoped, tag = 'scoped memory for _generator_fwd_jit.1']
    #allocation4 [shape = 's32[1]{0}', space=sflag, size = 0x4, scoped, tag = 'scoped memory for _generator_fwd_jit.1']
    #allocation5 [shape = 'u8[4096]{0}', space=vmem, size = 0x1000, scoped, tag = 'input window, operand 2, single buffered']
    #allocation6 [shape = 's32[1]{0}', space=sflag, size = 0x4, scoped, tag = 'scoped memory for _generator_fwd_jit.1']
    #allocation7 [shape = 'u8[2097152]{0}', space=vmem, size = 0x200000, scoped, tag = 'input window, operand 3, single buffered']
    #allocation8 [shape = 'u8[4096]{0}', space=vmem, size = 0x1000, scoped, tag = 'input window, operand 4, single buffered']
    #allocation9 [shape = 's32[1]{0}', space=sflag, size = 0x4, scoped, tag = 'scoped memory for _generator_fwd_jit.1']
    #allocation10 [shape = 'u8[1835008]{0}', space=vmem, size = 0x1c0000, scoped, tag = 'input window, operand 5, single buffered']
    #allocation11 [shape = 'u8[3584]{0}', space=vmem, size = 0x1000, scoped, tag = 'input window, operand 6, single buffered']
    #allocation12 [shape = 's32[1]{0}', space=sflag, size = 0x4, scoped, tag = 'scoped memory for _generator_fwd_jit.1']
    #allocation13 [shape = 'u8[14336]{0}', space=vmem, size = 0x3800, scoped, tag = 'output window, operand 0, single buffered']
    %12 = vsyncpa [#allocation3], 0
    %13 = vsyncpa [#allocation6], 0
    %14 = vsyncpa [#allocation9], 0
    %15 = vsyncpa [#allocation12], 0
    %16 = vsyncpa [#allocation4], 0
    // Predicated region
    $region2: #{_generator_fwd_jit.1} parent=1 // pred_check
      _
    $region3: #{_generator_fwd_jit.1} parent=1 // pred_check_branch
      %18 = sbr.rel (0) target = $region5
    $region4: #{_generator_fwd_jit.1} parent=1 // pred_region
      _
    $region5: #{_generator_fwd_jit.1} parent=1 // pred_fallthru
      _
    // Predicated region
    $region6: #{_generator_fwd_jit.1} parent=1 // pred_check
      _
    $region7: #{_generator_fwd_jit.1} parent=1 // pred_check_branch
      %20 = sbr.rel (0) target = $region9
    $region8: #{_generator_fwd_jit.1} parent=1 // pred_region
      %22 = vsyncadd [#allocation3], 0
      %s23 = sshll.u32 %s1, 4
      %s24 = int_to_ptr.hbm [resolvable:$true] %s23
      %s25 = sshll.u32 [#allocation2], 4
      %s26 = int_to_ptr.vmem [resolvable:$true] %s25
      %31 = dma.hbm_to_vmem [thread:$0]  %s24, 8192, %s26, [#allocation3], 512, 512, 32
    $region9: #{_generator_fwd_jit.1} parent=1 // pred_fallthru
      _
    // Predicated region
    $region10: #{_generator_fwd_jit.1} parent=1 // pred_check
      _
    $region11: #{_generator_fwd_jit.1} parent=1 // pred_check_branch
      %33 = sbr.rel (0) target = $region13
    $region12: #{_generator_fwd_jit.1} parent=1 // pred_region
      %35 = vsyncadd [#allocation6], 0
      %s37 = sshll.u32 %s2, 4
      %s38 = int_to_ptr.hbm [resolvable:$true] %s37
      %s39 = sshll.u32 [#allocation5], 4
      %s40 = int_to_ptr.vmem [resolvable:$true] %s39
      %42 = dma.hbm_to_vmem [thread:$0]  %s38, 128, %s40, [#allocation6]
    $region13: #{_generator_fwd_jit.1} parent=1 // pred_fallthru
      _
    // Predicated region
    $region14: #{_generator_fwd_jit.1} parent=1 // pred_check
      _
    $region15: #{_generator_fwd_jit.1} parent=1 // pred_check_branch
      %44 = sbr.rel (0) target = $region17
    $region16: #{_generator_fwd_jit.1} parent=1 // pred_region
      %46 = vsyncadd [#allocation6], 0
      %s47 = sshll.u32 %s3, 4
      %s48 = int_to_ptr.hbm [resolvable:$true] %s47
      %s49 = sshll.u32 [#allocation7], 4
      %s50 = int_to_ptr.vmem [resolvable:$true] %s49
      %55 = dma.hbm_to_vmem [thread:$0]  %s48, 65536, %s50, [#allocation6], 512, 512, 32
    $region17: #{_generator_fwd_jit.1} parent=1 // pred_fallthru
      _
    // Predicated region
    $region18: #{_generator_fwd_jit.1} parent=1 // pred_check
      _
    $region19: #{_generator_fwd_jit.1} parent=1 // pred_check_branch
      %57 = sbr.rel (0) target = $region21
    $region20: #{_generator_fwd_jit.1} parent=1 // pred_region
      %59 = vsyncadd [#allocation9], 0
      %s61 = sshll.u32 %s4, 4
      %s62 = int_to_ptr.hbm [resolvable:$true] %s61
      %s63 = sshll.u32 [#allocation8], 4
      %s64 = int_to_ptr.vmem [resolvable:$true] %s63
      %66 = dma.hbm_to_vmem [thread:$0]  %s62, 128, %s64, [#allocation9]
    $region21: #{_generator_fwd_jit.1} parent=1 // pred_fallthru
      _
    // Predicated region
    $region22: #{_generator_fwd_jit.1} parent=1 // pred_check
      _
    $region23: #{_generator_fwd_jit.1} parent=1 // pred_check_branch
      %68 = sbr.rel (0) target = $region25
    $region24: #{_generator_fwd_jit.1} parent=1 // pred_region
      %70 = vsyncadd [#allocation9], 0
      %s71 = sshll.u32 %s5, 4
      %s72 = int_to_ptr.hbm [resolvable:$true] %s71
      %s73 = sshll.u32 [#allocation10], 4
      %s74 = int_to_ptr.vmem [resolvable:$true] %s73
      %79 = dma.hbm_to_vmem [thread:$0]  %s72, 57344, %s74, [#allocation9], 448, 448, 28
    $region25: #{_generator_fwd_jit.1} parent=1 // pred_fallthru
      _
    // Predicated region
    $region26: #{_generator_fwd_jit.1} parent=1 // pred_check
      _
    $region27: #{_generator_fwd_jit.1} parent=1 // pred_check_branch
      %81 = sbr.rel (0) target = $region29
    $region28: #{_generator_fwd_jit.1} parent=1 // pred_region
      %83 = vsyncadd [#allocation12], 0
      %s85 = sshll.u32 %s6, 4
      %s86 = int_to_ptr.hbm [resolvable:$true] %s85
      %s87 = sshll.u32 [#allocation11], 4
      %s88 = int_to_ptr.vmem [resolvable:$true] %s87
      %90 = dma.hbm_to_vmem [thread:$0]  %s86, 112, %s88, [#allocation12]
    $region29: #{_generator_fwd_jit.1} parent=1 // pred_fallthru
      _
    // Predicated region
    $region30: #{_generator_fwd_jit.1} parent=1 // pred_check
      _
    $region31: #{_generator_fwd_jit.1} parent=1 // pred_check_branch
      %92 = sbr.rel (0) target = $region33
    $region32: #{_generator_fwd_jit.1} parent=1 // pred_region
      %94 = dma.done [#allocation3], 8192
    $region33: #{_generator_fwd_jit.1} parent=1 // pred_fallthru
      _
    // Predicated region
    $region34: #{_generator_fwd_jit.1} parent=1 // pred_check
      _
    $region35: #{_generator_fwd_jit.1} parent=1 // pred_check_branch
      %96 = sbr.rel (0) target = $region37
    $region36: #{_generator_fwd_jit.1} parent=1 // pred_region
      %98 = dma.done [#allocation6], 128
    $region37: #{_generator_fwd_jit.1} parent=1 // pred_fallthru
      _
    // Predicated region
    $region38: #{_generator_fwd_jit.1} parent=1 // pred_check
      _
    $region39: #{_generator_fwd_jit.1} parent=1 // pred_check_branch
      %100 = sbr.rel (0) target = $region41
    $region40: #{_generator_fwd_jit.1} parent=1 // pred_region
      %102 = dma.done [#allocation6], 65536
    $region41: #{_generator_fwd_jit.1} parent=1 // pred_fallthru
      _
    // Predicated region
    $region42: #{_generator_fwd_jit.1} parent=1 // pred_check
      _
    $region43: #{_generator_fwd_jit.1} parent=1 // pred_check_branch
      %104 = sbr.rel (0) target = $region45
    $region44: #{_generator_fwd_jit.1} parent=1 // pred_region
      %106 = dma.done [#allocation9], 128
    $region45: #{_generator_fwd_jit.1} parent=1 // pred_fallthru
      _
    // Predicated region
    $region46: #{_generator_fwd_jit.1} parent=1 // pred_check
      _
    $region47: #{_generator_fwd_jit.1} parent=1 // pred_check_branch
      %108 = sbr.rel (0) target = $region49
    $region48: #{_generator_fwd_jit.1} parent=1 // pred_region
      %110 = dma.done [#allocation9], 57344
    $region49: #{_generator_fwd_jit.1} parent=1 // pred_fallthru
      _
    // Predicated region
    $region50: #{_generator_fwd_jit.1} parent=1 // pred_check
      _
    $region51: #{_generator_fwd_jit.1} parent=1 // pred_check_branch
      %112 = sbr.rel (0) target = $region53
    $region52: #{_generator_fwd_jit.1} parent=1 // pred_region
      %114 = dma.done [#allocation12], 112
    $region53: #{_generator_fwd_jit.1} parent=1 // pred_fallthru
      _
    %v115 = vld [vmem:[%s0] sm:$0xf]
    %v116 = vld [vmem:[#allocation2] sm:$0xff]
    %v117 = vld [vmem:[#allocation2 + $0x8] sm:$0xff]
    %v118 = vld [vmem:[#allocation2 + $0x10] sm:$0xff]
    %v119 = vld [vmem:[#allocation2 + $0x18] sm:$0xff]
    %v120 = vld [vmem:[#allocation2 + $0x20] sm:$0xff]
    %v121 = vld [vmem:[#allocation2 + $0x28] sm:$0xff]
    %v122 = vld [vmem:[#allocation2 + $0x30] sm:$0xff]
    %v123 = vld [vmem:[#allocation2 + $0x38] sm:$0xff]
    %v124 = vld [vmem:[#allocation2 + $0x40] sm:$0xff]
    %v125 = vld [vmem:[#allocation2 + $0x48] sm:$0xff]
    %v126 = vld [vmem:[#allocation2 + $0x50] sm:$0xff]
    %v127 = vld [vmem:[#allocation2 + $0x58] sm:$0xff]
    %v128 = vld [vmem:[#allocation2 + $0x60] sm:$0xff]
    %v129 = vld [vmem:[#allocation2 + $0x68] sm:$0xff]
    %v130 = vld [vmem:[#allocation2 + $0x70] sm:$0xff]
    %v131 = vld [vmem:[#allocation2 + $0x78] sm:$0xff]
    %v132 = vld [vmem:[#allocation2 + $0x80] sm:$0xff]
    %v133 = vld [vmem:[#allocation2 + $0x88] sm:$0xff]
    %v134 = vld [vmem:[#allocation2 + $0x90] sm:$0xff]
    %v135 = vld [vmem:[#allocation2 + $0x98] sm:$0xff]
    %v136 = vld [vmem:[#allocation2 + $0xa0] sm:$0xff]
    %v137 = vld [vmem:[#allocation2 + $0xa8] sm:$0xff]
    %v138 = vld [vmem:[#allocation2 + $0xb0] sm:$0xff]
    %v139 = vld [vmem:[#allocation2 + $0xb8] sm:$0xff]
    %v140 = vld [vmem:[#allocation2 + $0xc0] sm:$0xff]
    %v141 = vld [vmem:[#allocation2 + $0xc8] sm:$0xff]
    %v142 = vld [vmem:[#allocation2 + $0xd0] sm:$0xff]
    %v143 = vld [vmem:[#allocation2 + $0xd8] sm:$0xff]
    %v144 = vld [vmem:[#allocation2 + $0xe0] sm:$0xff]
    %v145 = vld [vmem:[#allocation2 + $0xe8] sm:$0xff]
    %v146 = vld [vmem:[#allocation2 + $0xf0] sm:$0xff]
    %v147 = vld [vmem:[#allocation2 + $0xf8] sm:$0xff]
    %v148 = vld [vmem:[#allocation2 + $0x100] sm:$0xff]
    %v149 = vld [vmem:[#allocation2 + $0x108] sm:$0xff]
    %v150 = vld [vmem:[#allocation2 + $0x110] sm:$0xff]
    %v151 = vld [vmem:[#allocation2 + $0x118] sm:$0xff]
    %v152 = vld [vmem:[#allocation2 + $0x120] sm:$0xff]
    %v153 = vld [vmem:[#allocation2 + $0x128] sm:$0xff]
    %v154 = vld [vmem:[#allocation2 + $0x130] sm:$0xff]
    %v155 = vld [vmem:[#allocation2 + $0x138] sm:$0xff]
    %v156 = vld [vmem:[#allocation2 + $0x140] sm:$0xff]
    %v157 = vld [vmem:[#allocation2 + $0x148] sm:$0xff]
    %v158 = vld [vmem:[#allocation2 + $0x150] sm:$0xff]
    %v159 = vld [vmem:[#allocation2 + $0x158] sm:$0xff]
    %v160 = vld [vmem:[#allocation2 + $0x160] sm:$0xff]
    %v161 = vld [vmem:[#allocation2 + $0x168] sm:$0xff]
    %v162 = vld [vmem:[#allocation2 + $0x170] sm:$0xff]
    %v163 = vld [vmem:[#allocation2 + $0x178] sm:$0xff]
    %v164 = vld [vmem:[#allocation2 + $0x180] sm:$0xff]
    %v165 = vld [vmem:[#allocation2 + $0x188] sm:$0xff]
    %v166 = vld [vmem:[#allocation2 + $0x190] sm:$0xff]
    %v167 = vld [vmem:[#allocation2 + $0x198] sm:$0xff]
    %v168 = vld [vmem:[#allocation2 + $0x1a0] sm:$0xff]
    %v169 = vld [vmem:[#allocation2 + $0x1a8] sm:$0xff]
    %v170 = vld [vmem:[#allocation2 + $0x1b0] sm:$0xff]
    %v171 = vld [vmem:[#allocation2 + $0x1b8] sm:$0xff]
    %v172 = vld [vmem:[#allocation2 + $0x1c0] sm:$0xff]
    %v173 = vld [vmem:[#allocation2 + $0x1c8] sm:$0xff]
    %v174 = vld [vmem:[#allocation2 + $0x1d0] sm:$0xff]
    %v175 = vld [vmem:[#allocation2 + $0x1d8] sm:$0xff]
    %v176 = vld [vmem:[#allocation2 + $0x1e0] sm:$0xff]
    %v177 = vld [vmem:[#allocation2 + $0x1e8] sm:$0xff]
    %v178 = vld [vmem:[#allocation2 + $0x1f0] sm:$0xff]
    %v179 = vld [vmem:[#allocation2 + $0x1f8] sm:$0xff]
    %v180 = vld [vmem:[#allocation5] sm:$0xff]
    %v182 = vperm.slane %v180, 0
    %v183 = vperm.slane %v180, 1
    %v184 = vperm.slane %v180, 2
    %v185 = vperm.slane %v180, 3
    %v186 = vperm.slane %v180, 4
    %v187 = vperm.slane %v180, 5
    %v188 = vperm.slane %v180, 6
    %v189 = vperm.slane %v180, 7
    %v262 = vunpack.c.l.b16 %v116
    %v263 = vunpack.c.h.b16 %v116
    %v264 = vunpack.c.l.b16 %v117
    %v265 = vunpack.c.h.b16 %v117
    %v266 = vunpack.c.l.b16 %v118
    %v267 = vunpack.c.h.b16 %v118
    %v268 = vunpack.c.l.b16 %v119
    %v269 = vunpack.c.h.b16 %v119
    %v270 = vunpack.c.l.b16 %v120
    %v271 = vunpack.c.h.b16 %v120
    %v272 = vunpack.c.l.b16 %v121
    %v273 = vunpack.c.h.b16 %v121
    %v274 = vunpack.c.l.b16 %v122
    %v275 = vunpack.c.h.b16 %v122
    %v276 = vunpack.c.l.b16 %v123
    %v277 = vunpack.c.h.b16 %v123
    %v278 = vunpack.c.l.b16 %v124
    %v279 = vunpack.c.h.b16 %v124
    %v280 = vunpack.c.l.b16 %v125
    %v281 = vunpack.c.h.b16 %v125
    %v282 = vunpack.c.l.b16 %v126
    %v283 = vunpack.c.h.b16 %v126
    %v284 = vunpack.c.l.b16 %v127
    %v285 = vunpack.c.h.b16 %v127
    %v286 = vunpack.c.l.b16 %v128
    %v287 = vunpack.c.h.b16 %v128
    %v288 = vunpack.c.l.b16 %v129
    %v289 = vunpack.c.h.b16 %v129
    %v290 = vunpack.c.l.b16 %v130
    %v291 = vunpack.c.h.b16 %v130
    %v292 = vunpack.c.l.b16 %v131
    %v293 = vunpack.c.h.b16 %v131
    %v294 = vunpack.c.l.b16 %v132
    %v295 = vunpack.c.h.b16 %v132
    %v296 = vunpack.c.l.b16 %v133
    %v297 = vunpack.c.h.b16 %v133
    %v298 = vunpack.c.l.b16 %v134
    %v299 = vunpack.c.h.b16 %v134
    %v300 = vunpack.c.l.b16 %v135
    %v301 = vunpack.c.h.b16 %v135
    %v302 = vunpack.c.l.b16 %v136
    %v303 = vunpack.c.h.b16 %v136
    %v304 = vunpack.c.l.b16 %v137
    %v305 = vunpack.c.h.b16 %v137
    %v306 = vunpack.c.l.b16 %v138
    %v307 = vunpack.c.h.b16 %v138
    %v308 = vunpack.c.l.b16 %v139
    %v309 = vunpack.c.h.b16 %v139
    %v310 = vunpack.c.l.b16 %v140
    %v311 = vunpack.c.h.b16 %v140
    %v312 = vunpack.c.l.b16 %v141
    %v313 = vunpack.c.h.b16 %v141
    %v314 = vunpack.c.l.b16 %v142
    %v315 = vunpack.c.h.b16 %v142
    %v316 = vunpack.c.l.b16 %v143
    %v317 = vunpack.c.h.b16 %v143
    %v318 = vunpack.c.l.b16 %v144
    %v319 = vunpack.c.h.b16 %v144
    %v320 = vunpack.c.l.b16 %v145
    %v321 = vunpack.c.h.b16 %v145
    %v322 = vunpack.c.l.b16 %v146
    %v323 = vunpack.c.h.b16 %v146
    %v324 = vunpack.c.l.b16 %v147
    %v325 = vunpack.c.h.b16 %v147
    %v326 = vunpack.c.l.b16 %v148
    %v327 = vunpack.c.h.b16 %v148
    %v328 = vunpack.c.l.b16 %v149
    %v329 = vunpack.c.h.b16 %v149
    %v330 = vunpack.c.l.b16 %v150
    %v331 = vunpack.c.h.b16 %v150
    %v332 = vunpack.c.l.b16 %v151
    %v333 = vunpack.c.h.b16 %v151
    %v334 = vunpack.c.l.b16 %v152
    %v335 = vunpack.c.h.b16 %v152
    %v336 = vunpack.c.l.b16 %v153
    %v337 = vunpack.c.h.b16 %v153
    %v338 = vunpack.c.l.b16 %v154
    %v339 = vunpack.c.h.b16 %v154
    %v340 = vunpack.c.l.b16 %v155
    %v341 = vunpack.c.h.b16 %v155
    %v342 = vunpack.c.l.b16 %v156
    %v343 = vunpack.c.h.b16 %v156
    %v344 = vunpack.c.l.b16 %v157
    %v345 = vunpack.c.h.b16 %v157
    %v346 = vunpack.c.l.b16 %v158
    %v347 = vunpack.c.h.b16 %v158
    %v348 = vunpack.c.l.b16 %v159
    %v349 = vunpack.c.h.b16 %v159
    %v350 = vunpack.c.l.b16 %v160
    %v351 = vunpack.c.h.b16 %v160
    %v352 = vunpack.c.l.b16 %v161
    %v353 = vunpack.c.h.b16 %v161
    %v354 = vunpack.c.l.b16 %v162
    %v355 = vunpack.c.h.b16 %v162
    %v356 = vunpack.c.l.b16 %v163
    %v357 = vunpack.c.h.b16 %v163
    %v358 = vunpack.c.l.b16 %v164
    %v359 = vunpack.c.h.b16 %v164
    %v360 = vunpack.c.l.b16 %v165
    %v361 = vunpack.c.h.b16 %v165
    %v362 = vunpack.c.l.b16 %v166
    %v363 = vunpack.c.h.b16 %v166
    %v364 = vunpack.c.l.b16 %v167
    %v365 = vunpack.c.h.b16 %v167
    %v366 = vunpack.c.l.b16 %v168
    %v367 = vunpack.c.h.b16 %v168
    %v368 = vunpack.c.l.b16 %v169
    %v369 = vunpack.c.h.b16 %v169
    %v370 = vunpack.c.l.b16 %v170
    %v371 = vunpack.c.h.b16 %v170
    %v372 = vunpack.c.l.b16 %v171
    %v373 = vunpack.c.h.b16 %v171
    %v374 = vunpack.c.l.b16 %v172
    %v375 = vunpack.c.h.b16 %v172
    %v376 = vunpack.c.l.b16 %v173
    %v377 = vunpack.c.h.b16 %v173
    %v378 = vunpack.c.l.b16 %v174
    %v379 = vunpack.c.h.b16 %v174
    %v380 = vunpack.c.l.b16 %v175
    %v381 = vunpack.c.h.b16 %v175
    %v382 = vunpack.c.l.b16 %v176
    %v383 = vunpack.c.h.b16 %v176
    %v384 = vunpack.c.l.b16 %v177
    %v385 = vunpack.c.h.b16 %v177
    %v386 = vunpack.c.l.b16 %v178
    %v387 = vunpack.c.h.b16 %v178
    %v388 = vunpack.c.l.b16 %v179
    %v389 = vunpack.c.h.b16 %v179
    %v390 = vpack.c.b16 %v270, %v262
    %v391 = vpack.c.b16 %v271, %v263
    %v392 = vpack.c.b16 %v272, %v264
    %v393 = vpack.c.b16 %v273, %v265
    %v394 = vpack.c.b16 %v274, %v266
    %v395 = vpack.c.b16 %v275, %v267
    %v396 = vpack.c.b16 %v276, %v268
    %v397 = vpack.c.b16 %v277, %v269
    %v398 = vpack.c.b16 %v286, %v278
    %v399 = vpack.c.b16 %v287, %v279
    %v400 = vpack.c.b16 %v288, %v280
    %v401 = vpack.c.b16 %v289, %v281
    %v402 = vpack.c.b16 %v290, %v282
    %v403 = vpack.c.b16 %v291, %v283
    %v404 = vpack.c.b16 %v292, %v284
    %v405 = vpack.c.b16 %v293, %v285
    %v406 = vpack.c.b16 %v302, %v294
    %v407 = vpack.c.b16 %v303, %v295
    %v408 = vpack.c.b16 %v304, %v296
    %v409 = vpack.c.b16 %v305, %v297
    %v410 = vpack.c.b16 %v306, %v298
    %v411 = vpack.c.b16 %v307, %v299
    %v412 = vpack.c.b16 %v308, %v300
    %v413 = vpack.c.b16 %v309, %v301
    %v414 = vpack.c.b16 %v318, %v310
    %v415 = vpack.c.b16 %v319, %v311
    %v416 = vpack.c.b16 %v320, %v312
    %v417 = vpack.c.b16 %v321, %v313
    %v418 = vpack.c.b16 %v322, %v314
    %v419 = vpack.c.b16 %v323, %v315
    %v420 = vpack.c.b16 %v324, %v316
    %v421 = vpack.c.b16 %v325, %v317
    %v422 = vpack.c.b16 %v334, %v326
    %v423 = vpack.c.b16 %v335, %v327
    %v424 = vpack.c.b16 %v336, %v328
    %v425 = vpack.c.b16 %v337, %v329
    %v426 = vpack.c.b16 %v338, %v330
    %v427 = vpack.c.b16 %v339, %v331
    %v428 = vpack.c.b16 %v340, %v332
    %v429 = vpack.c.b16 %v341, %v333
    %v430 = vpack.c.b16 %v350, %v342
    %v431 = vpack.c.b16 %v351, %v343
    %v432 = vpack.c.b16 %v352, %v344
    %v433 = vpack.c.b16 %v353, %v345
    %v434 = vpack.c.b16 %v354, %v346
    %v435 = vpack.c.b16 %v355, %v347
    %v436 = vpack.c.b16 %v356, %v348
    %v437 = vpack.c.b16 %v357, %v349
    %v438 = vpack.c.b16 %v366, %v358
    %v439 = vpack.c.b16 %v367, %v359
    %v440 = vpack.c.b16 %v368, %v360
    %v441 = vpack.c.b16 %v369, %v361
    %v442 = vpack.c.b16 %v370, %v362
    %v443 = vpack.c.b16 %v371, %v363
    %v444 = vpack.c.b16 %v372, %v364
    %v445 = vpack.c.b16 %v373, %v365
    %v446 = vpack.c.b16 %v382, %v374
    %v447 = vpack.c.b16 %v383, %v375
    %v448 = vpack.c.b16 %v384, %v376
    %v449 = vpack.c.b16 %v385, %v377
    %v450 = vpack.c.b16 %v386, %v378
    %v451 = vpack.c.b16 %v387, %v379
    %v452 = vpack.c.b16 %v388, %v380
    %v453 = vpack.c.b16 %v389, %v381
    %518 = vmatpush.bf16.msra.mxu0 %v446
    %519 = vmatpush.bf16.msra.mxu0 %v438
    %520 = vmatpush.bf16.msra.mxu0 %v430
    %521 = vmatpush.bf16.msra.mxu0 %v422
    %522 = vmatpush.bf16.msra.mxu0 %v414
    %523 = vmatpush.bf16.msra.mxu0 %v406
    %524 = vmatpush.bf16.msra.mxu0 %v398
    %525 = vmatpush.bf16.msra.mxu0 %v390
    %526 = vmatmul.bf16.gmra.mxu0 %v115
    %v527 = vpop.f32.mrf.mxu0
    %v528 = vadd.f32 %v182, %v527
    %v529 = vpop.f32.mrf.mxu0
    %530 = vdwg.mxu0
    %531 = vmatpush.bf16.msra.mxu0 %v447
    %532 = vmatpush.bf16.msra.mxu0 %v439
    %533 = vmatpush.bf16.msra.mxu0 %v431
    %534 = vmatpush.bf16.msra.mxu0 %v423
    %535 = vmatpush.bf16.msra.mxu0 %v415
    %536 = vmatpush.bf16.msra.mxu0 %v407
    %537 = vmatpush.bf16.msra.mxu0 %v399
    %538 = vmatpush.bf16.msra.mxu0 %v391
    %539 = vmatmul.bf16.gmra.mxu0 %v115
    %v540 = vpop.f32.mrf.mxu0
    %v541 = vadd.f32 %v183, %v540
    %v542 = vpop.f32.mrf.mxu0
    %543 = vdwg.mxu0
    %544 = vmatpush.bf16.msra.mxu0 %v448
    %545 = vmatpush.bf16.msra.mxu0 %v440
    %546 = vmatpush.bf16.msra.mxu0 %v432
    %547 = vmatpush.bf16.msra.mxu0 %v424
    %548 = vmatpush.bf16.msra.mxu0 %v416
    %549 = vmatpush.bf16.msra.mxu0 %v408
    %550 = vmatpush.bf16.msra.mxu0 %v400
    %551 = vmatpush.bf16.msra.mxu0 %v392
    %552 = vmatmul.bf16.gmra.mxu0 %v115
    %v553 = vpop.f32.mrf.mxu0
    %v554 = vadd.f32 %v184, %v553
    %v555 = vpop.f32.mrf.mxu0
    %556 = vdwg.mxu0
    %557 = vmatpush.bf16.msra.mxu0 %v449
    %558 = vmatpush.bf16.msra.mxu0 %v441
    %559 = vmatpush.bf16.msra.mxu0 %v433
    %560 = vmatpush.bf16.msra.mxu0 %v425
    %561 = vmatpush.bf16.msra.mxu0 %v417
    %562 = vmatpush.bf16.msra.mxu0 %v409
    %563 = vmatpush.bf16.msra.mxu0 %v401
    %564 = vmatpush.bf16.msra.mxu0 %v393
    %565 = vmatmul.bf16.gmra.mxu0 %v115
    %v566 = vpop.f32.mrf.mxu0
    %v567 = vadd.f32 %v185, %v566
    %v568 = vpop.f32.mrf.mxu0
    %569 = vdwg.mxu0
    %570 = vmatpush.bf16.msra.mxu0 %v450
    %571 = vmatpush.bf16.msra.mxu0 %v442
    %572 = vmatpush.bf16.msra.mxu0 %v434
    %573 = vmatpush.bf16.msra.mxu0 %v426
    %574 = vmatpush.bf16.msra.mxu0 %v418
    %575 = vmatpush.bf16.msra.mxu0 %v410
    %576 = vmatpush.bf16.msra.mxu0 %v402
    %577 = vmatpush.bf16.msra.mxu0 %v394
    %578 = vmatmul.bf16.gmra.mxu0 %v115
    %v579 = vpop.f32.mrf.mxu0
    %v580 = vadd.f32 %v186, %v579
    %v581 = vpop.f32.mrf.mxu0
    %582 = vdwg.mxu0
    %583 = vmatpush.bf16.msra.mxu0 %v451
    %584 = vmatpush.bf16.msra.mxu0 %v443
    %585 = vmatpush.bf16.msra.mxu0 %v435
    %586 = vmatpush.bf16.msra.mxu0 %v427
    %587 = vmatpush.bf16.msra.mxu0 %v419
    %588 = vmatpush.bf16.msra.mxu0 %v411
    %589 = vmatpush.bf16.msra.mxu0 %v403
    %590 = vmatpush.bf16.msra.mxu0 %v395
    %591 = vmatmul.bf16.gmra.mxu0 %v115
    %v592 = vpop.f32.mrf.mxu0
    %v593 = vadd.f32 %v187, %v592
    %v594 = vpop.f32.mrf.mxu0
    %595 = vdwg.mxu0
    %596 = vmatpush.bf16.msra.mxu0 %v452
    %597 = vmatpush.bf16.msra.mxu0 %v444
    %598 = vmatpush.bf16.msra.mxu0 %v436
    %599 = vmatpush.bf16.msra.mxu0 %v428
    %600 = vmatpush.bf16.msra.mxu0 %v420
    %601 = vmatpush.bf16.msra.mxu0 %v412
    %602 = vmatpush.bf16.msra.mxu0 %v404
    %603 = vmatpush.bf16.msra.mxu0 %v396
    %604 = vmatmul.bf16.gmra.mxu0 %v115
    %v605 = vpop.f32.mrf.mxu0
    %v606 = vadd.f32 %v188, %v605
    %v607 = vpop.f32.mrf.mxu0
    %608 = vdwg.mxu0
    %609 = vmatpush.bf16.msra.mxu0 %v453
    %610 = vmatpush.bf16.msra.mxu0 %v445
    %611 = vmatpush.bf16.msra.mxu0 %v437
    %612 = vmatpush.bf16.msra.mxu0 %v429
    %613 = vmatpush.bf16.msra.mxu0 %v421
    %614 = vmatpush.bf16.msra.mxu0 %v413
    %615 = vmatpush.bf16.msra.mxu0 %v405
    %616 = vmatpush.bf16.msra.mxu0 %v397
    %617 = vmatmul.bf16.gmra.mxu0 %v115
    %v618 = vpop.f32.mrf.mxu0
    %v619 = vadd.f32 %v189, %v618
    %v620 = vpop.f32.mrf.mxu0
    %621 = vdwg.mxu0
    %v622 = vmax.f32 %v528, 0.0
    %v623 = vmax.f32 %v541, 0.0
    %v624 = vmax.f32 %v554, 0.0
    %v625 = vmax.f32 %v567, 0.0
    %v626 = vmax.f32 %v580, 0.0
    %v627 = vmax.f32 %v593, 0.0
    %v628 = vmax.f32 %v606, 0.0
    %v629 = vmax.f32 %v619, 0.0
    %v630 = vpack.c.bf16 %v622, %v622
    %v631 = vpack.c.bf16 %v623, %v623
    %v632 = vpack.c.bf16 %v624, %v624
    %v633 = vpack.c.bf16 %v625, %v625
    %v634 = vpack.c.bf16 %v626, %v626
    %v635 = vpack.c.bf16 %v627, %v627
    %v636 = vpack.c.bf16 %v628, %v628
    %v637 = vpack.c.bf16 %v629, %v629
    %v638 = vld [vmem:[#allocation7] sm:$0xff]
    %v639 = vld [vmem:[#allocation7 + $0x8] sm:$0xff]
    %v640 = vld [vmem:[#allocation7 + $0x10] sm:$0xff]
    %v641 = vld [vmem:[#allocation7 + $0x18] sm:$0xff]
    %v642 = vld [vmem:[#allocation7 + $0x20] sm:$0xff]
    %v643 = vld [vmem:[#allocation7 + $0x28] sm:$0xff]
    %v644 = vld [vmem:[#allocation7 + $0x30] sm:$0xff]
    %v645 = vld [vmem:[#allocation7 + $0x38] sm:$0xff]
    %v646 = vld [vmem:[#allocation7 + $0x40] sm:$0xff]
    %v647 = vld [vmem:[#allocation7 + $0x48] sm:$0xff]
    %v648 = vld [vmem:[#allocation7 + $0x50] sm:$0xff]
    %v649 = vld [vmem:[#allocation7 + $0x58] sm:$0xff]
    %v650 = vld [vmem:[#allocation7 + $0x60] sm:$0xff]
    %v651 = vld [vmem:[#allocation7 + $0x68] sm:$0xff]
    %v652 = vld [vmem:[#allocation7 + $0x70] sm:$0xff]
    %v653 = vld [vmem:[#allocation7 + $0x78] sm:$0xff]
    %v654 = vld [vmem:[#allocation7 + $0x80] sm:$0xff]
    %v655 = vld [vmem:[#allocation7 + $0x88] sm:$0xff]
    %v656 = vld [vmem:[#allocation7 + $0x90] sm:$0xff]
    %v657 = vld [vmem:[#allocation7 + $0x98] sm:$0xff]
    %v658 = vld [vmem:[#allocation7 + $0xa0] sm:$0xff]
    %v659 = vld [vmem:[#allocation7 + $0xa8] sm:$0xff]
    %v660 = vld [vmem:[#allocation7 + $0xb0] sm:$0xff]
    %v661 = vld [vmem:[#allocation7 + $0xb8] sm:$0xff]
    %v662 = vld [vmem:[#allocation7 + $0xc0] sm:$0xff]
    %v663 = vld [vmem:[#allocation7 + $0xc8] sm:$0xff]
    %v664 = vld [vmem:[#allocation7 + $0xd0] sm:$0xff]
    %v665 = vld [vmem:[#allocation7 + $0xd8] sm:$0xff]
    %v666 = vld [vmem:[#allocation7 + $0xe0] sm:$0xff]
    %v667 = vld [vmem:[#allocation7 + $0xe8] sm:$0xff]
    %v668 = vld [vmem:[#allocation7 + $0xf0] sm:$0xff]
    %v669 = vld [vmem:[#allocation7 + $0xf8] sm:$0xff]
    %v670 = vld [vmem:[#allocation7 + $0x100] sm:$0xff]
    %v671 = vld [vmem:[#allocation7 + $0x108] sm:$0xff]
    %v672 = vld [vmem:[#allocation7 + $0x110] sm:$0xff]
    %v673 = vld [vmem:[#allocation7 + $0x118] sm:$0xff]
    %v674 = vld [vmem:[#allocation7 + $0x120] sm:$0xff]
    %v675 = vld [vmem:[#allocation7 + $0x128] sm:$0xff]
    %v676 = vld [vmem:[#allocation7 + $0x130] sm:$0xff]
    %v677 = vld [vmem:[#allocation7 + $0x138] sm:$0xff]
    %v678 = vld [vmem:[#allocation7 + $0x140] sm:$0xff]
    %v679 = vld [vmem:[#allocation7 + $0x148] sm:$0xff]
    %v680 = vld [vmem:[#allocation7 + $0x150] sm:$0xff]
    %v681 = vld [vmem:[#allocation7 + $0x158] sm:$0xff]
    %v682 = vld [vmem:[#allocation7 + $0x160] sm:$0xff]
    %v683 = vld [vmem:[#allocation7 + $0x168] sm:$0xff]
    %v684 = vld [vmem:[#allocation7 + $0x170] sm:$0xff]
    %v685 = vld [vmem:[#allocation7 + $0x178] sm:$0xff]
    %v686 = vld [vmem:[#allocation7 + $0x180] sm:$0xff]
    %v687 = vld [vmem:[#allocation7 + $0x188] sm:$0xff]
    %v688 = vld [vmem:[#allocation7 + $0x190] sm:$0xff]
    %v689 = vld [vmem:[#allocation7 + $0x198] sm:$0xff]
    %v690 = vld [vmem:[#allocation7 + $0x1a0] sm:$0xff]
    %v691 = vld [vmem:[#allocation7 + $0x1a8] sm:$0xff]
    %v692 = vld [vmem:[#allocation7 + $0x1b0] sm:$0xff]
    %v693 = vld [vmem:[#allocation7 + $0x1b8] sm:$0xff]
    %v694 = vld [vmem:[#allocation7 + $0x1c0] sm:$0xff]
    %v695 = vld [vmem:[#allocation7 + $0x1c8] sm:$0xff]
    %v696 = vld [vmem:[#allocation7 + $0x1d0] sm:$0xff]
    %v697 = vld [vmem:[#allocation7 + $0x1d8] sm:$0xff]
    %v698 = vld [vmem:[#allocation7 + $0x1e0] sm:$0xff]
    %v699 = vld [vmem:[#allocation7 + $0x1e8] sm:$0xff]
    %v700 = vld [vmem:[#allocation7 + $0x1f0] sm:$0xff]
    %v701 = vld [vmem:[#allocation7 + $0x1f8] sm:$0xff]
    %v702 = vld [vmem:[#allocation7 + $0x200] sm:$0xff]
    %v703 = vld [vmem:[#allocation7 + $0x208] sm:$0xff]
    %v704 = vld [vmem:[#allocation7 + $0x210] sm:$0xff]
    %v705 = vld [vmem:[#allocation7 + $0x218] sm:$0xff]
    %v706 = vld [vmem:[#allocation7 + $0x220] sm:$0xff]
    %v707 = vld [vmem:[#allocation7 + $0x228] sm:$0xff]
    %v708 = vld [vmem:[#allocation7 + $0x230] sm:$0xff]
    %v709 = vld [vmem:[#allocation7 + $0x238] sm:$0xff]
    %v710 = vld [vmem:[#allocation7 + $0x240] sm:$0xff]
    %v711 = vld [vmem:[#allocation7 + $0x248] sm:$0xff]
    %v712 = vld [vmem:[#allocation7 + $0x250] sm:$0xff]
    %v713 = vld [vmem:[#allocation7 + $0x258] sm:$0xff]
    %v714 = vld [vmem:[#allocation7 + $0x260] sm:$0xff]
    %v715 = vld [vmem:[#allocation7 + $0x268] sm:$0xff]
    %v716 = vld [vmem:[#allocation7 + $0x270] sm:$0xff]
    %v717 = vld [vmem:[#allocation7 + $0x278] sm:$0xff]
    %v718 = vld [vmem:[#allocation7 + $0x280] sm:$0xff]
    %v719 = vld [vmem:[#allocation7 + $0x288] sm:$0xff]
    %v720 = vld [vmem:[#allocation7 + $0x290] sm:$0xff]
    %v721 = vld [vmem:[#allocation7 + $0x298] sm:$0xff]
    %v722 = vld [vmem:[#allocation7 + $0x2a0] sm:$0xff]
    %v723 = vld [vmem:[#allocation7 + $0x2a8] sm:$0xff]
    %v724 = vld [vmem:[#allocation7 + $0x2b0] sm:$0xff]
    %v725 = vld [vmem:[#allocation7 + $0x2b8] sm:$0xff]
    %v726 = vld [vmem:[#allocation7 + $0x2c0] sm:$0xff]
    %v727 = vld [vmem:[#allocation7 + $0x2c8] sm:$0xff]
    %v728 = vld [vmem:[#allocation7 + $0x2d0] sm:$0xff]
    %v729 = vld [vmem:[#allocation7 + $0x2d8] sm:$0xff]
    %v730 = vld [vmem:[#allocation7 + $0x2e0] sm:$0xff]
    %v731 = vld [vmem:[#allocation7 + $0x2e8] sm:$0xff]
    %v732 = vld [vmem:[#allocation7 + $0x2f0] sm:$0xff]
    %v733 = vld [vmem:[#allocation7 + $0x2f8] sm:$0xff]
    %v734 = vld [vmem:[#allocation7 + $0x300] sm:$0xff]
    %v735 = vld [vmem:[#allocation7 + $0x308] sm:$0xff]
    %v736 = vld [vmem:[#allocation7 + $0x310] sm:$0xff]
    %v737 = vld [vmem:[#allocation7 + $0x318] sm:$0xff]
    %v738 = vld [vmem:[#allocation7 + $0x320] sm:$0xff]
    %v739 = vld [vmem:[#allocation7 + $0x328] sm:$0xff]
    %v740 = vld [vmem:[#allocation7 + $0x330] sm:$0xff]
    %v741 = vld [vmem:[#allocation7 + $0x338] sm:$0xff]
    %v742 = vld [vmem:[#allocation7 + $0x340] sm:$0xff]
    %v743 = vld [vmem:[#allocation7 + $0x348] sm:$0xff]
    %v744 = vld [vmem:[#allocation7 + $0x350] sm:$0xff]
    %v745 = vld [vmem:[#allocation7 + $0x358] sm:$0xff]
    %v746 = vld [vmem:[#allocation7 + $0x360] sm:$0xff]
    %v747 = vld [vmem:[#allocation7 + $0x368] sm:$0xff]
    %v748 = vld [vmem:[#allocation7 + $0x370] sm:$0xff]
    %v749 = vld [vmem:[#allocation7 + $0x378] sm:$0xff]
    %v750 = vld [vmem:[#allocation7 + $0x380] sm:$0xff]
    %v751 = vld [vmem:[#allocation7 + $0x388] sm:$0xff]
    %v752 = vld [vmem:[#allocation7 + $0x390] sm:$0xff]
    %v753 = vld [vmem:[#allocation7 + $0x398] sm:$0xff]
    %v754 = vld [vmem:[#allocation7 + $0x3a0] sm:$0xff]
    %v755 = vld [vmem:[#allocation7 + $0x3a8] sm:$0xff]
    %v756 = vld [vmem:[#allocation7 + $0x3b0] sm:$0xff]
    %v757 = vld [vmem:[#allocation7 + $0x3b8] sm:$0xff]
    %v758 = vld [vmem:[#allocation7 + $0x3c0] sm:$0xff]
    %v759 = vld [vmem:[#allocation7 + $0x3c8] sm:$0xff]
    %v760 = vld [vmem:[#allocation7 + $0x3d0] sm:$0xff]
    %v761 = vld [vmem:[#allocation7 + $0x3d8] sm:$0xff]
    %v762 = vld [vmem:[#allocation7 + $0x3e0] sm:$0xff]
    %v763 = vld [vmem:[#allocation7 + $0x3e8] sm:$0xff]
    %v764 = vld [vmem:[#allocation7 + $0x3f0] sm:$0xff]
    %v765 = vld [vmem:[#allocation7 + $0x3f8] sm:$0xff]
    %v766 = vld [vmem:[#allocation7 + $0x400] sm:$0xff]
    %v767 = vld [vmem:[#allocation7 + $0x408] sm:$0xff]
    %v768 = vld [vmem:[#allocation7 + $0x410] sm:$0xff]
    %v769 = vld [vmem:[#allocation7 + $0x418] sm:$0xff]
    %v770 = vld [vmem:[#allocation7 + $0x420] sm:$0xff]
    %v771 = vld [vmem:[#allocation7 + $0x428] sm:$0xff]
    %v772 = vld [vmem:[#allocation7 + $0x430] sm:$0xff]
    %v773 = vld [vmem:[#allocation7 + $0x438] sm:$0xff]
    %v774 = vld [vmem:[#allocation7 + $0x440] sm:$0xff]
    %v775 = vld [vmem:[#allocation7 + $0x448] sm:$0xff]
    %v776 = vld [vmem:[#allocation7 + $0x450] sm:$0xff]
    %v777 = vld [vmem:[#allocation7 + $0x458] sm:$0xff]
    %v778 = vld [vmem:[#allocation7 + $0x460] sm:$0xff]
    %v779 = vld [vmem:[#allocation7 + $0x468] sm:$0xff]
    %v780 = vld [vmem:[#allocation7 + $0x470] sm:$0xff]
    %v781 = vld [vmem:[#allocation7 + $0x478] sm:$0xff]
    %v782 = vld [vmem:[#allocation7 + $0x480] sm:$0xff]
    %v783 = vld [vmem:[#allocation7 + $0x488] sm:$0xff]
    %v784 = vld [vmem:[#allocation7 + $0x490] sm:$0xff]
    %v785 = vld [vmem:[#allocation7 + $0x498] sm:$0xff]
    %v786 = vld [vmem:[#allocation7 + $0x4a0] sm:$0xff]
    %v787 = vld [vmem:[#allocation7 + $0x4a8] sm:$0xff]
    %v788 = vld [vmem:[#allocation7 + $0x4b0] sm:$0xff]
    %v789 = vld [vmem:[#allocation7 + $0x4b8] sm:$0xff]
    %v790 = vld [vmem:[#allocation7 + $0x4c0] sm:$0xff]
    %v791 = vld [vmem:[#allocation7 + $0x4c8] sm:$0xff]
    %v792 = vld [vmem:[#allocation7 + $0x4d0] sm:$0xff]
    %v793 = vld [vmem:[#allocation7 + $0x4d8] sm:$0xff]
    %v794 = vld [vmem:[#allocation7 + $0x4e0] sm:$0xff]
    %v795 = vld [vmem:[#allocation7 + $0x4e8] sm:$0xff]
    %v796 = vld [vmem:[#allocation7 + $0x4f0] sm:$0xff]
    %v797 = vld [vmem:[#allocation7 + $0x4f8] sm:$0xff]
    %v798 = vld [vmem:[#allocation7 + $0x500] sm:$0xff]
    %v799 = vld [vmem:[#allocation7 + $0x508] sm:$0xff]
    %v800 = vld [vmem:[#allocation7 + $0x510] sm:$0xff]
    %v801 = vld [vmem:[#allocation7 + $0x518] sm:$0xff]
    %v802 = vld [vmem:[#allocation7 + $0x520] sm:$0xff]
    %v803 = vld [vmem:[#allocation7 + $0x528] sm:$0xff]
    %v804 = vld [vmem:[#allocation7 + $0x530] sm:$0xff]
    %v805 = vld [vmem:[#allocation7 + $0x538] sm:$0xff]
    %v806 = vld [vmem:[#allocation7 + $0x540] sm:$0xff]
    %v807 = vld [vmem:[#allocation7 + $0x548] sm:$0xff]
    %v808 = vld [vmem:[#allocation7 + $0x550] sm:$0xff]
    %v809 = vld [vmem:[#allocation7 + $0x558] sm:$0xff]
    %v810 = vld [vmem:[#allocation7 + $0x560] sm:$0xff]
    %v811 = vld [vmem:[#allocation7 + $0x568] sm:$0xff]
    %v812 = vld [vmem:[#allocation7 + $0x570] sm:$0xff]
    %v813 = vld [vmem:[#allocation7 + $0x578] sm:$0xff]
    %v814 = vld [vmem:[#allocation7 + $0x580] sm:$0xff]
    %v815 = vld [vmem:[#allocation7 + $0x588] sm:$0xff]
    %v816 = vld [vmem:[#allocation7 + $0x590] sm:$0xff]
    %v817 = vld [vmem:[#allocation7 + $0x598] sm:$0xff]
    %v818 = vld [vmem:[#allocation7 + $0x5a0] sm:$0xff]
    %v819 = vld [vmem:[#allocation7 + $0x5a8] sm:$0xff]
    %v820 = vld [vmem:[#allocation7 + $0x5b0] sm:$0xff]
    %v821 = vld [vmem:[#allocation7 + $0x5b8] sm:$0xff]
    %v822 = vld [vmem:[#allocation7 + $0x5c0] sm:$0xff]
    %v823 = vld [vmem:[#allocation7 + $0x5c8] sm:$0xff]
    %v824 = vld [vmem:[#allocation7 + $0x5d0] sm:$0xff]
    %v825 = vld [vmem:[#allocation7 + $0x5d8] sm:$0xff]
    %v826 = vld [vmem:[#allocation7 + $0x5e0] sm:$0xff]
    %v827 = vld [vmem:[#allocation7 + $0x5e8] sm:$0xff]
    %v828 = vld [vmem:[#allocation7 + $0x5f0] sm:$0xff]
    %v829 = vld [vmem:[#allocation7 + $0x5f8] sm:$0xff]
    %v830 = vld [vmem:[#allocation7 + $0x600] sm:$0xff]
    %v831 = vld [vmem:[#allocation7 + $0x608] sm:$0xff]
    %v832 = vld [vmem:[#allocation7 + $0x610] sm:$0xff]
    %v833 = vld [vmem:[#allocation7 + $0x618] sm:$0xff]
    %v834 = vld [vmem:[#allocation7 + $0x620] sm:$0xff]
    %v835 = vld [vmem:[#allocation7 + $0x628] sm:$0xff]
    %v836 = vld [vmem:[#allocation7 + $0x630] sm:$0xff]
    %v837 = vld [vmem:[#allocation7 + $0x638] sm:$0xff]
    %v838 = vld [vmem:[#allocation7 + $0x640] sm:$0xff]
    %v839 = vld [vmem:[#allocation7 + $0x648] sm:$0xff]
    %v840 = vld [vmem:[#allocation7 + $0x650] sm:$0xff]
    %v841 = vld [vmem:[#allocation7 + $0x658] sm:$0xff]
    %v842 = vld [vmem:[#allocation7 + $0x660] sm:$0xff]
    %v843 = vld [vmem:[#allocation7 + $0x668] sm:$0xff]
    %v844 = vld [vmem:[#allocation7 + $0x670] sm:$0xff]
    %v845 = vld [vmem:[#allocation7 + $0x678] sm:$0xff]
    %v846 = vld [vmem:[#allocation7 + $0x680] sm:$0xff]
    %v847 = vld [vmem:[#allocation7 + $0x688] sm:$0xff]
    %v848 = vld [vmem:[#allocation7 + $0x690] sm:$0xff]
    %v849 = vld [vmem:[#allocation7 + $0x698] sm:$0xff]
    %v850 = vld [vmem:[#allocation7 + $0x6a0] sm:$0xff]
    %v851 = vld [vmem:[#allocation7 + $0x6a8] sm:$0xff]
    %v852 = vld [vmem:[#allocation7 + $0x6b0] sm:$0xff]
    %v853 = vld [vmem:[#allocation7 + $0x6b8] sm:$0xff]
    %v854 = vld [vmem:[#allocation7 + $0x6c0] sm:$0xff]
    %v855 = vld [vmem:[#allocation7 + $0x6c8] sm:$0xff]
    %v856 = vld [vmem:[#allocation7 + $0x6d0] sm:$0xff]
    %v857 = vld [vmem:[#allocation7 + $0x6d8] sm:$0xff]
    %v858 = vld [vmem:[#allocation7 + $0x6e0] sm:$0xff]
    %v859 = vld [vmem:[#allocation7 + $0x6e8] sm:$0xff]
    %v860 = vld [vmem:[#allocation7 + $0x6f0] sm:$0xff]
    %v861 = vld [vmem:[#allocation7 + $0x6f8] sm:$0xff]
    %v862 = vld [vmem:[#allocation7 + $0x700] sm:$0xff]
    %v863 = vld [vmem:[#allocation7 + $0x708] sm:$0xff]
    %v864 = vld [vmem:[#allocation7 + $0x710] sm:$0xff]
    %v865 = vld [vmem:[#allocation7 + $0x718] sm:$0xff]
    %v866 = vld [vmem:[#allocation7 + $0x720] sm:$0xff]
    %v867 = vld [vmem:[#allocation7 + $0x728] sm:$0xff]
    %v868 = vld [vmem:[#allocation7 + $0x730] sm:$0xff]
    %v869 = vld [vmem:[#allocation7 + $0x738] sm:$0xff]
    %v870 = vld [vmem:[#allocation7 + $0x740] sm:$0xff]
    %v871 = vld [vmem:[#allocation7 + $0x748] sm:$0xff]
    %v872 = vld [vmem:[#allocation7 + $0x750] sm:$0xff]
    %v873 = vld [vmem:[#allocation7 + $0x758] sm:$0xff]
    %v874 = vld [vmem:[#allocation7 + $0x760] sm:$0xff]
    %v875 = vld [vmem:[#allocation7 + $0x768] sm:$0xff]
    %v876 = vld [vmem:[#allocation7 + $0x770] sm:$0xff]
    %v877 = vld [vmem:[#allocation7 + $0x778] sm:$0xff]
    %v878 = vld [vmem:[#allocation7 + $0x780] sm:$0xff]
    %v879 = vld [vmem:[#allocation7 + $0x788] sm:$0xff]
    %v880 = vld [vmem:[#allocation7 + $0x790] sm:$0xff]
    %v881 = vld [vmem:[#allocation7 + $0x798] sm:$0xff]
    %v882 = vld [vmem:[#allocation7 + $0x7a0] sm:$0xff]
    %v883 = vld [vmem:[#allocation7 + $0x7a8] sm:$0xff]
    %v884 = vld [vmem:[#allocation7 + $0x7b0] sm:$0xff]
    %v885 = vld [vmem:[#allocation7 + $0x7b8] sm:$0xff]
    %v886 = vld [vmem:[#allocation7 + $0x7c0] sm:$0xff]
    %v887 = vld [vmem:[#allocation7 + $0x7c8] sm:$0xff]
    %v888 = vld [vmem:[#allocation7 + $0x7d0] sm:$0xff]
    %v889 = vld [vmem:[#allocation7 + $0x7d8] sm:$0xff]
    %v890 = vld [vmem:[#allocation7 + $0x7e0] sm:$0xff]
    %v891 = vld [vmem:[#allocation7 + $0x7e8] sm:$0xff]
    %v892 = vld [vmem:[#allocation7 + $0x7f0] sm:$0xff]
    %v893 = vld [vmem:[#allocation7 + $0x7f8] sm:$0xff]
    %v894 = vld [vmem:[#allocation7 + $0x800] sm:$0xff]
    %v895 = vld [vmem:[#allocation7 + $0x808] sm:$0xff]
    %v896 = vld [vmem:[#allocation7 + $0x810] sm:$0xff]
    %v897 = vld [vmem:[#allocation7 + $0x818] sm:$0xff]
    %v898 = vld [vmem:[#allocation7 + $0x820] sm:$0xff]
    %v899 = vld [vmem:[#allocation7 + $0x828] sm:$0xff]
    %v900 = vld [vmem:[#allocation7 + $0x830] sm:$0xff]
    %v901 = vld [vmem:[#allocation7 + $0x838] sm:$0xff]
    %v902 = vld [vmem:[#allocation7 + $0x840] sm:$0xff]
    %v903 = vld [vmem:[#allocation7 + $0x848] sm:$0xff]
    %v904 = vld [vmem:[#allocation7 + $0x850] sm:$0xff]
    %v905 = vld [vmem:[#allocation7 + $0x858] sm:$0xff]
    %v906 = vld [vmem:[#allocation7 + $0x860] sm:$0xff]
    %v907 = vld [vmem:[#allocation7 + $0x868] sm:$0xff]
    %v908 = vld [vmem:[#allocation7 + $0x870] sm:$0xff]
    %v909 = vld [vmem:[#allocation7 + $0x878] sm:$0xff]
    %v910 = vld [vmem:[#allocation7 + $0x880] sm:$0xff]
    %v911 = vld [vmem:[#allocation7 + $0x888] sm:$0xff]
    %v912 = vld [vmem:[#allocation7 + $0x890] sm:$0xff]
    %v913 = vld [vmem:[#allocation7 + $0x898] sm:$0xff]
    %v914 = vld [vmem:[#allocation7 + $0x8a0] sm:$0xff]
    %v915 = vld [vmem:[#allocation7 + $0x8a8] sm:$0xff]
    %v916 = vld [vmem:[#allocation7 + $0x8b0] sm:$0xff]
    %v917 = vld [vmem:[#allocation7 + $0x8b8] sm:$0xff]
    %v918 = vld [vmem:[#allocation7 + $0x8c0] sm:$0xff]
    %v919 = vld [vmem:[#allocation7 + $0x8c8] sm:$0xff]
    %v920 = vld [vmem:[#allocation7 + $0x8d0] sm:$0xff]
    %v921 = vld [vmem:[#allocation7 + $0x8d8] sm:$0xff]
    %v922 = vld [vmem:[#allocation7 + $0x8e0] sm:$0xff]
    %v923 = vld [vmem:[#allocation7 + $0x8e8] sm:$0xff]
    %v924 = vld [vmem:[#allocation7 + $0x8f0] sm:$0xff]
    %v925 = vld [vmem:[#allocation7 + $0x8f8] sm:$0xff]
    %v926 = vld [vmem:[#allocation7 + $0x900] sm:$0xff]
    %v927 = vld [vmem:[#allocation7 + $0x908] sm:$0xff]
    %v928 = vld [vmem:[#allocation7 + $0x910] sm:$0xff]
    %v929 = vld [vmem:[#allocation7 + $0x918] sm:$0xff]
    %v930 = vld [vmem:[#allocation7 + $0x920] sm:$0xff]
    %v931 = vld [vmem:[#allocation7 + $0x928] sm:$0xff]
    %v932 = vld [vmem:[#allocation7 + $0x930] sm:$0xff]
    %v933 = vld [vmem:[#allocation7 + $0x938] sm:$0xff]
    %v934 = vld [vmem:[#allocation7 + $0x940] sm:$0xff]
    %v935 = vld [vmem:[#allocation7 + $0x948] sm:$0xff]
    %v936 = vld [vmem:[#allocation7 + $0x950] sm:$0xff]
    %v937 = vld [vmem:[#allocation7 + $0x958] sm:$0xff]
    %v938 = vld [vmem:[#allocation7 + $0x960] sm:$0xff]
    %v939 = vld [vmem:[#allocation7 + $0x968] sm:$0xff]
    %v940 = vld [vmem:[#allocation7 + $0x970] sm:$0xff]
    %v941 = vld [vmem:[#allocation7 + $0x978] sm:$0xff]
    %v942 = vld [vmem:[#allocation7 + $0x980] sm:$0xff]
    %v943 = vld [vmem:[#allocation7 + $0x988] sm:$0xff]
    %v944 = vld [vmem:[#allocation7 + $0x990] sm:$0xff]
    %v945 = vld [vmem:[#allocation7 + $0x998] sm:$0xff]
    %v946 = vld [vmem:[#allocation7 + $0x9a0] sm:$0xff]
    %v947 = vld [vmem:[#allocation7 + $0x9a8] sm:$0xff]
    %v948 = vld [vmem:[#allocation7 + $0x9b0] sm:$0xff]
    %v949 = vld [vmem:[#allocation7 + $0x9b8] sm:$0xff]
    %v950 = vld [vmem:[#allocation7 + $0x9c0] sm:$0xff]
    %v951 = vld [vmem:[#allocation7 + $0x9c8] sm:$0xff]
    %v952 = vld [vmem:[#allocation7 + $0x9d0] sm:$0xff]
    %v953 = vld [vmem:[#allocation7 + $0x9d8] sm:$0xff]
    %v954 = vld [vmem:[#allocation7 + $0x9e0] sm:$0xff]
    %v955 = vld [vmem:[#allocation7 + $0x9e8] sm:$0xff]
    %v956 = vld [vmem:[#allocation7 + $0x9f0] sm:$0xff]
    %v957 = vld [vmem:[#allocation7 + $0x9f8] sm:$0xff]
    %v958 = vld [vmem:[#allocation7 + $0xa00] sm:$0xff]
    %v959 = vld [vmem:[#allocation7 + $0xa08] sm:$0xff]
    %v960 = vld [vmem:[#allocation7 + $0xa10] sm:$0xff]
    %v961 = vld [vmem:[#allocation7 + $0xa18] sm:$0xff]
    %v962 = vld [vmem:[#allocation7 + $0xa20] sm:$0xff]
    %v963 = vld [vmem:[#allocation7 + $0xa28] sm:$0xff]
    %v964 = vld [vmem:[#allocation7 + $0xa30] sm:$0xff]
    %v965 = vld [vmem:[#allocation7 + $0xa38] sm:$0xff]
    %v966 = vld [vmem:[#allocation7 + $0xa40] sm:$0xff]
    %v967 = vld [vmem:[#allocation7 + $0xa48] sm:$0xff]
    %v968 = vld [vmem:[#allocation7 + $0xa50] sm:$0xff]
    %v969 = vld [vmem:[#allocation7 + $0xa58] sm:$0xff]
    %v970 = vld [vmem:[#allocation7 + $0xa60] sm:$0xff]
    %v971 = vld [vmem:[#allocation7 + $0xa68] sm:$0xff]
    %v972 = vld [vmem:[#allocation7 + $0xa70] sm:$0xff]
    %v973 = vld [vmem:[#allocation7 + $0xa78] sm:$0xff]
    %v974 = vld [vmem:[#allocation7 + $0xa80] sm:$0xff]
    %v975 = vld [vmem:[#allocation7 + $0xa88] sm:$0xff]
    %v976 = vld [vmem:[#allocation7 + $0xa90] sm:$0xff]
    %v977 = vld [vmem:[#allocation7 + $0xa98] sm:$0xff]
    %v978 = vld [vmem:[#allocation7 + $0xaa0] sm:$0xff]
    %v979 = vld [vmem:[#allocation7 + $0xaa8] sm:$0xff]
    %v980 = vld [vmem:[#allocation7 + $0xab0] sm:$0xff]
    %v981 = vld [vmem:[#allocation7 + $0xab8] sm:$0xff]
    %v982 = vld [vmem:[#allocation7 + $0xac0] sm:$0xff]
    %v983 = vld [vmem:[#allocation7 + $0xac8] sm:$0xff]
    %v984 = vld [vmem:[#allocation7 + $0xad0] sm:$0xff]
    %v985 = vld [vmem:[#allocation7 + $0xad8] sm:$0xff]
    %v986 = vld [vmem:[#allocation7 + $0xae0] sm:$0xff]
    %v987 = vld [vmem:[#allocation7 + $0xae8] sm:$0xff]
    %v988 = vld [vmem:[#allocation7 + $0xaf0] sm:$0xff]
    %v989 = vld [vmem:[#allocation7 + $0xaf8] sm:$0xff]
    %v990 = vld [vmem:[#allocation7 + $0xb00] sm:$0xff]
    %v991 = vld [vmem:[#allocation7 + $0xb08] sm:$0xff]
    %v992 = vld [vmem:[#allocation7 + $0xb10] sm:$0xff]
    %v993 = vld [vmem:[#allocation7 + $0xb18] sm:$0xff]
    %v994 = vld [vmem:[#allocation7 + $0xb20] sm:$0xff]
    %v995 = vld [vmem:[#allocation7 + $0xb28] sm:$0xff]
    %v996 = vld [vmem:[#allocation7 + $0xb30] sm:$0xff]
    %v997 = vld [vmem:[#allocation7 + $0xb38] sm:$0xff]
    %v998 = vld [vmem:[#allocation7 + $0xb40] sm:$0xff]
    %v999 = vld [vmem:[#allocation7 + $0xb48] sm:$0xff]
    %v1000 = vld [vmem:[#allocation7 + $0xb50] sm:$0xff]
    %v1001 = vld [vmem:[#allocation7 + $0xb58] sm:$0xff]
    %v1002 = vld [vmem:[#allocation7 + $0xb60] sm:$0xff]
    %v1003 = vld [vmem:[#allocation7 + $0xb68] sm:$0xff]
    %v1004 = vld [vmem:[#allocation7 + $0xb70] sm:$0xff]
    %v1005 = vld [vmem:[#allocation7 + $0xb78] sm:$0xff]
    %v1006 = vld [vmem:[#allocation7 + $0xb80] sm:$0xff]
    %v1007 = vld [vmem:[#allocation7 + $0xb88] sm:$0xff]
    %v1008 = vld [vmem:[#allocation7 + $0xb90] sm:$0xff]
    %v1009 = vld [vmem:[#allocation7 + $0xb98] sm:$0xff]
    %v1010 = vld [vmem:[#allocation7 + $0xba0] sm:$0xff]
    %v1011 = vld [vmem:[#allocation7 + $0xba8] sm:$0xff]
    %v1012 = vld [vmem:[#allocation7 + $0xbb0] sm:$0xff]
    %v1013 = vld [vmem:[#allocation7 + $0xbb8] sm:$0xff]
    %v1014 = vld [vmem:[#allocation7 + $0xbc0] sm:$0xff]
    %v1015 = vld [vmem:[#allocation7 + $0xbc8] sm:$0xff]
    %v1016 = vld [vmem:[#allocation7 + $0xbd0] sm:$0xff]
    %v1017 = vld [vmem:[#allocation7 + $0xbd8] sm:$0xff]
    %v1018 = vld [vmem:[#allocation7 + $0xbe0] sm:$0xff]
    %v1019 = vld [vmem:[#allocation7 + $0xbe8] sm:$0xff]
    %v1020 = vld [vmem:[#allocation7 + $0xbf0] sm:$0xff]
    %v1021 = vld [vmem:[#allocation7 + $0xbf8] sm:$0xff]
    %v1022 = vld [vmem:[#allocation7 + $0xc00] sm:$0xff]
    %v1023 = vld [vmem:[#allocation7 + $0xc08] sm:$0xff]
    %v1024 = vld [vmem:[#allocation7 + $0xc10] sm:$0xff]
    %v1025 = vld [vmem:[#allocation7 + $0xc18] sm:$0xff]
    %v1026 = vld [vmem:[#allocation7 + $0xc20] sm:$0xff]
    %v1027 = vld [vmem:[#allocation7 + $0xc28] sm:$0xff]
    %v1028 = vld [vmem:[#allocation7 + $0xc30] sm:$0xff]
    %v1029 = vld [vmem:[#allocation7 + $0xc38] sm:$0xff]
    %v1030 = vld [vmem:[#allocation7 + $0xc40] sm:$0xff]
    %v1031 = vld [vmem:[#allocation7 + $0xc48] sm:$0xff]
    %v1032 = vld [vmem:[#allocation7 + $0xc50] sm:$0xff]
    %v1033 = vld [vmem:[#allocation7 + $0xc58] sm:$0xff]
    %v1034 = vld [vmem:[#allocation7 + $0xc60] sm:$0xff]
    %v1035 = vld [vmem:[#allocation7 + $0xc68] sm:$0xff]
    %v1036 = vld [vmem:[#allocation7 + $0xc70] sm:$0xff]
    %v1037 = vld [vmem:[#allocation7 + $0xc78] sm:$0xff]
    %v1038 = vld [vmem:[#allocation7 + $0xc80] sm:$0xff]
    %v1039 = vld [vmem:[#allocation7 + $0xc88] sm:$0xff]
    %v1040 = vld [vmem:[#allocation7 + $0xc90] sm:$0xff]
    %v1041 = vld [vmem:[#allocation7 + $0xc98] sm:$0xff]
    %v1042 = vld [vmem:[#allocation7 + $0xca0] sm:$0xff]
    %v1043 = vld [vmem:[#allocation7 + $0xca8] sm:$0xff]
    %v1044 = vld [vmem:[#allocation7 + $0xcb0] sm:$0xff]
    %v1045 = vld [vmem:[#allocation7 + $0xcb8] sm:$0xff]
    %v1046 = vld [vmem:[#allocation7 + $0xcc0] sm:$0xff]
    %v1047 = vld [vmem:[#allocation7 + $0xcc8] sm:$0xff]
    %v1048 = vld [vmem:[#allocation7 + $0xcd0] sm:$0xff]
    %v1049 = vld [vmem:[#allocation7 + $0xcd8] sm:$0xff]
    %v1050 = vld [vmem:[#allocation7 + $0xce0] sm:$0xff]
    %v1051 = vld [vmem:[#allocation7 + $0xce8] sm:$0xff]
    %v1052 = vld [vmem:[#allocation7 + $0xcf0] sm:$0xff]
    %v1053 = vld [vmem:[#allocation7 + $0xcf8] sm:$0xff]
    %v1054 = vld [vmem:[#allocation7 + $0xd00] sm:$0xff]
    %v1055 = vld [vmem:[#allocation7 + $0xd08] sm:$0xff]
    %v1056 = vld [vmem:[#allocation7 + $0xd10] sm:$0xff]
    %v1057 = vld [vmem:[#allocation7 + $0xd18] sm:$0xff]
    %v1058 = vld [vmem:[#allocation7 + $0xd20] sm:$0xff]
    %v1059 = vld [vmem:[#allocation7 + $0xd28] sm:$0xff]
    %v1060 = vld [vmem:[#allocation7 + $0xd30] sm:$0xff]
    %v1061 = vld [vmem:[#allocation7 + $0xd38] sm:$0xff]
    %v1062 = vld [vmem:[#allocation7 + $0xd40] sm:$0xff]
    %v1063 = vld [vmem:[#allocation7 + $0xd48] sm:$0xff]
    %v1064 = vld [vmem:[#allocation7 + $0xd50] sm:$0xff]
    %v1065 = vld [vmem:[#allocation7 + $0xd58] sm:$0xff]
    %v1066 = vld [vmem:[#allocation7 + $0xd60] sm:$0xff]
    %v1067 = vld [vmem:[#allocation7 + $0xd68] sm:$0xff]
    %v1068 = vld [vmem:[#allocation7 + $0xd70] sm:$0xff]
    %v1069 = vld [vmem:[#allocation7 + $0xd78] sm:$0xff]
    %v1070 = vld [vmem:[#allocation7 + $0xd80] sm:$0xff]
    %v1071 = vld [vmem:[#allocation7 + $0xd88] sm:$0xff]
    %v1072 = vld [vmem:[#allocation7 + $0xd90] sm:$0xff]
    %v1073 = vld [vmem:[#allocation7 + $0xd98] sm:$0xff]
    %v1074 = vld [vmem:[#allocation7 + $0xda0] sm:$0xff]
    %v1075 = vld [vmem:[#allocation7 + $0xda8] sm:$0xff]
    %v1076 = vld [vmem:[#allocation7 + $0xdb0] sm:$0xff]
    %v1077 = vld [vmem:[#allocation7 + $0xdb8] sm:$0xff]
    %v1078 = vld [vmem:[#allocation7 + $0xdc0] sm:$0xff]
    %v1079 = vld [vmem:[#allocation7 + $0xdc8] sm:$0xff]
    %v1080 = vld [vmem:[#allocation7 + $0xdd0] sm:$0xff]
    %v1081 = vld [vmem:[#allocation7 + $0xdd8] sm:$0xff]
    %v1082 = vld [vmem:[#allocation7 + $0xde0] sm:$0xff]
    %v1083 = vld [vmem:[#allocation7 + $0xde8] sm:$0xff]
    %v1084 = vld [vmem:[#allocation7 + $0xdf0] sm:$0xff]
    %v1085 = vld [vmem:[#allocation7 + $0xdf8] sm:$0xff]
    %v1086 = vld [vmem:[#allocation7 + $0xe00] sm:$0xff]
    %v1087 = vld [vmem:[#allocation7 + $0xe08] sm:$0xff]
    %v1088 = vld [vmem:[#allocation7 + $0xe10] sm:$0xff]
    %v1089 = vld [vmem:[#allocation7 + $0xe18] sm:$0xff]
    %v1090 = vld [vmem:[#allocation7 + $0xe20] sm:$0xff]
    %v1091 = vld [vmem:[#allocation7 + $0xe28] sm:$0xff]
    %v1092 = vld [vmem:[#allocation7 + $0xe30] sm:$0xff]
    %v1093 = vld [vmem:[#allocation7 + $0xe38] sm:$0xff]
    %v1094 = vld [vmem:[#allocation7 + $0xe40] sm:$0xff]
    %v1095 = vld [vmem:[#allocation7 + $0xe48] sm:$0xff]
    %v1096 = vld [vmem:[#allocation7 + $0xe50] sm:$0xff]
    %v1097 = vld [vmem:[#allocation7 + $0xe58] sm:$0xff]
    %v1098 = vld [vmem:[#allocation7 + $0xe60] sm:$0xff]
    %v1099 = vld [vmem:[#allocation7 + $0xe68] sm:$0xff]
    %v1100 = vld [vmem:[#allocation7 + $0xe70] sm:$0xff]
    %v1101 = vld [vmem:[#allocation7 + $0xe78] sm:$0xff]
    %v1102 = vld [vmem:[#allocation7 + $0xe80] sm:$0xff]
    %v1103 = vld [vmem:[#allocation7 + $0xe88] sm:$0xff]
    %v1104 = vld [vmem:[#allocation7 + $0xe90] sm:$0xff]
    %v1105 = vld [vmem:[#allocation7 + $0xe98] sm:$0xff]
    %v1106 = vld [vmem:[#allocation7 + $0xea0] sm:$0xff]
    %v1107 = vld [vmem:[#allocation7 + $0xea8] sm:$0xff]
    %v1108 = vld [vmem:[#allocation7 + $0xeb0] sm:$0xff]
    %v1109 = vld [vmem:[#allocation7 + $0xeb8] sm:$0xff]
    %v1110 = vld [vmem:[#allocation7 + $0xec0] sm:$0xff]
    %v1111 = vld [vmem:[#allocation7 + $0xec8] sm:$0xff]
    %v1112 = vld [vmem:[#allocation7 + $0xed0] sm:$0xff]
    %v1113 = vld [vmem:[#allocation7 + $0xed8] sm:$0xff]
    %v1114 = vld [vmem:[#allocation7 + $0xee0] sm:$0xff]
    %v1115 = vld [vmem:[#allocation7 + $0xee8] sm:$0xff]
    %v1116 = vld [vmem:[#allocation7 + $0xef0] sm:$0xff]
    %v1117 = vld [vmem:[#allocation7 + $0xef8] sm:$0xff]
    %v1118 = vld [vmem:[#allocation7 + $0xf00] sm:$0xff]
    %v1119 = vld [vmem:[#allocation7 + $0xf08] sm:$0xff]
    %v1120 = vld [vmem:[#allocation7 + $0xf10] sm:$0xff]
    %v1121 = vld [vmem:[#allocation7 + $0xf18] sm:$0xff]
    %v1122 = vld [vmem:[#allocation7 + $0xf20] sm:$0xff]
    %v1123 = vld [vmem:[#allocation7 + $0xf28] sm:$0xff]
    %v1124 = vld [vmem:[#allocation7 + $0xf30] sm:$0xff]
    %v1125 = vld [vmem:[#allocation7 + $0xf38] sm:$0xff]
    %v1126 = vld [vmem:[#allocation7 + $0xf40] sm:$0xff]
    %v1127 = vld [vmem:[#allocation7 + $0xf48] sm:$0xff]
    %v1128 = vld [vmem:[#allocation7 + $0xf50] sm:$0xff]
    %v1129 = vld [vmem:[#allocation7 + $0xf58] sm:$0xff]
    %v1130 = vld [vmem:[#allocation7 + $0xf60] sm:$0xff]
    %v1131 = vld [vmem:[#allocation7 + $0xf68] sm:$0xff]
    %v1132 = vld [vmem:[#allocation7 + $0xf70] sm:$0xff]
    %v1133 = vld [vmem:[#allocation7 + $0xf78] sm:$0xff]
    %v1134 = vld [vmem:[#allocation7 + $0xf80] sm:$0xff]
    %v1135 = vld [vmem:[#allocation7 + $0xf88] sm:$0xff]
    %v1136 = vld [vmem:[#allocation7 + $0xf90] sm:$0xff]
    %v1137 = vld [vmem:[#allocation7 + $0xf98] sm:$0xff]
    %v1138 = vld [vmem:[#allocation7 + $0xfa0] sm:$0xff]
    %v1139 = vld [vmem:[#allocation7 + $0xfa8] sm:$0xff]
    %v1140 = vld [vmem:[#allocation7 + $0xfb0] sm:$0xff]
    %v1141 = vld [vmem:[#allocation7 + $0xfb8] sm:$0xff]
    %v1142 = vld [vmem:[#allocation7 + $0xfc0] sm:$0xff]
    %v1143 = vld [vmem:[#allocation7 + $0xfc8] sm:$0xff]
    %v1144 = vld [vmem:[#allocation7 + $0xfd0] sm:$0xff]
    %v1145 = vld [vmem:[#allocation7 + $0xfd8] sm:$0xff]
    %v1146 = vld [vmem:[#allocation7 + $0xfe0] sm:$0xff]
    %v1147 = vld [vmem:[#allocation7 + $0xfe8] sm:$0xff]
    %v1148 = vld [vmem:[#allocation7 + $0xff0] sm:$0xff]
    %v1149 = vld [vmem:[#allocation7 + $0xff8] sm:$0xff]
    %v1150 = vld [vmem:[#allocation8] sm:$0xff]
    %v1152 = vperm.slane %v1150, 0
    %v1153 = vperm.slane %v1150, 1
    %v1154 = vperm.slane %v1150, 2
    %v1155 = vperm.slane %v1150, 3
    %v1156 = vperm.slane %v1150, 4
    %v1157 = vperm.slane %v1150, 5
    %v1158 = vperm.slane %v1150, 6
    %v1159 = vperm.slane %v1150, 7
    %v1680 = vunpack.c.l.b16 %v638
    %v1681 = vunpack.c.h.b16 %v638
    %v1682 = vunpack.c.l.b16 %v639
    %v1683 = vunpack.c.h.b16 %v639
    %v1684 = vunpack.c.l.b16 %v640
    %v1685 = vunpack.c.h.b16 %v640
    %v1686 = vunpack.c.l.b16 %v641
    %v1687 = vunpack.c.h.b16 %v641
    %v1688 = vunpack.c.l.b16 %v642
    %v1689 = vunpack.c.h.b16 %v642
    %v1690 = vunpack.c.l.b16 %v643
    %v1691 = vunpack.c.h.b16 %v643
    %v1692 = vunpack.c.l.b16 %v644
    %v1693 = vunpack.c.h.b16 %v644
    %v1694 = vunpack.c.l.b16 %v645
    %v1695 = vunpack.c.h.b16 %v645
    %v1696 = vunpack.c.l.b16 %v646
    %v1697 = vunpack.c.h.b16 %v646
    %v1698 = vunpack.c.l.b16 %v647
    %v1699 = vunpack.c.h.b16 %v647
    %v1700 = vunpack.c.l.b16 %v648
    %v1701 = vunpack.c.h.b16 %v648
    %v1702 = vunpack.c.l.b16 %v649
    %v1703 = vunpack.c.h.b16 %v649
    %v1704 = vunpack.c.l.b16 %v650
    %v1705 = vunpack.c.h.b16 %v650
    %v1706 = vunpack.c.l.b16 %v651
    %v1707 = vunpack.c.h.b16 %v651
    %v1708 = vunpack.c.l.b16 %v652
    %v1709 = vunpack.c.h.b16 %v652
    %v1710 = vunpack.c.l.b16 %v653
    %v1711 = vunpack.c.h.b16 %v653
    %v1712 = vunpack.c.l.b16 %v654
    %v1713 = vunpack.c.h.b16 %v654
    %v1714 = vunpack.c.l.b16 %v655
    %v1715 = vunpack.c.h.b16 %v655
    %v1716 = vunpack.c.l.b16 %v656
    %v1717 = vunpack.c.h.b16 %v656
    %v1718 = vunpack.c.l.b16 %v657
    %v1719 = vunpack.c.h.b16 %v657
    %v1720 = vunpack.c.l.b16 %v658
    %v1721 = vunpack.c.h.b16 %v658
    %v1722 = vunpack.c.l.b16 %v659
    %v1723 = vunpack.c.h.b16 %v659
    %v1724 = vunpack.c.l.b16 %v660
    %v1725 = vunpack.c.h.b16 %v660
    %v1726 = vunpack.c.l.b16 %v661
    %v1727 = vunpack.c.h.b16 %v661
    %v1728 = vunpack.c.l.b16 %v662
    %v1729 = vunpack.c.h.b16 %v662
    %v1730 = vunpack.c.l.b16 %v663
    %v1731 = vunpack.c.h.b16 %v663
    %v1732 = vunpack.c.l.b16 %v664
    %v1733 = vunpack.c.h.b16 %v664
    %v1734 = vunpack.c.l.b16 %v665
    %v1735 = vunpack.c.h.b16 %v665
    %v1736 = vunpack.c.l.b16 %v666
    %v1737 = vunpack.c.h.b16 %v666
    %v1738 = vunpack.c.l.b16 %v667
    %v1739 = vunpack.c.h.b16 %v667
    %v1740 = vunpack.c.l.b16 %v668
    %v1741 = vunpack.c.h.b16 %v668
    %v1742 = vunpack.c.l.b16 %v669
    %v1743 = vunpack.c.h.b16 %v669
    %v1744 = vunpack.c.l.b16 %v670
    %v1745 = vunpack.c.h.b16 %v670
    %v1746 = vunpack.c.l.b16 %v671
    %v1747 = vunpack.c.h.b16 %v671
    %v1748 = vunpack.c.l.b16 %v672
    %v1749 = vunpack.c.h.b16 %v672
    %v1750 = vunpack.c.l.b16 %v673
    %v1751 = vunpack.c.h.b16 %v673
    %v1752 = vunpack.c.l.b16 %v674
    %v1753 = vunpack.c.h.b16 %v674
    %v1754 = vunpack.c.l.b16 %v675
    %v1755 = vunpack.c.h.b16 %v675
    %v1756 = vunpack.c.l.b16 %v676
    %v1757 = vunpack.c.h.b16 %v676
    %v1758 = vunpack.c.l.b16 %v677
    %v1759 = vunpack.c.h.b16 %v677
    %v1760 = vunpack.c.l.b16 %v678
    %v1761 = vunpack.c.h.b16 %v678
    %v1762 = vunpack.c.l.b16 %v679
    %v1763 = vunpack.c.h.b16 %v679
    %v1764 = vunpack.c.l.b16 %v680
    %v1765 = vunpack.c.h.b16 %v680
    %v1766 = vunpack.c.l.b16 %v681
    %v1767 = vunpack.c.h.b16 %v681
    %v1768 = vunpack.c.l.b16 %v682
    %v1769 = vunpack.c.h.b16 %v682
    %v1770 = vunpack.c.l.b16 %v683
    %v1771 = vunpack.c.h.b16 %v683
    %v1772 = vunpack.c.l.b16 %v684
    %v1773 = vunpack.c.h.b16 %v684
    %v1774 = vunpack.c.l.b16 %v685
    %v1775 = vunpack.c.h.b16 %v685
    %v1776 = vunpack.c.l.b16 %v686
    %v1777 = vunpack.c.h.b16 %v686
    %v1778 = vunpack.c.l.b16 %v687
    %v1779 = vunpack.c.h.b16 %v687
    %v1780 = vunpack.c.l.b16 %v688
    %v1781 = vunpack.c.h.b16 %v688
    %v1782 = vunpack.c.l.b16 %v689
    %v1783 = vunpack.c.h.b16 %v689
    %v1784 = vunpack.c.l.b16 %v690
    %v1785 = vunpack.c.h.b16 %v690
    %v1786 = vunpack.c.l.b16 %v691
    %v1787 = vunpack.c.h.b16 %v691
    %v1788 = vunpack.c.l.b16 %v692
    %v1789 = vunpack.c.h.b16 %v692
    %v1790 = vunpack.c.l.b16 %v693
    %v1791 = vunpack.c.h.b16 %v693
    %v1792 = vunpack.c.l.b16 %v694
    %v1793 = vunpack.c.h.b16 %v694
    %v1794 = vunpack.c.l.b16 %v695
    %v1795 = vunpack.c.h.b16 %v695
    %v1796 = vunpack.c.l.b16 %v696
    %v1797 = vunpack.c.h.b16 %v696
    %v1798 = vunpack.c.l.b16 %v697
    %v1799 = vunpack.c.h.b16 %v697
    %v1800 = vunpack.c.l.b16 %v698
    %v1801 = vunpack.c.h.b16 %v698
    %v1802 = vunpack.c.l.b16 %v699
    %v1803 = vunpack.c.h.b16 %v699
    %v1804 = vunpack.c.l.b16 %v700
    %v1805 = vunpack.c.h.b16 %v700
    %v1806 = vunpack.c.l.b16 %v701
    %v1807 = vunpack.c.h.b16 %v701
    %v1808 = vunpack.c.l.b16 %v702
    %v1809 = vunpack.c.h.b16 %v702
    %v1810 = vunpack.c.l.b16 %v703
    %v1811 = vunpack.c.h.b16 %v703
    %v1812 = vunpack.c.l.b16 %v704
    %v1813 = vunpack.c.h.b16 %v704
    %v1814 = vunpack.c.l.b16 %v705
    %v1815 = vunpack.c.h.b16 %v705
    %v1816 = vunpack.c.l.b16 %v706
    %v1817 = vunpack.c.h.b16 %v706
    %v1818 = vunpack.c.l.b16 %v707
    %v1819 = vunpack.c.h.b16 %v707
    %v1820 = vunpack.c.l.b16 %v708
    %v1821 = vunpack.c.h.b16 %v708
    %v1822 = vunpack.c.l.b16 %v709
    %v1823 = vunpack.c.h.b16 %v709
    %v1824 = vunpack.c.l.b16 %v710
    %v1825 = vunpack.c.h.b16 %v710
    %v1826 = vunpack.c.l.b16 %v711
    %v1827 = vunpack.c.h.b16 %v711
    %v1828 = vunpack.c.l.b16 %v712
    %v1829 = vunpack.c.h.b16 %v712
    %v1830 = vunpack.c.l.b16 %v713
    %v1831 = vunpack.c.h.b16 %v713
    %v1832 = vunpack.c.l.b16 %v714
    %v1833 = vunpack.c.h.b16 %v714
    %v1834 = vunpack.c.l.b16 %v715
    %v1835 = vunpack.c.h.b16 %v715
    %v1836 = vunpack.c.l.b16 %v716
    %v1837 = vunpack.c.h.b16 %v716
    %v1838 = vunpack.c.l.b16 %v717
    %v1839 = vunpack.c.h.b16 %v717
    %v1840 = vunpack.c.l.b16 %v718
    %v1841 = vunpack.c.h.b16 %v718
    %v1842 = vunpack.c.l.b16 %v719
    %v1843 = vunpack.c.h.b16 %v719
    %v1844 = vunpack.c.l.b16 %v720
    %v1845 = vunpack.c.h.b16 %v720
    %v1846 = vunpack.c.l.b16 %v721
    %v1847 = vunpack.c.h.b16 %v721
    %v1848 = vunpack.c.l.b16 %v722
    %v1849 = vunpack.c.h.b16 %v722
    %v1850 = vunpack.c.l.b16 %v723
    %v1851 = vunpack.c.h.b16 %v723
    %v1852 = vunpack.c.l.b16 %v724
    %v1853 = vunpack.c.h.b16 %v724
    %v1854 = vunpack.c.l.b16 %v725
    %v1855 = vunpack.c.h.b16 %v725
    %v1856 = vunpack.c.l.b16 %v726
    %v1857 = vunpack.c.h.b16 %v726
    %v1858 = vunpack.c.l.b16 %v727
    %v1859 = vunpack.c.h.b16 %v727
    %v1860 = vunpack.c.l.b16 %v728
    %v1861 = vunpack.c.h.b16 %v728
    %v1862 = vunpack.c.l.b16 %v729
    %v1863 = vunpack.c.h.b16 %v729
    %v1864 = vunpack.c.l.b16 %v730
    %v1865 = vunpack.c.h.b16 %v730
    %v1866 = vunpack.c.l.b16 %v731
    %v1867 = vunpack.c.h.b16 %v731
    %v1868 = vunpack.c.l.b16 %v732
    %v1869 = vunpack.c.h.b16 %v732
    %v1870 = vunpack.c.l.b16 %v733
    %v1871 = vunpack.c.h.b16 %v733
    %v1872 = vunpack.c.l.b16 %v734
    %v1873 = vunpack.c.h.b16 %v734
    %v1874 = vunpack.c.l.b16 %v735
    %v1875 = vunpack.c.h.b16 %v735
    %v1876 = vunpack.c.l.b16 %v736
    %v1877 = vunpack.c.h.b16 %v736
    %v1878 = vunpack.c.l.b16 %v737
    %v1879 = vunpack.c.h.b16 %v737
    %v1880 = vunpack.c.l.b16 %v738
    %v1881 = vunpack.c.h.b16 %v738
    %v1882 = vunpack.c.l.b16 %v739
    %v1883 = vunpack.c.h.b16 %v739
    %v1884 = vunpack.c.l.b16 %v740
    %v1885 = vunpack.c.h.b16 %v740
    %v1886 = vunpack.c.l.b16 %v741
    %v1887 = vunpack.c.h.b16 %v741
    %v1888 = vunpack.c.l.b16 %v742
    %v1889 = vunpack.c.h.b16 %v742
    %v1890 = vunpack.c.l.b16 %v743
    %v1891 = vunpack.c.h.b16 %v743
    %v1892 = vunpack.c.l.b16 %v744
    %v1893 = vunpack.c.h.b16 %v744
    %v1894 = vunpack.c.l.b16 %v745
    %v1895 = vunpack.c.h.b16 %v745
    %v1896 = vunpack.c.l.b16 %v746
    %v1897 = vunpack.c.h.b16 %v746
    %v1898 = vunpack.c.l.b16 %v747
    %v1899 = vunpack.c.h.b16 %v747
    %v1900 = vunpack.c.l.b16 %v748
    %v1901 = vunpack.c.h.b16 %v748
    %v1902 = vunpack.c.l.b16 %v749
    %v1903 = vunpack.c.h.b16 %v749
    %v1904 = vunpack.c.l.b16 %v750
    %v1905 = vunpack.c.h.b16 %v750
    %v1906 = vunpack.c.l.b16 %v751
    %v1907 = vunpack.c.h.b16 %v751
    %v1908 = vunpack.c.l.b16 %v752
    %v1909 = vunpack.c.h.b16 %v752
    %v1910 = vunpack.c.l.b16 %v753
    %v1911 = vunpack.c.h.b16 %v753
    %v1912 = vunpack.c.l.b16 %v754
    %v1913 = vunpack.c.h.b16 %v754
    %v1914 = vunpack.c.l.b16 %v755
    %v1915 = vunpack.c.h.b16 %v755
    %v1916 = vunpack.c.l.b16 %v756
    %v1917 = vunpack.c.h.b16 %v756
    %v1918 = vunpack.c.l.b16 %v757
    %v1919 = vunpack.c.h.b16 %v757
    %v1920 = vunpack.c.l.b16 %v758
    %v1921 = vunpack.c.h.b16 %v758
    %v1922 = vunpack.c.l.b16 %v759
    %v1923 = vunpack.c.h.b16 %v759
    %v1924 = vunpack.c.l.b16 %v760
    %v1925 = vunpack.c.h.b16 %v760
    %v1926 = vunpack.c.l.b16 %v761
    %v1927 = vunpack.c.h.b16 %v761
    %v1928 = vunpack.c.l.b16 %v762
    %v1929 = vunpack.c.h.b16 %v762
    %v1930 = vunpack.c.l.b16 %v763
    %v1931 = vunpack.c.h.b16 %v763
    %v1932 = vunpack.c.l.b16 %v764
    %v1933 = vunpack.c.h.b16 %v764
    %v1934 = vunpack.c.l.b16 %v765
    %v1935 = vunpack.c.h.b16 %v765
    %v1936 = vunpack.c.l.b16 %v766
    %v1937 = vunpack.c.h.b16 %v766
    %v1938 = vunpack.c.l.b16 %v767
    %v1939 = vunpack.c.h.b16 %v767
    %v1940 = vunpack.c.l.b16 %v768
    %v1941 = vunpack.c.h.b16 %v768
    %v1942 = vunpack.c.l.b16 %v769
    %v1943 = vunpack.c.h.b16 %v769
    %v1944 = vunpack.c.l.b16 %v770
    %v1945 = vunpack.c.h.b16 %v770
    %v1946 = vunpack.c.l.b16 %v771
    %v1947 = vunpack.c.h.b16 %v771
    %v1948 = vunpack.c.l.b16 %v772
    %v1949 = vunpack.c.h.b16 %v772
    %v1950 = vunpack.c.l.b16 %v773
    %v1951 = vunpack.c.h.b16 %v773
    %v1952 = vunpack.c.l.b16 %v774
    %v1953 = vunpack.c.h.b16 %v774
    %v1954 = vunpack.c.l.b16 %v775
    %v1955 = vunpack.c.h.b16 %v775
    %v1956 = vunpack.c.l.b16 %v776
    %v1957 = vunpack.c.h.b16 %v776
    %v1958 = vunpack.c.l.b16 %v777
    %v1959 = vunpack.c.h.b16 %v777
    %v1960 = vunpack.c.l.b16 %v778
    %v1961 = vunpack.c.h.b16 %v778
    %v1962 = vunpack.c.l.b16 %v779
    %v1963 = vunpack.c.h.b16 %v779
    %v1964 = vunpack.c.l.b16 %v780
    %v1965 = vunpack.c.h.b16 %v780
    %v1966 = vunpack.c.l.b16 %v781
    %v1967 = vunpack.c.h.b16 %v781
    %v1968 = vunpack.c.l.b16 %v782
    %v1969 = vunpack.c.h.b16 %v782
    %v1970 = vunpack.c.l.b16 %v783
    %v1971 = vunpack.c.h.b16 %v783
    %v1972 = vunpack.c.l.b16 %v784
    %v1973 = vunpack.c.h.b16 %v784
    %v1974 = vunpack.c.l.b16 %v785
    %v1975 = vunpack.c.h.b16 %v785
    %v1976 = vunpack.c.l.b16 %v786
    %v1977 = vunpack.c.h.b16 %v786
    %v1978 = vunpack.c.l.b16 %v787
    %v1979 = vunpack.c.h.b16 %v787
    %v1980 = vunpack.c.l.b16 %v788
    %v1981 = vunpack.c.h.b16 %v788
    %v1982 = vunpack.c.l.b16 %v789
    %v1983 = vunpack.c.h.b16 %v789
    %v1984 = vunpack.c.l.b16 %v790
    %v1985 = vunpack.c.h.b16 %v790
    %v1986 = vunpack.c.l.b16 %v791
    %v1987 = vunpack.c.h.b16 %v791
    %v1988 = vunpack.c.l.b16 %v792
    %v1989 = vunpack.c.h.b16 %v792
    %v1990 = vunpack.c.l.b16 %v793
    %v1991 = vunpack.c.h.b16 %v793
    %v1992 = vunpack.c.l.b16 %v794
    %v1993 = vunpack.c.h.b16 %v794
    %v1994 = vunpack.c.l.b16 %v795
    %v1995 = vunpack.c.h.b16 %v795
    %v1996 = vunpack.c.l.b16 %v796
    %v1997 = vunpack.c.h.b16 %v796
    %v1998 = vunpack.c.l.b16 %v797
    %v1999 = vunpack.c.h.b16 %v797
    %v2000 = vunpack.c.l.b16 %v798
    %v2001 = vunpack.c.h.b16 %v798
    %v2002 = vunpack.c.l.b16 %v799
    %v2003 = vunpack.c.h.b16 %v799
    %v2004 = vunpack.c.l.b16 %v800
    %v2005 = vunpack.c.h.b16 %v800
    %v2006 = vunpack.c.l.b16 %v801
    %v2007 = vunpack.c.h.b16 %v801
    %v2008 = vunpack.c.l.b16 %v802
    %v2009 = vunpack.c.h.b16 %v802
    %v2010 = vunpack.c.l.b16 %v803
    %v2011 = vunpack.c.h.b16 %v803
    %v2012 = vunpack.c.l.b16 %v804
    %v2013 = vunpack.c.h.b16 %v804
    %v2014 = vunpack.c.l.b16 %v805
    %v2015 = vunpack.c.h.b16 %v805
    %v2016 = vunpack.c.l.b16 %v806
    %v2017 = vunpack.c.h.b16 %v806
    %v2018 = vunpack.c.l.b16 %v807
    %v2019 = vunpack.c.h.b16 %v807
    %v2020 = vunpack.c.l.b16 %v808
    %v2021 = vunpack.c.h.b16 %v808
    %v2022 = vunpack.c.l.b16 %v809
    %v2023 = vunpack.c.h.b16 %v809
    %v2024 = vunpack.c.l.b16 %v810
    %v2025 = vunpack.c.h.b16 %v810
    %v2026 = vunpack.c.l.b16 %v811
    %v2027 = vunpack.c.h.b16 %v811
    %v2028 = vunpack.c.l.b16 %v812
    %v2029 = vunpack.c.h.b16 %v812
    %v2030 = vunpack.c.l.b16 %v813
    %v2031 = vunpack.c.h.b16 %v813
    %v2032 = vunpack.c.l.b16 %v814
    %v2033 = vunpack.c.h.b16 %v814
    %v2034 = vunpack.c.l.b16 %v815
    %v2035 = vunpack.c.h.b16 %v815
    %v2036 = vunpack.c.l.b16 %v816
    %v2037 = vunpack.c.h.b16 %v816
    %v2038 = vunpack.c.l.b16 %v817
    %v2039 = vunpack.c.h.b16 %v817
    %v2040 = vunpack.c.l.b16 %v818
    %v2041 = vunpack.c.h.b16 %v818
    %v2042 = vunpack.c.l.b16 %v819
    %v2043 = vunpack.c.h.b16 %v819
    %v2044 = vunpack.c.l.b16 %v820
    %v2045 = vunpack.c.h.b16 %v820
    %v2046 = vunpack.c.l.b16 %v821
    %v2047 = vunpack.c.h.b16 %v821
    %v2048 = vunpack.c.l.b16 %v822
    %v2049 = vunpack.c.h.b16 %v822
    %v2050 = vunpack.c.l.b16 %v823
    %v2051 = vunpack.c.h.b16 %v823
    %v2052 = vunpack.c.l.b16 %v824
    %v2053 = vunpack.c.h.b16 %v824
    %v2054 = vunpack.c.l.b16 %v825
    %v2055 = vunpack.c.h.b16 %v825
    %v2056 = vunpack.c.l.b16 %v826
    %v2057 = vunpack.c.h.b16 %v826
    %v2058 = vunpack.c.l.b16 %v827
    %v2059 = vunpack.c.h.b16 %v827
    %v2060 = vunpack.c.l.b16 %v828
    %v2061 = vunpack.c.h.b16 %v828
    %v2062 = vunpack.c.l.b16 %v829
    %v2063 = vunpack.c.h.b16 %v829
    %v2064 = vunpack.c.l.b16 %v830
    %v2065 = vunpack.c.h.b16 %v830
    %v2066 = vunpack.c.l.b16 %v831
    %v2067 = vunpack.c.h.b16 %v831
    %v2068 = vunpack.c.l.b16 %v832
    %v2069 = vunpack.c.h.b16 %v832
    %v2070 = vunpack.c.l.b16 %v833
    %v2071 = vunpack.c.h.b16 %v833
    %v2072 = vunpack.c.l.b16 %v834
    %v2073 = vunpack.c.h.b16 %v834
    %v2074 = vunpack.c.l.b16 %v835
    %v2075 = vunpack.c.h.b16 %v835
    %v2076 = vunpack.c.l.b16 %v836
    %v2077 = vunpack.c.h.b16 %v836
    %v2078 = vunpack.c.l.b16 %v837
    %v2079 = vunpack.c.h.b16 %v837
    %v2080 = vunpack.c.l.b16 %v838
    %v2081 = vunpack.c.h.b16 %v838
    %v2082 = vunpack.c.l.b16 %v839
    %v2083 = vunpack.c.h.b16 %v839
    %v2084 = vunpack.c.l.b16 %v840
    %v2085 = vunpack.c.h.b16 %v840
    %v2086 = vunpack.c.l.b16 %v841
    %v2087 = vunpack.c.h.b16 %v841
    %v2088 = vunpack.c.l.b16 %v842
    %v2089 = vunpack.c.h.b16 %v842
    %v2090 = vunpack.c.l.b16 %v843
    %v2091 = vunpack.c.h.b16 %v843
    %v2092 = vunpack.c.l.b16 %v844
    %v2093 = vunpack.c.h.b16 %v844
    %v2094 = vunpack.c.l.b16 %v845
    %v2095 = vunpack.c.h.b16 %v845
    %v2096 = vunpack.c.l.b16 %v846
    %v2097 = vunpack.c.h.b16 %v846
    %v2098 = vunpack.c.l.b16 %v847
    %v2099 = vunpack.c.h.b16 %v847
    %v2100 = vunpack.c.l.b16 %v848
    %v2101 = vunpack.c.h.b16 %v848
    %v2102 = vunpack.c.l.b16 %v849
    %v2103 = vunpack.c.h.b16 %v849
    %v2104 = vunpack.c.l.b16 %v850
    %v2105 = vunpack.c.h.b16 %v850
    %v2106 = vunpack.c.l.b16 %v851
    %v2107 = vunpack.c.h.b16 %v851
    %v2108 = vunpack.c.l.b16 %v852
    %v2109 = vunpack.c.h.b16 %v852
    %v2110 = vunpack.c.l.b16 %v853
    %v2111 = vunpack.c.h.b16 %v853
    %v2112 = vunpack.c.l.b16 %v854
    %v2113 = vunpack.c.h.b16 %v854
    %v2114 = vunpack.c.l.b16 %v855
    %v2115 = vunpack.c.h.b16 %v855
    %v2116 = vunpack.c.l.b16 %v856
    %v2117 = vunpack.c.h.b16 %v856
    %v2118 = vunpack.c.l.b16 %v857
    %v2119 = vunpack.c.h.b16 %v857
    %v2120 = vunpack.c.l.b16 %v858
    %v2121 = vunpack.c.h.b16 %v858
    %v2122 = vunpack.c.l.b16 %v859
    %v2123 = vunpack.c.h.b16 %v859
    %v2124 = vunpack.c.l.b16 %v860
    %v2125 = vunpack.c.h.b16 %v860
    %v2126 = vunpack.c.l.b16 %v861
    %v2127 = vunpack.c.h.b16 %v861
    %v2128 = vunpack.c.l.b16 %v862
    %v2129 = vunpack.c.h.b16 %v862
    %v2130 = vunpack.c.l.b16 %v863
    %v2131 = vunpack.c.h.b16 %v863
    %v2132 = vunpack.c.l.b16 %v864
    %v2133 = vunpack.c.h.b16 %v864
    %v2134 = vunpack.c.l.b16 %v865
    %v2135 = vunpack.c.h.b16 %v865
    %v2136 = vunpack.c.l.b16 %v866
    %v2137 = vunpack.c.h.b16 %v866
    %v2138 = vunpack.c.l.b16 %v867
    %v2139 = vunpack.c.h.b16 %v867
    %v2140 = vunpack.c.l.b16 %v868
    %v2141 = vunpack.c.h.b16 %v868
    %v2142 = vunpack.c.l.b16 %v869
    %v2143 = vunpack.c.h.b16 %v869
    %v2144 = vunpack.c.l.b16 %v870
    %v2145 = vunpack.c.h.b16 %v870
    %v2146 = vunpack.c.l.b16 %v871
    %v2147 = vunpack.c.h.b16 %v871
    %v2148 = vunpack.c.l.b16 %v872
    %v2149 = vunpack.c.h.b16 %v872
    %v2150 = vunpack.c.l.b16 %v873
    %v2151 = vunpack.c.h.b16 %v873
    %v2152 = vunpack.c.l.b16 %v874
    %v2153 = vunpack.c.h.b16 %v874
    %v2154 = vunpack.c.l.b16 %v875
    %v2155 = vunpack.c.h.b16 %v875
    %v2156 = vunpack.c.l.b16 %v876
    %v2157 = vunpack.c.h.b16 %v876
    %v2158 = vunpack.c.l.b16 %v877
    %v2159 = vunpack.c.h.b16 %v877
    %v2160 = vunpack.c.l.b16 %v878
    %v2161 = vunpack.c.h.b16 %v878
    %v2162 = vunpack.c.l.b16 %v879
    %v2163 = vunpack.c.h.b16 %v879
    %v2164 = vunpack.c.l.b16 %v880
    %v2165 = vunpack.c.h.b16 %v880
    %v2166 = vunpack.c.l.b16 %v881
    %v2167 = vunpack.c.h.b16 %v881
    %v2168 = vunpack.c.l.b16 %v882
    %v2169 = vunpack.c.h.b16 %v882
    %v2170 = vunpack.c.l.b16 %v883
    %v2171 = vunpack.c.h.b16 %v883
    %v2172 = vunpack.c.l.b16 %v884
    %v2173 = vunpack.c.h.b16 %v884
    %v2174 = vunpack.c.l.b16 %v885
    %v2175 = vunpack.c.h.b16 %v885
    %v2176 = vunpack.c.l.b16 %v886
    %v2177 = vunpack.c.h.b16 %v886
    %v2178 = vunpack.c.l.b16 %v887
    %v2179 = vunpack.c.h.b16 %v887
    %v2180 = vunpack.c.l.b16 %v888
    %v2181 = vunpack.c.h.b16 %v888
    %v2182 = vunpack.c.l.b16 %v889
    %v2183 = vunpack.c.h.b16 %v889
    %v2184 = vunpack.c.l.b16 %v890
    %v2185 = vunpack.c.h.b16 %v890
    %v2186 = vunpack.c.l.b16 %v891
    %v2187 = vunpack.c.h.b16 %v891
    %v2188 = vunpack.c.l.b16 %v892
    %v2189 = vunpack.c.h.b16 %v892
    %v2190 = vunpack.c.l.b16 %v893
    %v2191 = vunpack.c.h.b16 %v893
    %v2192 = vunpack.c.l.b16 %v894
    %v2193 = vunpack.c.h.b16 %v894
    %v2194 = vunpack.c.l.b16 %v895
    %v2195 = vunpack.c.h.b16 %v895
    %v2196 = vunpack.c.l.b16 %v896
    %v2197 = vunpack.c.h.b16 %v896
    %v2198 = vunpack.c.l.b16 %v897
    %v2199 = vunpack.c.h.b16 %v897
    %v2200 = vunpack.c.l.b16 %v898
    %v2201 = vunpack.c.h.b16 %v898
    %v2202 = vunpack.c.l.b16 %v899
    %v2203 = vunpack.c.h.b16 %v899
    %v2204 = vunpack.c.l.b16 %v900
    %v2205 = vunpack.c.h.b16 %v900
    %v2206 = vunpack.c.l.b16 %v901
    %v2207 = vunpack.c.h.b16 %v901
    %v2208 = vunpack.c.l.b16 %v902
    %v2209 = vunpack.c.h.b16 %v902
    %v2210 = vunpack.c.l.b16 %v903
    %v2211 = vunpack.c.h.b16 %v903
    %v2212 = vunpack.c.l.b16 %v904
    %v2213 = vunpack.c.h.b16 %v904
    %v2214 = vunpack.c.l.b16 %v905
    %v2215 = vunpack.c.h.b16 %v905
    %v2216 = vunpack.c.l.b16 %v906
    %v2217 = vunpack.c.h.b16 %v906
    %v2218 = vunpack.c.l.b16 %v907
    %v2219 = vunpack.c.h.b16 %v907
    %v2220 = vunpack.c.l.b16 %v908
    %v2221 = vunpack.c.h.b16 %v908
    %v2222 = vunpack.c.l.b16 %v909
    %v2223 = vunpack.c.h.b16 %v909
    %v2224 = vunpack.c.l.b16 %v910
    %v2225 = vunpack.c.h.b16 %v910
    %v2226 = vunpack.c.l.b16 %v911
    %v2227 = vunpack.c.h.b16 %v911
    %v2228 = vunpack.c.l.b16 %v912
    %v2229 = vunpack.c.h.b16 %v912
    %v2230 = vunpack.c.l.b16 %v913
    %v2231 = vunpack.c.h.b16 %v913
    %v2232 = vunpack.c.l.b16 %v914
    %v2233 = vunpack.c.h.b16 %v914
    %v2234 = vunpack.c.l.b16 %v915
    %v2235 = vunpack.c.h.b16 %v915
    %v2236 = vunpack.c.l.b16 %v916
    %v2237 = vunpack.c.h.b16 %v916
    %v2238 = vunpack.c.l.b16 %v917
    %v2239 = vunpack.c.h.b16 %v917
    %v2240 = vunpack.c.l.b16 %v918
    %v2241 = vunpack.c.h.b16 %v918
    %v2242 = vunpack.c.l.b16 %v919
    %v2243 = vunpack.c.h.b16 %v919
    %v2244 = vunpack.c.l.b16 %v920
    %v2245 = vunpack.c.h.b16 %v920
    %v2246 = vunpack.c.l.b16 %v921
    %v2247 = vunpack.c.h.b16 %v921
    %v2248 = vunpack.c.l.b16 %v922
    %v2249 = vunpack.c.h.b16 %v922
    %v2250 = vunpack.c.l.b16 %v923
    %v2251 = vunpack.c.h.b16 %v923
    %v2252 = vunpack.c.l.b16 %v924
    %v2253 = vunpack.c.h.b16 %v924
    %v2254 = vunpack.c.l.b16 %v925
    %v2255 = vunpack.c.h.b16 %v925
    %v2256 = vunpack.c.l.b16 %v926
    %v2257 = vunpack.c.h.b16 %v926
    %v2258 = vunpack.c.l.b16 %v927
    %v2259 = vunpack.c.h.b16 %v927
    %v2260 = vunpack.c.l.b16 %v928
    %v2261 = vunpack.c.h.b16 %v928
    %v2262 = vunpack.c.l.b16 %v929
    %v2263 = vunpack.c.h.b16 %v929
    %v2264 = vunpack.c.l.b16 %v930
    %v2265 = vunpack.c.h.b16 %v930
    %v2266 = vunpack.c.l.b16 %v931
    %v2267 = vunpack.c.h.b16 %v931
    %v2268 = vunpack.c.l.b16 %v932
    %v2269 = vunpack.c.h.b16 %v932
    %v2270 = vunpack.c.l.b16 %v933
    %v2271 = vunpack.c.h.b16 %v933
    %v2272 = vunpack.c.l.b16 %v934
    %v2273 = vunpack.c.h.b16 %v934
    %v2274 = vunpack.c.l.b16 %v935
    %v2275 = vunpack.c.h.b16 %v935
    %v2276 = vunpack.c.l.b16 %v936
    %v2277 = vunpack.c.h.b16 %v936
    %v2278 = vunpack.c.l.b16 %v937
    %v2279 = vunpack.c.h.b16 %v937
    %v2280 = vunpack.c.l.b16 %v938
    %v2281 = vunpack.c.h.b16 %v938
    %v2282 = vunpack.c.l.b16 %v939
    %v2283 = vunpack.c.h.b16 %v939
    %v2284 = vunpack.c.l.b16 %v940
    %v2285 = vunpack.c.h.b16 %v940
    %v2286 = vunpack.c.l.b16 %v941
    %v2287 = vunpack.c.h.b16 %v941
    %v2288 = vunpack.c.l.b16 %v942
    %v2289 = vunpack.c.h.b16 %v942
    %v2290 = vunpack.c.l.b16 %v943
    %v2291 = vunpack.c.h.b16 %v943
    %v2292 = vunpack.c.l.b16 %v944
    %v2293 = vunpack.c.h.b16 %v944
    %v2294 = vunpack.c.l.b16 %v945
    %v2295 = vunpack.c.h.b16 %v945
    %v2296 = vunpack.c.l.b16 %v946
    %v2297 = vunpack.c.h.b16 %v946
    %v2298 = vunpack.c.l.b16 %v947
    %v2299 = vunpack.c.h.b16 %v947
    %v2300 = vunpack.c.l.b16 %v948
    %v2301 = vunpack.c.h.b16 %v948
    %v2302 = vunpack.c.l.b16 %v949
    %v2303 = vunpack.c.h.b16 %v949
    %v2304 = vunpack.c.l.b16 %v950
    %v2305 = vunpack.c.h.b16 %v950
    %v2306 = vunpack.c.l.b16 %v951
    %v2307 = vunpack.c.h.b16 %v951
    %v2308 = vunpack.c.l.b16 %v952
    %v2309 = vunpack.c.h.b16 %v952
    %v2310 = vunpack.c.l.b16 %v953
    %v2311 = vunpack.c.h.b16 %v953
    %v2312 = vunpack.c.l.b16 %v954
    %v2313 = vunpack.c.h.b16 %v954
    %v2314 = vunpack.c.l.b16 %v955
    %v2315 = vunpack.c.h.b16 %v955
    %v2316 = vunpack.c.l.b16 %v956
    %v2317 = vunpack.c.h.b16 %v956
    %v2318 = vunpack.c.l.b16 %v957
    %v2319 = vunpack.c.h.b16 %v957
    %v2320 = vunpack.c.l.b16 %v958
    %v2321 = vunpack.c.h.b16 %v958
    %v2322 = vunpack.c.l.b16 %v959
    %v2323 = vunpack.c.h.b16 %v959
    %v2324 = vunpack.c.l.b16 %v960
    %v2325 = vunpack.c.h.b16 %v960
    %v2326 = vunpack.c.l.b16 %v961
    %v2327 = vunpack.c.h.b16 %v961
    %v2328 = vunpack.c.l.b16 %v962
    %v2329 = vunpack.c.h.b16 %v962
    %v2330 = vunpack.c.l.b16 %v963
    %v2331 = vunpack.c.h.b16 %v963
    %v2332 = vunpack.c.l.b16 %v964
    %v2333 = vunpack.c.h.b16 %v964
    %v2334 = vunpack.c.l.b16 %v965
    %v2335 = vunpack.c.h.b16 %v965
    %v2336 = vunpack.c.l.b16 %v966
    %v2337 = vunpack.c.h.b16 %v966
    %v2338 = vunpack.c.l.b16 %v967
    %v2339 = vunpack.c.h.b16 %v967
    %v2340 = vunpack.c.l.b16 %v968
    %v2341 = vunpack.c.h.b16 %v968
    %v2342 = vunpack.c.l.b16 %v969
    %v2343 = vunpack.c.h.b16 %v969
    %v2344 = vunpack.c.l.b16 %v970
    %v2345 = vunpack.c.h.b16 %v970
    %v2346 = vunpack.c.l.b16 %v971
    %v2347 = vunpack.c.h.b16 %v971
    %v2348 = vunpack.c.l.b16 %v972
    %v2349 = vunpack.c.h.b16 %v972
    %v2350 = vunpack.c.l.b16 %v973
    %v2351 = vunpack.c.h.b16 %v973
    %v2352 = vunpack.c.l.b16 %v974
    %v2353 = vunpack.c.h.b16 %v974
    %v2354 = vunpack.c.l.b16 %v975
    %v2355 = vunpack.c.h.b16 %v975
    %v2356 = vunpack.c.l.b16 %v976
    %v2357 = vunpack.c.h.b16 %v976
    %v2358 = vunpack.c.l.b16 %v977
    %v2359 = vunpack.c.h.b16 %v977
    %v2360 = vunpack.c.l.b16 %v978
    %v2361 = vunpack.c.h.b16 %v978
    %v2362 = vunpack.c.l.b16 %v979
    %v2363 = vunpack.c.h.b16 %v979
    %v2364 = vunpack.c.l.b16 %v980
    %v2365 = vunpack.c.h.b16 %v980
    %v2366 = vunpack.c.l.b16 %v981
    %v2367 = vunpack.c.h.b16 %v981
    %v2368 = vunpack.c.l.b16 %v982
    %v2369 = vunpack.c.h.b16 %v982
    %v2370 = vunpack.c.l.b16 %v983
    %v2371 = vunpack.c.h.b16 %v983
    %v2372 = vunpack.c.l.b16 %v984
    %v2373 = vunpack.c.h.b16 %v984
    %v2374 = vunpack.c.l.b16 %v985
    %v2375 = vunpack.c.h.b16 %v985
    %v2376 = vunpack.c.l.b16 %v986
    %v2377 = vunpack.c.h.b16 %v986
    %v2378 = vunpack.c.l.b16 %v987
    %v2379 = vunpack.c.h.b16 %v987
    %v2380 = vunpack.c.l.b16 %v988
    %v2381 = vunpack.c.h.b16 %v988
    %v2382 = vunpack.c.l.b16 %v989
    %v2383 = vunpack.c.h.b16 %v989
    %v2384 = vunpack.c.l.b16 %v990
    %v2385 = vunpack.c.h.b16 %v990
    %v2386 = vunpack.c.l.b16 %v991
    %v2387 = vunpack.c.h.b16 %v991
    %v2388 = vunpack.c.l.b16 %v992
    %v2389 = vunpack.c.h.b16 %v992
    %v2390 = vunpack.c.l.b16 %v993
    %v2391 = vunpack.c.h.b16 %v993
    %v2392 = vunpack.c.l.b16 %v994
    %v2393 = vunpack.c.h.b16 %v994
    %v2394 = vunpack.c.l.b16 %v995
    %v2395 = vunpack.c.h.b16 %v995
    %v2396 = vunpack.c.l.b16 %v996
    %v2397 = vunpack.c.h.b16 %v996
    %v2398 = vunpack.c.l.b16 %v997
    %v2399 = vunpack.c.h.b16 %v997
    %v2400 = vunpack.c.l.b16 %v998
    %v2401 = vunpack.c.h.b16 %v998
    %v2402 = vunpack.c.l.b16 %v999
    %v2403 = vunpack.c.h.b16 %v999
    %v2404 = vunpack.c.l.b16 %v1000
    %v2405 = vunpack.c.h.b16 %v1000
    %v2406 = vunpack.c.l.b16 %v1001
    %v2407 = vunpack.c.h.b16 %v1001
    %v2408 = vunpack.c.l.b16 %v1002
    %v2409 = vunpack.c.h.b16 %v1002
    %v2410 = vunpack.c.l.b16 %v1003
    %v2411 = vunpack.c.h.b16 %v1003
    %v2412 = vunpack.c.l.b16 %v1004
    %v2413 = vunpack.c.h.b16 %v1004
    %v2414 = vunpack.c.l.b16 %v1005
    %v2415 = vunpack.c.h.b16 %v1005
    %v2416 = vunpack.c.l.b16 %v1006
    %v2417 = vunpack.c.h.b16 %v1006
    %v2418 = vunpack.c.l.b16 %v1007
    %v2419 = vunpack.c.h.b16 %v1007
    %v2420 = vunpack.c.l.b16 %v1008
    %v2421 = vunpack.c.h.b16 %v1008
    %v2422 = vunpack.c.l.b16 %v1009
    %v2423 = vunpack.c.h.b16 %v1009
    %v2424 = vunpack.c.l.b16 %v1010
    %v2425 = vunpack.c.h.b16 %v1010
    %v2426 = vunpack.c.l.b16 %v1011
    %v2427 = vunpack.c.h.b16 %v1011
    %v2428 = vunpack.c.l.b16 %v1012
    %v2429 = vunpack.c.h.b16 %v1012
    %v2430 = vunpack.c.l.b16 %v1013
    %v2431 = vunpack.c.h.b16 %v1013
    %v2432 = vunpack.c.l.b16 %v1014
    %v2433 = vunpack.c.h.b16 %v1014
    %v2434 = vunpack.c.l.b16 %v1015
    %v2435 = vunpack.c.h.b16 %v1015
    %v2436 = vunpack.c.l.b16 %v1016
    %v2437 = vunpack.c.h.b16 %v1016
    %v2438 = vunpack.c.l.b16 %v1017
    %v2439 = vunpack.c.h.b16 %v1017
    %v2440 = vunpack.c.l.b16 %v1018
    %v2441 = vunpack.c.h.b16 %v1018
    %v2442 = vunpack.c.l.b16 %v1019
    %v2443 = vunpack.c.h.b16 %v1019
    %v2444 = vunpack.c.l.b16 %v1020
    %v2445 = vunpack.c.h.b16 %v1020
    %v2446 = vunpack.c.l.b16 %v1021
    %v2447 = vunpack.c.h.b16 %v1021
    %v2448 = vunpack.c.l.b16 %v1022
    %v2449 = vunpack.c.h.b16 %v1022
    %v2450 = vunpack.c.l.b16 %v1023
    %v2451 = vunpack.c.h.b16 %v1023
    %v2452 = vunpack.c.l.b16 %v1024
    %v2453 = vunpack.c.h.b16 %v1024
    %v2454 = vunpack.c.l.b16 %v1025
    %v2455 = vunpack.c.h.b16 %v1025
    %v2456 = vunpack.c.l.b16 %v1026
    %v2457 = vunpack.c.h.b16 %v1026
    %v2458 = vunpack.c.l.b16 %v1027
    %v2459 = vunpack.c.h.b16 %v1027
    %v2460 = vunpack.c.l.b16 %v1028
    %v2461 = vunpack.c.h.b16 %v1028
    %v2462 = vunpack.c.l.b16 %v1029
    %v2463 = vunpack.c.h.b16 %v1029
    %v2464 = vunpack.c.l.b16 %v1030
    %v2465 = vunpack.c.h.b16 %v1030
    %v2466 = vunpack.c.l.b16 %v1031
    %v2467 = vunpack.c.h.b16 %v1031
    %v2468 = vunpack.c.l.b16 %v1032
    %v2469 = vunpack.c.h.b16 %v1032
    %v2470 = vunpack.c.l.b16 %v1033
    %v2471 = vunpack.c.h.b16 %v1033
    %v2472 = vunpack.c.l.b16 %v1034
    %v2473 = vunpack.c.h.b16 %v1034
    %v2474 = vunpack.c.l.b16 %v1035
    %v2475 = vunpack.c.h.b16 %v1035
    %v2476 = vunpack.c.l.b16 %v1036
    %v2477 = vunpack.c.h.b16 %v1036
    %v2478 = vunpack.c.l.b16 %v1037
    %v2479 = vunpack.c.h.b16 %v1037
    %v2480 = vunpack.c.l.b16 %v1038
    %v2481 = vunpack.c.h.b16 %v1038
    %v2482 = vunpack.c.l.b16 %v1039
    %v2483 = vunpack.c.h.b16 %v1039
    %v2484 = vunpack.c.l.b16 %v1040
    %v2485 = vunpack.c.h.b16 %v1040
    %v2486 = vunpack.c.l.b16 %v1041
    %v2487 = vunpack.c.h.b16 %v1041
    %v2488 = vunpack.c.l.b16 %v1042
    %v2489 = vunpack.c.h.b16 %v1042
    %v2490 = vunpack.c.l.b16 %v1043
    %v2491 = vunpack.c.h.b16 %v1043
    %v2492 = vunpack.c.l.b16 %v1044
    %v2493 = vunpack.c.h.b16 %v1044
    %v2494 = vunpack.c.l.b16 %v1045
    %v2495 = vunpack.c.h.b16 %v1045
    %v2496 = vunpack.c.l.b16 %v1046
    %v2497 = vunpack.c.h.b16 %v1046
    %v2498 = vunpack.c.l.b16 %v1047
    %v2499 = vunpack.c.h.b16 %v1047
    %v2500 = vunpack.c.l.b16 %v1048
    %v2501 = vunpack.c.h.b16 %v1048
    %v2502 = vunpack.c.l.b16 %v1049
    %v2503 = vunpack.c.h.b16 %v1049
    %v2504 = vunpack.c.l.b16 %v1050
    %v2505 = vunpack.c.h.b16 %v1050
    %v2506 = vunpack.c.l.b16 %v1051
    %v2507 = vunpack.c.h.b16 %v1051
    %v2508 = vunpack.c.l.b16 %v1052
    %v2509 = vunpack.c.h.b16 %v1052
    %v2510 = vunpack.c.l.b16 %v1053
    %v2511 = vunpack.c.h.b16 %v1053
    %v2512 = vunpack.c.l.b16 %v1054
    %v2513 = vunpack.c.h.b16 %v1054
    %v2514 = vunpack.c.l.b16 %v1055
    %v2515 = vunpack.c.h.b16 %v1055
    %v2516 = vunpack.c.l.b16 %v1056
    %v2517 = vunpack.c.h.b16 %v1056
    %v2518 = vunpack.c.l.b16 %v1057
    %v2519 = vunpack.c.h.b16 %v1057
    %v2520 = vunpack.c.l.b16 %v1058
    %v2521 = vunpack.c.h.b16 %v1058
    %v2522 = vunpack.c.l.b16 %v1059
    %v2523 = vunpack.c.h.b16 %v1059
    %v2524 = vunpack.c.l.b16 %v1060
    %v2525 = vunpack.c.h.b16 %v1060
    %v2526 = vunpack.c.l.b16 %v1061
    %v2527 = vunpack.c.h.b16 %v1061
    %v2528 = vunpack.c.l.b16 %v1062
    %v2529 = vunpack.c.h.b16 %v1062
    %v2530 = vunpack.c.l.b16 %v1063
    %v2531 = vunpack.c.h.b16 %v1063
    %v2532 = vunpack.c.l.b16 %v1064
    %v2533 = vunpack.c.h.b16 %v1064
    %v2534 = vunpack.c.l.b16 %v1065
    %v2535 = vunpack.c.h.b16 %v1065
    %v2536 = vunpack.c.l.b16 %v1066
    %v2537 = vunpack.c.h.b16 %v1066
    %v2538 = vunpack.c.l.b16 %v1067
    %v2539 = vunpack.c.h.b16 %v1067
    %v2540 = vunpack.c.l.b16 %v1068
    %v2541 = vunpack.c.h.b16 %v1068
    %v2542 = vunpack.c.l.b16 %v1069
    %v2543 = vunpack.c.h.b16 %v1069
    %v2544 = vunpack.c.l.b16 %v1070
    %v2545 = vunpack.c.h.b16 %v1070
    %v2546 = vunpack.c.l.b16 %v1071
    %v2547 = vunpack.c.h.b16 %v1071
    %v2548 = vunpack.c.l.b16 %v1072
    %v2549 = vunpack.c.h.b16 %v1072
    %v2550 = vunpack.c.l.b16 %v1073
    %v2551 = vunpack.c.h.b16 %v1073
    %v2552 = vunpack.c.l.b16 %v1074
    %v2553 = vunpack.c.h.b16 %v1074
    %v2554 = vunpack.c.l.b16 %v1075
    %v2555 = vunpack.c.h.b16 %v1075
    %v2556 = vunpack.c.l.b16 %v1076
    %v2557 = vunpack.c.h.b16 %v1076
    %v2558 = vunpack.c.l.b16 %v1077
    %v2559 = vunpack.c.h.b16 %v1077
    %v2560 = vunpack.c.l.b16 %v1078
    %v2561 = vunpack.c.h.b16 %v1078
    %v2562 = vunpack.c.l.b16 %v1079
    %v2563 = vunpack.c.h.b16 %v1079
    %v2564 = vunpack.c.l.b16 %v1080
    %v2565 = vunpack.c.h.b16 %v1080
    %v2566 = vunpack.c.l.b16 %v1081
    %v2567 = vunpack.c.h.b16 %v1081
    %v2568 = vunpack.c.l.b16 %v1082
    %v2569 = vunpack.c.h.b16 %v1082
    %v2570 = vunpack.c.l.b16 %v1083
    %v2571 = vunpack.c.h.b16 %v1083
    %v2572 = vunpack.c.l.b16 %v1084
    %v2573 = vunpack.c.h.b16 %v1084
    %v2574 = vunpack.c.l.b16 %v1085
    %v2575 = vunpack.c.h.b16 %v1085
    %v2576 = vunpack.c.l.b16 %v1086
    %v2577 = vunpack.c.h.b16 %v1086
    %v2578 = vunpack.c.l.b16 %v1087
    %v2579 = vunpack.c.h.b16 %v1087
    %v2580 = vunpack.c.l.b16 %v1088
    %v2581 = vunpack.c.h.b16 %v1088
    %v2582 = vunpack.c.l.b16 %v1089
    %v2583 = vunpack.c.h.b16 %v1089
    %v2584 = vunpack.c.l.b16 %v1090
    %v2585 = vunpack.c.h.b16 %v1090
    %v2586 = vunpack.c.l.b16 %v1091
    %v2587 = vunpack.c.h.b16 %v1091
    %v2588 = vunpack.c.l.b16 %v1092
    %v2589 = vunpack.c.h.b16 %v1092
    %v2590 = vunpack.c.l.b16 %v1093
    %v2591 = vunpack.c.h.b16 %v1093
    %v2592 = vunpack.c.l.b16 %v1094
    %v2593 = vunpack.c.h.b16 %v1094
    %v2594 = vunpack.c.l.b16 %v1095
    %v2595 = vunpack.c.h.b16 %v1095
    %v2596 = vunpack.c.l.b16 %v1096
    %v2597 = vunpack.c.h.b16 %v1096
    %v2598 = vunpack.c.l.b16 %v1097
    %v2599 = vunpack.c.h.b16 %v1097
    %v2600 = vunpack.c.l.b16 %v1098
    %v2601 = vunpack.c.h.b16 %v1098
    %v2602 = vunpack.c.l.b16 %v1099
    %v2603 = vunpack.c.h.b16 %v1099
    %v2604 = vunpack.c.l.b16 %v1100
    %v2605 = vunpack.c.h.b16 %v1100
    %v2606 = vunpack.c.l.b16 %v1101
    %v2607 = vunpack.c.h.b16 %v1101
    %v2608 = vunpack.c.l.b16 %v1102
    %v2609 = vunpack.c.h.b16 %v1102
    %v2610 = vunpack.c.l.b16 %v1103
    %v2611 = vunpack.c.h.b16 %v1103
    %v2612 = vunpack.c.l.b16 %v1104
    %v2613 = vunpack.c.h.b16 %v1104
    %v2614 = vunpack.c.l.b16 %v1105
    %v2615 = vunpack.c.h.b16 %v1105
    %v2616 = vunpack.c.l.b16 %v1106
    %v2617 = vunpack.c.h.b16 %v1106
    %v2618 = vunpack.c.l.b16 %v1107
    %v2619 = vunpack.c.h.b16 %v1107
    %v2620 = vunpack.c.l.b16 %v1108
    %v2621 = vunpack.c.h.b16 %v1108
    %v2622 = vunpack.c.l.b16 %v1109
    %v2623 = vunpack.c.h.b16 %v1109
    %v2624 = vunpack.c.l.b16 %v1110
    %v2625 = vunpack.c.h.b16 %v1110
    %v2626 = vunpack.c.l.b16 %v1111
    %v2627 = vunpack.c.h.b16 %v1111
    %v2628 = vunpack.c.l.b16 %v1112
    %v2629 = vunpack.c.h.b16 %v1112
    %v2630 = vunpack.c.l.b16 %v1113
    %v2631 = vunpack.c.h.b16 %v1113
    %v2632 = vunpack.c.l.b16 %v1114
    %v2633 = vunpack.c.h.b16 %v1114
    %v2634 = vunpack.c.l.b16 %v1115
    %v2635 = vunpack.c.h.b16 %v1115
    %v2636 = vunpack.c.l.b16 %v1116
    %v2637 = vunpack.c.h.b16 %v1116
    %v2638 = vunpack.c.l.b16 %v1117
    %v2639 = vunpack.c.h.b16 %v1117
    %v2640 = vunpack.c.l.b16 %v1118
    %v2641 = vunpack.c.h.b16 %v1118
    %v2642 = vunpack.c.l.b16 %v1119
    %v2643 = vunpack.c.h.b16 %v1119
    %v2644 = vunpack.c.l.b16 %v1120
    %v2645 = vunpack.c.h.b16 %v1120
    %v2646 = vunpack.c.l.b16 %v1121
    %v2647 = vunpack.c.h.b16 %v1121
    %v2648 = vunpack.c.l.b16 %v1122
    %v2649 = vunpack.c.h.b16 %v1122
    %v2650 = vunpack.c.l.b16 %v1123
    %v2651 = vunpack.c.h.b16 %v1123
    %v2652 = vunpack.c.l.b16 %v1124
    %v2653 = vunpack.c.h.b16 %v1124
    %v2654 = vunpack.c.l.b16 %v1125
    %v2655 = vunpack.c.h.b16 %v1125
    %v2656 = vunpack.c.l.b16 %v1126
    %v2657 = vunpack.c.h.b16 %v1126
    %v2658 = vunpack.c.l.b16 %v1127
    %v2659 = vunpack.c.h.b16 %v1127
    %v2660 = vunpack.c.l.b16 %v1128
    %v2661 = vunpack.c.h.b16 %v1128
    %v2662 = vunpack.c.l.b16 %v1129
    %v2663 = vunpack.c.h.b16 %v1129
    %v2664 = vunpack.c.l.b16 %v1130
    %v2665 = vunpack.c.h.b16 %v1130
    %v2666 = vunpack.c.l.b16 %v1131
    %v2667 = vunpack.c.h.b16 %v1131
    %v2668 = vunpack.c.l.b16 %v1132
    %v2669 = vunpack.c.h.b16 %v1132
    %v2670 = vunpack.c.l.b16 %v1133
    %v2671 = vunpack.c.h.b16 %v1133
    %v2672 = vunpack.c.l.b16 %v1134
    %v2673 = vunpack.c.h.b16 %v1134
    %v2674 = vunpack.c.l.b16 %v1135
    %v2675 = vunpack.c.h.b16 %v1135
    %v2676 = vunpack.c.l.b16 %v1136
    %v2677 = vunpack.c.h.b16 %v1136
    %v2678 = vunpack.c.l.b16 %v1137
    %v2679 = vunpack.c.h.b16 %v1137
    %v2680 = vunpack.c.l.b16 %v1138
    %v2681 = vunpack.c.h.b16 %v1138
    %v2682 = vunpack.c.l.b16 %v1139
    %v2683 = vunpack.c.h.b16 %v1139
    %v2684 = vunpack.c.l.b16 %v1140
    %v2685 = vunpack.c.h.b16 %v1140
    %v2686 = vunpack.c.l.b16 %v1141
    %v2687 = vunpack.c.h.b16 %v1141
    %v2688 = vunpack.c.l.b16 %v1142
    %v2689 = vunpack.c.h.b16 %v1142
    %v2690 = vunpack.c.l.b16 %v1143
    %v2691 = vunpack.c.h.b16 %v1143
    %v2692 = vunpack.c.l.b16 %v1144
    %v2693 = vunpack.c.h.b16 %v1144
    %v2694 = vunpack.c.l.b16 %v1145
    %v2695 = vunpack.c.h.b16 %v1145
    %v2696 = vunpack.c.l.b16 %v1146
    %v2697 = vunpack.c.h.b16 %v1146
    %v2698 = vunpack.c.l.b16 %v1147
    %v2699 = vunpack.c.h.b16 %v1147
    %v2700 = vunpack.c.l.b16 %v1148
    %v2701 = vunpack.c.h.b16 %v1148
    %v2702 = vunpack.c.l.b16 %v1149
    %v2703 = vunpack.c.h.b16 %v1149
    %v2704 = vpack.c.b16 %v1688, %v1680
    %v2705 = vpack.c.b16 %v1689, %v1681
    %v2706 = vpack.c.b16 %v1690, %v1682
    %v2707 = vpack.c.b16 %v1691, %v1683
    %v2708 = vpack.c.b16 %v1692, %v1684
    %v2709 = vpack.c.b16 %v1693, %v1685
    %v2710 = vpack.c.b16 %v1694, %v1686
    %v2711 = vpack.c.b16 %v1695, %v1687
    %v2712 = vpack.c.b16 %v1704, %v1696
    %v2713 = vpack.c.b16 %v1705, %v1697
    %v2714 = vpack.c.b16 %v1706, %v1698
    %v2715 = vpack.c.b16 %v1707, %v1699
    %v2716 = vpack.c.b16 %v1708, %v1700
    %v2717 = vpack.c.b16 %v1709, %v1701
    %v2718 = vpack.c.b16 %v1710, %v1702
    %v2719 = vpack.c.b16 %v1711, %v1703
    %v2720 = vpack.c.b16 %v1720, %v1712
    %v2721 = vpack.c.b16 %v1721, %v1713
    %v2722 = vpack.c.b16 %v1722, %v1714
    %v2723 = vpack.c.b16 %v1723, %v1715
    %v2724 = vpack.c.b16 %v1724, %v1716
    %v2725 = vpack.c.b16 %v1725, %v1717
    %v2726 = vpack.c.b16 %v1726, %v1718
    %v2727 = vpack.c.b16 %v1727, %v1719
    %v2728 = vpack.c.b16 %v1736, %v1728
    %v2729 = vpack.c.b16 %v1737, %v1729
    %v2730 = vpack.c.b16 %v1738, %v1730
    %v2731 = vpack.c.b16 %v1739, %v1731
    %v2732 = vpack.c.b16 %v1740, %v1732
    %v2733 = vpack.c.b16 %v1741, %v1733
    %v2734 = vpack.c.b16 %v1742, %v1734
    %v2735 = vpack.c.b16 %v1743, %v1735
    %v2736 = vpack.c.b16 %v1752, %v1744
    %v2737 = vpack.c.b16 %v1753, %v1745
    %v2738 = vpack.c.b16 %v1754, %v1746
    %v2739 = vpack.c.b16 %v1755, %v1747
    %v2740 = vpack.c.b16 %v1756, %v1748
    %v2741 = vpack.c.b16 %v1757, %v1749
    %v2742 = vpack.c.b16 %v1758, %v1750
    %v2743 = vpack.c.b16 %v1759, %v1751
    %v2744 = vpack.c.b16 %v1768, %v1760
    %v2745 = vpack.c.b16 %v1769, %v1761
    %v2746 = vpack.c.b16 %v1770, %v1762
    %v2747 = vpack.c.b16 %v1771, %v1763
    %v2748 = vpack.c.b16 %v1772, %v1764
    %v2749 = vpack.c.b16 %v1773, %v1765
    %v2750 = vpack.c.b16 %v1774, %v1766
    %v2751 = vpack.c.b16 %v1775, %v1767
    %v2752 = vpack.c.b16 %v1784, %v1776
    %v2753 = vpack.c.b16 %v1785, %v1777
    %v2754 = vpack.c.b16 %v1786, %v1778
    %v2755 = vpack.c.b16 %v1787, %v1779
    %v2756 = vpack.c.b16 %v1788, %v1780
    %v2757 = vpack.c.b16 %v1789, %v1781
    %v2758 = vpack.c.b16 %v1790, %v1782
    %v2759 = vpack.c.b16 %v1791, %v1783
    %v2760 = vpack.c.b16 %v1800, %v1792
    %v2761 = vpack.c.b16 %v1801, %v1793
    %v2762 = vpack.c.b16 %v1802, %v1794
    %v2763 = vpack.c.b16 %v1803, %v1795
    %v2764 = vpack.c.b16 %v1804, %v1796
    %v2765 = vpack.c.b16 %v1805, %v1797
    %v2766 = vpack.c.b16 %v1806, %v1798
    %v2767 = vpack.c.b16 %v1807, %v1799
    %v2768 = vpack.c.b16 %v1816, %v1808
    %v2769 = vpack.c.b16 %v1817, %v1809
    %v2770 = vpack.c.b16 %v1818, %v1810
    %v2771 = vpack.c.b16 %v1819, %v1811
    %v2772 = vpack.c.b16 %v1820, %v1812
    %v2773 = vpack.c.b16 %v1821, %v1813
    %v2774 = vpack.c.b16 %v1822, %v1814
    %v2775 = vpack.c.b16 %v1823, %v1815
    %v2776 = vpack.c.b16 %v1832, %v1824
    %v2777 = vpack.c.b16 %v1833, %v1825
    %v2778 = vpack.c.b16 %v1834, %v1826
    %v2779 = vpack.c.b16 %v1835, %v1827
    %v2780 = vpack.c.b16 %v1836, %v1828
    %v2781 = vpack.c.b16 %v1837, %v1829
    %v2782 = vpack.c.b16 %v1838, %v1830
    %v2783 = vpack.c.b16 %v1839, %v1831
    %v2784 = vpack.c.b16 %v1848, %v1840
    %v2785 = vpack.c.b16 %v1849, %v1841
    %v2786 = vpack.c.b16 %v1850, %v1842
    %v2787 = vpack.c.b16 %v1851, %v1843
    %v2788 = vpack.c.b16 %v1852, %v1844
    %v2789 = vpack.c.b16 %v1853, %v1845
    %v2790 = vpack.c.b16 %v1854, %v1846
    %v2791 = vpack.c.b16 %v1855, %v1847
    %v2792 = vpack.c.b16 %v1864, %v1856
    %v2793 = vpack.c.b16 %v1865, %v1857
    %v2794 = vpack.c.b16 %v1866, %v1858
    %v2795 = vpack.c.b16 %v1867, %v1859
    %v2796 = vpack.c.b16 %v1868, %v1860
    %v2797 = vpack.c.b16 %v1869, %v1861
    %v2798 = vpack.c.b16 %v1870, %v1862
    %v2799 = vpack.c.b16 %v1871, %v1863
    %v2800 = vpack.c.b16 %v1880, %v1872
    %v2801 = vpack.c.b16 %v1881, %v1873
    %v2802 = vpack.c.b16 %v1882, %v1874
    %v2803 = vpack.c.b16 %v1883, %v1875
    %v2804 = vpack.c.b16 %v1884, %v1876
    %v2805 = vpack.c.b16 %v1885, %v1877
    %v2806 = vpack.c.b16 %v1886, %v1878
    %v2807 = vpack.c.b16 %v1887, %v1879
    %v2808 = vpack.c.b16 %v1896, %v1888
    %v2809 = vpack.c.b16 %v1897, %v1889
    %v2810 = vpack.c.b16 %v1898, %v1890
    %v2811 = vpack.c.b16 %v1899, %v1891
    %v2812 = vpack.c.b16 %v1900, %v1892
    %v2813 = vpack.c.b16 %v1901, %v1893
    %v2814 = vpack.c.b16 %v1902, %v1894
    %v2815 = vpack.c.b16 %v1903, %v1895
    %v2816 = vpack.c.b16 %v1912, %v1904
    %v2817 = vpack.c.b16 %v1913, %v1905
    %v2818 = vpack.c.b16 %v1914, %v1906
    %v2819 = vpack.c.b16 %v1915, %v1907
    %v2820 = vpack.c.b16 %v1916, %v1908
    %v2821 = vpack.c.b16 %v1917, %v1909
    %v2822 = vpack.c.b16 %v1918, %v1910
    %v2823 = vpack.c.b16 %v1919, %v1911
    %v2824 = vpack.c.b16 %v1928, %v1920
    %v2825 = vpack.c.b16 %v1929, %v1921
    %v2826 = vpack.c.b16 %v1930, %v1922
    %v2827 = vpack.c.b16 %v1931, %v1923
    %v2828 = vpack.c.b16 %v1932, %v1924
    %v2829 = vpack.c.b16 %v1933, %v1925
    %v2830 = vpack.c.b16 %v1934, %v1926
    %v2831 = vpack.c.b16 %v1935, %v1927
    %v2832 = vpack.c.b16 %v1944, %v1936
    %v2833 = vpack.c.b16 %v1945, %v1937
    %v2834 = vpack.c.b16 %v1946, %v1938
    %v2835 = vpack.c.b16 %v1947, %v1939
    %v2836 = vpack.c.b16 %v1948, %v1940
    %v2837 = vpack.c.b16 %v1949, %v1941
    %v2838 = vpack.c.b16 %v1950, %v1942
    %v2839 = vpack.c.b16 %v1951, %v1943
    %v2840 = vpack.c.b16 %v1960, %v1952
    %v2841 = vpack.c.b16 %v1961, %v1953
    %v2842 = vpack.c.b16 %v1962, %v1954
    %v2843 = vpack.c.b16 %v1963, %v1955
    %v2844 = vpack.c.b16 %v1964, %v1956
    %v2845 = vpack.c.b16 %v1965, %v1957
    %v2846 = vpack.c.b16 %v1966, %v1958
    %v2847 = vpack.c.b16 %v1967, %v1959
    %v2848 = vpack.c.b16 %v1976, %v1968
    %v2849 = vpack.c.b16 %v1977, %v1969
    %v2850 = vpack.c.b16 %v1978, %v1970
    %v2851 = vpack.c.b16 %v1979, %v1971
    %v2852 = vpack.c.b16 %v1980, %v1972
    %v2853 = vpack.c.b16 %v1981, %v1973
    %v2854 = vpack.c.b16 %v1982, %v1974
    %v2855 = vpack.c.b16 %v1983, %v1975
    %v2856 = vpack.c.b16 %v1992, %v1984
    %v2857 = vpack.c.b16 %v1993, %v1985
    %v2858 = vpack.c.b16 %v1994, %v1986
    %v2859 = vpack.c.b16 %v1995, %v1987
    %v2860 = vpack.c.b16 %v1996, %v1988
    %v2861 = vpack.c.b16 %v1997, %v1989
    %v2862 = vpack.c.b16 %v1998, %v1990
    %v2863 = vpack.c.b16 %v1999, %v1991
    %v2864 = vpack.c.b16 %v2008, %v2000
    %v2865 = vpack.c.b16 %v2009, %v2001
    %v2866 = vpack.c.b16 %v2010, %v2002
    %v2867 = vpack.c.b16 %v2011, %v2003
    %v2868 = vpack.c.b16 %v2012, %v2004
    %v2869 = vpack.c.b16 %v2013, %v2005
    %v2870 = vpack.c.b16 %v2014, %v2006
    %v2871 = vpack.c.b16 %v2015, %v2007
    %v2872 = vpack.c.b16 %v2024, %v2016
    %v2873 = vpack.c.b16 %v2025, %v2017
    %v2874 = vpack.c.b16 %v2026, %v2018
    %v2875 = vpack.c.b16 %v2027, %v2019
    %v2876 = vpack.c.b16 %v2028, %v2020
    %v2877 = vpack.c.b16 %v2029, %v2021
    %v2878 = vpack.c.b16 %v2030, %v2022
    %v2879 = vpack.c.b16 %v2031, %v2023
    %v2880 = vpack.c.b16 %v2040, %v2032
    %v2881 = vpack.c.b16 %v2041, %v2033
    %v2882 = vpack.c.b16 %v2042, %v2034
    %v2883 = vpack.c.b16 %v2043, %v2035
    %v2884 = vpack.c.b16 %v2044, %v2036
    %v2885 = vpack.c.b16 %v2045, %v2037
    %v2886 = vpack.c.b16 %v2046, %v2038
    %v2887 = vpack.c.b16 %v2047, %v2039
    %v2888 = vpack.c.b16 %v2056, %v2048
    %v2889 = vpack.c.b16 %v2057, %v2049
    %v2890 = vpack.c.b16 %v2058, %v2050
    %v2891 = vpack.c.b16 %v2059, %v2051
    %v2892 = vpack.c.b16 %v2060, %v2052
    %v2893 = vpack.c.b16 %v2061, %v2053
    %v2894 = vpack.c.b16 %v2062, %v2054
    %v2895 = vpack.c.b16 %v2063, %v2055
    %v2896 = vpack.c.b16 %v2072, %v2064
    %v2897 = vpack.c.b16 %v2073, %v2065
    %v2898 = vpack.c.b16 %v2074, %v2066
    %v2899 = vpack.c.b16 %v2075, %v2067
    %v2900 = vpack.c.b16 %v2076, %v2068
    %v2901 = vpack.c.b16 %v2077, %v2069
    %v2902 = vpack.c.b16 %v2078, %v2070
    %v2903 = vpack.c.b16 %v2079, %v2071
    %v2904 = vpack.c.b16 %v2088, %v2080
    %v2905 = vpack.c.b16 %v2089, %v2081
    %v2906 = vpack.c.b16 %v2090, %v2082
    %v2907 = vpack.c.b16 %v2091, %v2083
    %v2908 = vpack.c.b16 %v2092, %v2084
    %v2909 = vpack.c.b16 %v2093, %v2085
    %v2910 = vpack.c.b16 %v2094, %v2086
    %v2911 = vpack.c.b16 %v2095, %v2087
    %v2912 = vpack.c.b16 %v2104, %v2096
    %v2913 = vpack.c.b16 %v2105, %v2097
    %v2914 = vpack.c.b16 %v2106, %v2098
    %v2915 = vpack.c.b16 %v2107, %v2099
    %v2916 = vpack.c.b16 %v2108, %v2100
    %v2917 = vpack.c.b16 %v2109, %v2101
    %v2918 = vpack.c.b16 %v2110, %v2102
    %v2919 = vpack.c.b16 %v2111, %v2103
    %v2920 = vpack.c.b16 %v2120, %v2112
    %v2921 = vpack.c.b16 %v2121, %v2113
    %v2922 = vpack.c.b16 %v2122, %v2114
    %v2923 = vpack.c.b16 %v2123, %v2115
    %v2924 = vpack.c.b16 %v2124, %v2116
    %v2925 = vpack.c.b16 %v2125, %v2117
    %v2926 = vpack.c.b16 %v2126, %v2118
    %v2927 = vpack.c.b16 %v2127, %v2119
    %v2928 = vpack.c.b16 %v2136, %v2128
    %v2929 = vpack.c.b16 %v2137, %v2129
    %v2930 = vpack.c.b16 %v2138, %v2130
    %v2931 = vpack.c.b16 %v2139, %v2131
    %v2932 = vpack.c.b16 %v2140, %v2132
    %v2933 = vpack.c.b16 %v2141, %v2133
    %v2934 = vpack.c.b16 %v2142, %v2134
    %v2935 = vpack.c.b16 %v2143, %v2135
    %v2936 = vpack.c.b16 %v2152, %v2144
    %v2937 = vpack.c.b16 %v2153, %v2145
    %v2938 = vpack.c.b16 %v2154, %v2146
    %v2939 = vpack.c.b16 %v2155, %v2147
    %v2940 = vpack.c.b16 %v2156, %v2148
    %v2941 = vpack.c.b16 %v2157, %v2149
    %v2942 = vpack.c.b16 %v2158, %v2150
    %v2943 = vpack.c.b16 %v2159, %v2151
    %v2944 = vpack.c.b16 %v2168, %v2160
    %v2945 = vpack.c.b16 %v2169, %v2161
    %v2946 = vpack.c.b16 %v2170, %v2162
    %v2947 = vpack.c.b16 %v2171, %v2163
    %v2948 = vpack.c.b16 %v2172, %v2164
    %v2949 = vpack.c.b16 %v2173, %v2165
    %v2950 = vpack.c.b16 %v2174, %v2166
    %v2951 = vpack.c.b16 %v2175, %v2167
    %v2952 = vpack.c.b16 %v2184, %v2176
    %v2953 = vpack.c.b16 %v2185, %v2177
    %v2954 = vpack.c.b16 %v2186, %v2178
    %v2955 = vpack.c.b16 %v2187, %v2179
    %v2956 = vpack.c.b16 %v2188, %v2180
    %v2957 = vpack.c.b16 %v2189, %v2181
    %v2958 = vpack.c.b16 %v2190, %v2182
    %v2959 = vpack.c.b16 %v2191, %v2183
    %v2960 = vpack.c.b16 %v2200, %v2192
    %v2961 = vpack.c.b16 %v2201, %v2193
    %v2962 = vpack.c.b16 %v2202, %v2194
    %v2963 = vpack.c.b16 %v2203, %v2195
    %v2964 = vpack.c.b16 %v2204, %v2196
    %v2965 = vpack.c.b16 %v2205, %v2197
    %v2966 = vpack.c.b16 %v2206, %v2198
    %v2967 = vpack.c.b16 %v2207, %v2199
    %v2968 = vpack.c.b16 %v2216, %v2208
    %v2969 = vpack.c.b16 %v2217, %v2209
    %v2970 = vpack.c.b16 %v2218, %v2210
    %v2971 = vpack.c.b16 %v2219, %v2211
    %v2972 = vpack.c.b16 %v2220, %v2212
    %v2973 = vpack.c.b16 %v2221, %v2213
    %v2974 = vpack.c.b16 %v2222, %v2214
    %v2975 = vpack.c.b16 %v2223, %v2215
    %v2976 = vpack.c.b16 %v2232, %v2224
    %v2977 = vpack.c.b16 %v2233, %v2225
    %v2978 = vpack.c.b16 %v2234, %v2226
    %v2979 = vpack.c.b16 %v2235, %v2227
    %v2980 = vpack.c.b16 %v2236, %v2228
    %v2981 = vpack.c.b16 %v2237, %v2229
    %v2982 = vpack.c.b16 %v2238, %v2230
    %v2983 = vpack.c.b16 %v2239, %v2231
    %v2984 = vpack.c.b16 %v2248, %v2240
    %v2985 = vpack.c.b16 %v2249, %v2241
    %v2986 = vpack.c.b16 %v2250, %v2242
    %v2987 = vpack.c.b16 %v2251, %v2243
    %v2988 = vpack.c.b16 %v2252, %v2244
    %v2989 = vpack.c.b16 %v2253, %v2245
    %v2990 = vpack.c.b16 %v2254, %v2246
    %v2991 = vpack.c.b16 %v2255, %v2247
    %v2992 = vpack.c.b16 %v2264, %v2256
    %v2993 = vpack.c.b16 %v2265, %v2257
    %v2994 = vpack.c.b16 %v2266, %v2258
    %v2995 = vpack.c.b16 %v2267, %v2259
    %v2996 = vpack.c.b16 %v2268, %v2260
    %v2997 = vpack.c.b16 %v2269, %v2261
    %v2998 = vpack.c.b16 %v2270, %v2262
    %v2999 = vpack.c.b16 %v2271, %v2263
    %v3000 = vpack.c.b16 %v2280, %v2272
    %v3001 = vpack.c.b16 %v2281, %v2273
    %v3002 = vpack.c.b16 %v2282, %v2274
    %v3003 = vpack.c.b16 %v2283, %v2275
    %v3004 = vpack.c.b16 %v2284, %v2276
    %v3005 = vpack.c.b16 %v2285, %v2277
    %v3006 = vpack.c.b16 %v2286, %v2278
    %v3007 = vpack.c.b16 %v2287, %v2279
    %v3008 = vpack.c.b16 %v2296, %v2288
    %v3009 = vpack.c.b16 %v2297, %v2289
    %v3010 = vpack.c.b16 %v2298, %v2290
    %v3011 = vpack.c.b16 %v2299, %v2291
    %v3012 = vpack.c.b16 %v2300, %v2292
    %v3013 = vpack.c.b16 %v2301, %v2293
    %v3014 = vpack.c.b16 %v2302, %v2294
    %v3015 = vpack.c.b16 %v2303, %v2295
    %v3016 = vpack.c.b16 %v2312, %v2304
    %v3017 = vpack.c.b16 %v2313, %v2305
    %v3018 = vpack.c.b16 %v2314, %v2306
    %v3019 = vpack.c.b16 %v2315, %v2307
    %v3020 = vpack.c.b16 %v2316, %v2308
    %v3021 = vpack.c.b16 %v2317, %v2309
    %v3022 = vpack.c.b16 %v2318, %v2310
    %v3023 = vpack.c.b16 %v2319, %v2311
    %v3024 = vpack.c.b16 %v2328, %v2320
    %v3025 = vpack.c.b16 %v2329, %v2321
    %v3026 = vpack.c.b16 %v2330, %v2322
    %v3027 = vpack.c.b16 %v2331, %v2323
    %v3028 = vpack.c.b16 %v2332, %v2324
    %v3029 = vpack.c.b16 %v2333, %v2325
    %v3030 = vpack.c.b16 %v2334, %v2326
    %v3031 = vpack.c.b16 %v2335, %v2327
    %v3032 = vpack.c.b16 %v2344, %v2336
    %v3033 = vpack.c.b16 %v2345, %v2337
    %v3034 = vpack.c.b16 %v2346, %v2338
    %v3035 = vpack.c.b16 %v2347, %v2339
    %v3036 = vpack.c.b16 %v2348, %v2340
    %v3037 = vpack.c.b16 %v2349, %v2341
    %v3038 = vpack.c.b16 %v2350, %v2342
    %v3039 = vpack.c.b16 %v2351, %v2343
    %v3040 = vpack.c.b16 %v2360, %v2352
    %v3041 = vpack.c.b16 %v2361, %v2353
    %v3042 = vpack.c.b16 %v2362, %v2354
    %v3043 = vpack.c.b16 %v2363, %v2355
    %v3044 = vpack.c.b16 %v2364, %v2356
    %v3045 = vpack.c.b16 %v2365, %v2357
    %v3046 = vpack.c.b16 %v2366, %v2358
    %v3047 = vpack.c.b16 %v2367, %v2359
    %v3048 = vpack.c.b16 %v2376, %v2368
    %v3049 = vpack.c.b16 %v2377, %v2369
    %v3050 = vpack.c.b16 %v2378, %v2370
    %v3051 = vpack.c.b16 %v2379, %v2371
    %v3052 = vpack.c.b16 %v2380, %v2372
    %v3053 = vpack.c.b16 %v2381, %v2373
    %v3054 = vpack.c.b16 %v2382, %v2374
    %v3055 = vpack.c.b16 %v2383, %v2375
    %v3056 = vpack.c.b16 %v2392, %v2384
    %v3057 = vpack.c.b16 %v2393, %v2385
    %v3058 = vpack.c.b16 %v2394, %v2386
    %v3059 = vpack.c.b16 %v2395, %v2387
    %v3060 = vpack.c.b16 %v2396, %v2388
    %v3061 = vpack.c.b16 %v2397, %v2389
    %v3062 = vpack.c.b16 %v2398, %v2390
    %v3063 = vpack.c.b16 %v2399, %v2391
    %v3064 = vpack.c.b16 %v2408, %v2400
    %v3065 = vpack.c.b16 %v2409, %v2401
    %v3066 = vpack.c.b16 %v2410, %v2402
    %v3067 = vpack.c.b16 %v2411, %v2403
    %v3068 = vpack.c.b16 %v2412, %v2404
    %v3069 = vpack.c.b16 %v2413, %v2405
    %v3070 = vpack.c.b16 %v2414, %v2406
    %v3071 = vpack.c.b16 %v2415, %v2407
    %v3072 = vpack.c.b16 %v2424, %v2416
    %v3073 = vpack.c.b16 %v2425, %v2417
    %v3074 = vpack.c.b16 %v2426, %v2418
    %v3075 = vpack.c.b16 %v2427, %v2419
    %v3076 = vpack.c.b16 %v2428, %v2420
    %v3077 = vpack.c.b16 %v2429, %v2421
    %v3078 = vpack.c.b16 %v2430, %v2422
    %v3079 = vpack.c.b16 %v2431, %v2423
    %v3080 = vpack.c.b16 %v2440, %v2432
    %v3081 = vpack.c.b16 %v2441, %v2433
    %v3082 = vpack.c.b16 %v2442, %v2434
    %v3083 = vpack.c.b16 %v2443, %v2435
    %v3084 = vpack.c.b16 %v2444, %v2436
    %v3085 = vpack.c.b16 %v2445, %v2437
    %v3086 = vpack.c.b16 %v2446, %v2438
    %v3087 = vpack.c.b16 %v2447, %v2439
    %v3088 = vpack.c.b16 %v2456, %v2448
    %v3089 = vpack.c.b16 %v2457, %v2449
    %v3090 = vpack.c.b16 %v2458, %v2450
    %v3091 = vpack.c.b16 %v2459, %v2451
    %v3092 = vpack.c.b16 %v2460, %v2452
    %v3093 = vpack.c.b16 %v2461, %v2453
    %v3094 = vpack.c.b16 %v2462, %v2454
    %v3095 = vpack.c.b16 %v2463, %v2455
    %v3096 = vpack.c.b16 %v2472, %v2464
    %v3097 = vpack.c.b16 %v2473, %v2465
    %v3098 = vpack.c.b16 %v2474, %v2466
    %v3099 = vpack.c.b16 %v2475, %v2467
    %v3100 = vpack.c.b16 %v2476, %v2468
    %v3101 = vpack.c.b16 %v2477, %v2469
    %v3102 = vpack.c.b16 %v2478, %v2470
    %v3103 = vpack.c.b16 %v2479, %v2471
    %v3104 = vpack.c.b16 %v2488, %v2480
    %v3105 = vpack.c.b16 %v2489, %v2481
    %v3106 = vpack.c.b16 %v2490, %v2482
    %v3107 = vpack.c.b16 %v2491, %v2483
    %v3108 = vpack.c.b16 %v2492, %v2484
    %v3109 = vpack.c.b16 %v2493, %v2485
    %v3110 = vpack.c.b16 %v2494, %v2486
    %v3111 = vpack.c.b16 %v2495, %v2487
    %v3112 = vpack.c.b16 %v2504, %v2496
    %v3113 = vpack.c.b16 %v2505, %v2497
    %v3114 = vpack.c.b16 %v2506, %v2498
    %v3115 = vpack.c.b16 %v2507, %v2499
    %v3116 = vpack.c.b16 %v2508, %v2500
    %v3117 = vpack.c.b16 %v2509, %v2501
    %v3118 = vpack.c.b16 %v2510, %v2502
    %v3119 = vpack.c.b16 %v2511, %v2503
    %v3120 = vpack.c.b16 %v2520, %v2512
    %v3121 = vpack.c.b16 %v2521, %v2513
    %v3122 = vpack.c.b16 %v2522, %v2514
    %v3123 = vpack.c.b16 %v2523, %v2515
    %v3124 = vpack.c.b16 %v2524, %v2516
    %v3125 = vpack.c.b16 %v2525, %v2517
    %v3126 = vpack.c.b16 %v2526, %v2518
    %v3127 = vpack.c.b16 %v2527, %v2519
    %v3128 = vpack.c.b16 %v2536, %v2528
    %v3129 = vpack.c.b16 %v2537, %v2529
    %v3130 = vpack.c.b16 %v2538, %v2530
    %v3131 = vpack.c.b16 %v2539, %v2531
    %v3132 = vpack.c.b16 %v2540, %v2532
    %v3133 = vpack.c.b16 %v2541, %v2533
    %v3134 = vpack.c.b16 %v2542, %v2534
    %v3135 = vpack.c.b16 %v2543, %v2535
    %v3136 = vpack.c.b16 %v2552, %v2544
    %v3137 = vpack.c.b16 %v2553, %v2545
    %v3138 = vpack.c.b16 %v2554, %v2546
    %v3139 = vpack.c.b16 %v2555, %v2547
    %v3140 = vpack.c.b16 %v2556, %v2548
    %v3141 = vpack.c.b16 %v2557, %v2549
    %v3142 = vpack.c.b16 %v2558, %v2550
    %v3143 = vpack.c.b16 %v2559, %v2551
    %v3144 = vpack.c.b16 %v2568, %v2560
    %v3145 = vpack.c.b16 %v2569, %v2561
    %v3146 = vpack.c.b16 %v2570, %v2562
    %v3147 = vpack.c.b16 %v2571, %v2563
    %v3148 = vpack.c.b16 %v2572, %v2564
    %v3149 = vpack.c.b16 %v2573, %v2565
    %v3150 = vpack.c.b16 %v2574, %v2566
    %v3151 = vpack.c.b16 %v2575, %v2567
    %v3152 = vpack.c.b16 %v2584, %v2576
    %v3153 = vpack.c.b16 %v2585, %v2577
    %v3154 = vpack.c.b16 %v2586, %v2578
    %v3155 = vpack.c.b16 %v2587, %v2579
    %v3156 = vpack.c.b16 %v2588, %v2580
    %v3157 = vpack.c.b16 %v2589, %v2581
    %v3158 = vpack.c.b16 %v2590, %v2582
    %v3159 = vpack.c.b16 %v2591, %v2583
    %v3160 = vpack.c.b16 %v2600, %v2592
    %v3161 = vpack.c.b16 %v2601, %v2593
    %v3162 = vpack.c.b16 %v2602, %v2594
    %v3163 = vpack.c.b16 %v2603, %v2595
    %v3164 = vpack.c.b16 %v2604, %v2596
    %v3165 = vpack.c.b16 %v2605, %v2597
    %v3166 = vpack.c.b16 %v2606, %v2598
    %v3167 = vpack.c.b16 %v2607, %v2599
    %v3168 = vpack.c.b16 %v2616, %v2608
    %v3169 = vpack.c.b16 %v2617, %v2609
    %v3170 = vpack.c.b16 %v2618, %v2610
    %v3171 = vpack.c.b16 %v2619, %v2611
    %v3172 = vpack.c.b16 %v2620, %v2612
    %v3173 = vpack.c.b16 %v2621, %v2613
    %v3174 = vpack.c.b16 %v2622, %v2614
    %v3175 = vpack.c.b16 %v2623, %v2615
    %v3176 = vpack.c.b16 %v2632, %v2624
    %v3177 = vpack.c.b16 %v2633, %v2625
    %v3178 = vpack.c.b16 %v2634, %v2626
    %v3179 = vpack.c.b16 %v2635, %v2627
    %v3180 = vpack.c.b16 %v2636, %v2628
    %v3181 = vpack.c.b16 %v2637, %v2629
    %v3182 = vpack.c.b16 %v2638, %v2630
    %v3183 = vpack.c.b16 %v2639, %v2631
    %v3184 = vpack.c.b16 %v2648, %v2640
    %v3185 = vpack.c.b16 %v2649, %v2641
    %v3186 = vpack.c.b16 %v2650, %v2642
    %v3187 = vpack.c.b16 %v2651, %v2643
    %v3188 = vpack.c.b16 %v2652, %v2644
    %v3189 = vpack.c.b16 %v2653, %v2645
    %v3190 = vpack.c.b16 %v2654, %v2646
    %v3191 = vpack.c.b16 %v2655, %v2647
    %v3192 = vpack.c.b16 %v2664, %v2656
    %v3193 = vpack.c.b16 %v2665, %v2657
    %v3194 = vpack.c.b16 %v2666, %v2658
    %v3195 = vpack.c.b16 %v2667, %v2659
    %v3196 = vpack.c.b16 %v2668, %v2660
    %v3197 = vpack.c.b16 %v2669, %v2661
    %v3198 = vpack.c.b16 %v2670, %v2662
    %v3199 = vpack.c.b16 %v2671, %v2663
    %v3200 = vpack.c.b16 %v2680, %v2672
    %v3201 = vpack.c.b16 %v2681, %v2673
    %v3202 = vpack.c.b16 %v2682, %v2674
    %v3203 = vpack.c.b16 %v2683, %v2675
    %v3204 = vpack.c.b16 %v2684, %v2676
    %v3205 = vpack.c.b16 %v2685, %v2677
    %v3206 = vpack.c.b16 %v2686, %v2678
    %v3207 = vpack.c.b16 %v2687, %v2679
    %v3208 = vpack.c.b16 %v2696, %v2688
    %v3209 = vpack.c.b16 %v2697, %v2689
    %v3210 = vpack.c.b16 %v2698, %v2690
    %v3211 = vpack.c.b16 %v2699, %v2691
    %v3212 = vpack.c.b16 %v2700, %v2692
    %v3213 = vpack.c.b16 %v2701, %v2693
    %v3214 = vpack.c.b16 %v2702, %v2694
    %v3215 = vpack.c.b16 %v2703, %v2695
    %3728 = vmatpush.bf16.msra.mxu0 %v2760
    %3729 = vmatpush.bf16.msra.mxu0 %v2752
    %3730 = vmatpush.bf16.msra.mxu0 %v2744
    %3731 = vmatpush.bf16.msra.mxu0 %v2736
    %3732 = vmatpush.bf16.msra.mxu0 %v2728
    %3733 = vmatpush.bf16.msra.mxu0 %v2720
    %3734 = vmatpush.bf16.msra.mxu0 %v2712
    %3735 = vmatpush.bf16.msra.mxu0 %v2704
    %3736 = vmatmul.bf16.gmra.mxu0 %v630
    %v3737 = vpop.f32.mrf.mxu0
    %v3738 = vadd.f32 %v1152, %v3737
    %v3739 = vpop.f32.mrf.mxu0
    %3740 = vdwg.mxu0
    %3741 = vmatpush.bf16.msra.mxu0 %v2824
    %3742 = vmatpush.bf16.msra.mxu0 %v2816
    %3743 = vmatpush.bf16.msra.mxu0 %v2808
    %3744 = vmatpush.bf16.msra.mxu0 %v2800
    %3745 = vmatpush.bf16.msra.mxu0 %v2792
    %3746 = vmatpush.bf16.msra.mxu0 %v2784
    %3747 = vmatpush.bf16.msra.mxu0 %v2776
    %3748 = vmatpush.bf16.msra.mxu0 %v2768
    %3749 = vmatmul.bf16.gmra.mxu0 %v631
    %v3750 = vpop.f32.mrf.mxu0
    %v3751 = vadd.f32 %v3738, %v3750
    %v3752 = vpop.f32.mrf.mxu0
    %3753 = vdwg.mxu0
    %3754 = vmatpush.bf16.msra.mxu0 %v2888
    %3755 = vmatpush.bf16.msra.mxu0 %v2880
    %3756 = vmatpush.bf16.msra.mxu0 %v2872
    %3757 = vmatpush.bf16.msra.mxu0 %v2864
    %3758 = vmatpush.bf16.msra.mxu0 %v2856
    %3759 = vmatpush.bf16.msra.mxu0 %v2848
    %3760 = vmatpush.bf16.msra.mxu0 %v2840
    %3761 = vmatpush.bf16.msra.mxu0 %v2832
    %3762 = vmatmul.bf16.gmra.mxu0 %v632
    %v3763 = vpop.f32.mrf.mxu0
    %v3764 = vadd.f32 %v3751, %v3763
    %v3765 = vpop.f32.mrf.mxu0
    %3766 = vdwg.mxu0
    %3767 = vmatpush.bf16.msra.mxu0 %v2952
    %3768 = vmatpush.bf16.msra.mxu0 %v2944
    %3769 = vmatpush.bf16.msra.mxu0 %v2936
    %3770 = vmatpush.bf16.msra.mxu0 %v2928
    %3771 = vmatpush.bf16.msra.mxu0 %v2920
    %3772 = vmatpush.bf16.msra.mxu0 %v2912
    %3773 = vmatpush.bf16.msra.mxu0 %v2904
    %3774 = vmatpush.bf16.msra.mxu0 %v2896
    %3775 = vmatmul.bf16.gmra.mxu0 %v633
    %v3776 = vpop.f32.mrf.mxu0
    %v3777 = vadd.f32 %v3764, %v3776
    %v3778 = vpop.f32.mrf.mxu0
    %3779 = vdwg.mxu0
    %3780 = vmatpush.bf16.msra.mxu0 %v3016
    %3781 = vmatpush.bf16.msra.mxu0 %v3008
    %3782 = vmatpush.bf16.msra.mxu0 %v3000
    %3783 = vmatpush.bf16.msra.mxu0 %v2992
    %3784 = vmatpush.bf16.msra.mxu0 %v2984
    %3785 = vmatpush.bf16.msra.mxu0 %v2976
    %3786 = vmatpush.bf16.msra.mxu0 %v2968
    %3787 = vmatpush.bf16.msra.mxu0 %v2960
    %3788 = vmatmul.bf16.gmra.mxu0 %v634
    %v3789 = vpop.f32.mrf.mxu0
    %v3790 = vadd.f32 %v3777, %v3789
    %v3791 = vpop.f32.mrf.mxu0
    %3792 = vdwg.mxu0
    %3793 = vmatpush.bf16.msra.mxu0 %v3080
    %3794 = vmatpush.bf16.msra.mxu0 %v3072
    %3795 = vmatpush.bf16.msra.mxu0 %v3064
    %3796 = vmatpush.bf16.msra.mxu0 %v3056
    %3797 = vmatpush.bf16.msra.mxu0 %v3048
    %3798 = vmatpush.bf16.msra.mxu0 %v3040
    %3799 = vmatpush.bf16.msra.mxu0 %v3032
    %3800 = vmatpush.bf16.msra.mxu0 %v3024
    %3801 = vmatmul.bf16.gmra.mxu0 %v635
    %v3802 = vpop.f32.mrf.mxu0
    %v3803 = vadd.f32 %v3790, %v3802
    %v3804 = vpop.f32.mrf.mxu0
    %3805 = vdwg.mxu0
    %3806 = vmatpush.bf16.msra.mxu0 %v3144
    %3807 = vmatpush.bf16.msra.mxu0 %v3136
    %3808 = vmatpush.bf16.msra.mxu0 %v3128
    %3809 = vmatpush.bf16.msra.mxu0 %v3120
    %3810 = vmatpush.bf16.msra.mxu0 %v3112
    %3811 = vmatpush.bf16.msra.mxu0 %v3104
    %3812 = vmatpush.bf16.msra.mxu0 %v3096
    %3813 = vmatpush.bf16.msra.mxu0 %v3088
    %3814 = vmatmul.bf16.gmra.mxu0 %v636
    %v3815 = vpop.f32.mrf.mxu0
    %v3816 = vadd.f32 %v3803, %v3815
    %v3817 = vpop.f32.mrf.mxu0
    %3818 = vdwg.mxu0
    %3819 = vmatpush.bf16.msra.mxu0 %v3208
    %3820 = vmatpush.bf16.msra.mxu0 %v3200
    %3821 = vmatpush.bf16.msra.mxu0 %v3192
    %3822 = vmatpush.bf16.msra.mxu0 %v3184
    %3823 = vmatpush.bf16.msra.mxu0 %v3176
    %3824 = vmatpush.bf16.msra.mxu0 %v3168
    %3825 = vmatpush.bf16.msra.mxu0 %v3160
    %3826 = vmatpush.bf16.msra.mxu0 %v3152
    %3827 = vmatmul.bf16.gmra.mxu0 %v637
    %v3828 = vpop.f32.mrf.mxu0
    %v3829 = vadd.f32 %v3816, %v3828
    %v3830 = vpop.f32.mrf.mxu0
    %3831 = vdwg.mxu0
    %3832 = vmatpush.bf16.msra.mxu0 %v2761
    %3833 = vmatpush.bf16.msra.mxu0 %v2753
    %3834 = vmatpush.bf16.msra.mxu0 %v2745
    %3835 = vmatpush.bf16.msra.mxu0 %v2737
    %3836 = vmatpush.bf16.msra.mxu0 %v2729
    %3837 = vmatpush.bf16.msra.mxu0 %v2721
    %3838 = vmatpush.bf16.msra.mxu0 %v2713
    %3839 = vmatpush.bf16.msra.mxu0 %v2705
    %3840 = vmatmul.bf16.gmra.mxu0 %v630
    %v3841 = vpop.f32.mrf.mxu0
    %v3842 = vadd.f32 %v1153, %v3841
    %v3843 = vpop.f32.mrf.mxu0
    %3844 = vdwg.mxu0
    %3845 = vmatpush.bf16.msra.mxu0 %v2825
    %3846 = vmatpush.bf16.msra.mxu0 %v2817
    %3847 = vmatpush.bf16.msra.mxu0 %v2809
    %3848 = vmatpush.bf16.msra.mxu0 %v2801
    %3849 = vmatpush.bf16.msra.mxu0 %v2793
    %3850 = vmatpush.bf16.msra.mxu0 %v2785
    %3851 = vmatpush.bf16.msra.mxu0 %v2777
    %3852 = vmatpush.bf16.msra.mxu0 %v2769
    %3853 = vmatmul.bf16.gmra.mxu0 %v631
    %v3854 = vpop.f32.mrf.mxu0
    %v3855 = vadd.f32 %v3842, %v3854
    %v3856 = vpop.f32.mrf.mxu0
    %3857 = vdwg.mxu0
    %3858 = vmatpush.bf16.msra.mxu0 %v2889
    %3859 = vmatpush.bf16.msra.mxu0 %v2881
    %3860 = vmatpush.bf16.msra.mxu0 %v2873
    %3861 = vmatpush.bf16.msra.mxu0 %v2865
    %3862 = vmatpush.bf16.msra.mxu0 %v2857
    %3863 = vmatpush.bf16.msra.mxu0 %v2849
    %3864 = vmatpush.bf16.msra.mxu0 %v2841
    %3865 = vmatpush.bf16.msra.mxu0 %v2833
    %3866 = vmatmul.bf16.gmra.mxu0 %v632
    %v3867 = vpop.f32.mrf.mxu0
    %v3868 = vadd.f32 %v3855, %v3867
    %v3869 = vpop.f32.mrf.mxu0
    %3870 = vdwg.mxu0
    %3871 = vmatpush.bf16.msra.mxu0 %v2953
    %3872 = vmatpush.bf16.msra.mxu0 %v2945
    %3873 = vmatpush.bf16.msra.mxu0 %v2937
    %3874 = vmatpush.bf16.msra.mxu0 %v2929
    %3875 = vmatpush.bf16.msra.mxu0 %v2921
    %3876 = vmatpush.bf16.msra.mxu0 %v2913
    %3877 = vmatpush.bf16.msra.mxu0 %v2905
    %3878 = vmatpush.bf16.msra.mxu0 %v2897
    %3879 = vmatmul.bf16.gmra.mxu0 %v633
    %v3880 = vpop.f32.mrf.mxu0
    %v3881 = vadd.f32 %v3868, %v3880
    %v3882 = vpop.f32.mrf.mxu0
    %3883 = vdwg.mxu0
    %3884 = vmatpush.bf16.msra.mxu0 %v3017
    %3885 = vmatpush.bf16.msra.mxu0 %v3009
    %3886 = vmatpush.bf16.msra.mxu0 %v3001
    %3887 = vmatpush.bf16.msra.mxu0 %v2993
    %3888 = vmatpush.bf16.msra.mxu0 %v2985
    %3889 = vmatpush.bf16.msra.mxu0 %v2977
    %3890 = vmatpush.bf16.msra.mxu0 %v2969
    %3891 = vmatpush.bf16.msra.mxu0 %v2961
    %3892 = vmatmul.bf16.gmra.mxu0 %v634
    %v3893 = vpop.f32.mrf.mxu0
    %v3894 = vadd.f32 %v3881, %v3893
    %v3895 = vpop.f32.mrf.mxu0
    %3896 = vdwg.mxu0
    %3897 = vmatpush.bf16.msra.mxu0 %v3081
    %3898 = vmatpush.bf16.msra.mxu0 %v3073
    %3899 = vmatpush.bf16.msra.mxu0 %v3065
    %3900 = vmatpush.bf16.msra.mxu0 %v3057
    %3901 = vmatpush.bf16.msra.mxu0 %v3049
    %3902 = vmatpush.bf16.msra.mxu0 %v3041
    %3903 = vmatpush.bf16.msra.mxu0 %v3033
    %3904 = vmatpush.bf16.msra.mxu0 %v3025
    %3905 = vmatmul.bf16.gmra.mxu0 %v635
    %v3906 = vpop.f32.mrf.mxu0
    %v3907 = vadd.f32 %v3894, %v3906
    %v3908 = vpop.f32.mrf.mxu0
    %3909 = vdwg.mxu0
    %3910 = vmatpush.bf16.msra.mxu0 %v3145
    %3911 = vmatpush.bf16.msra.mxu0 %v3137
    %3912 = vmatpush.bf16.msra.mxu0 %v3129
    %3913 = vmatpush.bf16.msra.mxu0 %v3121
    %3914 = vmatpush.bf16.msra.mxu0 %v3113
    %3915 = vmatpush.bf16.msra.mxu0 %v3105
    %3916 = vmatpush.bf16.msra.mxu0 %v3097
    %3917 = vmatpush.bf16.msra.mxu0 %v3089
    %3918 = vmatmul.bf16.gmra.mxu0 %v636
    %v3919 = vpop.f32.mrf.mxu0
    %v3920 = vadd.f32 %v3907, %v3919
    %v3921 = vpop.f32.mrf.mxu0
    %3922 = vdwg.mxu0
    %3923 = vmatpush.bf16.msra.mxu0 %v3209
    %3924 = vmatpush.bf16.msra.mxu0 %v3201
    %3925 = vmatpush.bf16.msra.mxu0 %v3193
    %3926 = vmatpush.bf16.msra.mxu0 %v3185
    %3927 = vmatpush.bf16.msra.mxu0 %v3177
    %3928 = vmatpush.bf16.msra.mxu0 %v3169
    %3929 = vmatpush.bf16.msra.mxu0 %v3161
    %3930 = vmatpush.bf16.msra.mxu0 %v3153
    %3931 = vmatmul.bf16.gmra.mxu0 %v637
    %v3932 = vpop.f32.mrf.mxu0
    %v3933 = vadd.f32 %v3920, %v3932
    %v3934 = vpop.f32.mrf.mxu0
    %3935 = vdwg.mxu0
    %3936 = vmatpush.bf16.msra.mxu0 %v2762
    %3937 = vmatpush.bf16.msra.mxu0 %v2754
    %3938 = vmatpush.bf16.msra.mxu0 %v2746
    %3939 = vmatpush.bf16.msra.mxu0 %v2738
    %3940 = vmatpush.bf16.msra.mxu0 %v2730
    %3941 = vmatpush.bf16.msra.mxu0 %v2722
    %3942 = vmatpush.bf16.msra.mxu0 %v2714
    %3943 = vmatpush.bf16.msra.mxu0 %v2706
    %3944 = vmatmul.bf16.gmra.mxu0 %v630
    %v3945 = vpop.f32.mrf.mxu0
    %v3946 = vadd.f32 %v1154, %v3945
    %v3947 = vpop.f32.mrf.mxu0
    %3948 = vdwg.mxu0
    %3949 = vmatpush.bf16.msra.mxu0 %v2826
    %3950 = vmatpush.bf16.msra.mxu0 %v2818
    %3951 = vmatpush.bf16.msra.mxu0 %v2810
    %3952 = vmatpush.bf16.msra.mxu0 %v2802
    %3953 = vmatpush.bf16.msra.mxu0 %v2794
    %3954 = vmatpush.bf16.msra.mxu0 %v2786
    %3955 = vmatpush.bf16.msra.mxu0 %v2778
    %3956 = vmatpush.bf16.msra.mxu0 %v2770
    %3957 = vmatmul.bf16.gmra.mxu0 %v631
    %v3958 = vpop.f32.mrf.mxu0
    %v3959 = vadd.f32 %v3946, %v3958
    %v3960 = vpop.f32.mrf.mxu0
    %3961 = vdwg.mxu0
    %3962 = vmatpush.bf16.msra.mxu0 %v2890
    %3963 = vmatpush.bf16.msra.mxu0 %v2882
    %3964 = vmatpush.bf16.msra.mxu0 %v2874
    %3965 = vmatpush.bf16.msra.mxu0 %v2866
    %3966 = vmatpush.bf16.msra.mxu0 %v2858
    %3967 = vmatpush.bf16.msra.mxu0 %v2850
    %3968 = vmatpush.bf16.msra.mxu0 %v2842
    %3969 = vmatpush.bf16.msra.mxu0 %v2834
    %3970 = vmatmul.bf16.gmra.mxu0 %v632
    %v3971 = vpop.f32.mrf.mxu0
    %v3972 = vadd.f32 %v3959, %v3971
    %v3973 = vpop.f32.mrf.mxu0
    %3974 = vdwg.mxu0
    %3975 = vmatpush.bf16.msra.mxu0 %v2954
    %3976 = vmatpush.bf16.msra.mxu0 %v2946
    %3977 = vmatpush.bf16.msra.mxu0 %v2938
    %3978 = vmatpush.bf16.msra.mxu0 %v2930
    %3979 = vmatpush.bf16.msra.mxu0 %v2922
    %3980 = vmatpush.bf16.msra.mxu0 %v2914
    %3981 = vmatpush.bf16.msra.mxu0 %v2906
    %3982 = vmatpush.bf16.msra.mxu0 %v2898
    %3983 = vmatmul.bf16.gmra.mxu0 %v633
    %v3984 = vpop.f32.mrf.mxu0
    %v3985 = vadd.f32 %v3972, %v3984
    %v3986 = vpop.f32.mrf.mxu0
    %3987 = vdwg.mxu0
    %3988 = vmatpush.bf16.msra.mxu0 %v3018
    %3989 = vmatpush.bf16.msra.mxu0 %v3010
    %3990 = vmatpush.bf16.msra.mxu0 %v3002
    %3991 = vmatpush.bf16.msra.mxu0 %v2994
    %3992 = vmatpush.bf16.msra.mxu0 %v2986
    %3993 = vmatpush.bf16.msra.mxu0 %v2978
    %3994 = vmatpush.bf16.msra.mxu0 %v2970
    %3995 = vmatpush.bf16.msra.mxu0 %v2962
    %3996 = vmatmul.bf16.gmra.mxu0 %v634
    %v3997 = vpop.f32.mrf.mxu0
    %v3998 = vadd.f32 %v3985, %v3997
    %v3999 = vpop.f32.mrf.mxu0
    %4000 = vdwg.mxu0
    %4001 = vmatpush.bf16.msra.mxu0 %v3082
    %4002 = vmatpush.bf16.msra.mxu0 %v3074
    %4003 = vmatpush.bf16.msra.mxu0 %v3066
    %4004 = vmatpush.bf16.msra.mxu0 %v3058
    %4005 = vmatpush.bf16.msra.mxu0 %v3050
    %4006 = vmatpush.bf16.msra.mxu0 %v3042
    %4007 = vmatpush.bf16.msra.mxu0 %v3034
    %4008 = vmatpush.bf16.msra.mxu0 %v3026
    %4009 = vmatmul.bf16.gmra.mxu0 %v635
    %v4010 = vpop.f32.mrf.mxu0
    %v4011 = vadd.f32 %v3998, %v4010
    %v4012 = vpop.f32.mrf.mxu0
    %4013 = vdwg.mxu0
    %4014 = vmatpush.bf16.msra.mxu0 %v3146
    %4015 = vmatpush.bf16.msra.mxu0 %v3138
    %4016 = vmatpush.bf16.msra.mxu0 %v3130
    %4017 = vmatpush.bf16.msra.mxu0 %v3122
    %4018 = vmatpush.bf16.msra.mxu0 %v3114
    %4019 = vmatpush.bf16.msra.mxu0 %v3106
    %4020 = vmatpush.bf16.msra.mxu0 %v3098
    %4021 = vmatpush.bf16.msra.mxu0 %v3090
    %4022 = vmatmul.bf16.gmra.mxu0 %v636
    %v4023 = vpop.f32.mrf.mxu0
    %v4024 = vadd.f32 %v4011, %v4023
    %v4025 = vpop.f32.mrf.mxu0
    %4026 = vdwg.mxu0
    %4027 = vmatpush.bf16.msra.mxu0 %v3210
    %4028 = vmatpush.bf16.msra.mxu0 %v3202
    %4029 = vmatpush.bf16.msra.mxu0 %v3194
    %4030 = vmatpush.bf16.msra.mxu0 %v3186
    %4031 = vmatpush.bf16.msra.mxu0 %v3178
    %4032 = vmatpush.bf16.msra.mxu0 %v3170
    %4033 = vmatpush.bf16.msra.mxu0 %v3162
    %4034 = vmatpush.bf16.msra.mxu0 %v3154
    %4035 = vmatmul.bf16.gmra.mxu0 %v637
    %v4036 = vpop.f32.mrf.mxu0
    %v4037 = vadd.f32 %v4024, %v4036
    %v4038 = vpop.f32.mrf.mxu0
    %4039 = vdwg.mxu0
    %4040 = vmatpush.bf16.msra.mxu0 %v2763
    %4041 = vmatpush.bf16.msra.mxu0 %v2755
    %4042 = vmatpush.bf16.msra.mxu0 %v2747
    %4043 = vmatpush.bf16.msra.mxu0 %v2739
    %4044 = vmatpush.bf16.msra.mxu0 %v2731
    %4045 = vmatpush.bf16.msra.mxu0 %v2723
    %4046 = vmatpush.bf16.msra.mxu0 %v2715
    %4047 = vmatpush.bf16.msra.mxu0 %v2707
    %4048 = vmatmul.bf16.gmra.mxu0 %v630
    %v4049 = vpop.f32.mrf.mxu0
    %v4050 = vadd.f32 %v1155, %v4049
    %v4051 = vpop.f32.mrf.mxu0
    %4052 = vdwg.mxu0
    %4053 = vmatpush.bf16.msra.mxu0 %v2827
    %4054 = vmatpush.bf16.msra.mxu0 %v2819
    %4055 = vmatpush.bf16.msra.mxu0 %v2811
    %4056 = vmatpush.bf16.msra.mxu0 %v2803
    %4057 = vmatpush.bf16.msra.mxu0 %v2795
    %4058 = vmatpush.bf16.msra.mxu0 %v2787
    %4059 = vmatpush.bf16.msra.mxu0 %v2779
    %4060 = vmatpush.bf16.msra.mxu0 %v2771
    %4061 = vmatmul.bf16.gmra.mxu0 %v631
    %v4062 = vpop.f32.mrf.mxu0
    %v4063 = vadd.f32 %v4050, %v4062
    %v4064 = vpop.f32.mrf.mxu0
    %4065 = vdwg.mxu0
    %4066 = vmatpush.bf16.msra.mxu0 %v2891
    %4067 = vmatpush.bf16.msra.mxu0 %v2883
    %4068 = vmatpush.bf16.msra.mxu0 %v2875
    %4069 = vmatpush.bf16.msra.mxu0 %v2867
    %4070 = vmatpush.bf16.msra.mxu0 %v2859
    %4071 = vmatpush.bf16.msra.mxu0 %v2851
    %4072 = vmatpush.bf16.msra.mxu0 %v2843
    %4073 = vmatpush.bf16.msra.mxu0 %v2835
    %4074 = vmatmul.bf16.gmra.mxu0 %v632
    %v4075 = vpop.f32.mrf.mxu0
    %v4076 = vadd.f32 %v4063, %v4075
    %v4077 = vpop.f32.mrf.mxu0
    %4078 = vdwg.mxu0
    %4079 = vmatpush.bf16.msra.mxu0 %v2955
    %4080 = vmatpush.bf16.msra.mxu0 %v2947
    %4081 = vmatpush.bf16.msra.mxu0 %v2939
    %4082 = vmatpush.bf16.msra.mxu0 %v2931
    %4083 = vmatpush.bf16.msra.mxu0 %v2923
    %4084 = vmatpush.bf16.msra.mxu0 %v2915
    %4085 = vmatpush.bf16.msra.mxu0 %v2907
    %4086 = vmatpush.bf16.msra.mxu0 %v2899
    %4087 = vmatmul.bf16.gmra.mxu0 %v633
    %v4088 = vpop.f32.mrf.mxu0
    %v4089 = vadd.f32 %v4076, %v4088
    %v4090 = vpop.f32.mrf.mxu0
    %4091 = vdwg.mxu0
    %4092 = vmatpush.bf16.msra.mxu0 %v3019
    %4093 = vmatpush.bf16.msra.mxu0 %v3011
    %4094 = vmatpush.bf16.msra.mxu0 %v3003
    %4095 = vmatpush.bf16.msra.mxu0 %v2995
    %4096 = vmatpush.bf16.msra.mxu0 %v2987
    %4097 = vmatpush.bf16.msra.mxu0 %v2979
    %4098 = vmatpush.bf16.msra.mxu0 %v2971
    %4099 = vmatpush.bf16.msra.mxu0 %v2963
    %4100 = vmatmul.bf16.gmra.mxu0 %v634
    %v4101 = vpop.f32.mrf.mxu0
    %v4102 = vadd.f32 %v4089, %v4101
    %v4103 = vpop.f32.mrf.mxu0
    %4104 = vdwg.mxu0
    %4105 = vmatpush.bf16.msra.mxu0 %v3083
    %4106 = vmatpush.bf16.msra.mxu0 %v3075
    %4107 = vmatpush.bf16.msra.mxu0 %v3067
    %4108 = vmatpush.bf16.msra.mxu0 %v3059
    %4109 = vmatpush.bf16.msra.mxu0 %v3051
    %4110 = vmatpush.bf16.msra.mxu0 %v3043
    %4111 = vmatpush.bf16.msra.mxu0 %v3035
    %4112 = vmatpush.bf16.msra.mxu0 %v3027
    %4113 = vmatmul.bf16.gmra.mxu0 %v635
    %v4114 = vpop.f32.mrf.mxu0
    %v4115 = vadd.f32 %v4102, %v4114
    %v4116 = vpop.f32.mrf.mxu0
    %4117 = vdwg.mxu0
    %4118 = vmatpush.bf16.msra.mxu0 %v3147
    %4119 = vmatpush.bf16.msra.mxu0 %v3139
    %4120 = vmatpush.bf16.msra.mxu0 %v3131
    %4121 = vmatpush.bf16.msra.mxu0 %v3123
    %4122 = vmatpush.bf16.msra.mxu0 %v3115
    %4123 = vmatpush.bf16.msra.mxu0 %v3107
    %4124 = vmatpush.bf16.msra.mxu0 %v3099
    %4125 = vmatpush.bf16.msra.mxu0 %v3091
    %4126 = vmatmul.bf16.gmra.mxu0 %v636
    %v4127 = vpop.f32.mrf.mxu0
    %v4128 = vadd.f32 %v4115, %v4127
    %v4129 = vpop.f32.mrf.mxu0
    %4130 = vdwg.mxu0
    %4131 = vmatpush.bf16.msra.mxu0 %v3211
    %4132 = vmatpush.bf16.msra.mxu0 %v3203
    %4133 = vmatpush.bf16.msra.mxu0 %v3195
    %4134 = vmatpush.bf16.msra.mxu0 %v3187
    %4135 = vmatpush.bf16.msra.mxu0 %v3179
    %4136 = vmatpush.bf16.msra.mxu0 %v3171
    %4137 = vmatpush.bf16.msra.mxu0 %v3163
    %4138 = vmatpush.bf16.msra.mxu0 %v3155
    %4139 = vmatmul.bf16.gmra.mxu0 %v637
    %v4140 = vpop.f32.mrf.mxu0
    %v4141 = vadd.f32 %v4128, %v4140
    %v4142 = vpop.f32.mrf.mxu0
    %4143 = vdwg.mxu0
    %4144 = vmatpush.bf16.msra.mxu0 %v2764
    %4145 = vmatpush.bf16.msra.mxu0 %v2756
    %4146 = vmatpush.bf16.msra.mxu0 %v2748
    %4147 = vmatpush.bf16.msra.mxu0 %v2740
    %4148 = vmatpush.bf16.msra.mxu0 %v2732
    %4149 = vmatpush.bf16.msra.mxu0 %v2724
    %4150 = vmatpush.bf16.msra.mxu0 %v2716
    %4151 = vmatpush.bf16.msra.mxu0 %v2708
    %4152 = vmatmul.bf16.gmra.mxu0 %v630
    %v4153 = vpop.f32.mrf.mxu0
    %v4154 = vadd.f32 %v1156, %v4153
    %v4155 = vpop.f32.mrf.mxu0
    %4156 = vdwg.mxu0
    %4157 = vmatpush.bf16.msra.mxu0 %v2828
    %4158 = vmatpush.bf16.msra.mxu0 %v2820
    %4159 = vmatpush.bf16.msra.mxu0 %v2812
    %4160 = vmatpush.bf16.msra.mxu0 %v2804
    %4161 = vmatpush.bf16.msra.mxu0 %v2796
    %4162 = vmatpush.bf16.msra.mxu0 %v2788
    %4163 = vmatpush.bf16.msra.mxu0 %v2780
    %4164 = vmatpush.bf16.msra.mxu0 %v2772
    %4165 = vmatmul.bf16.gmra.mxu0 %v631
    %v4166 = vpop.f32.mrf.mxu0
    %v4167 = vadd.f32 %v4154, %v4166
    %v4168 = vpop.f32.mrf.mxu0
    %4169 = vdwg.mxu0
    %4170 = vmatpush.bf16.msra.mxu0 %v2892
    %4171 = vmatpush.bf16.msra.mxu0 %v2884
    %4172 = vmatpush.bf16.msra.mxu0 %v2876
    %4173 = vmatpush.bf16.msra.mxu0 %v2868
    %4174 = vmatpush.bf16.msra.mxu0 %v2860
    %4175 = vmatpush.bf16.msra.mxu0 %v2852
    %4176 = vmatpush.bf16.msra.mxu0 %v2844
    %4177 = vmatpush.bf16.msra.mxu0 %v2836
    %4178 = vmatmul.bf16.gmra.mxu0 %v632
    %v4179 = vpop.f32.mrf.mxu0
    %v4180 = vadd.f32 %v4167, %v4179
    %v4181 = vpop.f32.mrf.mxu0
    %4182 = vdwg.mxu0
    %4183 = vmatpush.bf16.msra.mxu0 %v2956
    %4184 = vmatpush.bf16.msra.mxu0 %v2948
    %4185 = vmatpush.bf16.msra.mxu0 %v2940
    %4186 = vmatpush.bf16.msra.mxu0 %v2932
    %4187 = vmatpush.bf16.msra.mxu0 %v2924
    %4188 = vmatpush.bf16.msra.mxu0 %v2916
    %4189 = vmatpush.bf16.msra.mxu0 %v2908
    %4190 = vmatpush.bf16.msra.mxu0 %v2900
    %4191 = vmatmul.bf16.gmra.mxu0 %v633
    %v4192 = vpop.f32.mrf.mxu0
    %v4193 = vadd.f32 %v4180, %v4192
    %v4194 = vpop.f32.mrf.mxu0
    %4195 = vdwg.mxu0
    %4196 = vmatpush.bf16.msra.mxu0 %v3020
    %4197 = vmatpush.bf16.msra.mxu0 %v3012
    %4198 = vmatpush.bf16.msra.mxu0 %v3004
    %4199 = vmatpush.bf16.msra.mxu0 %v2996
    %4200 = vmatpush.bf16.msra.mxu0 %v2988
    %4201 = vmatpush.bf16.msra.mxu0 %v2980
    %4202 = vmatpush.bf16.msra.mxu0 %v2972
    %4203 = vmatpush.bf16.msra.mxu0 %v2964
    %4204 = vmatmul.bf16.gmra.mxu0 %v634
    %v4205 = vpop.f32.mrf.mxu0
    %v4206 = vadd.f32 %v4193, %v4205
    %v4207 = vpop.f32.mrf.mxu0
    %4208 = vdwg.mxu0
    %4209 = vmatpush.bf16.msra.mxu0 %v3084
    %4210 = vmatpush.bf16.msra.mxu0 %v3076
    %4211 = vmatpush.bf16.msra.mxu0 %v3068
    %4212 = vmatpush.bf16.msra.mxu0 %v3060
    %4213 = vmatpush.bf16.msra.mxu0 %v3052
    %4214 = vmatpush.bf16.msra.mxu0 %v3044
    %4215 = vmatpush.bf16.msra.mxu0 %v3036
    %4216 = vmatpush.bf16.msra.mxu0 %v3028
    %4217 = vmatmul.bf16.gmra.mxu0 %v635
    %v4218 = vpop.f32.mrf.mxu0
    %v4219 = vadd.f32 %v4206, %v4218
    %v4220 = vpop.f32.mrf.mxu0
    %4221 = vdwg.mxu0
    %4222 = vmatpush.bf16.msra.mxu0 %v3148
    %4223 = vmatpush.bf16.msra.mxu0 %v3140
    %4224 = vmatpush.bf16.msra.mxu0 %v3132
    %4225 = vmatpush.bf16.msra.mxu0 %v3124
    %4226 = vmatpush.bf16.msra.mxu0 %v3116
    %4227 = vmatpush.bf16.msra.mxu0 %v3108
    %4228 = vmatpush.bf16.msra.mxu0 %v3100
    %4229 = vmatpush.bf16.msra.mxu0 %v3092
    %4230 = vmatmul.bf16.gmra.mxu0 %v636
    %v4231 = vpop.f32.mrf.mxu0
    %v4232 = vadd.f32 %v4219, %v4231
    %v4233 = vpop.f32.mrf.mxu0
    %4234 = vdwg.mxu0
    %4235 = vmatpush.bf16.msra.mxu0 %v3212
    %4236 = vmatpush.bf16.msra.mxu0 %v3204
    %4237 = vmatpush.bf16.msra.mxu0 %v3196
    %4238 = vmatpush.bf16.msra.mxu0 %v3188
    %4239 = vmatpush.bf16.msra.mxu0 %v3180
    %4240 = vmatpush.bf16.msra.mxu0 %v3172
    %4241 = vmatpush.bf16.msra.mxu0 %v3164
    %4242 = vmatpush.bf16.msra.mxu0 %v3156
    %4243 = vmatmul.bf16.gmra.mxu0 %v637
    %v4244 = vpop.f32.mrf.mxu0
    %v4245 = vadd.f32 %v4232, %v4244
    %v4246 = vpop.f32.mrf.mxu0
    %4247 = vdwg.mxu0
    %4248 = vmatpush.bf16.msra.mxu0 %v2765
    %4249 = vmatpush.bf16.msra.mxu0 %v2757
    %4250 = vmatpush.bf16.msra.mxu0 %v2749
    %4251 = vmatpush.bf16.msra.mxu0 %v2741
    %4252 = vmatpush.bf16.msra.mxu0 %v2733
    %4253 = vmatpush.bf16.msra.mxu0 %v2725
    %4254 = vmatpush.bf16.msra.mxu0 %v2717
    %4255 = vmatpush.bf16.msra.mxu0 %v2709
    %4256 = vmatmul.bf16.gmra.mxu0 %v630
    %v4257 = vpop.f32.mrf.mxu0
    %v4258 = vadd.f32 %v1157, %v4257
    %v4259 = vpop.f32.mrf.mxu0
    %4260 = vdwg.mxu0
    %4261 = vmatpush.bf16.msra.mxu0 %v2829
    %4262 = vmatpush.bf16.msra.mxu0 %v2821
    %4263 = vmatpush.bf16.msra.mxu0 %v2813
    %4264 = vmatpush.bf16.msra.mxu0 %v2805
    %4265 = vmatpush.bf16.msra.mxu0 %v2797
    %4266 = vmatpush.bf16.msra.mxu0 %v2789
    %4267 = vmatpush.bf16.msra.mxu0 %v2781
    %4268 = vmatpush.bf16.msra.mxu0 %v2773
    %4269 = vmatmul.bf16.gmra.mxu0 %v631
    %v4270 = vpop.f32.mrf.mxu0
    %v4271 = vadd.f32 %v4258, %v4270
    %v4272 = vpop.f32.mrf.mxu0
    %4273 = vdwg.mxu0
    %4274 = vmatpush.bf16.msra.mxu0 %v2893
    %4275 = vmatpush.bf16.msra.mxu0 %v2885
    %4276 = vmatpush.bf16.msra.mxu0 %v2877
    %4277 = vmatpush.bf16.msra.mxu0 %v2869
    %4278 = vmatpush.bf16.msra.mxu0 %v2861
    %4279 = vmatpush.bf16.msra.mxu0 %v2853
    %4280 = vmatpush.bf16.msra.mxu0 %v2845
    %4281 = vmatpush.bf16.msra.mxu0 %v2837
    %4282 = vmatmul.bf16.gmra.mxu0 %v632
    %v4283 = vpop.f32.mrf.mxu0
    %v4284 = vadd.f32 %v4271, %v4283
    %v4285 = vpop.f32.mrf.mxu0
    %4286 = vdwg.mxu0
    %4287 = vmatpush.bf16.msra.mxu0 %v2957
    %4288 = vmatpush.bf16.msra.mxu0 %v2949
    %4289 = vmatpush.bf16.msra.mxu0 %v2941
    %4290 = vmatpush.bf16.msra.mxu0 %v2933
    %4291 = vmatpush.bf16.msra.mxu0 %v2925
    %4292 = vmatpush.bf16.msra.mxu0 %v2917
    %4293 = vmatpush.bf16.msra.mxu0 %v2909
    %4294 = vmatpush.bf16.msra.mxu0 %v2901
    %4295 = vmatmul.bf16.gmra.mxu0 %v633
    %v4296 = vpop.f32.mrf.mxu0
    %v4297 = vadd.f32 %v4284, %v4296
    %v4298 = vpop.f32.mrf.mxu0
    %4299 = vdwg.mxu0
    %4300 = vmatpush.bf16.msra.mxu0 %v3021
    %4301 = vmatpush.bf16.msra.mxu0 %v3013
    %4302 = vmatpush.bf16.msra.mxu0 %v3005
    %4303 = vmatpush.bf16.msra.mxu0 %v2997
    %4304 = vmatpush.bf16.msra.mxu0 %v2989
    %4305 = vmatpush.bf16.msra.mxu0 %v2981
    %4306 = vmatpush.bf16.msra.mxu0 %v2973
    %4307 = vmatpush.bf16.msra.mxu0 %v2965
    %4308 = vmatmul.bf16.gmra.mxu0 %v634
    %v4309 = vpop.f32.mrf.mxu0
    %v4310 = vadd.f32 %v4297, %v4309
    %v4311 = vpop.f32.mrf.mxu0
    %4312 = vdwg.mxu0
    %4313 = vmatpush.bf16.msra.mxu0 %v3085
    %4314 = vmatpush.bf16.msra.mxu0 %v3077
    %4315 = vmatpush.bf16.msra.mxu0 %v3069
    %4316 = vmatpush.bf16.msra.mxu0 %v3061
    %4317 = vmatpush.bf16.msra.mxu0 %v3053
    %4318 = vmatpush.bf16.msra.mxu0 %v3045
    %4319 = vmatpush.bf16.msra.mxu0 %v3037
    %4320 = vmatpush.bf16.msra.mxu0 %v3029
    %4321 = vmatmul.bf16.gmra.mxu0 %v635
    %v4322 = vpop.f32.mrf.mxu0
    %v4323 = vadd.f32 %v4310, %v4322
    %v4324 = vpop.f32.mrf.mxu0
    %4325 = vdwg.mxu0
    %4326 = vmatpush.bf16.msra.mxu0 %v3149
    %4327 = vmatpush.bf16.msra.mxu0 %v3141
    %4328 = vmatpush.bf16.msra.mxu0 %v3133
    %4329 = vmatpush.bf16.msra.mxu0 %v3125
    %4330 = vmatpush.bf16.msra.mxu0 %v3117
    %4331 = vmatpush.bf16.msra.mxu0 %v3109
    %4332 = vmatpush.bf16.msra.mxu0 %v3101
    %4333 = vmatpush.bf16.msra.mxu0 %v3093
    %4334 = vmatmul.bf16.gmra.mxu0 %v636
    %v4335 = vpop.f32.mrf.mxu0
    %v4336 = vadd.f32 %v4323, %v4335
    %v4337 = vpop.f32.mrf.mxu0
    %4338 = vdwg.mxu0
    %4339 = vmatpush.bf16.msra.mxu0 %v3213
    %4340 = vmatpush.bf16.msra.mxu0 %v3205
    %4341 = vmatpush.bf16.msra.mxu0 %v3197
    %4342 = vmatpush.bf16.msra.mxu0 %v3189
    %4343 = vmatpush.bf16.msra.mxu0 %v3181
    %4344 = vmatpush.bf16.msra.mxu0 %v3173
    %4345 = vmatpush.bf16.msra.mxu0 %v3165
    %4346 = vmatpush.bf16.msra.mxu0 %v3157
    %4347 = vmatmul.bf16.gmra.mxu0 %v637
    %v4348 = vpop.f32.mrf.mxu0
    %v4349 = vadd.f32 %v4336, %v4348
    %v4350 = vpop.f32.mrf.mxu0
    %4351 = vdwg.mxu0
    %4352 = vmatpush.bf16.msra.mxu0 %v2766
    %4353 = vmatpush.bf16.msra.mxu0 %v2758
    %4354 = vmatpush.bf16.msra.mxu0 %v2750
    %4355 = vmatpush.bf16.msra.mxu0 %v2742
    %4356 = vmatpush.bf16.msra.mxu0 %v2734
    %4357 = vmatpush.bf16.msra.mxu0 %v2726
    %4358 = vmatpush.bf16.msra.mxu0 %v2718
    %4359 = vmatpush.bf16.msra.mxu0 %v2710
    %4360 = vmatmul.bf16.gmra.mxu0 %v630
    %v4361 = vpop.f32.mrf.mxu0
    %v4362 = vadd.f32 %v1158, %v4361
    %v4363 = vpop.f32.mrf.mxu0
    %4364 = vdwg.mxu0
    %4365 = vmatpush.bf16.msra.mxu0 %v2830
    %4366 = vmatpush.bf16.msra.mxu0 %v2822
    %4367 = vmatpush.bf16.msra.mxu0 %v2814
    %4368 = vmatpush.bf16.msra.mxu0 %v2806
    %4369 = vmatpush.bf16.msra.mxu0 %v2798
    %4370 = vmatpush.bf16.msra.mxu0 %v2790
    %4371 = vmatpush.bf16.msra.mxu0 %v2782
    %4372 = vmatpush.bf16.msra.mxu0 %v2774
    %4373 = vmatmul.bf16.gmra.mxu0 %v631
    %v4374 = vpop.f32.mrf.mxu0
    %v4375 = vadd.f32 %v4362, %v4374
    %v4376 = vpop.f32.mrf.mxu0
    %4377 = vdwg.mxu0
    %4378 = vmatpush.bf16.msra.mxu0 %v2894
    %4379 = vmatpush.bf16.msra.mxu0 %v2886
    %4380 = vmatpush.bf16.msra.mxu0 %v2878
    %4381 = vmatpush.bf16.msra.mxu0 %v2870
    %4382 = vmatpush.bf16.msra.mxu0 %v2862
    %4383 = vmatpush.bf16.msra.mxu0 %v2854
    %4384 = vmatpush.bf16.msra.mxu0 %v2846
    %4385 = vmatpush.bf16.msra.mxu0 %v2838
    %4386 = vmatmul.bf16.gmra.mxu0 %v632
    %v4387 = vpop.f32.mrf.mxu0
    %v4388 = vadd.f32 %v4375, %v4387
    %v4389 = vpop.f32.mrf.mxu0
    %4390 = vdwg.mxu0
    %4391 = vmatpush.bf16.msra.mxu0 %v2958
    %4392 = vmatpush.bf16.msra.mxu0 %v2950
    %4393 = vmatpush.bf16.msra.mxu0 %v2942
    %4394 = vmatpush.bf16.msra.mxu0 %v2934
    %4395 = vmatpush.bf16.msra.mxu0 %v2926
    %4396 = vmatpush.bf16.msra.mxu0 %v2918
    %4397 = vmatpush.bf16.msra.mxu0 %v2910
    %4398 = vmatpush.bf16.msra.mxu0 %v2902
    %4399 = vmatmul.bf16.gmra.mxu0 %v633
    %v4400 = vpop.f32.mrf.mxu0
    %v4401 = vadd.f32 %v4388, %v4400
    %v4402 = vpop.f32.mrf.mxu0
    %4403 = vdwg.mxu0
    %4404 = vmatpush.bf16.msra.mxu0 %v3022
    %4405 = vmatpush.bf16.msra.mxu0 %v3014
    %4406 = vmatpush.bf16.msra.mxu0 %v3006
    %4407 = vmatpush.bf16.msra.mxu0 %v2998
    %4408 = vmatpush.bf16.msra.mxu0 %v2990
    %4409 = vmatpush.bf16.msra.mxu0 %v2982
    %4410 = vmatpush.bf16.msra.mxu0 %v2974
    %4411 = vmatpush.bf16.msra.mxu0 %v2966
    %4412 = vmatmul.bf16.gmra.mxu0 %v634
    %v4413 = vpop.f32.mrf.mxu0
    %v4414 = vadd.f32 %v4401, %v4413
    %v4415 = vpop.f32.mrf.mxu0
    %4416 = vdwg.mxu0
    %4417 = vmatpush.bf16.msra.mxu0 %v3086
    %4418 = vmatpush.bf16.msra.mxu0 %v3078
    %4419 = vmatpush.bf16.msra.mxu0 %v3070
    %4420 = vmatpush.bf16.msra.mxu0 %v3062
    %4421 = vmatpush.bf16.msra.mxu0 %v3054
    %4422 = vmatpush.bf16.msra.mxu0 %v3046
    %4423 = vmatpush.bf16.msra.mxu0 %v3038
    %4424 = vmatpush.bf16.msra.mxu0 %v3030
    %4425 = vmatmul.bf16.gmra.mxu0 %v635
    %v4426 = vpop.f32.mrf.mxu0
    %v4427 = vadd.f32 %v4414, %v4426
    %v4428 = vpop.f32.mrf.mxu0
    %4429 = vdwg.mxu0
    %4430 = vmatpush.bf16.msra.mxu0 %v3150
    %4431 = vmatpush.bf16.msra.mxu0 %v3142
    %4432 = vmatpush.bf16.msra.mxu0 %v3134
    %4433 = vmatpush.bf16.msra.mxu0 %v3126
    %4434 = vmatpush.bf16.msra.mxu0 %v3118
    %4435 = vmatpush.bf16.msra.mxu0 %v3110
    %4436 = vmatpush.bf16.msra.mxu0 %v3102
    %4437 = vmatpush.bf16.msra.mxu0 %v3094
    %4438 = vmatmul.bf16.gmra.mxu0 %v636
    %v4439 = vpop.f32.mrf.mxu0
    %v4440 = vadd.f32 %v4427, %v4439
    %v4441 = vpop.f32.mrf.mxu0
    %4442 = vdwg.mxu0
    %4443 = vmatpush.bf16.msra.mxu0 %v3214
    %4444 = vmatpush.bf16.msra.mxu0 %v3206
    %4445 = vmatpush.bf16.msra.mxu0 %v3198
    %4446 = vmatpush.bf16.msra.mxu0 %v3190
    %4447 = vmatpush.bf16.msra.mxu0 %v3182
    %4448 = vmatpush.bf16.msra.mxu0 %v3174
    %4449 = vmatpush.bf16.msra.mxu0 %v3166
    %4450 = vmatpush.bf16.msra.mxu0 %v3158
    %4451 = vmatmul.bf16.gmra.mxu0 %v637
    %v4452 = vpop.f32.mrf.mxu0
    %v4453 = vadd.f32 %v4440, %v4452
    %v4454 = vpop.f32.mrf.mxu0
    %4455 = vdwg.mxu0
    %4456 = vmatpush.bf16.msra.mxu0 %v2767
    %4457 = vmatpush.bf16.msra.mxu0 %v2759
    %4458 = vmatpush.bf16.msra.mxu0 %v2751
    %4459 = vmatpush.bf16.msra.mxu0 %v2743
    %4460 = vmatpush.bf16.msra.mxu0 %v2735
    %4461 = vmatpush.bf16.msra.mxu0 %v2727
    %4462 = vmatpush.bf16.msra.mxu0 %v2719
    %4463 = vmatpush.bf16.msra.mxu0 %v2711
    %4464 = vmatmul.bf16.gmra.mxu0 %v630
    %v4465 = vpop.f32.mrf.mxu0
    %v4466 = vadd.f32 %v1159, %v4465
    %v4467 = vpop.f32.mrf.mxu0
    %4468 = vdwg.mxu0
    %4469 = vmatpush.bf16.msra.mxu0 %v2831
    %4470 = vmatpush.bf16.msra.mxu0 %v2823
    %4471 = vmatpush.bf16.msra.mxu0 %v2815
    %4472 = vmatpush.bf16.msra.mxu0 %v2807
    %4473 = vmatpush.bf16.msra.mxu0 %v2799
    %4474 = vmatpush.bf16.msra.mxu0 %v2791
    %4475 = vmatpush.bf16.msra.mxu0 %v2783
    %4476 = vmatpush.bf16.msra.mxu0 %v2775
    %4477 = vmatmul.bf16.gmra.mxu0 %v631
    %v4478 = vpop.f32.mrf.mxu0
    %v4479 = vadd.f32 %v4466, %v4478
    %v4480 = vpop.f32.mrf.mxu0
    %4481 = vdwg.mxu0
    %4482 = vmatpush.bf16.msra.mxu0 %v2895
    %4483 = vmatpush.bf16.msra.mxu0 %v2887
    %4484 = vmatpush.bf16.msra.mxu0 %v2879
    %4485 = vmatpush.bf16.msra.mxu0 %v2871
    %4486 = vmatpush.bf16.msra.mxu0 %v2863
    %4487 = vmatpush.bf16.msra.mxu0 %v2855
    %4488 = vmatpush.bf16.msra.mxu0 %v2847
    %4489 = vmatpush.bf16.msra.mxu0 %v2839
    %4490 = vmatmul.bf16.gmra.mxu0 %v632
    %v4491 = vpop.f32.mrf.mxu0
    %v4492 = vadd.f32 %v4479, %v4491
    %v4493 = vpop.f32.mrf.mxu0
    %4494 = vdwg.mxu0
    %4495 = vmatpush.bf16.msra.mxu0 %v2959
    %4496 = vmatpush.bf16.msra.mxu0 %v2951
    %4497 = vmatpush.bf16.msra.mxu0 %v2943
    %4498 = vmatpush.bf16.msra.mxu0 %v2935
    %4499 = vmatpush.bf16.msra.mxu0 %v2927
    %4500 = vmatpush.bf16.msra.mxu0 %v2919
    %4501 = vmatpush.bf16.msra.mxu0 %v2911
    %4502 = vmatpush.bf16.msra.mxu0 %v2903
    %4503 = vmatmul.bf16.gmra.mxu0 %v633
    %v4504 = vpop.f32.mrf.mxu0
    %v4505 = vadd.f32 %v4492, %v4504
    %v4506 = vpop.f32.mrf.mxu0
    %4507 = vdwg.mxu0
    %4508 = vmatpush.bf16.msra.mxu0 %v3023
    %4509 = vmatpush.bf16.msra.mxu0 %v3015
    %4510 = vmatpush.bf16.msra.mxu0 %v3007
    %4511 = vmatpush.bf16.msra.mxu0 %v2999
    %4512 = vmatpush.bf16.msra.mxu0 %v2991
    %4513 = vmatpush.bf16.msra.mxu0 %v2983
    %4514 = vmatpush.bf16.msra.mxu0 %v2975
    %4515 = vmatpush.bf16.msra.mxu0 %v2967
    %4516 = vmatmul.bf16.gmra.mxu0 %v634
    %v4517 = vpop.f32.mrf.mxu0
    %v4518 = vadd.f32 %v4505, %v4517
    %v4519 = vpop.f32.mrf.mxu0
    %4520 = vdwg.mxu0
    %4521 = vmatpush.bf16.msra.mxu0 %v3087
    %4522 = vmatpush.bf16.msra.mxu0 %v3079
    %4523 = vmatpush.bf16.msra.mxu0 %v3071
    %4524 = vmatpush.bf16.msra.mxu0 %v3063
    %4525 = vmatpush.bf16.msra.mxu0 %v3055
    %4526 = vmatpush.bf16.msra.mxu0 %v3047
    %4527 = vmatpush.bf16.msra.mxu0 %v3039
    %4528 = vmatpush.bf16.msra.mxu0 %v3031
    %4529 = vmatmul.bf16.gmra.mxu0 %v635
    %v4530 = vpop.f32.mrf.mxu0
    %v4531 = vadd.f32 %v4518, %v4530
    %v4532 = vpop.f32.mrf.mxu0
    %4533 = vdwg.mxu0
    %4534 = vmatpush.bf16.msra.mxu0 %v3151
    %4535 = vmatpush.bf16.msra.mxu0 %v3143
    %4536 = vmatpush.bf16.msra.mxu0 %v3135
    %4537 = vmatpush.bf16.msra.mxu0 %v3127
    %4538 = vmatpush.bf16.msra.mxu0 %v3119
    %4539 = vmatpush.bf16.msra.mxu0 %v3111
    %4540 = vmatpush.bf16.msra.mxu0 %v3103
    %4541 = vmatpush.bf16.msra.mxu0 %v3095
    %4542 = vmatmul.bf16.gmra.mxu0 %v636
    %v4543 = vpop.f32.mrf.mxu0
    %v4544 = vadd.f32 %v4531, %v4543
    %v4545 = vpop.f32.mrf.mxu0
    %4546 = vdwg.mxu0
    %4547 = vmatpush.bf16.msra.mxu0 %v3215
    %4548 = vmatpush.bf16.msra.mxu0 %v3207
    %4549 = vmatpush.bf16.msra.mxu0 %v3199
    %4550 = vmatpush.bf16.msra.mxu0 %v3191
    %4551 = vmatpush.bf16.msra.mxu0 %v3183
    %4552 = vmatpush.bf16.msra.mxu0 %v3175
    %4553 = vmatpush.bf16.msra.mxu0 %v3167
    %4554 = vmatpush.bf16.msra.mxu0 %v3159
    %4555 = vmatmul.bf16.gmra.mxu0 %v637
    %v4556 = vpop.f32.mrf.mxu0
    %v4557 = vadd.f32 %v4544, %v4556
    %v4558 = vpop.f32.mrf.mxu0
    %4559 = vdwg.mxu0
    %v4560 = vmax.f32 %v3829, 0.0
    %v4561 = vmax.f32 %v3933, 0.0
    %v4562 = vmax.f32 %v4037, 0.0
    %v4563 = vmax.f32 %v4141, 0.0
    %v4564 = vmax.f32 %v4245, 0.0
    %v4565 = vmax.f32 %v4349, 0.0
    %v4566 = vmax.f32 %v4453, 0.0
    %v4567 = vmax.f32 %v4557, 0.0
    %v4568 = vpack.c.bf16 %v4560, %v4560
    %v4569 = vpack.c.bf16 %v4561, %v4561
    %v4570 = vpack.c.bf16 %v4562, %v4562
    %v4571 = vpack.c.bf16 %v4563, %v4563
    %v4572 = vpack.c.bf16 %v4564, %v4564
    %v4573 = vpack.c.bf16 %v4565, %v4565
    %v4574 = vpack.c.bf16 %v4566, %v4566
    %v4575 = vpack.c.bf16 %v4567, %v4567
    %v4576 = vld [vmem:[#allocation10] sm:$0xff]
    %v4577 = vld [vmem:[#allocation10 + $0x8] sm:$0xff]
    %v4578 = vld [vmem:[#allocation10 + $0x10] sm:$0xff]
    %v4579 = vld [vmem:[#allocation10 + $0x18] sm:$0xf]
    %v4580 = vld [vmem:[#allocation10 + $0x1c] sm:$0xff]
    %v4581 = vld [vmem:[#allocation10 + $0x24] sm:$0xff]
    %v4582 = vld [vmem:[#allocation10 + $0x2c] sm:$0xff]
    %v4583 = vld [vmem:[#allocation10 + $0x34] sm:$0xf]
    %v4584 = vld [vmem:[#allocation10 + $0x38] sm:$0xff]
    %v4585 = vld [vmem:[#allocation10 + $0x40] sm:$0xff]
    %v4586 = vld [vmem:[#allocation10 + $0x48] sm:$0xff]
    %v4587 = vld [vmem:[#allocation10 + $0x50] sm:$0xf]
    %v4588 = vld [vmem:[#allocation10 + $0x54] sm:$0xff]
    %v4589 = vld [vmem:[#allocation10 + $0x5c] sm:$0xff]
    %v4590 = vld [vmem:[#allocation10 + $0x64] sm:$0xff]
    %v4591 = vld [vmem:[#allocation10 + $0x6c] sm:$0xf]
    %v4592 = vld [vmem:[#allocation10 + $0x70] sm:$0xff]
    %v4593 = vld [vmem:[#allocation10 + $0x78] sm:$0xff]
    %v4594 = vld [vmem:[#allocation10 + $0x80] sm:$0xff]
    %v4595 = vld [vmem:[#allocation10 + $0x88] sm:$0xf]
    %v4596 = vld [vmem:[#allocation10 + $0x8c] sm:$0xff]
    %v4597 = vld [vmem:[#allocation10 + $0x94] sm:$0xff]
    %v4598 = vld [vmem:[#allocation10 + $0x9c] sm:$0xff]
    %v4599 = vld [vmem:[#allocation10 + $0xa4] sm:$0xf]
    %v4600 = vld [vmem:[#allocation10 + $0xa8] sm:$0xff]
    %v4601 = vld [vmem:[#allocation10 + $0xb0] sm:$0xff]
    %v4602 = vld [vmem:[#allocation10 + $0xb8] sm:$0xff]
    %v4603 = vld [vmem:[#allocation10 + $0xc0] sm:$0xf]
    %v4604 = vld [vmem:[#allocation10 + $0xc4] sm:$0xff]
    %v4605 = vld [vmem:[#allocation10 + $0xcc] sm:$0xff]
    %v4606 = vld [vmem:[#allocation10 + $0xd4] sm:$0xff]
    %v4607 = vld [vmem:[#allocation10 + $0xdc] sm:$0xf]
    %v4608 = vld [vmem:[#allocation10 + $0xe0] sm:$0xff]
    %v4609 = vld [vmem:[#allocation10 + $0xe8] sm:$0xff]
    %v4610 = vld [vmem:[#allocation10 + $0xf0] sm:$0xff]
    %v4611 = vld [vmem:[#allocation10 + $0xf8] sm:$0xf]
    %v4612 = vld [vmem:[#allocation10 + $0xfc] sm:$0xff]
    %v4613 = vld [vmem:[#allocation10 + $0x104] sm:$0xff]
    %v4614 = vld [vmem:[#allocation10 + $0x10c] sm:$0xff]
    %v4615 = vld [vmem:[#allocation10 + $0x114] sm:$0xf]
    %v4616 = vld [vmem:[#allocation10 + $0x118] sm:$0xff]
    %v4617 = vld [vmem:[#allocation10 + $0x120] sm:$0xff]
    %v4618 = vld [vmem:[#allocation10 + $0x128] sm:$0xff]
    %v4619 = vld [vmem:[#allocation10 + $0x130] sm:$0xf]
    %v4620 = vld [vmem:[#allocation10 + $0x134] sm:$0xff]
    %v4621 = vld [vmem:[#allocation10 + $0x13c] sm:$0xff]
    %v4622 = vld [vmem:[#allocation10 + $0x144] sm:$0xff]
    %v4623 = vld [vmem:[#allocation10 + $0x14c] sm:$0xf]
    %v4624 = vld [vmem:[#allocation10 + $0x150] sm:$0xff]
    %v4625 = vld [vmem:[#allocation10 + $0x158] sm:$0xff]
    %v4626 = vld [vmem:[#allocation10 + $0x160] sm:$0xff]
    %v4627 = vld [vmem:[#allocation10 + $0x168] sm:$0xf]
    %v4628 = vld [vmem:[#allocation10 + $0x16c] sm:$0xff]
    %v4629 = vld [vmem:[#allocation10 + $0x174] sm:$0xff]
    %v4630 = vld [vmem:[#allocation10 + $0x17c] sm:$0xff]
    %v4631 = vld [vmem:[#allocation10 + $0x184] sm:$0xf]
    %v4632 = vld [vmem:[#allocation10 + $0x188] sm:$0xff]
    %v4633 = vld [vmem:[#allocation10 + $0x190] sm:$0xff]
    %v4634 = vld [vmem:[#allocation10 + $0x198] sm:$0xff]
    %v4635 = vld [vmem:[#allocation10 + $0x1a0] sm:$0xf]
    %v4636 = vld [vmem:[#allocation10 + $0x1a4] sm:$0xff]
    %v4637 = vld [vmem:[#allocation10 + $0x1ac] sm:$0xff]
    %v4638 = vld [vmem:[#allocation10 + $0x1b4] sm:$0xff]
    %v4639 = vld [vmem:[#allocation10 + $0x1bc] sm:$0xf]
    %v4640 = vld [vmem:[#allocation10 + $0x1c0] sm:$0xff]
    %v4641 = vld [vmem:[#allocation10 + $0x1c8] sm:$0xff]
    %v4642 = vld [vmem:[#allocation10 + $0x1d0] sm:$0xff]
    %v4643 = vld [vmem:[#allocation10 + $0x1d8] sm:$0xf]
    %v4644 = vld [vmem:[#allocation10 + $0x1dc] sm:$0xff]
    %v4645 = vld [vmem:[#allocation10 + $0x1e4] sm:$0xff]
    %v4646 = vld [vmem:[#allocation10 + $0x1ec] sm:$0xff]
    %v4647 = vld [vmem:[#allocation10 + $0x1f4] sm:$0xf]
    %v4648 = vld [vmem:[#allocation10 + $0x1f8] sm:$0xff]
    %v4649 = vld [vmem:[#allocation10 + $0x200] sm:$0xff]
    %v4650 = vld [vmem:[#allocation10 + $0x208] sm:$0xff]
    %v4651 = vld [vmem:[#allocation10 + $0x210] sm:$0xf]
    %v4652 = vld [vmem:[#allocation10 + $0x214] sm:$0xff]
    %v4653 = vld [vmem:[#allocation10 + $0x21c] sm:$0xff]
    %v4654 = vld [vmem:[#allocation10 + $0x224] sm:$0xff]
    %v4655 = vld [vmem:[#allocation10 + $0x22c] sm:$0xf]
    %v4656 = vld [vmem:[#allocation10 + $0x230] sm:$0xff]
    %v4657 = vld [vmem:[#allocation10 + $0x238] sm:$0xff]
    %v4658 = vld [vmem:[#allocation10 + $0x240] sm:$0xff]
    %v4659 = vld [vmem:[#allocation10 + $0x248] sm:$0xf]
    %v4660 = vld [vmem:[#allocation10 + $0x24c] sm:$0xff]
    %v4661 = vld [vmem:[#allocation10 + $0x254] sm:$0xff]
    %v4662 = vld [vmem:[#allocation10 + $0x25c] sm:$0xff]
    %v4663 = vld [vmem:[#allocation10 + $0x264] sm:$0xf]
    %v4664 = vld [vmem:[#allocation10 + $0x268] sm:$0xff]
    %v4665 = vld [vmem:[#allocation10 + $0x270] sm:$0xff]
    %v4666 = vld [vmem:[#allocation10 + $0x278] sm:$0xff]
    %v4667 = vld [vmem:[#allocation10 + $0x280] sm:$0xf]
    %v4668 = vld [vmem:[#allocation10 + $0x284] sm:$0xff]
    %v4669 = vld [vmem:[#allocation10 + $0x28c] sm:$0xff]
    %v4670 = vld [vmem:[#allocation10 + $0x294] sm:$0xff]
    %v4671 = vld [vmem:[#allocation10 + $0x29c] sm:$0xf]
    %v4672 = vld [vmem:[#allocation10 + $0x2a0] sm:$0xff]
    %v4673 = vld [vmem:[#allocation10 + $0x2a8] sm:$0xff]
    %v4674 = vld [vmem:[#allocation10 + $0x2b0] sm:$0xff]
    %v4675 = vld [vmem:[#allocation10 + $0x2b8] sm:$0xf]
    %v4676 = vld [vmem:[#allocation10 + $0x2bc] sm:$0xff]
    %v4677 = vld [vmem:[#allocation10 + $0x2c4] sm:$0xff]
    %v4678 = vld [vmem:[#allocation10 + $0x2cc] sm:$0xff]
    %v4679 = vld [vmem:[#allocation10 + $0x2d4] sm:$0xf]
    %v4680 = vld [vmem:[#allocation10 + $0x2d8] sm:$0xff]
    %v4681 = vld [vmem:[#allocation10 + $0x2e0] sm:$0xff]
    %v4682 = vld [vmem:[#allocation10 + $0x2e8] sm:$0xff]
    %v4683 = vld [vmem:[#allocation10 + $0x2f0] sm:$0xf]
    %v4684 = vld [vmem:[#allocation10 + $0x2f4] sm:$0xff]
    %v4685 = vld [vmem:[#allocation10 + $0x2fc] sm:$0xff]
    %v4686 = vld [vmem:[#allocation10 + $0x304] sm:$0xff]
    %v4687 = vld [vmem:[#allocation10 + $0x30c] sm:$0xf]
    %v4688 = vld [vmem:[#allocation10 + $0x310] sm:$0xff]
    %v4689 = vld [vmem:[#allocation10 + $0x318] sm:$0xff]
    %v4690 = vld [vmem:[#allocation10 + $0x320] sm:$0xff]
    %v4691 = vld [vmem:[#allocation10 + $0x328] sm:$0xf]
    %v4692 = vld [vmem:[#allocation10 + $0x32c] sm:$0xff]
    %v4693 = vld [vmem:[#allocation10 + $0x334] sm:$0xff]
    %v4694 = vld [vmem:[#allocation10 + $0x33c] sm:$0xff]
    %v4695 = vld [vmem:[#allocation10 + $0x344] sm:$0xf]
    %v4696 = vld [vmem:[#allocation10 + $0x348] sm:$0xff]
    %v4697 = vld [vmem:[#allocation10 + $0x350] sm:$0xff]
    %v4698 = vld [vmem:[#allocation10 + $0x358] sm:$0xff]
    %v4699 = vld [vmem:[#allocation10 + $0x360] sm:$0xf]
    %v4700 = vld [vmem:[#allocation10 + $0x364] sm:$0xff]
    %v4701 = vld [vmem:[#allocation10 + $0x36c] sm:$0xff]
    %v4702 = vld [vmem:[#allocation10 + $0x374] sm:$0xff]
    %v4703 = vld [vmem:[#allocation10 + $0x37c] sm:$0xf]
    %v4704 = vld [vmem:[#allocation10 + $0x380] sm:$0xff]
    %v4705 = vld [vmem:[#allocation10 + $0x388] sm:$0xff]
    %v4706 = vld [vmem:[#allocation10 + $0x390] sm:$0xff]
    %v4707 = vld [vmem:[#allocation10 + $0x398] sm:$0xf]
    %v4708 = vld [vmem:[#allocation10 + $0x39c] sm:$0xff]
    %v4709 = vld [vmem:[#allocation10 + $0x3a4] sm:$0xff]
    %v4710 = vld [vmem:[#allocation10 + $0x3ac] sm:$0xff]
    %v4711 = vld [vmem:[#allocation10 + $0x3b4] sm:$0xf]
    %v4712 = vld [vmem:[#allocation10 + $0x3b8] sm:$0xff]
    %v4713 = vld [vmem:[#allocation10 + $0x3c0] sm:$0xff]
    %v4714 = vld [vmem:[#allocation10 + $0x3c8] sm:$0xff]
    %v4715 = vld [vmem:[#allocation10 + $0x3d0] sm:$0xf]
    %v4716 = vld [vmem:[#allocation10 + $0x3d4] sm:$0xff]
    %v4717 = vld [vmem:[#allocation10 + $0x3dc] sm:$0xff]
    %v4718 = vld [vmem:[#allocation10 + $0x3e4] sm:$0xff]
    %v4719 = vld [vmem:[#allocation10 + $0x3ec] sm:$0xf]
    %v4720 = vld [vmem:[#allocation10 + $0x3f0] sm:$0xff]
    %v4721 = vld [vmem:[#allocation10 + $0x3f8] sm:$0xff]
    %v4722 = vld [vmem:[#allocation10 + $0x400] sm:$0xff]
    %v4723 = vld [vmem:[#allocation10 + $0x408] sm:$0xf]
    %v4724 = vld [vmem:[#allocation10 + $0x40c] sm:$0xff]
    %v4725 = vld [vmem:[#allocation10 + $0x414] sm:$0xff]
    %v4726 = vld [vmem:[#allocation10 + $0x41c] sm:$0xff]
    %v4727 = vld [vmem:[#allocation10 + $0x424] sm:$0xf]
    %v4728 = vld [vmem:[#allocation10 + $0x428] sm:$0xff]
    %v4729 = vld [vmem:[#allocation10 + $0x430] sm:$0xff]
    %v4730 = vld [vmem:[#allocation10 + $0x438] sm:$0xff]
    %v4731 = vld [vmem:[#allocation10 + $0x440] sm:$0xf]
    %v4732 = vld [vmem:[#allocation10 + $0x444] sm:$0xff]
    %v4733 = vld [vmem:[#allocation10 + $0x44c] sm:$0xff]
    %v4734 = vld [vmem:[#allocation10 + $0x454] sm:$0xff]
    %v4735 = vld [vmem:[#allocation10 + $0x45c] sm:$0xf]
    %v4736 = vld [vmem:[#allocation10 + $0x460] sm:$0xff]
    %v4737 = vld [vmem:[#allocation10 + $0x468] sm:$0xff]
    %v4738 = vld [vmem:[#allocation10 + $0x470] sm:$0xff]
    %v4739 = vld [vmem:[#allocation10 + $0x478] sm:$0xf]
    %v4740 = vld [vmem:[#allocation10 + $0x47c] sm:$0xff]
    %v4741 = vld [vmem:[#allocation10 + $0x484] sm:$0xff]
    %v4742 = vld [vmem:[#allocation10 + $0x48c] sm:$0xff]
    %v4743 = vld [vmem:[#allocation10 + $0x494] sm:$0xf]
    %v4744 = vld [vmem:[#allocation10 + $0x498] sm:$0xff]
    %v4745 = vld [vmem:[#allocation10 + $0x4a0] sm:$0xff]
    %v4746 = vld [vmem:[#allocation10 + $0x4a8] sm:$0xff]
    %v4747 = vld [vmem:[#allocation10 + $0x4b0] sm:$0xf]
    %v4748 = vld [vmem:[#allocation10 + $0x4b4] sm:$0xff]
    %v4749 = vld [vmem:[#allocation10 + $0x4bc] sm:$0xff]
    %v4750 = vld [vmem:[#allocation10 + $0x4c4] sm:$0xff]
    %v4751 = vld [vmem:[#allocation10 + $0x4cc] sm:$0xf]
    %v4752 = vld [vmem:[#allocation10 + $0x4d0] sm:$0xff]
    %v4753 = vld [vmem:[#allocation10 + $0x4d8] sm:$0xff]
    %v4754 = vld [vmem:[#allocation10 + $0x4e0] sm:$0xff]
    %v4755 = vld [vmem:[#allocation10 + $0x4e8] sm:$0xf]
    %v4756 = vld [vmem:[#allocation10 + $0x4ec] sm:$0xff]
    %v4757 = vld [vmem:[#allocation10 + $0x4f4] sm:$0xff]
    %v4758 = vld [vmem:[#allocation10 + $0x4fc] sm:$0xff]
    %v4759 = vld [vmem:[#allocation10 + $0x504] sm:$0xf]
    %v4760 = vld [vmem:[#allocation10 + $0x508] sm:$0xff]
    %v4761 = vld [vmem:[#allocation10 + $0x510] sm:$0xff]
    %v4762 = vld [vmem:[#allocation10 + $0x518] sm:$0xff]
    %v4763 = vld [vmem:[#allocation10 + $0x520] sm:$0xf]
    %v4764 = vld [vmem:[#allocation10 + $0x524] sm:$0xff]
    %v4765 = vld [vmem:[#allocation10 + $0x52c] sm:$0xff]
    %v4766 = vld [vmem:[#allocation10 + $0x534] sm:$0xff]
    %v4767 = vld [vmem:[#allocation10 + $0x53c] sm:$0xf]
    %v4768 = vld [vmem:[#allocation10 + $0x540] sm:$0xff]
    %v4769 = vld [vmem:[#allocation10 + $0x548] sm:$0xff]
    %v4770 = vld [vmem:[#allocation10 + $0x550] sm:$0xff]
    %v4771 = vld [vmem:[#allocation10 + $0x558] sm:$0xf]
    %v4772 = vld [vmem:[#allocation10 + $0x55c] sm:$0xff]
    %v4773 = vld [vmem:[#allocation10 + $0x564] sm:$0xff]
    %v4774 = vld [vmem:[#allocation10 + $0x56c] sm:$0xff]
    %v4775 = vld [vmem:[#allocation10 + $0x574] sm:$0xf]
    %v4776 = vld [vmem:[#allocation10 + $0x578] sm:$0xff]
    %v4777 = vld [vmem:[#allocation10 + $0x580] sm:$0xff]
    %v4778 = vld [vmem:[#allocation10 + $0x588] sm:$0xff]
    %v4779 = vld [vmem:[#allocation10 + $0x590] sm:$0xf]
    %v4780 = vld [vmem:[#allocation10 + $0x594] sm:$0xff]
    %v4781 = vld [vmem:[#allocation10 + $0x59c] sm:$0xff]
    %v4782 = vld [vmem:[#allocation10 + $0x5a4] sm:$0xff]
    %v4783 = vld [vmem:[#allocation10 + $0x5ac] sm:$0xf]
    %v4784 = vld [vmem:[#allocation10 + $0x5b0] sm:$0xff]
    %v4785 = vld [vmem:[#allocation10 + $0x5b8] sm:$0xff]
    %v4786 = vld [vmem:[#allocation10 + $0x5c0] sm:$0xff]
    %v4787 = vld [vmem:[#allocation10 + $0x5c8] sm:$0xf]
    %v4788 = vld [vmem:[#allocation10 + $0x5cc] sm:$0xff]
    %v4789 = vld [vmem:[#allocation10 + $0x5d4] sm:$0xff]
    %v4790 = vld [vmem:[#allocation10 + $0x5dc] sm:$0xff]
    %v4791 = vld [vmem:[#allocation10 + $0x5e4] sm:$0xf]
    %v4792 = vld [vmem:[#allocation10 + $0x5e8] sm:$0xff]
    %v4793 = vld [vmem:[#allocation10 + $0x5f0] sm:$0xff]
    %v4794 = vld [vmem:[#allocation10 + $0x5f8] sm:$0xff]
    %v4795 = vld [vmem:[#allocation10 + $0x600] sm:$0xf]
    %v4796 = vld [vmem:[#allocation10 + $0x604] sm:$0xff]
    %v4797 = vld [vmem:[#allocation10 + $0x60c] sm:$0xff]
    %v4798 = vld [vmem:[#allocation10 + $0x614] sm:$0xff]
    %v4799 = vld [vmem:[#allocation10 + $0x61c] sm:$0xf]
    %v4800 = vld [vmem:[#allocation10 + $0x620] sm:$0xff]
    %v4801 = vld [vmem:[#allocation10 + $0x628] sm:$0xff]
    %v4802 = vld [vmem:[#allocation10 + $0x630] sm:$0xff]
    %v4803 = vld [vmem:[#allocation10 + $0x638] sm:$0xf]
    %v4804 = vld [vmem:[#allocation10 + $0x63c] sm:$0xff]
    %v4805 = vld [vmem:[#allocation10 + $0x644] sm:$0xff]
    %v4806 = vld [vmem:[#allocation10 + $0x64c] sm:$0xff]
    %v4807 = vld [vmem:[#allocation10 + $0x654] sm:$0xf]
    %v4808 = vld [vmem:[#allocation10 + $0x658] sm:$0xff]
    %v4809 = vld [vmem:[#allocation10 + $0x660] sm:$0xff]
    %v4810 = vld [vmem:[#allocation10 + $0x668] sm:$0xff]
    %v4811 = vld [vmem:[#allocation10 + $0x670] sm:$0xf]
    %v4812 = vld [vmem:[#allocation10 + $0x674] sm:$0xff]
    %v4813 = vld [vmem:[#allocation10 + $0x67c] sm:$0xff]
    %v4814 = vld [vmem:[#allocation10 + $0x684] sm:$0xff]
    %v4815 = vld [vmem:[#allocation10 + $0x68c] sm:$0xf]
    %v4816 = vld [vmem:[#allocation10 + $0x690] sm:$0xff]
    %v4817 = vld [vmem:[#allocation10 + $0x698] sm:$0xff]
    %v4818 = vld [vmem:[#allocation10 + $0x6a0] sm:$0xff]
    %v4819 = vld [vmem:[#allocation10 + $0x6a8] sm:$0xf]
    %v4820 = vld [vmem:[#allocation10 + $0x6ac] sm:$0xff]
    %v4821 = vld [vmem:[#allocation10 + $0x6b4] sm:$0xff]
    %v4822 = vld [vmem:[#allocation10 + $0x6bc] sm:$0xff]
    %v4823 = vld [vmem:[#allocation10 + $0x6c4] sm:$0xf]
    %v4824 = vld [vmem:[#allocation10 + $0x6c8] sm:$0xff]
    %v4825 = vld [vmem:[#allocation10 + $0x6d0] sm:$0xff]
    %v4826 = vld [vmem:[#allocation10 + $0x6d8] sm:$0xff]
    %v4827 = vld [vmem:[#allocation10 + $0x6e0] sm:$0xf]
    %v4828 = vld [vmem:[#allocation10 + $0x6e4] sm:$0xff]
    %v4829 = vld [vmem:[#allocation10 + $0x6ec] sm:$0xff]
    %v4830 = vld [vmem:[#allocation10 + $0x6f4] sm:$0xff]
    %v4831 = vld [vmem:[#allocation10 + $0x6fc] sm:$0xf]
    %v4832 = vld [vmem:[#allocation10 + $0x700] sm:$0xff]
    %v4833 = vld [vmem:[#allocation10 + $0x708] sm:$0xff]
    %v4834 = vld [vmem:[#allocation10 + $0x710] sm:$0xff]
    %v4835 = vld [vmem:[#allocation10 + $0x718] sm:$0xf]
    %v4836 = vld [vmem:[#allocation10 + $0x71c] sm:$0xff]
    %v4837 = vld [vmem:[#allocation10 + $0x724] sm:$0xff]
    %v4838 = vld [vmem:[#allocation10 + $0x72c] sm:$0xff]
    %v4839 = vld [vmem:[#allocation10 + $0x734] sm:$0xf]
    %v4840 = vld [vmem:[#allocation10 + $0x738] sm:$0xff]
    %v4841 = vld [vmem:[#allocation10 + $0x740] sm:$0xff]
    %v4842 = vld [vmem:[#allocation10 + $0x748] sm:$0xff]
    %v4843 = vld [vmem:[#allocation10 + $0x750] sm:$0xf]
    %v4844 = vld [vmem:[#allocation10 + $0x754] sm:$0xff]
    %v4845 = vld [vmem:[#allocation10 + $0x75c] sm:$0xff]
    %v4846 = vld [vmem:[#allocation10 + $0x764] sm:$0xff]
    %v4847 = vld [vmem:[#allocation10 + $0x76c] sm:$0xf]
    %v4848 = vld [vmem:[#allocation10 + $0x770] sm:$0xff]
    %v4849 = vld [vmem:[#allocation10 + $0x778] sm:$0xff]
    %v4850 = vld [vmem:[#allocation10 + $0x780] sm:$0xff]
    %v4851 = vld [vmem:[#allocation10 + $0x788] sm:$0xf]
    %v4852 = vld [vmem:[#allocation10 + $0x78c] sm:$0xff]
    %v4853 = vld [vmem:[#allocation10 + $0x794] sm:$0xff]
    %v4854 = vld [vmem:[#allocation10 + $0x79c] sm:$0xff]
    %v4855 = vld [vmem:[#allocation10 + $0x7a4] sm:$0xf]
    %v4856 = vld [vmem:[#allocation10 + $0x7a8] sm:$0xff]
    %v4857 = vld [vmem:[#allocation10 + $0x7b0] sm:$0xff]
    %v4858 = vld [vmem:[#allocation10 + $0x7b8] sm:$0xff]
    %v4859 = vld [vmem:[#allocation10 + $0x7c0] sm:$0xf]
    %v4860 = vld [vmem:[#allocation10 + $0x7c4] sm:$0xff]
    %v4861 = vld [vmem:[#allocation10 + $0x7cc] sm:$0xff]
    %v4862 = vld [vmem:[#allocation10 + $0x7d4] sm:$0xff]
    %v4863 = vld [vmem:[#allocation10 + $0x7dc] sm:$0xf]
    %v4864 = vld [vmem:[#allocation10 + $0x7e0] sm:$0xff]
    %v4865 = vld [vmem:[#allocation10 + $0x7e8] sm:$0xff]
    %v4866 = vld [vmem:[#allocation10 + $0x7f0] sm:$0xff]
    %v4867 = vld [vmem:[#allocation10 + $0x7f8] sm:$0xf]
    %v4868 = vld [vmem:[#allocation10 + $0x7fc] sm:$0xff]
    %v4869 = vld [vmem:[#allocation10 + $0x804] sm:$0xff]
    %v4870 = vld [vmem:[#allocation10 + $0x80c] sm:$0xff]
    %v4871 = vld [vmem:[#allocation10 + $0x814] sm:$0xf]
    %v4872 = vld [vmem:[#allocation10 + $0x818] sm:$0xff]
    %v4873 = vld [vmem:[#allocation10 + $0x820] sm:$0xff]
    %v4874 = vld [vmem:[#allocation10 + $0x828] sm:$0xff]
    %v4875 = vld [vmem:[#allocation10 + $0x830] sm:$0xf]
    %v4876 = vld [vmem:[#allocation10 + $0x834] sm:$0xff]
    %v4877 = vld [vmem:[#allocation10 + $0x83c] sm:$0xff]
    %v4878 = vld [vmem:[#allocation10 + $0x844] sm:$0xff]
    %v4879 = vld [vmem:[#allocation10 + $0x84c] sm:$0xf]
    %v4880 = vld [vmem:[#allocation10 + $0x850] sm:$0xff]
    %v4881 = vld [vmem:[#allocation10 + $0x858] sm:$0xff]
    %v4882 = vld [vmem:[#allocation10 + $0x860] sm:$0xff]
    %v4883 = vld [vmem:[#allocation10 + $0x868] sm:$0xf]
    %v4884 = vld [vmem:[#allocation10 + $0x86c] sm:$0xff]
    %v4885 = vld [vmem:[#allocation10 + $0x874] sm:$0xff]
    %v4886 = vld [vmem:[#allocation10 + $0x87c] sm:$0xff]
    %v4887 = vld [vmem:[#allocation10 + $0x884] sm:$0xf]
    %v4888 = vld [vmem:[#allocation10 + $0x888] sm:$0xff]
    %v4889 = vld [vmem:[#allocation10 + $0x890] sm:$0xff]
    %v4890 = vld [vmem:[#allocation10 + $0x898] sm:$0xff]
    %v4891 = vld [vmem:[#allocation10 + $0x8a0] sm:$0xf]
    %v4892 = vld [vmem:[#allocation10 + $0x8a4] sm:$0xff]
    %v4893 = vld [vmem:[#allocation10 + $0x8ac] sm:$0xff]
    %v4894 = vld [vmem:[#allocation10 + $0x8b4] sm:$0xff]
    %v4895 = vld [vmem:[#allocation10 + $0x8bc] sm:$0xf]
    %v4896 = vld [vmem:[#allocation10 + $0x8c0] sm:$0xff]
    %v4897 = vld [vmem:[#allocation10 + $0x8c8] sm:$0xff]
    %v4898 = vld [vmem:[#allocation10 + $0x8d0] sm:$0xff]
    %v4899 = vld [vmem:[#allocation10 + $0x8d8] sm:$0xf]
    %v4900 = vld [vmem:[#allocation10 + $0x8dc] sm:$0xff]
    %v4901 = vld [vmem:[#allocation10 + $0x8e4] sm:$0xff]
    %v4902 = vld [vmem:[#allocation10 + $0x8ec] sm:$0xff]
    %v4903 = vld [vmem:[#allocation10 + $0x8f4] sm:$0xf]
    %v4904 = vld [vmem:[#allocation10 + $0x8f8] sm:$0xff]
    %v4905 = vld [vmem:[#allocation10 + $0x900] sm:$0xff]
    %v4906 = vld [vmem:[#allocation10 + $0x908] sm:$0xff]
    %v4907 = vld [vmem:[#allocation10 + $0x910] sm:$0xf]
    %v4908 = vld [vmem:[#allocation10 + $0x914] sm:$0xff]
    %v4909 = vld [vmem:[#allocation10 + $0x91c] sm:$0xff]
    %v4910 = vld [vmem:[#allocation10 + $0x924] sm:$0xff]
    %v4911 = vld [vmem:[#allocation10 + $0x92c] sm:$0xf]
    %v4912 = vld [vmem:[#allocation10 + $0x930] sm:$0xff]
    %v4913 = vld [vmem:[#allocation10 + $0x938] sm:$0xff]
    %v4914 = vld [vmem:[#allocation10 + $0x940] sm:$0xff]
    %v4915 = vld [vmem:[#allocation10 + $0x948] sm:$0xf]
    %v4916 = vld [vmem:[#allocation10 + $0x94c] sm:$0xff]
    %v4917 = vld [vmem:[#allocation10 + $0x954] sm:$0xff]
    %v4918 = vld [vmem:[#allocation10 + $0x95c] sm:$0xff]
    %v4919 = vld [vmem:[#allocation10 + $0x964] sm:$0xf]
    %v4920 = vld [vmem:[#allocation10 + $0x968] sm:$0xff]
    %v4921 = vld [vmem:[#allocation10 + $0x970] sm:$0xff]
    %v4922 = vld [vmem:[#allocation10 + $0x978] sm:$0xff]
    %v4923 = vld [vmem:[#allocation10 + $0x980] sm:$0xf]
    %v4924 = vld [vmem:[#allocation10 + $0x984] sm:$0xff]
    %v4925 = vld [vmem:[#allocation10 + $0x98c] sm:$0xff]
    %v4926 = vld [vmem:[#allocation10 + $0x994] sm:$0xff]
    %v4927 = vld [vmem:[#allocation10 + $0x99c] sm:$0xf]
    %v4928 = vld [vmem:[#allocation10 + $0x9a0] sm:$0xff]
    %v4929 = vld [vmem:[#allocation10 + $0x9a8] sm:$0xff]
    %v4930 = vld [vmem:[#allocation10 + $0x9b0] sm:$0xff]
    %v4931 = vld [vmem:[#allocation10 + $0x9b8] sm:$0xf]
    %v4932 = vld [vmem:[#allocation10 + $0x9bc] sm:$0xff]
    %v4933 = vld [vmem:[#allocation10 + $0x9c4] sm:$0xff]
    %v4934 = vld [vmem:[#allocation10 + $0x9cc] sm:$0xff]
    %v4935 = vld [vmem:[#allocation10 + $0x9d4] sm:$0xf]
    %v4936 = vld [vmem:[#allocation10 + $0x9d8] sm:$0xff]
    %v4937 = vld [vmem:[#allocation10 + $0x9e0] sm:$0xff]
    %v4938 = vld [vmem:[#allocation10 + $0x9e8] sm:$0xff]
    %v4939 = vld [vmem:[#allocation10 + $0x9f0] sm:$0xf]
    %v4940 = vld [vmem:[#allocation10 + $0x9f4] sm:$0xff]
    %v4941 = vld [vmem:[#allocation10 + $0x9fc] sm:$0xff]
    %v4942 = vld [vmem:[#allocation10 + $0xa04] sm:$0xff]
    %v4943 = vld [vmem:[#allocation10 + $0xa0c] sm:$0xf]
    %v4944 = vld [vmem:[#allocation10 + $0xa10] sm:$0xff]
    %v4945 = vld [vmem:[#allocation10 + $0xa18] sm:$0xff]
    %v4946 = vld [vmem:[#allocation10 + $0xa20] sm:$0xff]
    %v4947 = vld [vmem:[#allocation10 + $0xa28] sm:$0xf]
    %v4948 = vld [vmem:[#allocation10 + $0xa2c] sm:$0xff]
    %v4949 = vld [vmem:[#allocation10 + $0xa34] sm:$0xff]
    %v4950 = vld [vmem:[#allocation10 + $0xa3c] sm:$0xff]
    %v4951 = vld [vmem:[#allocation10 + $0xa44] sm:$0xf]
    %v4952 = vld [vmem:[#allocation10 + $0xa48] sm:$0xff]
    %v4953 = vld [vmem:[#allocation10 + $0xa50] sm:$0xff]
    %v4954 = vld [vmem:[#allocation10 + $0xa58] sm:$0xff]
    %v4955 = vld [vmem:[#allocation10 + $0xa60] sm:$0xf]
    %v4956 = vld [vmem:[#allocation10 + $0xa64] sm:$0xff]
    %v4957 = vld [vmem:[#allocation10 + $0xa6c] sm:$0xff]
    %v4958 = vld [vmem:[#allocation10 + $0xa74] sm:$0xff]
    %v4959 = vld [vmem:[#allocation10 + $0xa7c] sm:$0xf]
    %v4960 = vld [vmem:[#allocation10 + $0xa80] sm:$0xff]
    %v4961 = vld [vmem:[#allocation10 + $0xa88] sm:$0xff]
    %v4962 = vld [vmem:[#allocation10 + $0xa90] sm:$0xff]
    %v4963 = vld [vmem:[#allocation10 + $0xa98] sm:$0xf]
    %v4964 = vld [vmem:[#allocation10 + $0xa9c] sm:$0xff]
    %v4965 = vld [vmem:[#allocation10 + $0xaa4] sm:$0xff]
    %v4966 = vld [vmem:[#allocation10 + $0xaac] sm:$0xff]
    %v4967 = vld [vmem:[#allocation10 + $0xab4] sm:$0xf]
    %v4968 = vld [vmem:[#allocation10 + $0xab8] sm:$0xff]
    %v4969 = vld [vmem:[#allocation10 + $0xac0] sm:$0xff]
    %v4970 = vld [vmem:[#allocation10 + $0xac8] sm:$0xff]
    %v4971 = vld [vmem:[#allocation10 + $0xad0] sm:$0xf]
    %v4972 = vld [vmem:[#allocation10 + $0xad4] sm:$0xff]
    %v4973 = vld [vmem:[#allocation10 + $0xadc] sm:$0xff]
    %v4974 = vld [vmem:[#allocation10 + $0xae4] sm:$0xff]
    %v4975 = vld [vmem:[#allocation10 + $0xaec] sm:$0xf]
    %v4976 = vld [vmem:[#allocation10 + $0xaf0] sm:$0xff]
    %v4977 = vld [vmem:[#allocation10 + $0xaf8] sm:$0xff]
    %v4978 = vld [vmem:[#allocation10 + $0xb00] sm:$0xff]
    %v4979 = vld [vmem:[#allocation10 + $0xb08] sm:$0xf]
    %v4980 = vld [vmem:[#allocation10 + $0xb0c] sm:$0xff]
    %v4981 = vld [vmem:[#allocation10 + $0xb14] sm:$0xff]
    %v4982 = vld [vmem:[#allocation10 + $0xb1c] sm:$0xff]
    %v4983 = vld [vmem:[#allocation10 + $0xb24] sm:$0xf]
    %v4984 = vld [vmem:[#allocation10 + $0xb28] sm:$0xff]
    %v4985 = vld [vmem:[#allocation10 + $0xb30] sm:$0xff]
    %v4986 = vld [vmem:[#allocation10 + $0xb38] sm:$0xff]
    %v4987 = vld [vmem:[#allocation10 + $0xb40] sm:$0xf]
    %v4988 = vld [vmem:[#allocation10 + $0xb44] sm:$0xff]
    %v4989 = vld [vmem:[#allocation10 + $0xb4c] sm:$0xff]
    %v4990 = vld [vmem:[#allocation10 + $0xb54] sm:$0xff]
    %v4991 = vld [vmem:[#allocation10 + $0xb5c] sm:$0xf]
    %v4992 = vld [vmem:[#allocation10 + $0xb60] sm:$0xff]
    %v4993 = vld [vmem:[#allocation10 + $0xb68] sm:$0xff]
    %v4994 = vld [vmem:[#allocation10 + $0xb70] sm:$0xff]
    %v4995 = vld [vmem:[#allocation10 + $0xb78] sm:$0xf]
    %v4996 = vld [vmem:[#allocation10 + $0xb7c] sm:$0xff]
    %v4997 = vld [vmem:[#allocation10 + $0xb84] sm:$0xff]
    %v4998 = vld [vmem:[#allocation10 + $0xb8c] sm:$0xff]
    %v4999 = vld [vmem:[#allocation10 + $0xb94] sm:$0xf]
    %v5000 = vld [vmem:[#allocation10 + $0xb98] sm:$0xff]
    %v5001 = vld [vmem:[#allocation10 + $0xba0] sm:$0xff]
    %v5002 = vld [vmem:[#allocation10 + $0xba8] sm:$0xff]
    %v5003 = vld [vmem:[#allocation10 + $0xbb0] sm:$0xf]
    %v5004 = vld [vmem:[#allocation10 + $0xbb4] sm:$0xff]
    %v5005 = vld [vmem:[#allocation10 + $0xbbc] sm:$0xff]
    %v5006 = vld [vmem:[#allocation10 + $0xbc4] sm:$0xff]
    %v5007 = vld [vmem:[#allocation10 + $0xbcc] sm:$0xf]
    %v5008 = vld [vmem:[#allocation10 + $0xbd0] sm:$0xff]
    %v5009 = vld [vmem:[#allocation10 + $0xbd8] sm:$0xff]
    %v5010 = vld [vmem:[#allocation10 + $0xbe0] sm:$0xff]
    %v5011 = vld [vmem:[#allocation10 + $0xbe8] sm:$0xf]
    %v5012 = vld [vmem:[#allocation10 + $0xbec] sm:$0xff]
    %v5013 = vld [vmem:[#allocation10 + $0xbf4] sm:$0xff]
    %v5014 = vld [vmem:[#allocation10 + $0xbfc] sm:$0xff]
    %v5015 = vld [vmem:[#allocation10 + $0xc04] sm:$0xf]
    %v5016 = vld [vmem:[#allocation10 + $0xc08] sm:$0xff]
    %v5017 = vld [vmem:[#allocation10 + $0xc10] sm:$0xff]
    %v5018 = vld [vmem:[#allocation10 + $0xc18] sm:$0xff]
    %v5019 = vld [vmem:[#allocation10 + $0xc20] sm:$0xf]
    %v5020 = vld [vmem:[#allocation10 + $0xc24] sm:$0xff]
    %v5021 = vld [vmem:[#allocation10 + $0xc2c] sm:$0xff]
    %v5022 = vld [vmem:[#allocation10 + $0xc34] sm:$0xff]
    %v5023 = vld [vmem:[#allocation10 + $0xc3c] sm:$0xf]
    %v5024 = vld [vmem:[#allocation10 + $0xc40] sm:$0xff]
    %v5025 = vld [vmem:[#allocation10 + $0xc48] sm:$0xff]
    %v5026 = vld [vmem:[#allocation10 + $0xc50] sm:$0xff]
    %v5027 = vld [vmem:[#allocation10 + $0xc58] sm:$0xf]
    %v5028 = vld [vmem:[#allocation10 + $0xc5c] sm:$0xff]
    %v5029 = vld [vmem:[#allocation10 + $0xc64] sm:$0xff]
    %v5030 = vld [vmem:[#allocation10 + $0xc6c] sm:$0xff]
    %v5031 = vld [vmem:[#allocation10 + $0xc74] sm:$0xf]
    %v5032 = vld [vmem:[#allocation10 + $0xc78] sm:$0xff]
    %v5033 = vld [vmem:[#allocation10 + $0xc80] sm:$0xff]
    %v5034 = vld [vmem:[#allocation10 + $0xc88] sm:$0xff]
    %v5035 = vld [vmem:[#allocation10 + $0xc90] sm:$0xf]
    %v5036 = vld [vmem:[#allocation10 + $0xc94] sm:$0xff]
    %v5037 = vld [vmem:[#allocation10 + $0xc9c] sm:$0xff]
    %v5038 = vld [vmem:[#allocation10 + $0xca4] sm:$0xff]
    %v5039 = vld [vmem:[#allocation10 + $0xcac] sm:$0xf]
    %v5040 = vld [vmem:[#allocation10 + $0xcb0] sm:$0xff]
    %v5041 = vld [vmem:[#allocation10 + $0xcb8] sm:$0xff]
    %v5042 = vld [vmem:[#allocation10 + $0xcc0] sm:$0xff]
    %v5043 = vld [vmem:[#allocation10 + $0xcc8] sm:$0xf]
    %v5044 = vld [vmem:[#allocation10 + $0xccc] sm:$0xff]
    %v5045 = vld [vmem:[#allocation10 + $0xcd4] sm:$0xff]
    %v5046 = vld [vmem:[#allocation10 + $0xcdc] sm:$0xff]
    %v5047 = vld [vmem:[#allocation10 + $0xce4] sm:$0xf]
    %v5048 = vld [vmem:[#allocation10 + $0xce8] sm:$0xff]
    %v5049 = vld [vmem:[#allocation10 + $0xcf0] sm:$0xff]
    %v5050 = vld [vmem:[#allocation10 + $0xcf8] sm:$0xff]
    %v5051 = vld [vmem:[#allocation10 + $0xd00] sm:$0xf]
    %v5052 = vld [vmem:[#allocation10 + $0xd04] sm:$0xff]
    %v5053 = vld [vmem:[#allocation10 + $0xd0c] sm:$0xff]
    %v5054 = vld [vmem:[#allocation10 + $0xd14] sm:$0xff]
    %v5055 = vld [vmem:[#allocation10 + $0xd1c] sm:$0xf]
    %v5056 = vld [vmem:[#allocation10 + $0xd20] sm:$0xff]
    %v5057 = vld [vmem:[#allocation10 + $0xd28] sm:$0xff]
    %v5058 = vld [vmem:[#allocation10 + $0xd30] sm:$0xff]
    %v5059 = vld [vmem:[#allocation10 + $0xd38] sm:$0xf]
    %v5060 = vld [vmem:[#allocation10 + $0xd3c] sm:$0xff]
    %v5061 = vld [vmem:[#allocation10 + $0xd44] sm:$0xff]
    %v5062 = vld [vmem:[#allocation10 + $0xd4c] sm:$0xff]
    %v5063 = vld [vmem:[#allocation10 + $0xd54] sm:$0xf]
    %v5064 = vld [vmem:[#allocation10 + $0xd58] sm:$0xff]
    %v5065 = vld [vmem:[#allocation10 + $0xd60] sm:$0xff]
    %v5066 = vld [vmem:[#allocation10 + $0xd68] sm:$0xff]
    %v5067 = vld [vmem:[#allocation10 + $0xd70] sm:$0xf]
    %v5068 = vld [vmem:[#allocation10 + $0xd74] sm:$0xff]
    %v5069 = vld [vmem:[#allocation10 + $0xd7c] sm:$0xff]
    %v5070 = vld [vmem:[#allocation10 + $0xd84] sm:$0xff]
    %v5071 = vld [vmem:[#allocation10 + $0xd8c] sm:$0xf]
    %v5072 = vld [vmem:[#allocation10 + $0xd90] sm:$0xff]
    %v5073 = vld [vmem:[#allocation10 + $0xd98] sm:$0xff]
    %v5074 = vld [vmem:[#allocation10 + $0xda0] sm:$0xff]
    %v5075 = vld [vmem:[#allocation10 + $0xda8] sm:$0xf]
    %v5076 = vld [vmem:[#allocation10 + $0xdac] sm:$0xff]
    %v5077 = vld [vmem:[#allocation10 + $0xdb4] sm:$0xff]
    %v5078 = vld [vmem:[#allocation10 + $0xdbc] sm:$0xff]
    %v5079 = vld [vmem:[#allocation10 + $0xdc4] sm:$0xf]
    %v5080 = vld [vmem:[#allocation10 + $0xdc8] sm:$0xff]
    %v5081 = vld [vmem:[#allocation10 + $0xdd0] sm:$0xff]
    %v5082 = vld [vmem:[#allocation10 + $0xdd8] sm:$0xff]
    %v5083 = vld [vmem:[#allocation10 + $0xde0] sm:$0xf]
    %v5084 = vld [vmem:[#allocation10 + $0xde4] sm:$0xff]
    %v5085 = vld [vmem:[#allocation10 + $0xdec] sm:$0xff]
    %v5086 = vld [vmem:[#allocation10 + $0xdf4] sm:$0xff]
    %v5087 = vld [vmem:[#allocation10 + $0xdfc] sm:$0xf]
    %v5088 = vld [vmem:[#allocation11] sm:$0xff]
    %v5090 = vperm.slane %v5088, 0
    %v5091 = vperm.slane %v5088, 1
    %v5092 = vperm.slane %v5088, 2
    %v5093 = vperm.slane %v5088, 3
    %v5094 = vperm.slane %v5088, 4
    %v5095 = vperm.slane %v5088, 5
    %v5096 = vperm.slane %v5088, 6
    %v5616 = vunpack.c.l.b16 %v4576
    %v5617 = vunpack.c.h.b16 %v4576
    %v5618 = vunpack.c.l.b16 %v4577
    %v5619 = vunpack.c.h.b16 %v4577
    %v5620 = vunpack.c.l.b16 %v4578
    %v5621 = vunpack.c.h.b16 %v4578
    %v5622 = vunpack.c.l.b16 %v4579
    %v5623 = vunpack.c.l.b16 %v4580
    %v5624 = vunpack.c.h.b16 %v4580
    %v5625 = vunpack.c.l.b16 %v4581
    %v5626 = vunpack.c.h.b16 %v4581
    %v5627 = vunpack.c.l.b16 %v4582
    %v5628 = vunpack.c.h.b16 %v4582
    %v5629 = vunpack.c.l.b16 %v4583
    %v5630 = vunpack.c.l.b16 %v4584
    %v5631 = vunpack.c.h.b16 %v4584
    %v5632 = vunpack.c.l.b16 %v4585
    %v5633 = vunpack.c.h.b16 %v4585
    %v5634 = vunpack.c.l.b16 %v4586
    %v5635 = vunpack.c.h.b16 %v4586
    %v5636 = vunpack.c.l.b16 %v4587
    %v5637 = vunpack.c.l.b16 %v4588
    %v5638 = vunpack.c.h.b16 %v4588
    %v5639 = vunpack.c.l.b16 %v4589
    %v5640 = vunpack.c.h.b16 %v4589
    %v5641 = vunpack.c.l.b16 %v4590
    %v5642 = vunpack.c.h.b16 %v4590
    %v5643 = vunpack.c.l.b16 %v4591
    %v5644 = vunpack.c.l.b16 %v4592
    %v5645 = vunpack.c.h.b16 %v4592
    %v5646 = vunpack.c.l.b16 %v4593
    %v5647 = vunpack.c.h.b16 %v4593
    %v5648 = vunpack.c.l.b16 %v4594
    %v5649 = vunpack.c.h.b16 %v4594
    %v5650 = vunpack.c.l.b16 %v4595
    %v5651 = vunpack.c.l.b16 %v4596
    %v5652 = vunpack.c.h.b16 %v4596
    %v5653 = vunpack.c.l.b16 %v4597
    %v5654 = vunpack.c.h.b16 %v4597
    %v5655 = vunpack.c.l.b16 %v4598
    %v5656 = vunpack.c.h.b16 %v4598
    %v5657 = vunpack.c.l.b16 %v4599
    %v5658 = vunpack.c.l.b16 %v4600
    %v5659 = vunpack.c.h.b16 %v4600
    %v5660 = vunpack.c.l.b16 %v4601
    %v5661 = vunpack.c.h.b16 %v4601
    %v5662 = vunpack.c.l.b16 %v4602
    %v5663 = vunpack.c.h.b16 %v4602
    %v5664 = vunpack.c.l.b16 %v4603
    %v5665 = vunpack.c.l.b16 %v4604
    %v5666 = vunpack.c.h.b16 %v4604
    %v5667 = vunpack.c.l.b16 %v4605
    %v5668 = vunpack.c.h.b16 %v4605
    %v5669 = vunpack.c.l.b16 %v4606
    %v5670 = vunpack.c.h.b16 %v4606
    %v5671 = vunpack.c.l.b16 %v4607
    %v5672 = vunpack.c.l.b16 %v4608
    %v5673 = vunpack.c.h.b16 %v4608
    %v5674 = vunpack.c.l.b16 %v4609
    %v5675 = vunpack.c.h.b16 %v4609
    %v5676 = vunpack.c.l.b16 %v4610
    %v5677 = vunpack.c.h.b16 %v4610
    %v5678 = vunpack.c.l.b16 %v4611
    %v5679 = vunpack.c.l.b16 %v4612
    %v5680 = vunpack.c.h.b16 %v4612
    %v5681 = vunpack.c.l.b16 %v4613
    %v5682 = vunpack.c.h.b16 %v4613
    %v5683 = vunpack.c.l.b16 %v4614
    %v5684 = vunpack.c.h.b16 %v4614
    %v5685 = vunpack.c.l.b16 %v4615
    %v5686 = vunpack.c.l.b16 %v4616
    %v5687 = vunpack.c.h.b16 %v4616
    %v5688 = vunpack.c.l.b16 %v4617
    %v5689 = vunpack.c.h.b16 %v4617
    %v5690 = vunpack.c.l.b16 %v4618
    %v5691 = vunpack.c.h.b16 %v4618
    %v5692 = vunpack.c.l.b16 %v4619
    %v5693 = vunpack.c.l.b16 %v4620
    %v5694 = vunpack.c.h.b16 %v4620
    %v5695 = vunpack.c.l.b16 %v4621
    %v5696 = vunpack.c.h.b16 %v4621
    %v5697 = vunpack.c.l.b16 %v4622
    %v5698 = vunpack.c.h.b16 %v4622
    %v5699 = vunpack.c.l.b16 %v4623
    %v5700 = vunpack.c.l.b16 %v4624
    %v5701 = vunpack.c.h.b16 %v4624
    %v5702 = vunpack.c.l.b16 %v4625
    %v5703 = vunpack.c.h.b16 %v4625
    %v5704 = vunpack.c.l.b16 %v4626
    %v5705 = vunpack.c.h.b16 %v4626
    %v5706 = vunpack.c.l.b16 %v4627
    %v5707 = vunpack.c.l.b16 %v4628
    %v5708 = vunpack.c.h.b16 %v4628
    %v5709 = vunpack.c.l.b16 %v4629
    %v5710 = vunpack.c.h.b16 %v4629
    %v5711 = vunpack.c.l.b16 %v4630
    %v5712 = vunpack.c.h.b16 %v4630
    %v5713 = vunpack.c.l.b16 %v4631
    %v5714 = vunpack.c.l.b16 %v4632
    %v5715 = vunpack.c.h.b16 %v4632
    %v5716 = vunpack.c.l.b16 %v4633
    %v5717 = vunpack.c.h.b16 %v4633
    %v5718 = vunpack.c.l.b16 %v4634
    %v5719 = vunpack.c.h.b16 %v4634
    %v5720 = vunpack.c.l.b16 %v4635
    %v5721 = vunpack.c.l.b16 %v4636
    %v5722 = vunpack.c.h.b16 %v4636
    %v5723 = vunpack.c.l.b16 %v4637
    %v5724 = vunpack.c.h.b16 %v4637
    %v5725 = vunpack.c.l.b16 %v4638
    %v5726 = vunpack.c.h.b16 %v4638
    %v5727 = vunpack.c.l.b16 %v4639
    %v5728 = vunpack.c.l.b16 %v4640
    %v5729 = vunpack.c.h.b16 %v4640
    %v5730 = vunpack.c.l.b16 %v4641
    %v5731 = vunpack.c.h.b16 %v4641
    %v5732 = vunpack.c.l.b16 %v4642
    %v5733 = vunpack.c.h.b16 %v4642
    %v5734 = vunpack.c.l.b16 %v4643
    %v5735 = vunpack.c.l.b16 %v4644
    %v5736 = vunpack.c.h.b16 %v4644
    %v5737 = vunpack.c.l.b16 %v4645
    %v5738 = vunpack.c.h.b16 %v4645
    %v5739 = vunpack.c.l.b16 %v4646
    %v5740 = vunpack.c.h.b16 %v4646
    %v5741 = vunpack.c.l.b16 %v4647
    %v5742 = vunpack.c.l.b16 %v4648
    %v5743 = vunpack.c.h.b16 %v4648
    %v5744 = vunpack.c.l.b16 %v4649
    %v5745 = vunpack.c.h.b16 %v4649
    %v5746 = vunpack.c.l.b16 %v4650
    %v5747 = vunpack.c.h.b16 %v4650
    %v5748 = vunpack.c.l.b16 %v4651
    %v5749 = vunpack.c.l.b16 %v4652
    %v5750 = vunpack.c.h.b16 %v4652
    %v5751 = vunpack.c.l.b16 %v4653
    %v5752 = vunpack.c.h.b16 %v4653
    %v5753 = vunpack.c.l.b16 %v4654
    %v5754 = vunpack.c.h.b16 %v4654
    %v5755 = vunpack.c.l.b16 %v4655
    %v5756 = vunpack.c.l.b16 %v4656
    %v5757 = vunpack.c.h.b16 %v4656
    %v5758 = vunpack.c.l.b16 %v4657
    %v5759 = vunpack.c.h.b16 %v4657
    %v5760 = vunpack.c.l.b16 %v4658
    %v5761 = vunpack.c.h.b16 %v4658
    %v5762 = vunpack.c.l.b16 %v4659
    %v5763 = vunpack.c.l.b16 %v4660
    %v5764 = vunpack.c.h.b16 %v4660
    %v5765 = vunpack.c.l.b16 %v4661
    %v5766 = vunpack.c.h.b16 %v4661
    %v5767 = vunpack.c.l.b16 %v4662
    %v5768 = vunpack.c.h.b16 %v4662
    %v5769 = vunpack.c.l.b16 %v4663
    %v5770 = vunpack.c.l.b16 %v4664
    %v5771 = vunpack.c.h.b16 %v4664
    %v5772 = vunpack.c.l.b16 %v4665
    %v5773 = vunpack.c.h.b16 %v4665
    %v5774 = vunpack.c.l.b16 %v4666
    %v5775 = vunpack.c.h.b16 %v4666
    %v5776 = vunpack.c.l.b16 %v4667
    %v5777 = vunpack.c.l.b16 %v4668
    %v5778 = vunpack.c.h.b16 %v4668
    %v5779 = vunpack.c.l.b16 %v4669
    %v5780 = vunpack.c.h.b16 %v4669
    %v5781 = vunpack.c.l.b16 %v4670
    %v5782 = vunpack.c.h.b16 %v4670
    %v5783 = vunpack.c.l.b16 %v4671
    %v5784 = vunpack.c.l.b16 %v4672
    %v5785 = vunpack.c.h.b16 %v4672
    %v5786 = vunpack.c.l.b16 %v4673
    %v5787 = vunpack.c.h.b16 %v4673
    %v5788 = vunpack.c.l.b16 %v4674
    %v5789 = vunpack.c.h.b16 %v4674
    %v5790 = vunpack.c.l.b16 %v4675
    %v5791 = vunpack.c.l.b16 %v4676
    %v5792 = vunpack.c.h.b16 %v4676
    %v5793 = vunpack.c.l.b16 %v4677
    %v5794 = vunpack.c.h.b16 %v4677
    %v5795 = vunpack.c.l.b16 %v4678
    %v5796 = vunpack.c.h.b16 %v4678
    %v5797 = vunpack.c.l.b16 %v4679
    %v5798 = vunpack.c.l.b16 %v4680
    %v5799 = vunpack.c.h.b16 %v4680
    %v5800 = vunpack.c.l.b16 %v4681
    %v5801 = vunpack.c.h.b16 %v4681
    %v5802 = vunpack.c.l.b16 %v4682
    %v5803 = vunpack.c.h.b16 %v4682
    %v5804 = vunpack.c.l.b16 %v4683
    %v5805 = vunpack.c.l.b16 %v4684
    %v5806 = vunpack.c.h.b16 %v4684
    %v5807 = vunpack.c.l.b16 %v4685
    %v5808 = vunpack.c.h.b16 %v4685
    %v5809 = vunpack.c.l.b16 %v4686
    %v5810 = vunpack.c.h.b16 %v4686
    %v5811 = vunpack.c.l.b16 %v4687
    %v5812 = vunpack.c.l.b16 %v4688
    %v5813 = vunpack.c.h.b16 %v4688
    %v5814 = vunpack.c.l.b16 %v4689
    %v5815 = vunpack.c.h.b16 %v4689
    %v5816 = vunpack.c.l.b16 %v4690
    %v5817 = vunpack.c.h.b16 %v4690
    %v5818 = vunpack.c.l.b16 %v4691
    %v5819 = vunpack.c.l.b16 %v4692
    %v5820 = vunpack.c.h.b16 %v4692
    %v5821 = vunpack.c.l.b16 %v4693
    %v5822 = vunpack.c.h.b16 %v4693
    %v5823 = vunpack.c.l.b16 %v4694
    %v5824 = vunpack.c.h.b16 %v4694
    %v5825 = vunpack.c.l.b16 %v4695
    %v5826 = vunpack.c.l.b16 %v4696
    %v5827 = vunpack.c.h.b16 %v4696
    %v5828 = vunpack.c.l.b16 %v4697
    %v5829 = vunpack.c.h.b16 %v4697
    %v5830 = vunpack.c.l.b16 %v4698
    %v5831 = vunpack.c.h.b16 %v4698
    %v5832 = vunpack.c.l.b16 %v4699
    %v5833 = vunpack.c.l.b16 %v4700
    %v5834 = vunpack.c.h.b16 %v4700
    %v5835 = vunpack.c.l.b16 %v4701
    %v5836 = vunpack.c.h.b16 %v4701
    %v5837 = vunpack.c.l.b16 %v4702
    %v5838 = vunpack.c.h.b16 %v4702
    %v5839 = vunpack.c.l.b16 %v4703
    %v5840 = vunpack.c.l.b16 %v4704
    %v5841 = vunpack.c.h.b16 %v4704
    %v5842 = vunpack.c.l.b16 %v4705
    %v5843 = vunpack.c.h.b16 %v4705
    %v5844 = vunpack.c.l.b16 %v4706
    %v5845 = vunpack.c.h.b16 %v4706
    %v5846 = vunpack.c.l.b16 %v4707
    %v5847 = vunpack.c.l.b16 %v4708
    %v5848 = vunpack.c.h.b16 %v4708
    %v5849 = vunpack.c.l.b16 %v4709
    %v5850 = vunpack.c.h.b16 %v4709
    %v5851 = vunpack.c.l.b16 %v4710
    %v5852 = vunpack.c.h.b16 %v4710
    %v5853 = vunpack.c.l.b16 %v4711
    %v5854 = vunpack.c.l.b16 %v4712
    %v5855 = vunpack.c.h.b16 %v4712
    %v5856 = vunpack.c.l.b16 %v4713
    %v5857 = vunpack.c.h.b16 %v4713
    %v5858 = vunpack.c.l.b16 %v4714
    %v5859 = vunpack.c.h.b16 %v4714
    %v5860 = vunpack.c.l.b16 %v4715
    %v5861 = vunpack.c.l.b16 %v4716
    %v5862 = vunpack.c.h.b16 %v4716
    %v5863 = vunpack.c.l.b16 %v4717
    %v5864 = vunpack.c.h.b16 %v4717
    %v5865 = vunpack.c.l.b16 %v4718
    %v5866 = vunpack.c.h.b16 %v4718
    %v5867 = vunpack.c.l.b16 %v4719
    %v5868 = vunpack.c.l.b16 %v4720
    %v5869 = vunpack.c.h.b16 %v4720
    %v5870 = vunpack.c.l.b16 %v4721
    %v5871 = vunpack.c.h.b16 %v4721
    %v5872 = vunpack.c.l.b16 %v4722
    %v5873 = vunpack.c.h.b16 %v4722
    %v5874 = vunpack.c.l.b16 %v4723
    %v5875 = vunpack.c.l.b16 %v4724
    %v5876 = vunpack.c.h.b16 %v4724
    %v5877 = vunpack.c.l.b16 %v4725
    %v5878 = vunpack.c.h.b16 %v4725
    %v5879 = vunpack.c.l.b16 %v4726
    %v5880 = vunpack.c.h.b16 %v4726
    %v5881 = vunpack.c.l.b16 %v4727
    %v5882 = vunpack.c.l.b16 %v4728
    %v5883 = vunpack.c.h.b16 %v4728
    %v5884 = vunpack.c.l.b16 %v4729
    %v5885 = vunpack.c.h.b16 %v4729
    %v5886 = vunpack.c.l.b16 %v4730
    %v5887 = vunpack.c.h.b16 %v4730
    %v5888 = vunpack.c.l.b16 %v4731
    %v5889 = vunpack.c.l.b16 %v4732
    %v5890 = vunpack.c.h.b16 %v4732
    %v5891 = vunpack.c.l.b16 %v4733
    %v5892 = vunpack.c.h.b16 %v4733
    %v5893 = vunpack.c.l.b16 %v4734
    %v5894 = vunpack.c.h.b16 %v4734
    %v5895 = vunpack.c.l.b16 %v4735
    %v5896 = vunpack.c.l.b16 %v4736
    %v5897 = vunpack.c.h.b16 %v4736
    %v5898 = vunpack.c.l.b16 %v4737
    %v5899 = vunpack.c.h.b16 %v4737
    %v5900 = vunpack.c.l.b16 %v4738
    %v5901 = vunpack.c.h.b16 %v4738
    %v5902 = vunpack.c.l.b16 %v4739
    %v5903 = vunpack.c.l.b16 %v4740
    %v5904 = vunpack.c.h.b16 %v4740
    %v5905 = vunpack.c.l.b16 %v4741
    %v5906 = vunpack.c.h.b16 %v4741
    %v5907 = vunpack.c.l.b16 %v4742
    %v5908 = vunpack.c.h.b16 %v4742
    %v5909 = vunpack.c.l.b16 %v4743
    %v5910 = vunpack.c.l.b16 %v4744
    %v5911 = vunpack.c.h.b16 %v4744
    %v5912 = vunpack.c.l.b16 %v4745
    %v5913 = vunpack.c.h.b16 %v4745
    %v5914 = vunpack.c.l.b16 %v4746
    %v5915 = vunpack.c.h.b16 %v4746
    %v5916 = vunpack.c.l.b16 %v4747
    %v5917 = vunpack.c.l.b16 %v4748
    %v5918 = vunpack.c.h.b16 %v4748
    %v5919 = vunpack.c.l.b16 %v4749
    %v5920 = vunpack.c.h.b16 %v4749
    %v5921 = vunpack.c.l.b16 %v4750
    %v5922 = vunpack.c.h.b16 %v4750
    %v5923 = vunpack.c.l.b16 %v4751
    %v5924 = vunpack.c.l.b16 %v4752
    %v5925 = vunpack.c.h.b16 %v4752
    %v5926 = vunpack.c.l.b16 %v4753
    %v5927 = vunpack.c.h.b16 %v4753
    %v5928 = vunpack.c.l.b16 %v4754
    %v5929 = vunpack.c.h.b16 %v4754
    %v5930 = vunpack.c.l.b16 %v4755
    %v5931 = vunpack.c.l.b16 %v4756
    %v5932 = vunpack.c.h.b16 %v4756
    %v5933 = vunpack.c.l.b16 %v4757
    %v5934 = vunpack.c.h.b16 %v4757
    %v5935 = vunpack.c.l.b16 %v4758
    %v5936 = vunpack.c.h.b16 %v4758
    %v5937 = vunpack.c.l.b16 %v4759
    %v5938 = vunpack.c.l.b16 %v4760
    %v5939 = vunpack.c.h.b16 %v4760
    %v5940 = vunpack.c.l.b16 %v4761
    %v5941 = vunpack.c.h.b16 %v4761
    %v5942 = vunpack.c.l.b16 %v4762
    %v5943 = vunpack.c.h.b16 %v4762
    %v5944 = vunpack.c.l.b16 %v4763
    %v5945 = vunpack.c.l.b16 %v4764
    %v5946 = vunpack.c.h.b16 %v4764
    %v5947 = vunpack.c.l.b16 %v4765
    %v5948 = vunpack.c.h.b16 %v4765
    %v5949 = vunpack.c.l.b16 %v4766
    %v5950 = vunpack.c.h.b16 %v4766
    %v5951 = vunpack.c.l.b16 %v4767
    %v5952 = vunpack.c.l.b16 %v4768
    %v5953 = vunpack.c.h.b16 %v4768
    %v5954 = vunpack.c.l.b16 %v4769
    %v5955 = vunpack.c.h.b16 %v4769
    %v5956 = vunpack.c.l.b16 %v4770
    %v5957 = vunpack.c.h.b16 %v4770
    %v5958 = vunpack.c.l.b16 %v4771
    %v5959 = vunpack.c.l.b16 %v4772
    %v5960 = vunpack.c.h.b16 %v4772
    %v5961 = vunpack.c.l.b16 %v4773
    %v5962 = vunpack.c.h.b16 %v4773
    %v5963 = vunpack.c.l.b16 %v4774
    %v5964 = vunpack.c.h.b16 %v4774
    %v5965 = vunpack.c.l.b16 %v4775
    %v5966 = vunpack.c.l.b16 %v4776
    %v5967 = vunpack.c.h.b16 %v4776
    %v5968 = vunpack.c.l.b16 %v4777
    %v5969 = vunpack.c.h.b16 %v4777
    %v5970 = vunpack.c.l.b16 %v4778
    %v5971 = vunpack.c.h.b16 %v4778
    %v5972 = vunpack.c.l.b16 %v4779
    %v5973 = vunpack.c.l.b16 %v4780
    %v5974 = vunpack.c.h.b16 %v4780
    %v5975 = vunpack.c.l.b16 %v4781
    %v5976 = vunpack.c.h.b16 %v4781
    %v5977 = vunpack.c.l.b16 %v4782
    %v5978 = vunpack.c.h.b16 %v4782
    %v5979 = vunpack.c.l.b16 %v4783
    %v5980 = vunpack.c.l.b16 %v4784
    %v5981 = vunpack.c.h.b16 %v4784
    %v5982 = vunpack.c.l.b16 %v4785
    %v5983 = vunpack.c.h.b16 %v4785
    %v5984 = vunpack.c.l.b16 %v4786
    %v5985 = vunpack.c.h.b16 %v4786
    %v5986 = vunpack.c.l.b16 %v4787
    %v5987 = vunpack.c.l.b16 %v4788
    %v5988 = vunpack.c.h.b16 %v4788
    %v5989 = vunpack.c.l.b16 %v4789
    %v5990 = vunpack.c.h.b16 %v4789
    %v5991 = vunpack.c.l.b16 %v4790
    %v5992 = vunpack.c.h.b16 %v4790
    %v5993 = vunpack.c.l.b16 %v4791
    %v5994 = vunpack.c.l.b16 %v4792
    %v5995 = vunpack.c.h.b16 %v4792
    %v5996 = vunpack.c.l.b16 %v4793
    %v5997 = vunpack.c.h.b16 %v4793
    %v5998 = vunpack.c.l.b16 %v4794
    %v5999 = vunpack.c.h.b16 %v4794
    %v6000 = vunpack.c.l.b16 %v4795
    %v6001 = vunpack.c.l.b16 %v4796
    %v6002 = vunpack.c.h.b16 %v4796
    %v6003 = vunpack.c.l.b16 %v4797
    %v6004 = vunpack.c.h.b16 %v4797
    %v6005 = vunpack.c.l.b16 %v4798
    %v6006 = vunpack.c.h.b16 %v4798
    %v6007 = vunpack.c.l.b16 %v4799
    %v6008 = vunpack.c.l.b16 %v4800
    %v6009 = vunpack.c.h.b16 %v4800
    %v6010 = vunpack.c.l.b16 %v4801
    %v6011 = vunpack.c.h.b16 %v4801
    %v6012 = vunpack.c.l.b16 %v4802
    %v6013 = vunpack.c.h.b16 %v4802
    %v6014 = vunpack.c.l.b16 %v4803
    %v6015 = vunpack.c.l.b16 %v4804
    %v6016 = vunpack.c.h.b16 %v4804
    %v6017 = vunpack.c.l.b16 %v4805
    %v6018 = vunpack.c.h.b16 %v4805
    %v6019 = vunpack.c.l.b16 %v4806
    %v6020 = vunpack.c.h.b16 %v4806
    %v6021 = vunpack.c.l.b16 %v4807
    %v6022 = vunpack.c.l.b16 %v4808
    %v6023 = vunpack.c.h.b16 %v4808
    %v6024 = vunpack.c.l.b16 %v4809
    %v6025 = vunpack.c.h.b16 %v4809
    %v6026 = vunpack.c.l.b16 %v4810
    %v6027 = vunpack.c.h.b16 %v4810
    %v6028 = vunpack.c.l.b16 %v4811
    %v6029 = vunpack.c.l.b16 %v4812
    %v6030 = vunpack.c.h.b16 %v4812
    %v6031 = vunpack.c.l.b16 %v4813
    %v6032 = vunpack.c.h.b16 %v4813
    %v6033 = vunpack.c.l.b16 %v4814
    %v6034 = vunpack.c.h.b16 %v4814
    %v6035 = vunpack.c.l.b16 %v4815
    %v6036 = vunpack.c.l.b16 %v4816
    %v6037 = vunpack.c.h.b16 %v4816
    %v6038 = vunpack.c.l.b16 %v4817
    %v6039 = vunpack.c.h.b16 %v4817
    %v6040 = vunpack.c.l.b16 %v4818
    %v6041 = vunpack.c.h.b16 %v4818
    %v6042 = vunpack.c.l.b16 %v4819
    %v6043 = vunpack.c.l.b16 %v4820
    %v6044 = vunpack.c.h.b16 %v4820
    %v6045 = vunpack.c.l.b16 %v4821
    %v6046 = vunpack.c.h.b16 %v4821
    %v6047 = vunpack.c.l.b16 %v4822
    %v6048 = vunpack.c.h.b16 %v4822
    %v6049 = vunpack.c.l.b16 %v4823
    %v6050 = vunpack.c.l.b16 %v4824
    %v6051 = vunpack.c.h.b16 %v4824
    %v6052 = vunpack.c.l.b16 %v4825
    %v6053 = vunpack.c.h.b16 %v4825
    %v6054 = vunpack.c.l.b16 %v4826
    %v6055 = vunpack.c.h.b16 %v4826
    %v6056 = vunpack.c.l.b16 %v4827
    %v6057 = vunpack.c.l.b16 %v4828
    %v6058 = vunpack.c.h.b16 %v4828
    %v6059 = vunpack.c.l.b16 %v4829
    %v6060 = vunpack.c.h.b16 %v4829
    %v6061 = vunpack.c.l.b16 %v4830
    %v6062 = vunpack.c.h.b16 %v4830
    %v6063 = vunpack.c.l.b16 %v4831
    %v6064 = vunpack.c.l.b16 %v4832
    %v6065 = vunpack.c.h.b16 %v4832
    %v6066 = vunpack.c.l.b16 %v4833
    %v6067 = vunpack.c.h.b16 %v4833
    %v6068 = vunpack.c.l.b16 %v4834
    %v6069 = vunpack.c.h.b16 %v4834
    %v6070 = vunpack.c.l.b16 %v4835
    %v6071 = vunpack.c.l.b16 %v4836
    %v6072 = vunpack.c.h.b16 %v4836
    %v6073 = vunpack.c.l.b16 %v4837
    %v6074 = vunpack.c.h.b16 %v4837
    %v6075 = vunpack.c.l.b16 %v4838
    %v6076 = vunpack.c.h.b16 %v4838
    %v6077 = vunpack.c.l.b16 %v4839
    %v6078 = vunpack.c.l.b16 %v4840
    %v6079 = vunpack.c.h.b16 %v4840
    %v6080 = vunpack.c.l.b16 %v4841
    %v6081 = vunpack.c.h.b16 %v4841
    %v6082 = vunpack.c.l.b16 %v4842
    %v6083 = vunpack.c.h.b16 %v4842
    %v6084 = vunpack.c.l.b16 %v4843
    %v6085 = vunpack.c.l.b16 %v4844
    %v6086 = vunpack.c.h.b16 %v4844
    %v6087 = vunpack.c.l.b16 %v4845
    %v6088 = vunpack.c.h.b16 %v4845
    %v6089 = vunpack.c.l.b16 %v4846
    %v6090 = vunpack.c.h.b16 %v4846
    %v6091 = vunpack.c.l.b16 %v4847
    %v6092 = vunpack.c.l.b16 %v4848
    %v6093 = vunpack.c.h.b16 %v4848
    %v6094 = vunpack.c.l.b16 %v4849
    %v6095 = vunpack.c.h.b16 %v4849
    %v6096 = vunpack.c.l.b16 %v4850
    %v6097 = vunpack.c.h.b16 %v4850
    %v6098 = vunpack.c.l.b16 %v4851
    %v6099 = vunpack.c.l.b16 %v4852
    %v6100 = vunpack.c.h.b16 %v4852
    %v6101 = vunpack.c.l.b16 %v4853
    %v6102 = vunpack.c.h.b16 %v4853
    %v6103 = vunpack.c.l.b16 %v4854
    %v6104 = vunpack.c.h.b16 %v4854
    %v6105 = vunpack.c.l.b16 %v4855
    %v6106 = vunpack.c.l.b16 %v4856
    %v6107 = vunpack.c.h.b16 %v4856
    %v6108 = vunpack.c.l.b16 %v4857
    %v6109 = vunpack.c.h.b16 %v4857
    %v6110 = vunpack.c.l.b16 %v4858
    %v6111 = vunpack.c.h.b16 %v4858
    %v6112 = vunpack.c.l.b16 %v4859
    %v6113 = vunpack.c.l.b16 %v4860
    %v6114 = vunpack.c.h.b16 %v4860
    %v6115 = vunpack.c.l.b16 %v4861
    %v6116 = vunpack.c.h.b16 %v4861
    %v6117 = vunpack.c.l.b16 %v4862
    %v6118 = vunpack.c.h.b16 %v4862
    %v6119 = vunpack.c.l.b16 %v4863
    %v6120 = vunpack.c.l.b16 %v4864
    %v6121 = vunpack.c.h.b16 %v4864
    %v6122 = vunpack.c.l.b16 %v4865
    %v6123 = vunpack.c.h.b16 %v4865
    %v6124 = vunpack.c.l.b16 %v4866
    %v6125 = vunpack.c.h.b16 %v4866
    %v6126 = vunpack.c.l.b16 %v4867
    %v6127 = vunpack.c.l.b16 %v4868
    %v6128 = vunpack.c.h.b16 %v4868
    %v6129 = vunpack.c.l.b16 %v4869
    %v6130 = vunpack.c.h.b16 %v4869
    %v6131 = vunpack.c.l.b16 %v4870
    %v6132 = vunpack.c.h.b16 %v4870
    %v6133 = vunpack.c.l.b16 %v4871
    %v6134 = vunpack.c.l.b16 %v4872
    %v6135 = vunpack.c.h.b16 %v4872
    %v6136 = vunpack.c.l.b16 %v4873
    %v6137 = vunpack.c.h.b16 %v4873
    %v6138 = vunpack.c.l.b16 %v4874
    %v6139 = vunpack.c.h.b16 %v4874
    %v6140 = vunpack.c.l.b16 %v4875
    %v6141 = vunpack.c.l.b16 %v4876
    %v6142 = vunpack.c.h.b16 %v4876
    %v6143 = vunpack.c.l.b16 %v4877
    %v6144 = vunpack.c.h.b16 %v4877
    %v6145 = vunpack.c.l.b16 %v4878
    %v6146 = vunpack.c.h.b16 %v4878
    %v6147 = vunpack.c.l.b16 %v4879
    %v6148 = vunpack.c.l.b16 %v4880
    %v6149 = vunpack.c.h.b16 %v4880
    %v6150 = vunpack.c.l.b16 %v4881
    %v6151 = vunpack.c.h.b16 %v4881
    %v6152 = vunpack.c.l.b16 %v4882
    %v6153 = vunpack.c.h.b16 %v4882
    %v6154 = vunpack.c.l.b16 %v4883
    %v6155 = vunpack.c.l.b16 %v4884
    %v6156 = vunpack.c.h.b16 %v4884
    %v6157 = vunpack.c.l.b16 %v4885
    %v6158 = vunpack.c.h.b16 %v4885
    %v6159 = vunpack.c.l.b16 %v4886
    %v6160 = vunpack.c.h.b16 %v4886
    %v6161 = vunpack.c.l.b16 %v4887
    %v6162 = vunpack.c.l.b16 %v4888
    %v6163 = vunpack.c.h.b16 %v4888
    %v6164 = vunpack.c.l.b16 %v4889
    %v6165 = vunpack.c.h.b16 %v4889
    %v6166 = vunpack.c.l.b16 %v4890
    %v6167 = vunpack.c.h.b16 %v4890
    %v6168 = vunpack.c.l.b16 %v4891
    %v6169 = vunpack.c.l.b16 %v4892
    %v6170 = vunpack.c.h.b16 %v4892
    %v6171 = vunpack.c.l.b16 %v4893
    %v6172 = vunpack.c.h.b16 %v4893
    %v6173 = vunpack.c.l.b16 %v4894
    %v6174 = vunpack.c.h.b16 %v4894
    %v6175 = vunpack.c.l.b16 %v4895
    %v6176 = vunpack.c.l.b16 %v4896
    %v6177 = vunpack.c.h.b16 %v4896
    %v6178 = vunpack.c.l.b16 %v4897
    %v6179 = vunpack.c.h.b16 %v4897
    %v6180 = vunpack.c.l.b16 %v4898
    %v6181 = vunpack.c.h.b16 %v4898
    %v6182 = vunpack.c.l.b16 %v4899
    %v6183 = vunpack.c.l.b16 %v4900
    %v6184 = vunpack.c.h.b16 %v4900
    %v6185 = vunpack.c.l.b16 %v4901
    %v6186 = vunpack.c.h.b16 %v4901
    %v6187 = vunpack.c.l.b16 %v4902
    %v6188 = vunpack.c.h.b16 %v4902
    %v6189 = vunpack.c.l.b16 %v4903
    %v6190 = vunpack.c.l.b16 %v4904
    %v6191 = vunpack.c.h.b16 %v4904
    %v6192 = vunpack.c.l.b16 %v4905
    %v6193 = vunpack.c.h.b16 %v4905
    %v6194 = vunpack.c.l.b16 %v4906
    %v6195 = vunpack.c.h.b16 %v4906
    %v6196 = vunpack.c.l.b16 %v4907
    %v6197 = vunpack.c.l.b16 %v4908
    %v6198 = vunpack.c.h.b16 %v4908
    %v6199 = vunpack.c.l.b16 %v4909
    %v6200 = vunpack.c.h.b16 %v4909
    %v6201 = vunpack.c.l.b16 %v4910
    %v6202 = vunpack.c.h.b16 %v4910
    %v6203 = vunpack.c.l.b16 %v4911
    %v6204 = vunpack.c.l.b16 %v4912
    %v6205 = vunpack.c.h.b16 %v4912
    %v6206 = vunpack.c.l.b16 %v4913
    %v6207 = vunpack.c.h.b16 %v4913
    %v6208 = vunpack.c.l.b16 %v4914
    %v6209 = vunpack.c.h.b16 %v4914
    %v6210 = vunpack.c.l.b16 %v4915
    %v6211 = vunpack.c.l.b16 %v4916
    %v6212 = vunpack.c.h.b16 %v4916
    %v6213 = vunpack.c.l.b16 %v4917
    %v6214 = vunpack.c.h.b16 %v4917
    %v6215 = vunpack.c.l.b16 %v4918
    %v6216 = vunpack.c.h.b16 %v4918
    %v6217 = vunpack.c.l.b16 %v4919
    %v6218 = vunpack.c.l.b16 %v4920
    %v6219 = vunpack.c.h.b16 %v4920
    %v6220 = vunpack.c.l.b16 %v4921
    %v6221 = vunpack.c.h.b16 %v4921
    %v6222 = vunpack.c.l.b16 %v4922
    %v6223 = vunpack.c.h.b16 %v4922
    %v6224 = vunpack.c.l.b16 %v4923
    %v6225 = vunpack.c.l.b16 %v4924
    %v6226 = vunpack.c.h.b16 %v4924
    %v6227 = vunpack.c.l.b16 %v4925
    %v6228 = vunpack.c.h.b16 %v4925
    %v6229 = vunpack.c.l.b16 %v4926
    %v6230 = vunpack.c.h.b16 %v4926
    %v6231 = vunpack.c.l.b16 %v4927
    %v6232 = vunpack.c.l.b16 %v4928
    %v6233 = vunpack.c.h.b16 %v4928
    %v6234 = vunpack.c.l.b16 %v4929
    %v6235 = vunpack.c.h.b16 %v4929
    %v6236 = vunpack.c.l.b16 %v4930
    %v6237 = vunpack.c.h.b16 %v4930
    %v6238 = vunpack.c.l.b16 %v4931
    %v6239 = vunpack.c.l.b16 %v4932
    %v6240 = vunpack.c.h.b16 %v4932
    %v6241 = vunpack.c.l.b16 %v4933
    %v6242 = vunpack.c.h.b16 %v4933
    %v6243 = vunpack.c.l.b16 %v4934
    %v6244 = vunpack.c.h.b16 %v4934
    %v6245 = vunpack.c.l.b16 %v4935
    %v6246 = vunpack.c.l.b16 %v4936
    %v6247 = vunpack.c.h.b16 %v4936
    %v6248 = vunpack.c.l.b16 %v4937
    %v6249 = vunpack.c.h.b16 %v4937
    %v6250 = vunpack.c.l.b16 %v4938
    %v6251 = vunpack.c.h.b16 %v4938
    %v6252 = vunpack.c.l.b16 %v4939
    %v6253 = vunpack.c.l.b16 %v4940
    %v6254 = vunpack.c.h.b16 %v4940
    %v6255 = vunpack.c.l.b16 %v4941
    %v6256 = vunpack.c.h.b16 %v4941
    %v6257 = vunpack.c.l.b16 %v4942
    %v6258 = vunpack.c.h.b16 %v4942
    %v6259 = vunpack.c.l.b16 %v4943
    %v6260 = vunpack.c.l.b16 %v4944
    %v6261 = vunpack.c.h.b16 %v4944
    %v6262 = vunpack.c.l.b16 %v4945
    %v6263 = vunpack.c.h.b16 %v4945
    %v6264 = vunpack.c.l.b16 %v4946
    %v6265 = vunpack.c.h.b16 %v4946
    %v6266 = vunpack.c.l.b16 %v4947
    %v6267 = vunpack.c.l.b16 %v4948
    %v6268 = vunpack.c.h.b16 %v4948
    %v6269 = vunpack.c.l.b16 %v4949
    %v6270 = vunpack.c.h.b16 %v4949
    %v6271 = vunpack.c.l.b16 %v4950
    %v6272 = vunpack.c.h.b16 %v4950
    %v6273 = vunpack.c.l.b16 %v4951
    %v6274 = vunpack.c.l.b16 %v4952
    %v6275 = vunpack.c.h.b16 %v4952
    %v6276 = vunpack.c.l.b16 %v4953
    %v6277 = vunpack.c.h.b16 %v4953
    %v6278 = vunpack.c.l.b16 %v4954
    %v6279 = vunpack.c.h.b16 %v4954
    %v6280 = vunpack.c.l.b16 %v4955
    %v6281 = vunpack.c.l.b16 %v4956
    %v6282 = vunpack.c.h.b16 %v4956
    %v6283 = vunpack.c.l.b16 %v4957
    %v6284 = vunpack.c.h.b16 %v4957
    %v6285 = vunpack.c.l.b16 %v4958
    %v6286 = vunpack.c.h.b16 %v4958
    %v6287 = vunpack.c.l.b16 %v4959
    %v6288 = vunpack.c.l.b16 %v4960
    %v6289 = vunpack.c.h.b16 %v4960
    %v6290 = vunpack.c.l.b16 %v4961
    %v6291 = vunpack.c.h.b16 %v4961
    %v6292 = vunpack.c.l.b16 %v4962
    %v6293 = vunpack.c.h.b16 %v4962
    %v6294 = vunpack.c.l.b16 %v4963
    %v6295 = vunpack.c.l.b16 %v4964
    %v6296 = vunpack.c.h.b16 %v4964
    %v6297 = vunpack.c.l.b16 %v4965
    %v6298 = vunpack.c.h.b16 %v4965
    %v6299 = vunpack.c.l.b16 %v4966
    %v6300 = vunpack.c.h.b16 %v4966
    %v6301 = vunpack.c.l.b16 %v4967
    %v6302 = vunpack.c.l.b16 %v4968
    %v6303 = vunpack.c.h.b16 %v4968
    %v6304 = vunpack.c.l.b16 %v4969
    %v6305 = vunpack.c.h.b16 %v4969
    %v6306 = vunpack.c.l.b16 %v4970
    %v6307 = vunpack.c.h.b16 %v4970
    %v6308 = vunpack.c.l.b16 %v4971
    %v6309 = vunpack.c.l.b16 %v4972
    %v6310 = vunpack.c.h.b16 %v4972
    %v6311 = vunpack.c.l.b16 %v4973
    %v6312 = vunpack.c.h.b16 %v4973
    %v6313 = vunpack.c.l.b16 %v4974
    %v6314 = vunpack.c.h.b16 %v4974
    %v6315 = vunpack.c.l.b16 %v4975
    %v6316 = vunpack.c.l.b16 %v4976
    %v6317 = vunpack.c.h.b16 %v4976
    %v6318 = vunpack.c.l.b16 %v4977
    %v6319 = vunpack.c.h.b16 %v4977
    %v6320 = vunpack.c.l.b16 %v4978
    %v6321 = vunpack.c.h.b16 %v4978
    %v6322 = vunpack.c.l.b16 %v4979
    %v6323 = vunpack.c.l.b16 %v4980
    %v6324 = vunpack.c.h.b16 %v4980
    %v6325 = vunpack.c.l.b16 %v4981
    %v6326 = vunpack.c.h.b16 %v4981
    %v6327 = vunpack.c.l.b16 %v4982
    %v6328 = vunpack.c.h.b16 %v4982
    %v6329 = vunpack.c.l.b16 %v4983
    %v6330 = vunpack.c.l.b16 %v4984
    %v6331 = vunpack.c.h.b16 %v4984
    %v6332 = vunpack.c.l.b16 %v4985
    %v6333 = vunpack.c.h.b16 %v4985
    %v6334 = vunpack.c.l.b16 %v4986
    %v6335 = vunpack.c.h.b16 %v4986
    %v6336 = vunpack.c.l.b16 %v4987
    %v6337 = vunpack.c.l.b16 %v4988
    %v6338 = vunpack.c.h.b16 %v4988
    %v6339 = vunpack.c.l.b16 %v4989
    %v6340 = vunpack.c.h.b16 %v4989
    %v6341 = vunpack.c.l.b16 %v4990
    %v6342 = vunpack.c.h.b16 %v4990
    %v6343 = vunpack.c.l.b16 %v4991
    %v6344 = vunpack.c.l.b16 %v4992
    %v6345 = vunpack.c.h.b16 %v4992
    %v6346 = vunpack.c.l.b16 %v4993
    %v6347 = vunpack.c.h.b16 %v4993
    %v6348 = vunpack.c.l.b16 %v4994
    %v6349 = vunpack.c.h.b16 %v4994
    %v6350 = vunpack.c.l.b16 %v4995
    %v6351 = vunpack.c.l.b16 %v4996
    %v6352 = vunpack.c.h.b16 %v4996
    %v6353 = vunpack.c.l.b16 %v4997
    %v6354 = vunpack.c.h.b16 %v4997
    %v6355 = vunpack.c.l.b16 %v4998
    %v6356 = vunpack.c.h.b16 %v4998
    %v6357 = vunpack.c.l.b16 %v4999
    %v6358 = vunpack.c.l.b16 %v5000
    %v6359 = vunpack.c.h.b16 %v5000
    %v6360 = vunpack.c.l.b16 %v5001
    %v6361 = vunpack.c.h.b16 %v5001
    %v6362 = vunpack.c.l.b16 %v5002
    %v6363 = vunpack.c.h.b16 %v5002
    %v6364 = vunpack.c.l.b16 %v5003
    %v6365 = vunpack.c.l.b16 %v5004
    %v6366 = vunpack.c.h.b16 %v5004
    %v6367 = vunpack.c.l.b16 %v5005
    %v6368 = vunpack.c.h.b16 %v5005
    %v6369 = vunpack.c.l.b16 %v5006
    %v6370 = vunpack.c.h.b16 %v5006
    %v6371 = vunpack.c.l.b16 %v5007
    %v6372 = vunpack.c.l.b16 %v5008
    %v6373 = vunpack.c.h.b16 %v5008
    %v6374 = vunpack.c.l.b16 %v5009
    %v6375 = vunpack.c.h.b16 %v5009
    %v6376 = vunpack.c.l.b16 %v5010
    %v6377 = vunpack.c.h.b16 %v5010
    %v6378 = vunpack.c.l.b16 %v5011
    %v6379 = vunpack.c.l.b16 %v5012
    %v6380 = vunpack.c.h.b16 %v5012
    %v6381 = vunpack.c.l.b16 %v5013
    %v6382 = vunpack.c.h.b16 %v5013
    %v6383 = vunpack.c.l.b16 %v5014
    %v6384 = vunpack.c.h.b16 %v5014
    %v6385 = vunpack.c.l.b16 %v5015
    %v6386 = vunpack.c.l.b16 %v5016
    %v6387 = vunpack.c.h.b16 %v5016
    %v6388 = vunpack.c.l.b16 %v5017
    %v6389 = vunpack.c.h.b16 %v5017
    %v6390 = vunpack.c.l.b16 %v5018
    %v6391 = vunpack.c.h.b16 %v5018
    %v6392 = vunpack.c.l.b16 %v5019
    %v6393 = vunpack.c.l.b16 %v5020
    %v6394 = vunpack.c.h.b16 %v5020
    %v6395 = vunpack.c.l.b16 %v5021
    %v6396 = vunpack.c.h.b16 %v5021
    %v6397 = vunpack.c.l.b16 %v5022
    %v6398 = vunpack.c.h.b16 %v5022
    %v6399 = vunpack.c.l.b16 %v5023
    %v6400 = vunpack.c.l.b16 %v5024
    %v6401 = vunpack.c.h.b16 %v5024
    %v6402 = vunpack.c.l.b16 %v5025
    %v6403 = vunpack.c.h.b16 %v5025
    %v6404 = vunpack.c.l.b16 %v5026
    %v6405 = vunpack.c.h.b16 %v5026
    %v6406 = vunpack.c.l.b16 %v5027
    %v6407 = vunpack.c.l.b16 %v5028
    %v6408 = vunpack.c.h.b16 %v5028
    %v6409 = vunpack.c.l.b16 %v5029
    %v6410 = vunpack.c.h.b16 %v5029
    %v6411 = vunpack.c.l.b16 %v5030
    %v6412 = vunpack.c.h.b16 %v5030
    %v6413 = vunpack.c.l.b16 %v5031
    %v6414 = vunpack.c.l.b16 %v5032
    %v6415 = vunpack.c.h.b16 %v5032
    %v6416 = vunpack.c.l.b16 %v5033
    %v6417 = vunpack.c.h.b16 %v5033
    %v6418 = vunpack.c.l.b16 %v5034
    %v6419 = vunpack.c.h.b16 %v5034
    %v6420 = vunpack.c.l.b16 %v5035
    %v6421 = vunpack.c.l.b16 %v5036
    %v6422 = vunpack.c.h.b16 %v5036
    %v6423 = vunpack.c.l.b16 %v5037
    %v6424 = vunpack.c.h.b16 %v5037
    %v6425 = vunpack.c.l.b16 %v5038
    %v6426 = vunpack.c.h.b16 %v5038
    %v6427 = vunpack.c.l.b16 %v5039
    %v6428 = vunpack.c.l.b16 %v5040
    %v6429 = vunpack.c.h.b16 %v5040
    %v6430 = vunpack.c.l.b16 %v5041
    %v6431 = vunpack.c.h.b16 %v5041
    %v6432 = vunpack.c.l.b16 %v5042
    %v6433 = vunpack.c.h.b16 %v5042
    %v6434 = vunpack.c.l.b16 %v5043
    %v6435 = vunpack.c.l.b16 %v5044
    %v6436 = vunpack.c.h.b16 %v5044
    %v6437 = vunpack.c.l.b16 %v5045
    %v6438 = vunpack.c.h.b16 %v5045
    %v6439 = vunpack.c.l.b16 %v5046
    %v6440 = vunpack.c.h.b16 %v5046
    %v6441 = vunpack.c.l.b16 %v5047
    %v6442 = vunpack.c.l.b16 %v5048
    %v6443 = vunpack.c.h.b16 %v5048
    %v6444 = vunpack.c.l.b16 %v5049
    %v6445 = vunpack.c.h.b16 %v5049
    %v6446 = vunpack.c.l.b16 %v5050
    %v6447 = vunpack.c.h.b16 %v5050
    %v6448 = vunpack.c.l.b16 %v5051
    %v6449 = vunpack.c.l.b16 %v5052
    %v6450 = vunpack.c.h.b16 %v5052
    %v6451 = vunpack.c.l.b16 %v5053
    %v6452 = vunpack.c.h.b16 %v5053
    %v6453 = vunpack.c.l.b16 %v5054
    %v6454 = vunpack.c.h.b16 %v5054
    %v6455 = vunpack.c.l.b16 %v5055
    %v6456 = vunpack.c.l.b16 %v5056
    %v6457 = vunpack.c.h.b16 %v5056
    %v6458 = vunpack.c.l.b16 %v5057
    %v6459 = vunpack.c.h.b16 %v5057
    %v6460 = vunpack.c.l.b16 %v5058
    %v6461 = vunpack.c.h.b16 %v5058
    %v6462 = vunpack.c.l.b16 %v5059
    %v6463 = vunpack.c.l.b16 %v5060
    %v6464 = vunpack.c.h.b16 %v5060
    %v6465 = vunpack.c.l.b16 %v5061
    %v6466 = vunpack.c.h.b16 %v5061
    %v6467 = vunpack.c.l.b16 %v5062
    %v6468 = vunpack.c.h.b16 %v5062
    %v6469 = vunpack.c.l.b16 %v5063
    %v6470 = vunpack.c.l.b16 %v5064
    %v6471 = vunpack.c.h.b16 %v5064
    %v6472 = vunpack.c.l.b16 %v5065
    %v6473 = vunpack.c.h.b16 %v5065
    %v6474 = vunpack.c.l.b16 %v5066
    %v6475 = vunpack.c.h.b16 %v5066
    %v6476 = vunpack.c.l.b16 %v5067
    %v6477 = vunpack.c.l.b16 %v5068
    %v6478 = vunpack.c.h.b16 %v5068
    %v6479 = vunpack.c.l.b16 %v5069
    %v6480 = vunpack.c.h.b16 %v5069
    %v6481 = vunpack.c.l.b16 %v5070
    %v6482 = vunpack.c.h.b16 %v5070
    %v6483 = vunpack.c.l.b16 %v5071
    %v6484 = vunpack.c.l.b16 %v5072
    %v6485 = vunpack.c.h.b16 %v5072
    %v6486 = vunpack.c.l.b16 %v5073
    %v6487 = vunpack.c.h.b16 %v5073
    %v6488 = vunpack.c.l.b16 %v5074
    %v6489 = vunpack.c.h.b16 %v5074
    %v6490 = vunpack.c.l.b16 %v5075
    %v6491 = vunpack.c.l.b16 %v5076
    %v6492 = vunpack.c.h.b16 %v5076
    %v6493 = vunpack.c.l.b16 %v5077
    %v6494 = vunpack.c.h.b16 %v5077
    %v6495 = vunpack.c.l.b16 %v5078
    %v6496 = vunpack.c.h.b16 %v5078
    %v6497 = vunpack.c.l.b16 %v5079
    %v6498 = vunpack.c.l.b16 %v5080
    %v6499 = vunpack.c.h.b16 %v5080
    %v6500 = vunpack.c.l.b16 %v5081
    %v6501 = vunpack.c.h.b16 %v5081
    %v6502 = vunpack.c.l.b16 %v5082
    %v6503 = vunpack.c.h.b16 %v5082
    %v6504 = vunpack.c.l.b16 %v5083
    %v6505 = vunpack.c.l.b16 %v5084
    %v6506 = vunpack.c.h.b16 %v5084
    %v6507 = vunpack.c.l.b16 %v5085
    %v6508 = vunpack.c.h.b16 %v5085
    %v6509 = vunpack.c.l.b16 %v5086
    %v6510 = vunpack.c.h.b16 %v5086
    %v6511 = vunpack.c.l.b16 %v5087
    %v6512 = vpack.c.b16 %v5623, %v5616
    %v6513 = vpack.c.b16 %v5624, %v5617
    %v6514 = vpack.c.b16 %v5625, %v5618
    %v6515 = vpack.c.b16 %v5626, %v5619
    %v6516 = vpack.c.b16 %v5627, %v5620
    %v6517 = vpack.c.b16 %v5628, %v5621
    %v6518 = vpack.c.b16 %v5629, %v5622
    %v6519 = vpack.c.b16 %v5637, %v5630
    %v6520 = vpack.c.b16 %v5638, %v5631
    %v6521 = vpack.c.b16 %v5639, %v5632
    %v6522 = vpack.c.b16 %v5640, %v5633
    %v6523 = vpack.c.b16 %v5641, %v5634
    %v6524 = vpack.c.b16 %v5642, %v5635
    %v6525 = vpack.c.b16 %v5643, %v5636
    %v6526 = vpack.c.b16 %v5651, %v5644
    %v6527 = vpack.c.b16 %v5652, %v5645
    %v6528 = vpack.c.b16 %v5653, %v5646
    %v6529 = vpack.c.b16 %v5654, %v5647
    %v6530 = vpack.c.b16 %v5655, %v5648
    %v6531 = vpack.c.b16 %v5656, %v5649
    %v6532 = vpack.c.b16 %v5657, %v5650
    %v6533 = vpack.c.b16 %v5665, %v5658
    %v6534 = vpack.c.b16 %v5666, %v5659
    %v6535 = vpack.c.b16 %v5667, %v5660
    %v6536 = vpack.c.b16 %v5668, %v5661
    %v6537 = vpack.c.b16 %v5669, %v5662
    %v6538 = vpack.c.b16 %v5670, %v5663
    %v6539 = vpack.c.b16 %v5671, %v5664
    %v6540 = vpack.c.b16 %v5679, %v5672
    %v6541 = vpack.c.b16 %v5680, %v5673
    %v6542 = vpack.c.b16 %v5681, %v5674
    %v6543 = vpack.c.b16 %v5682, %v5675
    %v6544 = vpack.c.b16 %v5683, %v5676
    %v6545 = vpack.c.b16 %v5684, %v5677
    %v6546 = vpack.c.b16 %v5685, %v5678
    %v6547 = vpack.c.b16 %v5693, %v5686
    %v6548 = vpack.c.b16 %v5694, %v5687
    %v6549 = vpack.c.b16 %v5695, %v5688
    %v6550 = vpack.c.b16 %v5696, %v5689
    %v6551 = vpack.c.b16 %v5697, %v5690
    %v6552 = vpack.c.b16 %v5698, %v5691
    %v6553 = vpack.c.b16 %v5699, %v5692
    %v6554 = vpack.c.b16 %v5707, %v5700
    %v6555 = vpack.c.b16 %v5708, %v5701
    %v6556 = vpack.c.b16 %v5709, %v5702
    %v6557 = vpack.c.b16 %v5710, %v5703
    %v6558 = vpack.c.b16 %v5711, %v5704
    %v6559 = vpack.c.b16 %v5712, %v5705
    %v6560 = vpack.c.b16 %v5713, %v5706
    %v6561 = vpack.c.b16 %v5721, %v5714
    %v6562 = vpack.c.b16 %v5722, %v5715
    %v6563 = vpack.c.b16 %v5723, %v5716
    %v6564 = vpack.c.b16 %v5724, %v5717
    %v6565 = vpack.c.b16 %v5725, %v5718
    %v6566 = vpack.c.b16 %v5726, %v5719
    %v6567 = vpack.c.b16 %v5727, %v5720
    %v6568 = vpack.c.b16 %v5735, %v5728
    %v6569 = vpack.c.b16 %v5736, %v5729
    %v6570 = vpack.c.b16 %v5737, %v5730
    %v6571 = vpack.c.b16 %v5738, %v5731
    %v6572 = vpack.c.b16 %v5739, %v5732
    %v6573 = vpack.c.b16 %v5740, %v5733
    %v6574 = vpack.c.b16 %v5741, %v5734
    %v6575 = vpack.c.b16 %v5749, %v5742
    %v6576 = vpack.c.b16 %v5750, %v5743
    %v6577 = vpack.c.b16 %v5751, %v5744
    %v6578 = vpack.c.b16 %v5752, %v5745
    %v6579 = vpack.c.b16 %v5753, %v5746
    %v6580 = vpack.c.b16 %v5754, %v5747
    %v6581 = vpack.c.b16 %v5755, %v5748
    %v6582 = vpack.c.b16 %v5763, %v5756
    %v6583 = vpack.c.b16 %v5764, %v5757
    %v6584 = vpack.c.b16 %v5765, %v5758
    %v6585 = vpack.c.b16 %v5766, %v5759
    %v6586 = vpack.c.b16 %v5767, %v5760
    %v6587 = vpack.c.b16 %v5768, %v5761
    %v6588 = vpack.c.b16 %v5769, %v5762
    %v6589 = vpack.c.b16 %v5777, %v5770
    %v6590 = vpack.c.b16 %v5778, %v5771
    %v6591 = vpack.c.b16 %v5779, %v5772
    %v6592 = vpack.c.b16 %v5780, %v5773
    %v6593 = vpack.c.b16 %v5781, %v5774
    %v6594 = vpack.c.b16 %v5782, %v5775
    %v6595 = vpack.c.b16 %v5783, %v5776
    %v6596 = vpack.c.b16 %v5791, %v5784
    %v6597 = vpack.c.b16 %v5792, %v5785
    %v6598 = vpack.c.b16 %v5793, %v5786
    %v6599 = vpack.c.b16 %v5794, %v5787
    %v6600 = vpack.c.b16 %v5795, %v5788
    %v6601 = vpack.c.b16 %v5796, %v5789
    %v6602 = vpack.c.b16 %v5797, %v5790
    %v6603 = vpack.c.b16 %v5805, %v5798
    %v6604 = vpack.c.b16 %v5806, %v5799
    %v6605 = vpack.c.b16 %v5807, %v5800
    %v6606 = vpack.c.b16 %v5808, %v5801
    %v6607 = vpack.c.b16 %v5809, %v5802
    %v6608 = vpack.c.b16 %v5810, %v5803
    %v6609 = vpack.c.b16 %v5811, %v5804
    %v6610 = vpack.c.b16 %v5819, %v5812
    %v6611 = vpack.c.b16 %v5820, %v5813
    %v6612 = vpack.c.b16 %v5821, %v5814
    %v6613 = vpack.c.b16 %v5822, %v5815
    %v6614 = vpack.c.b16 %v5823, %v5816
    %v6615 = vpack.c.b16 %v5824, %v5817
    %v6616 = vpack.c.b16 %v5825, %v5818
    %v6617 = vpack.c.b16 %v5833, %v5826
    %v6618 = vpack.c.b16 %v5834, %v5827
    %v6619 = vpack.c.b16 %v5835, %v5828
    %v6620 = vpack.c.b16 %v5836, %v5829
    %v6621 = vpack.c.b16 %v5837, %v5830
    %v6622 = vpack.c.b16 %v5838, %v5831
    %v6623 = vpack.c.b16 %v5839, %v5832
    %v6624 = vpack.c.b16 %v5847, %v5840
    %v6625 = vpack.c.b16 %v5848, %v5841
    %v6626 = vpack.c.b16 %v5849, %v5842
    %v6627 = vpack.c.b16 %v5850, %v5843
    %v6628 = vpack.c.b16 %v5851, %v5844
    %v6629 = vpack.c.b16 %v5852, %v5845
    %v6630 = vpack.c.b16 %v5853, %v5846
    %v6631 = vpack.c.b16 %v5861, %v5854
    %v6632 = vpack.c.b16 %v5862, %v5855
    %v6633 = vpack.c.b16 %v5863, %v5856
    %v6634 = vpack.c.b16 %v5864, %v5857
    %v6635 = vpack.c.b16 %v5865, %v5858
    %v6636 = vpack.c.b16 %v5866, %v5859
    %v6637 = vpack.c.b16 %v5867, %v5860
    %v6638 = vpack.c.b16 %v5875, %v5868
    %v6639 = vpack.c.b16 %v5876, %v5869
    %v6640 = vpack.c.b16 %v5877, %v5870
    %v6641 = vpack.c.b16 %v5878, %v5871
    %v6642 = vpack.c.b16 %v5879, %v5872
    %v6643 = vpack.c.b16 %v5880, %v5873
    %v6644 = vpack.c.b16 %v5881, %v5874
    %v6645 = vpack.c.b16 %v5889, %v5882
    %v6646 = vpack.c.b16 %v5890, %v5883
    %v6647 = vpack.c.b16 %v5891, %v5884
    %v6648 = vpack.c.b16 %v5892, %v5885
    %v6649 = vpack.c.b16 %v5893, %v5886
    %v6650 = vpack.c.b16 %v5894, %v5887
    %v6651 = vpack.c.b16 %v5895, %v5888
    %v6652 = vpack.c.b16 %v5903, %v5896
    %v6653 = vpack.c.b16 %v5904, %v5897
    %v6654 = vpack.c.b16 %v5905, %v5898
    %v6655 = vpack.c.b16 %v5906, %v5899
    %v6656 = vpack.c.b16 %v5907, %v5900
    %v6657 = vpack.c.b16 %v5908, %v5901
    %v6658 = vpack.c.b16 %v5909, %v5902
    %v6659 = vpack.c.b16 %v5917, %v5910
    %v6660 = vpack.c.b16 %v5918, %v5911
    %v6661 = vpack.c.b16 %v5919, %v5912
    %v6662 = vpack.c.b16 %v5920, %v5913
    %v6663 = vpack.c.b16 %v5921, %v5914
    %v6664 = vpack.c.b16 %v5922, %v5915
    %v6665 = vpack.c.b16 %v5923, %v5916
    %v6666 = vpack.c.b16 %v5931, %v5924
    %v6667 = vpack.c.b16 %v5932, %v5925
    %v6668 = vpack.c.b16 %v5933, %v5926
    %v6669 = vpack.c.b16 %v5934, %v5927
    %v6670 = vpack.c.b16 %v5935, %v5928
    %v6671 = vpack.c.b16 %v5936, %v5929
    %v6672 = vpack.c.b16 %v5937, %v5930
    %v6673 = vpack.c.b16 %v5945, %v5938
    %v6674 = vpack.c.b16 %v5946, %v5939
    %v6675 = vpack.c.b16 %v5947, %v5940
    %v6676 = vpack.c.b16 %v5948, %v5941
    %v6677 = vpack.c.b16 %v5949, %v5942
    %v6678 = vpack.c.b16 %v5950, %v5943
    %v6679 = vpack.c.b16 %v5951, %v5944
    %v6680 = vpack.c.b16 %v5959, %v5952
    %v6681 = vpack.c.b16 %v5960, %v5953
    %v6682 = vpack.c.b16 %v5961, %v5954
    %v6683 = vpack.c.b16 %v5962, %v5955
    %v6684 = vpack.c.b16 %v5963, %v5956
    %v6685 = vpack.c.b16 %v5964, %v5957
    %v6686 = vpack.c.b16 %v5965, %v5958
    %v6687 = vpack.c.b16 %v5973, %v5966
    %v6688 = vpack.c.b16 %v5974, %v5967
    %v6689 = vpack.c.b16 %v5975, %v5968
    %v6690 = vpack.c.b16 %v5976, %v5969
    %v6691 = vpack.c.b16 %v5977, %v5970
    %v6692 = vpack.c.b16 %v5978, %v5971
    %v6693 = vpack.c.b16 %v5979, %v5972
    %v6694 = vpack.c.b16 %v5987, %v5980
    %v6695 = vpack.c.b16 %v5988, %v5981
    %v6696 = vpack.c.b16 %v5989, %v5982
    %v6697 = vpack.c.b16 %v5990, %v5983
    %v6698 = vpack.c.b16 %v5991, %v5984
    %v6699 = vpack.c.b16 %v5992, %v5985
    %v6700 = vpack.c.b16 %v5993, %v5986
    %v6701 = vpack.c.b16 %v6001, %v5994
    %v6702 = vpack.c.b16 %v6002, %v5995
    %v6703 = vpack.c.b16 %v6003, %v5996
    %v6704 = vpack.c.b16 %v6004, %v5997
    %v6705 = vpack.c.b16 %v6005, %v5998
    %v6706 = vpack.c.b16 %v6006, %v5999
    %v6707 = vpack.c.b16 %v6007, %v6000
    %v6708 = vpack.c.b16 %v6015, %v6008
    %v6709 = vpack.c.b16 %v6016, %v6009
    %v6710 = vpack.c.b16 %v6017, %v6010
    %v6711 = vpack.c.b16 %v6018, %v6011
    %v6712 = vpack.c.b16 %v6019, %v6012
    %v6713 = vpack.c.b16 %v6020, %v6013
    %v6714 = vpack.c.b16 %v6021, %v6014
    %v6715 = vpack.c.b16 %v6029, %v6022
    %v6716 = vpack.c.b16 %v6030, %v6023
    %v6717 = vpack.c.b16 %v6031, %v6024
    %v6718 = vpack.c.b16 %v6032, %v6025
    %v6719 = vpack.c.b16 %v6033, %v6026
    %v6720 = vpack.c.b16 %v6034, %v6027
    %v6721 = vpack.c.b16 %v6035, %v6028
    %v6722 = vpack.c.b16 %v6043, %v6036
    %v6723 = vpack.c.b16 %v6044, %v6037
    %v6724 = vpack.c.b16 %v6045, %v6038
    %v6725 = vpack.c.b16 %v6046, %v6039
    %v6726 = vpack.c.b16 %v6047, %v6040
    %v6727 = vpack.c.b16 %v6048, %v6041
    %v6728 = vpack.c.b16 %v6049, %v6042
    %v6729 = vpack.c.b16 %v6057, %v6050
    %v6730 = vpack.c.b16 %v6058, %v6051
    %v6731 = vpack.c.b16 %v6059, %v6052
    %v6732 = vpack.c.b16 %v6060, %v6053
    %v6733 = vpack.c.b16 %v6061, %v6054
    %v6734 = vpack.c.b16 %v6062, %v6055
    %v6735 = vpack.c.b16 %v6063, %v6056
    %v6736 = vpack.c.b16 %v6071, %v6064
    %v6737 = vpack.c.b16 %v6072, %v6065
    %v6738 = vpack.c.b16 %v6073, %v6066
    %v6739 = vpack.c.b16 %v6074, %v6067
    %v6740 = vpack.c.b16 %v6075, %v6068
    %v6741 = vpack.c.b16 %v6076, %v6069
    %v6742 = vpack.c.b16 %v6077, %v6070
    %v6743 = vpack.c.b16 %v6085, %v6078
    %v6744 = vpack.c.b16 %v6086, %v6079
    %v6745 = vpack.c.b16 %v6087, %v6080
    %v6746 = vpack.c.b16 %v6088, %v6081
    %v6747 = vpack.c.b16 %v6089, %v6082
    %v6748 = vpack.c.b16 %v6090, %v6083
    %v6749 = vpack.c.b16 %v6091, %v6084
    %v6750 = vpack.c.b16 %v6099, %v6092
    %v6751 = vpack.c.b16 %v6100, %v6093
    %v6752 = vpack.c.b16 %v6101, %v6094
    %v6753 = vpack.c.b16 %v6102, %v6095
    %v6754 = vpack.c.b16 %v6103, %v6096
    %v6755 = vpack.c.b16 %v6104, %v6097
    %v6756 = vpack.c.b16 %v6105, %v6098
    %v6757 = vpack.c.b16 %v6113, %v6106
    %v6758 = vpack.c.b16 %v6114, %v6107
    %v6759 = vpack.c.b16 %v6115, %v6108
    %v6760 = vpack.c.b16 %v6116, %v6109
    %v6761 = vpack.c.b16 %v6117, %v6110
    %v6762 = vpack.c.b16 %v6118, %v6111
    %v6763 = vpack.c.b16 %v6119, %v6112
    %v6764 = vpack.c.b16 %v6127, %v6120
    %v6765 = vpack.c.b16 %v6128, %v6121
    %v6766 = vpack.c.b16 %v6129, %v6122
    %v6767 = vpack.c.b16 %v6130, %v6123
    %v6768 = vpack.c.b16 %v6131, %v6124
    %v6769 = vpack.c.b16 %v6132, %v6125
    %v6770 = vpack.c.b16 %v6133, %v6126
    %v6771 = vpack.c.b16 %v6141, %v6134
    %v6772 = vpack.c.b16 %v6142, %v6135
    %v6773 = vpack.c.b16 %v6143, %v6136
    %v6774 = vpack.c.b16 %v6144, %v6137
    %v6775 = vpack.c.b16 %v6145, %v6138
    %v6776 = vpack.c.b16 %v6146, %v6139
    %v6777 = vpack.c.b16 %v6147, %v6140
    %v6778 = vpack.c.b16 %v6155, %v6148
    %v6779 = vpack.c.b16 %v6156, %v6149
    %v6780 = vpack.c.b16 %v6157, %v6150
    %v6781 = vpack.c.b16 %v6158, %v6151
    %v6782 = vpack.c.b16 %v6159, %v6152
    %v6783 = vpack.c.b16 %v6160, %v6153
    %v6784 = vpack.c.b16 %v6161, %v6154
    %v6785 = vpack.c.b16 %v6169, %v6162
    %v6786 = vpack.c.b16 %v6170, %v6163
    %v6787 = vpack.c.b16 %v6171, %v6164
    %v6788 = vpack.c.b16 %v6172, %v6165
    %v6789 = vpack.c.b16 %v6173, %v6166
    %v6790 = vpack.c.b16 %v6174, %v6167
    %v6791 = vpack.c.b16 %v6175, %v6168
    %v6792 = vpack.c.b16 %v6183, %v6176
    %v6793 = vpack.c.b16 %v6184, %v6177
    %v6794 = vpack.c.b16 %v6185, %v6178
    %v6795 = vpack.c.b16 %v6186, %v6179
    %v6796 = vpack.c.b16 %v6187, %v6180
    %v6797 = vpack.c.b16 %v6188, %v6181
    %v6798 = vpack.c.b16 %v6189, %v6182
    %v6799 = vpack.c.b16 %v6197, %v6190
    %v6800 = vpack.c.b16 %v6198, %v6191
    %v6801 = vpack.c.b16 %v6199, %v6192
    %v6802 = vpack.c.b16 %v6200, %v6193
    %v6803 = vpack.c.b16 %v6201, %v6194
    %v6804 = vpack.c.b16 %v6202, %v6195
    %v6805 = vpack.c.b16 %v6203, %v6196
    %v6806 = vpack.c.b16 %v6211, %v6204
    %v6807 = vpack.c.b16 %v6212, %v6205
    %v6808 = vpack.c.b16 %v6213, %v6206
    %v6809 = vpack.c.b16 %v6214, %v6207
    %v6810 = vpack.c.b16 %v6215, %v6208
    %v6811 = vpack.c.b16 %v6216, %v6209
    %v6812 = vpack.c.b16 %v6217, %v6210
    %v6813 = vpack.c.b16 %v6225, %v6218
    %v6814 = vpack.c.b16 %v6226, %v6219
    %v6815 = vpack.c.b16 %v6227, %v6220
    %v6816 = vpack.c.b16 %v6228, %v6221
    %v6817 = vpack.c.b16 %v6229, %v6222
    %v6818 = vpack.c.b16 %v6230, %v6223
    %v6819 = vpack.c.b16 %v6231, %v6224
    %v6820 = vpack.c.b16 %v6239, %v6232
    %v6821 = vpack.c.b16 %v6240, %v6233
    %v6822 = vpack.c.b16 %v6241, %v6234
    %v6823 = vpack.c.b16 %v6242, %v6235
    %v6824 = vpack.c.b16 %v6243, %v6236
    %v6825 = vpack.c.b16 %v6244, %v6237
    %v6826 = vpack.c.b16 %v6245, %v6238
    %v6827 = vpack.c.b16 %v6253, %v6246
    %v6828 = vpack.c.b16 %v6254, %v6247
    %v6829 = vpack.c.b16 %v6255, %v6248
    %v6830 = vpack.c.b16 %v6256, %v6249
    %v6831 = vpack.c.b16 %v6257, %v6250
    %v6832 = vpack.c.b16 %v6258, %v6251
    %v6833 = vpack.c.b16 %v6259, %v6252
    %v6834 = vpack.c.b16 %v6267, %v6260
    %v6835 = vpack.c.b16 %v6268, %v6261
    %v6836 = vpack.c.b16 %v6269, %v6262
    %v6837 = vpack.c.b16 %v6270, %v6263
    %v6838 = vpack.c.b16 %v6271, %v6264
    %v6839 = vpack.c.b16 %v6272, %v6265
    %v6840 = vpack.c.b16 %v6273, %v6266
    %v6841 = vpack.c.b16 %v6281, %v6274
    %v6842 = vpack.c.b16 %v6282, %v6275
    %v6843 = vpack.c.b16 %v6283, %v6276
    %v6844 = vpack.c.b16 %v6284, %v6277
    %v6845 = vpack.c.b16 %v6285, %v6278
    %v6846 = vpack.c.b16 %v6286, %v6279
    %v6847 = vpack.c.b16 %v6287, %v6280
    %v6848 = vpack.c.b16 %v6295, %v6288
    %v6849 = vpack.c.b16 %v6296, %v6289
    %v6850 = vpack.c.b16 %v6297, %v6290
    %v6851 = vpack.c.b16 %v6298, %v6291
    %v6852 = vpack.c.b16 %v6299, %v6292
    %v6853 = vpack.c.b16 %v6300, %v6293
    %v6854 = vpack.c.b16 %v6301, %v6294
    %v6855 = vpack.c.b16 %v6309, %v6302
    %v6856 = vpack.c.b16 %v6310, %v6303
    %v6857 = vpack.c.b16 %v6311, %v6304
    %v6858 = vpack.c.b16 %v6312, %v6305
    %v6859 = vpack.c.b16 %v6313, %v6306
    %v6860 = vpack.c.b16 %v6314, %v6307
    %v6861 = vpack.c.b16 %v6315, %v6308
    %v6862 = vpack.c.b16 %v6323, %v6316
    %v6863 = vpack.c.b16 %v6324, %v6317
    %v6864 = vpack.c.b16 %v6325, %v6318
    %v6865 = vpack.c.b16 %v6326, %v6319
    %v6866 = vpack.c.b16 %v6327, %v6320
    %v6867 = vpack.c.b16 %v6328, %v6321
    %v6868 = vpack.c.b16 %v6329, %v6322
    %v6869 = vpack.c.b16 %v6337, %v6330
    %v6870 = vpack.c.b16 %v6338, %v6331
    %v6871 = vpack.c.b16 %v6339, %v6332
    %v6872 = vpack.c.b16 %v6340, %v6333
    %v6873 = vpack.c.b16 %v6341, %v6334
    %v6874 = vpack.c.b16 %v6342, %v6335
    %v6875 = vpack.c.b16 %v6343, %v6336
    %v6876 = vpack.c.b16 %v6351, %v6344
    %v6877 = vpack.c.b16 %v6352, %v6345
    %v6878 = vpack.c.b16 %v6353, %v6346
    %v6879 = vpack.c.b16 %v6354, %v6347
    %v6880 = vpack.c.b16 %v6355, %v6348
    %v6881 = vpack.c.b16 %v6356, %v6349
    %v6882 = vpack.c.b16 %v6357, %v6350
    %v6883 = vpack.c.b16 %v6365, %v6358
    %v6884 = vpack.c.b16 %v6366, %v6359
    %v6885 = vpack.c.b16 %v6367, %v6360
    %v6886 = vpack.c.b16 %v6368, %v6361
    %v6887 = vpack.c.b16 %v6369, %v6362
    %v6888 = vpack.c.b16 %v6370, %v6363
    %v6889 = vpack.c.b16 %v6371, %v6364
    %v6890 = vpack.c.b16 %v6379, %v6372
    %v6891 = vpack.c.b16 %v6380, %v6373
    %v6892 = vpack.c.b16 %v6381, %v6374
    %v6893 = vpack.c.b16 %v6382, %v6375
    %v6894 = vpack.c.b16 %v6383, %v6376
    %v6895 = vpack.c.b16 %v6384, %v6377
    %v6896 = vpack.c.b16 %v6385, %v6378
    %v6897 = vpack.c.b16 %v6393, %v6386
    %v6898 = vpack.c.b16 %v6394, %v6387
    %v6899 = vpack.c.b16 %v6395, %v6388
    %v6900 = vpack.c.b16 %v6396, %v6389
    %v6901 = vpack.c.b16 %v6397, %v6390
    %v6902 = vpack.c.b16 %v6398, %v6391
    %v6903 = vpack.c.b16 %v6399, %v6392
    %v6904 = vpack.c.b16 %v6407, %v6400
    %v6905 = vpack.c.b16 %v6408, %v6401
    %v6906 = vpack.c.b16 %v6409, %v6402
    %v6907 = vpack.c.b16 %v6410, %v6403
    %v6908 = vpack.c.b16 %v6411, %v6404
    %v6909 = vpack.c.b16 %v6412, %v6405
    %v6910 = vpack.c.b16 %v6413, %v6406
    %v6911 = vpack.c.b16 %v6421, %v6414
    %v6912 = vpack.c.b16 %v6422, %v6415
    %v6913 = vpack.c.b16 %v6423, %v6416
    %v6914 = vpack.c.b16 %v6424, %v6417
    %v6915 = vpack.c.b16 %v6425, %v6418
    %v6916 = vpack.c.b16 %v6426, %v6419
    %v6917 = vpack.c.b16 %v6427, %v6420
    %v6918 = vpack.c.b16 %v6435, %v6428
    %v6919 = vpack.c.b16 %v6436, %v6429
    %v6920 = vpack.c.b16 %v6437, %v6430
    %v6921 = vpack.c.b16 %v6438, %v6431
    %v6922 = vpack.c.b16 %v6439, %v6432
    %v6923 = vpack.c.b16 %v6440, %v6433
    %v6924 = vpack.c.b16 %v6441, %v6434
    %v6925 = vpack.c.b16 %v6449, %v6442
    %v6926 = vpack.c.b16 %v6450, %v6443
    %v6927 = vpack.c.b16 %v6451, %v6444
    %v6928 = vpack.c.b16 %v6452, %v6445
    %v6929 = vpack.c.b16 %v6453, %v6446
    %v6930 = vpack.c.b16 %v6454, %v6447
    %v6931 = vpack.c.b16 %v6455, %v6448
    %v6932 = vpack.c.b16 %v6463, %v6456
    %v6933 = vpack.c.b16 %v6464, %v6457
    %v6934 = vpack.c.b16 %v6465, %v6458
    %v6935 = vpack.c.b16 %v6466, %v6459
    %v6936 = vpack.c.b16 %v6467, %v6460
    %v6937 = vpack.c.b16 %v6468, %v6461
    %v6938 = vpack.c.b16 %v6469, %v6462
    %v6939 = vpack.c.b16 %v6477, %v6470
    %v6940 = vpack.c.b16 %v6478, %v6471
    %v6941 = vpack.c.b16 %v6479, %v6472
    %v6942 = vpack.c.b16 %v6480, %v6473
    %v6943 = vpack.c.b16 %v6481, %v6474
    %v6944 = vpack.c.b16 %v6482, %v6475
    %v6945 = vpack.c.b16 %v6483, %v6476
    %v6946 = vpack.c.b16 %v6491, %v6484
    %v6947 = vpack.c.b16 %v6492, %v6485
    %v6948 = vpack.c.b16 %v6493, %v6486
    %v6949 = vpack.c.b16 %v6494, %v6487
    %v6950 = vpack.c.b16 %v6495, %v6488
    %v6951 = vpack.c.b16 %v6496, %v6489
    %v6952 = vpack.c.b16 %v6497, %v6490
    %v6953 = vpack.c.b16 %v6505, %v6498
    %v6954 = vpack.c.b16 %v6506, %v6499
    %v6955 = vpack.c.b16 %v6507, %v6500
    %v6956 = vpack.c.b16 %v6508, %v6501
    %v6957 = vpack.c.b16 %v6509, %v6502
    %v6958 = vpack.c.b16 %v6510, %v6503
    %v6959 = vpack.c.b16 %v6511, %v6504
    %7408 = vmatpush.bf16.msra.mxu0 %v6561
    %7409 = vmatpush.bf16.msra.mxu0 %v6554
    %7410 = vmatpush.bf16.msra.mxu0 %v6547
    %7411 = vmatpush.bf16.msra.mxu0 %v6540
    %7412 = vmatpush.bf16.msra.mxu0 %v6533
    %7413 = vmatpush.bf16.msra.mxu0 %v6526
    %7414 = vmatpush.bf16.msra.mxu0 %v6519
    %7415 = vmatpush.bf16.msra.mxu0 %v6512
    %7416 = vmatmul.bf16.gmra.mxu0 %v4568
    %v7417 = vpop.f32.mrf.mxu0
    %v7418 = vadd.f32 %v5090, %v7417
    %v7419 = vpop.f32.mrf.mxu0
    %7420 = vdwg.mxu0
    %7421 = vmatpush.bf16.msra.mxu0 %v6617
    %7422 = vmatpush.bf16.msra.mxu0 %v6610
    %7423 = vmatpush.bf16.msra.mxu0 %v6603
    %7424 = vmatpush.bf16.msra.mxu0 %v6596
    %7425 = vmatpush.bf16.msra.mxu0 %v6589
    %7426 = vmatpush.bf16.msra.mxu0 %v6582
    %7427 = vmatpush.bf16.msra.mxu0 %v6575
    %7428 = vmatpush.bf16.msra.mxu0 %v6568
    %7429 = vmatmul.bf16.gmra.mxu0 %v4569
    %v7430 = vpop.f32.mrf.mxu0
    %v7431 = vadd.f32 %v7418, %v7430
    %v7432 = vpop.f32.mrf.mxu0
    %7433 = vdwg.mxu0
    %7434 = vmatpush.bf16.msra.mxu0 %v6673
    %7435 = vmatpush.bf16.msra.mxu0 %v6666
    %7436 = vmatpush.bf16.msra.mxu0 %v6659
    %7437 = vmatpush.bf16.msra.mxu0 %v6652
    %7438 = vmatpush.bf16.msra.mxu0 %v6645
    %7439 = vmatpush.bf16.msra.mxu0 %v6638
    %7440 = vmatpush.bf16.msra.mxu0 %v6631
    %7441 = vmatpush.bf16.msra.mxu0 %v6624
    %7442 = vmatmul.bf16.gmra.mxu0 %v4570
    %v7443 = vpop.f32.mrf.mxu0
    %v7444 = vadd.f32 %v7431, %v7443
    %v7445 = vpop.f32.mrf.mxu0
    %7446 = vdwg.mxu0
    %7447 = vmatpush.bf16.msra.mxu0 %v6729
    %7448 = vmatpush.bf16.msra.mxu0 %v6722
    %7449 = vmatpush.bf16.msra.mxu0 %v6715
    %7450 = vmatpush.bf16.msra.mxu0 %v6708
    %7451 = vmatpush.bf16.msra.mxu0 %v6701
    %7452 = vmatpush.bf16.msra.mxu0 %v6694
    %7453 = vmatpush.bf16.msra.mxu0 %v6687
    %7454 = vmatpush.bf16.msra.mxu0 %v6680
    %7455 = vmatmul.bf16.gmra.mxu0 %v4571
    %v7456 = vpop.f32.mrf.mxu0
    %v7457 = vadd.f32 %v7444, %v7456
    %v7458 = vpop.f32.mrf.mxu0
    %7459 = vdwg.mxu0
    %7460 = vmatpush.bf16.msra.mxu0 %v6785
    %7461 = vmatpush.bf16.msra.mxu0 %v6778
    %7462 = vmatpush.bf16.msra.mxu0 %v6771
    %7463 = vmatpush.bf16.msra.mxu0 %v6764
    %7464 = vmatpush.bf16.msra.mxu0 %v6757
    %7465 = vmatpush.bf16.msra.mxu0 %v6750
    %7466 = vmatpush.bf16.msra.mxu0 %v6743
    %7467 = vmatpush.bf16.msra.mxu0 %v6736
    %7468 = vmatmul.bf16.gmra.mxu0 %v4572
    %v7469 = vpop.f32.mrf.mxu0
    %v7470 = vadd.f32 %v7457, %v7469
    %v7471 = vpop.f32.mrf.mxu0
    %7472 = vdwg.mxu0
    %7473 = vmatpush.bf16.msra.mxu0 %v6841
    %7474 = vmatpush.bf16.msra.mxu0 %v6834
    %7475 = vmatpush.bf16.msra.mxu0 %v6827
    %7476 = vmatpush.bf16.msra.mxu0 %v6820
    %7477 = vmatpush.bf16.msra.mxu0 %v6813
    %7478 = vmatpush.bf16.msra.mxu0 %v6806
    %7479 = vmatpush.bf16.msra.mxu0 %v6799
    %7480 = vmatpush.bf16.msra.mxu0 %v6792
    %7481 = vmatmul.bf16.gmra.mxu0 %v4573
    %v7482 = vpop.f32.mrf.mxu0
    %v7483 = vadd.f32 %v7470, %v7482
    %v7484 = vpop.f32.mrf.mxu0
    %7485 = vdwg.mxu0
    %7486 = vmatpush.bf16.msra.mxu0 %v6897
    %7487 = vmatpush.bf16.msra.mxu0 %v6890
    %7488 = vmatpush.bf16.msra.mxu0 %v6883
    %7489 = vmatpush.bf16.msra.mxu0 %v6876
    %7490 = vmatpush.bf16.msra.mxu0 %v6869
    %7491 = vmatpush.bf16.msra.mxu0 %v6862
    %7492 = vmatpush.bf16.msra.mxu0 %v6855
    %7493 = vmatpush.bf16.msra.mxu0 %v6848
    %7494 = vmatmul.bf16.gmra.mxu0 %v4574
    %v7495 = vpop.f32.mrf.mxu0
    %v7496 = vadd.f32 %v7483, %v7495
    %v7497 = vpop.f32.mrf.mxu0
    %7498 = vdwg.mxu0
    %7499 = vmatpush.bf16.msra.mxu0 %v6953
    %7500 = vmatpush.bf16.msra.mxu0 %v6946
    %7501 = vmatpush.bf16.msra.mxu0 %v6939
    %7502 = vmatpush.bf16.msra.mxu0 %v6932
    %7503 = vmatpush.bf16.msra.mxu0 %v6925
    %7504 = vmatpush.bf16.msra.mxu0 %v6918
    %7505 = vmatpush.bf16.msra.mxu0 %v6911
    %7506 = vmatpush.bf16.msra.mxu0 %v6904
    %7507 = vmatmul.bf16.gmra.mxu0 %v4575
    %v7508 = vpop.f32.mrf.mxu0
    %v7509 = vadd.f32 %v7496, %v7508
    %v7510 = vpop.f32.mrf.mxu0
    %7511 = vdwg.mxu0
    %7512 = vmatpush.bf16.msra.mxu0 %v6562
    %7513 = vmatpush.bf16.msra.mxu0 %v6555
    %7514 = vmatpush.bf16.msra.mxu0 %v6548
    %7515 = vmatpush.bf16.msra.mxu0 %v6541
    %7516 = vmatpush.bf16.msra.mxu0 %v6534
    %7517 = vmatpush.bf16.msra.mxu0 %v6527
    %7518 = vmatpush.bf16.msra.mxu0 %v6520
    %7519 = vmatpush.bf16.msra.mxu0 %v6513
    %7520 = vmatmul.bf16.gmra.mxu0 %v4568
    %v7521 = vpop.f32.mrf.mxu0
    %v7522 = vadd.f32 %v5091, %v7521
    %v7523 = vpop.f32.mrf.mxu0
    %7524 = vdwg.mxu0
    %7525 = vmatpush.bf16.msra.mxu0 %v6618
    %7526 = vmatpush.bf16.msra.mxu0 %v6611
    %7527 = vmatpush.bf16.msra.mxu0 %v6604
    %7528 = vmatpush.bf16.msra.mxu0 %v6597
    %7529 = vmatpush.bf16.msra.mxu0 %v6590
    %7530 = vmatpush.bf16.msra.mxu0 %v6583
    %7531 = vmatpush.bf16.msra.mxu0 %v6576
    %7532 = vmatpush.bf16.msra.mxu0 %v6569
    %7533 = vmatmul.bf16.gmra.mxu0 %v4569
    %v7534 = vpop.f32.mrf.mxu0
    %v7535 = vadd.f32 %v7522, %v7534
    %v7536 = vpop.f32.mrf.mxu0
    %7537 = vdwg.mxu0
    %7538 = vmatpush.bf16.msra.mxu0 %v6674
    %7539 = vmatpush.bf16.msra.mxu0 %v6667
    %7540 = vmatpush.bf16.msra.mxu0 %v6660
    %7541 = vmatpush.bf16.msra.mxu0 %v6653
    %7542 = vmatpush.bf16.msra.mxu0 %v6646
    %7543 = vmatpush.bf16.msra.mxu0 %v6639
    %7544 = vmatpush.bf16.msra.mxu0 %v6632
    %7545 = vmatpush.bf16.msra.mxu0 %v6625
    %7546 = vmatmul.bf16.gmra.mxu0 %v4570
    %v7547 = vpop.f32.mrf.mxu0
    %v7548 = vadd.f32 %v7535, %v7547
    %v7549 = vpop.f32.mrf.mxu0
    %7550 = vdwg.mxu0
    %7551 = vmatpush.bf16.msra.mxu0 %v6730
    %7552 = vmatpush.bf16.msra.mxu0 %v6723
    %7553 = vmatpush.bf16.msra.mxu0 %v6716
    %7554 = vmatpush.bf16.msra.mxu0 %v6709
    %7555 = vmatpush.bf16.msra.mxu0 %v6702
    %7556 = vmatpush.bf16.msra.mxu0 %v6695
    %7557 = vmatpush.bf16.msra.mxu0 %v6688
    %7558 = vmatpush.bf16.msra.mxu0 %v6681
    %7559 = vmatmul.bf16.gmra.mxu0 %v4571
    %v7560 = vpop.f32.mrf.mxu0
    %v7561 = vadd.f32 %v7548, %v7560
    %v7562 = vpop.f32.mrf.mxu0
    %7563 = vdwg.mxu0
    %7564 = vmatpush.bf16.msra.mxu0 %v6786
    %7565 = vmatpush.bf16.msra.mxu0 %v6779
    %7566 = vmatpush.bf16.msra.mxu0 %v6772
    %7567 = vmatpush.bf16.msra.mxu0 %v6765
    %7568 = vmatpush.bf16.msra.mxu0 %v6758
    %7569 = vmatpush.bf16.msra.mxu0 %v6751
    %7570 = vmatpush.bf16.msra.mxu0 %v6744
    %7571 = vmatpush.bf16.msra.mxu0 %v6737
    %7572 = vmatmul.bf16.gmra.mxu0 %v4572
    %v7573 = vpop.f32.mrf.mxu0
    %v7574 = vadd.f32 %v7561, %v7573
    %v7575 = vpop.f32.mrf.mxu0
    %7576 = vdwg.mxu0
    %7577 = vmatpush.bf16.msra.mxu0 %v6842
    %7578 = vmatpush.bf16.msra.mxu0 %v6835
    %7579 = vmatpush.bf16.msra.mxu0 %v6828
    %7580 = vmatpush.bf16.msra.mxu0 %v6821
    %7581 = vmatpush.bf16.msra.mxu0 %v6814
    %7582 = vmatpush.bf16.msra.mxu0 %v6807
    %7583 = vmatpush.bf16.msra.mxu0 %v6800
    %7584 = vmatpush.bf16.msra.mxu0 %v6793
    %7585 = vmatmul.bf16.gmra.mxu0 %v4573
    %v7586 = vpop.f32.mrf.mxu0
    %v7587 = vadd.f32 %v7574, %v7586
    %v7588 = vpop.f32.mrf.mxu0
    %7589 = vdwg.mxu0
    %7590 = vmatpush.bf16.msra.mxu0 %v6898
    %7591 = vmatpush.bf16.msra.mxu0 %v6891
    %7592 = vmatpush.bf16.msra.mxu0 %v6884
    %7593 = vmatpush.bf16.msra.mxu0 %v6877
    %7594 = vmatpush.bf16.msra.mxu0 %v6870
    %7595 = vmatpush.bf16.msra.mxu0 %v6863
    %7596 = vmatpush.bf16.msra.mxu0 %v6856
    %7597 = vmatpush.bf16.msra.mxu0 %v6849
    %7598 = vmatmul.bf16.gmra.mxu0 %v4574
    %v7599 = vpop.f32.mrf.mxu0
    %v7600 = vadd.f32 %v7587, %v7599
    %v7601 = vpop.f32.mrf.mxu0
    %7602 = vdwg.mxu0
    %7603 = vmatpush.bf16.msra.mxu0 %v6954
    %7604 = vmatpush.bf16.msra.mxu0 %v6947
    %7605 = vmatpush.bf16.msra.mxu0 %v6940
    %7606 = vmatpush.bf16.msra.mxu0 %v6933
    %7607 = vmatpush.bf16.msra.mxu0 %v6926
    %7608 = vmatpush.bf16.msra.mxu0 %v6919
    %7609 = vmatpush.bf16.msra.mxu0 %v6912
    %7610 = vmatpush.bf16.msra.mxu0 %v6905
    %7611 = vmatmul.bf16.gmra.mxu0 %v4575
    %v7612 = vpop.f32.mrf.mxu0
    %v7613 = vadd.f32 %v7600, %v7612
    %v7614 = vpop.f32.mrf.mxu0
    %7615 = vdwg.mxu0
    %7616 = vmatpush.bf16.msra.mxu0 %v6563
    %7617 = vmatpush.bf16.msra.mxu0 %v6556
    %7618 = vmatpush.bf16.msra.mxu0 %v6549
    %7619 = vmatpush.bf16.msra.mxu0 %v6542
    %7620 = vmatpush.bf16.msra.mxu0 %v6535
    %7621 = vmatpush.bf16.msra.mxu0 %v6528
    %7622 = vmatpush.bf16.msra.mxu0 %v6521
    %7623 = vmatpush.bf16.msra.mxu0 %v6514
    %7624 = vmatmul.bf16.gmra.mxu0 %v4568
    %v7625 = vpop.f32.mrf.mxu0
    %v7626 = vadd.f32 %v5092, %v7625
    %v7627 = vpop.f32.mrf.mxu0
    %7628 = vdwg.mxu0
    %7629 = vmatpush.bf16.msra.mxu0 %v6619
    %7630 = vmatpush.bf16.msra.mxu0 %v6612
    %7631 = vmatpush.bf16.msra.mxu0 %v6605
    %7632 = vmatpush.bf16.msra.mxu0 %v6598
    %7633 = vmatpush.bf16.msra.mxu0 %v6591
    %7634 = vmatpush.bf16.msra.mxu0 %v6584
    %7635 = vmatpush.bf16.msra.mxu0 %v6577
    %7636 = vmatpush.bf16.msra.mxu0 %v6570
    %7637 = vmatmul.bf16.gmra.mxu0 %v4569
    %v7638 = vpop.f32.mrf.mxu0
    %v7639 = vadd.f32 %v7626, %v7638
    %v7640 = vpop.f32.mrf.mxu0
    %7641 = vdwg.mxu0
    %7642 = vmatpush.bf16.msra.mxu0 %v6675
    %7643 = vmatpush.bf16.msra.mxu0 %v6668
    %7644 = vmatpush.bf16.msra.mxu0 %v6661
    %7645 = vmatpush.bf16.msra.mxu0 %v6654
    %7646 = vmatpush.bf16.msra.mxu0 %v6647
    %7647 = vmatpush.bf16.msra.mxu0 %v6640
    %7648 = vmatpush.bf16.msra.mxu0 %v6633
    %7649 = vmatpush.bf16.msra.mxu0 %v6626
    %7650 = vmatmul.bf16.gmra.mxu0 %v4570
    %v7651 = vpop.f32.mrf.mxu0
    %v7652 = vadd.f32 %v7639, %v7651
    %v7653 = vpop.f32.mrf.mxu0
    %7654 = vdwg.mxu0
    %7655 = vmatpush.bf16.msra.mxu0 %v6731
    %7656 = vmatpush.bf16.msra.mxu0 %v6724
    %7657 = vmatpush.bf16.msra.mxu0 %v6717
    %7658 = vmatpush.bf16.msra.mxu0 %v6710
    %7659 = vmatpush.bf16.msra.mxu0 %v6703
    %7660 = vmatpush.bf16.msra.mxu0 %v6696
    %7661 = vmatpush.bf16.msra.mxu0 %v6689
    %7662 = vmatpush.bf16.msra.mxu0 %v6682
    %7663 = vmatmul.bf16.gmra.mxu0 %v4571
    %v7664 = vpop.f32.mrf.mxu0
    %v7665 = vadd.f32 %v7652, %v7664
    %v7666 = vpop.f32.mrf.mxu0
    %7667 = vdwg.mxu0
    %7668 = vmatpush.bf16.msra.mxu0 %v6787
    %7669 = vmatpush.bf16.msra.mxu0 %v6780
    %7670 = vmatpush.bf16.msra.mxu0 %v6773
    %7671 = vmatpush.bf16.msra.mxu0 %v6766
    %7672 = vmatpush.bf16.msra.mxu0 %v6759
    %7673 = vmatpush.bf16.msra.mxu0 %v6752
    %7674 = vmatpush.bf16.msra.mxu0 %v6745
    %7675 = vmatpush.bf16.msra.mxu0 %v6738
    %7676 = vmatmul.bf16.gmra.mxu0 %v4572
    %v7677 = vpop.f32.mrf.mxu0
    %v7678 = vadd.f32 %v7665, %v7677
    %v7679 = vpop.f32.mrf.mxu0
    %7680 = vdwg.mxu0
    %7681 = vmatpush.bf16.msra.mxu0 %v6843
    %7682 = vmatpush.bf16.msra.mxu0 %v6836
    %7683 = vmatpush.bf16.msra.mxu0 %v6829
    %7684 = vmatpush.bf16.msra.mxu0 %v6822
    %7685 = vmatpush.bf16.msra.mxu0 %v6815
    %7686 = vmatpush.bf16.msra.mxu0 %v6808
    %7687 = vmatpush.bf16.msra.mxu0 %v6801
    %7688 = vmatpush.bf16.msra.mxu0 %v6794
    %7689 = vmatmul.bf16.gmra.mxu0 %v4573
    %v7690 = vpop.f32.mrf.mxu0
    %v7691 = vadd.f32 %v7678, %v7690
    %v7692 = vpop.f32.mrf.mxu0
    %7693 = vdwg.mxu0
    %7694 = vmatpush.bf16.msra.mxu0 %v6899
    %7695 = vmatpush.bf16.msra.mxu0 %v6892
    %7696 = vmatpush.bf16.msra.mxu0 %v6885
    %7697 = vmatpush.bf16.msra.mxu0 %v6878
    %7698 = vmatpush.bf16.msra.mxu0 %v6871
    %7699 = vmatpush.bf16.msra.mxu0 %v6864
    %7700 = vmatpush.bf16.msra.mxu0 %v6857
    %7701 = vmatpush.bf16.msra.mxu0 %v6850
    %7702 = vmatmul.bf16.gmra.mxu0 %v4574
    %v7703 = vpop.f32.mrf.mxu0
    %v7704 = vadd.f32 %v7691, %v7703
    %v7705 = vpop.f32.mrf.mxu0
    %7706 = vdwg.mxu0
    %7707 = vmatpush.bf16.msra.mxu0 %v6955
    %7708 = vmatpush.bf16.msra.mxu0 %v6948
    %7709 = vmatpush.bf16.msra.mxu0 %v6941
    %7710 = vmatpush.bf16.msra.mxu0 %v6934
    %7711 = vmatpush.bf16.msra.mxu0 %v6927
    %7712 = vmatpush.bf16.msra.mxu0 %v6920
    %7713 = vmatpush.bf16.msra.mxu0 %v6913
    %7714 = vmatpush.bf16.msra.mxu0 %v6906
    %7715 = vmatmul.bf16.gmra.mxu0 %v4575
    %v7716 = vpop.f32.mrf.mxu0
    %v7717 = vadd.f32 %v7704, %v7716
    %v7718 = vpop.f32.mrf.mxu0
    %7719 = vdwg.mxu0
    %7720 = vmatpush.bf16.msra.mxu0 %v6564
    %7721 = vmatpush.bf16.msra.mxu0 %v6557
    %7722 = vmatpush.bf16.msra.mxu0 %v6550
    %7723 = vmatpush.bf16.msra.mxu0 %v6543
    %7724 = vmatpush.bf16.msra.mxu0 %v6536
    %7725 = vmatpush.bf16.msra.mxu0 %v6529
    %7726 = vmatpush.bf16.msra.mxu0 %v6522
    %7727 = vmatpush.bf16.msra.mxu0 %v6515
    %7728 = vmatmul.bf16.gmra.mxu0 %v4568
    %v7729 = vpop.f32.mrf.mxu0
    %v7730 = vadd.f32 %v5093, %v7729
    %v7731 = vpop.f32.mrf.mxu0
    %7732 = vdwg.mxu0
    %7733 = vmatpush.bf16.msra.mxu0 %v6620
    %7734 = vmatpush.bf16.msra.mxu0 %v6613
    %7735 = vmatpush.bf16.msra.mxu0 %v6606
    %7736 = vmatpush.bf16.msra.mxu0 %v6599
    %7737 = vmatpush.bf16.msra.mxu0 %v6592
    %7738 = vmatpush.bf16.msra.mxu0 %v6585
    %7739 = vmatpush.bf16.msra.mxu0 %v6578
    %7740 = vmatpush.bf16.msra.mxu0 %v6571
    %7741 = vmatmul.bf16.gmra.mxu0 %v4569
    %v7742 = vpop.f32.mrf.mxu0
    %v7743 = vadd.f32 %v7730, %v7742
    %v7744 = vpop.f32.mrf.mxu0
    %7745 = vdwg.mxu0
    %7746 = vmatpush.bf16.msra.mxu0 %v6676
    %7747 = vmatpush.bf16.msra.mxu0 %v6669
    %7748 = vmatpush.bf16.msra.mxu0 %v6662
    %7749 = vmatpush.bf16.msra.mxu0 %v6655
    %7750 = vmatpush.bf16.msra.mxu0 %v6648
    %7751 = vmatpush.bf16.msra.mxu0 %v6641
    %7752 = vmatpush.bf16.msra.mxu0 %v6634
    %7753 = vmatpush.bf16.msra.mxu0 %v6627
    %7754 = vmatmul.bf16.gmra.mxu0 %v4570
    %v7755 = vpop.f32.mrf.mxu0
    %v7756 = vadd.f32 %v7743, %v7755
    %v7757 = vpop.f32.mrf.mxu0
    %7758 = vdwg.mxu0
    %7759 = vmatpush.bf16.msra.mxu0 %v6732
    %7760 = vmatpush.bf16.msra.mxu0 %v6725
    %7761 = vmatpush.bf16.msra.mxu0 %v6718
    %7762 = vmatpush.bf16.msra.mxu0 %v6711
    %7763 = vmatpush.bf16.msra.mxu0 %v6704
    %7764 = vmatpush.bf16.msra.mxu0 %v6697
    %7765 = vmatpush.bf16.msra.mxu0 %v6690
    %7766 = vmatpush.bf16.msra.mxu0 %v6683
    %7767 = vmatmul.bf16.gmra.mxu0 %v4571
    %v7768 = vpop.f32.mrf.mxu0
    %v7769 = vadd.f32 %v7756, %v7768
    %v7770 = vpop.f32.mrf.mxu0
    %7771 = vdwg.mxu0
    %7772 = vmatpush.bf16.msra.mxu0 %v6788
    %7773 = vmatpush.bf16.msra.mxu0 %v6781
    %7774 = vmatpush.bf16.msra.mxu0 %v6774
    %7775 = vmatpush.bf16.msra.mxu0 %v6767
    %7776 = vmatpush.bf16.msra.mxu0 %v6760
    %7777 = vmatpush.bf16.msra.mxu0 %v6753
    %7778 = vmatpush.bf16.msra.mxu0 %v6746
    %7779 = vmatpush.bf16.msra.mxu0 %v6739
    %7780 = vmatmul.bf16.gmra.mxu0 %v4572
    %v7781 = vpop.f32.mrf.mxu0
    %v7782 = vadd.f32 %v7769, %v7781
    %v7783 = vpop.f32.mrf.mxu0
    %7784 = vdwg.mxu0
    %7785 = vmatpush.bf16.msra.mxu0 %v6844
    %7786 = vmatpush.bf16.msra.mxu0 %v6837
    %7787 = vmatpush.bf16.msra.mxu0 %v6830
    %7788 = vmatpush.bf16.msra.mxu0 %v6823
    %7789 = vmatpush.bf16.msra.mxu0 %v6816
    %7790 = vmatpush.bf16.msra.mxu0 %v6809
    %7791 = vmatpush.bf16.msra.mxu0 %v6802
    %7792 = vmatpush.bf16.msra.mxu0 %v6795
    %7793 = vmatmul.bf16.gmra.mxu0 %v4573
    %v7794 = vpop.f32.mrf.mxu0
    %v7795 = vadd.f32 %v7782, %v7794
    %v7796 = vpop.f32.mrf.mxu0
    %7797 = vdwg.mxu0
    %7798 = vmatpush.bf16.msra.mxu0 %v6900
    %7799 = vmatpush.bf16.msra.mxu0 %v6893
    %7800 = vmatpush.bf16.msra.mxu0 %v6886
    %7801 = vmatpush.bf16.msra.mxu0 %v6879
    %7802 = vmatpush.bf16.msra.mxu0 %v6872
    %7803 = vmatpush.bf16.msra.mxu0 %v6865
    %7804 = vmatpush.bf16.msra.mxu0 %v6858
    %7805 = vmatpush.bf16.msra.mxu0 %v6851
    %7806 = vmatmul.bf16.gmra.mxu0 %v4574
    %v7807 = vpop.f32.mrf.mxu0
    %v7808 = vadd.f32 %v7795, %v7807
    %v7809 = vpop.f32.mrf.mxu0
    %7810 = vdwg.mxu0
    %7811 = vmatpush.bf16.msra.mxu0 %v6956
    %7812 = vmatpush.bf16.msra.mxu0 %v6949
    %7813 = vmatpush.bf16.msra.mxu0 %v6942
    %7814 = vmatpush.bf16.msra.mxu0 %v6935
    %7815 = vmatpush.bf16.msra.mxu0 %v6928
    %7816 = vmatpush.bf16.msra.mxu0 %v6921
    %7817 = vmatpush.bf16.msra.mxu0 %v6914
    %7818 = vmatpush.bf16.msra.mxu0 %v6907
    %7819 = vmatmul.bf16.gmra.mxu0 %v4575
    %v7820 = vpop.f32.mrf.mxu0
    %v7821 = vadd.f32 %v7808, %v7820
    %v7822 = vpop.f32.mrf.mxu0
    %7823 = vdwg.mxu0
    %7824 = vmatpush.bf16.msra.mxu0 %v6565
    %7825 = vmatpush.bf16.msra.mxu0 %v6558
    %7826 = vmatpush.bf16.msra.mxu0 %v6551
    %7827 = vmatpush.bf16.msra.mxu0 %v6544
    %7828 = vmatpush.bf16.msra.mxu0 %v6537
    %7829 = vmatpush.bf16.msra.mxu0 %v6530
    %7830 = vmatpush.bf16.msra.mxu0 %v6523
    %7831 = vmatpush.bf16.msra.mxu0 %v6516
    %7832 = vmatmul.bf16.gmra.mxu0 %v4568
    %v7833 = vpop.f32.mrf.mxu0
    %v7834 = vadd.f32 %v5094, %v7833
    %v7835 = vpop.f32.mrf.mxu0
    %7836 = vdwg.mxu0
    %7837 = vmatpush.bf16.msra.mxu0 %v6621
    %7838 = vmatpush.bf16.msra.mxu0 %v6614
    %7839 = vmatpush.bf16.msra.mxu0 %v6607
    %7840 = vmatpush.bf16.msra.mxu0 %v6600
    %7841 = vmatpush.bf16.msra.mxu0 %v6593
    %7842 = vmatpush.bf16.msra.mxu0 %v6586
    %7843 = vmatpush.bf16.msra.mxu0 %v6579
    %7844 = vmatpush.bf16.msra.mxu0 %v6572
    %7845 = vmatmul.bf16.gmra.mxu0 %v4569
    %v7846 = vpop.f32.mrf.mxu0
    %v7847 = vadd.f32 %v7834, %v7846
    %v7848 = vpop.f32.mrf.mxu0
    %7849 = vdwg.mxu0
    %7850 = vmatpush.bf16.msra.mxu0 %v6677
    %7851 = vmatpush.bf16.msra.mxu0 %v6670
    %7852 = vmatpush.bf16.msra.mxu0 %v6663
    %7853 = vmatpush.bf16.msra.mxu0 %v6656
    %7854 = vmatpush.bf16.msra.mxu0 %v6649
    %7855 = vmatpush.bf16.msra.mxu0 %v6642
    %7856 = vmatpush.bf16.msra.mxu0 %v6635
    %7857 = vmatpush.bf16.msra.mxu0 %v6628
    %7858 = vmatmul.bf16.gmra.mxu0 %v4570
    %v7859 = vpop.f32.mrf.mxu0
    %v7860 = vadd.f32 %v7847, %v7859
    %v7861 = vpop.f32.mrf.mxu0
    %7862 = vdwg.mxu0
    %7863 = vmatpush.bf16.msra.mxu0 %v6733
    %7864 = vmatpush.bf16.msra.mxu0 %v6726
    %7865 = vmatpush.bf16.msra.mxu0 %v6719
    %7866 = vmatpush.bf16.msra.mxu0 %v6712
    %7867 = vmatpush.bf16.msra.mxu0 %v6705
    %7868 = vmatpush.bf16.msra.mxu0 %v6698
    %7869 = vmatpush.bf16.msra.mxu0 %v6691
    %7870 = vmatpush.bf16.msra.mxu0 %v6684
    %7871 = vmatmul.bf16.gmra.mxu0 %v4571
    %v7872 = vpop.f32.mrf.mxu0
    %v7873 = vadd.f32 %v7860, %v7872
    %v7874 = vpop.f32.mrf.mxu0
    %7875 = vdwg.mxu0
    %7876 = vmatpush.bf16.msra.mxu0 %v6789
    %7877 = vmatpush.bf16.msra.mxu0 %v6782
    %7878 = vmatpush.bf16.msra.mxu0 %v6775
    %7879 = vmatpush.bf16.msra.mxu0 %v6768
    %7880 = vmatpush.bf16.msra.mxu0 %v6761
    %7881 = vmatpush.bf16.msra.mxu0 %v6754
    %7882 = vmatpush.bf16.msra.mxu0 %v6747
    %7883 = vmatpush.bf16.msra.mxu0 %v6740
    %7884 = vmatmul.bf16.gmra.mxu0 %v4572
    %v7885 = vpop.f32.mrf.mxu0
    %v7886 = vadd.f32 %v7873, %v7885
    %v7887 = vpop.f32.mrf.mxu0
    %7888 = vdwg.mxu0
    %7889 = vmatpush.bf16.msra.mxu0 %v6845
    %7890 = vmatpush.bf16.msra.mxu0 %v6838
    %7891 = vmatpush.bf16.msra.mxu0 %v6831
    %7892 = vmatpush.bf16.msra.mxu0 %v6824
    %7893 = vmatpush.bf16.msra.mxu0 %v6817
    %7894 = vmatpush.bf16.msra.mxu0 %v6810
    %7895 = vmatpush.bf16.msra.mxu0 %v6803
    %7896 = vmatpush.bf16.msra.mxu0 %v6796
    %7897 = vmatmul.bf16.gmra.mxu0 %v4573
    %v7898 = vpop.f32.mrf.mxu0
    %v7899 = vadd.f32 %v7886, %v7898
    %v7900 = vpop.f32.mrf.mxu0
    %7901 = vdwg.mxu0
    %7902 = vmatpush.bf16.msra.mxu0 %v6901
    %7903 = vmatpush.bf16.msra.mxu0 %v6894
    %7904 = vmatpush.bf16.msra.mxu0 %v6887
    %7905 = vmatpush.bf16.msra.mxu0 %v6880
    %7906 = vmatpush.bf16.msra.mxu0 %v6873
    %7907 = vmatpush.bf16.msra.mxu0 %v6866
    %7908 = vmatpush.bf16.msra.mxu0 %v6859
    %7909 = vmatpush.bf16.msra.mxu0 %v6852
    %7910 = vmatmul.bf16.gmra.mxu0 %v4574
    %v7911 = vpop.f32.mrf.mxu0
    %v7912 = vadd.f32 %v7899, %v7911
    %v7913 = vpop.f32.mrf.mxu0
    %7914 = vdwg.mxu0
    %7915 = vmatpush.bf16.msra.mxu0 %v6957
    %7916 = vmatpush.bf16.msra.mxu0 %v6950
    %7917 = vmatpush.bf16.msra.mxu0 %v6943
    %7918 = vmatpush.bf16.msra.mxu0 %v6936
    %7919 = vmatpush.bf16.msra.mxu0 %v6929
    %7920 = vmatpush.bf16.msra.mxu0 %v6922
    %7921 = vmatpush.bf16.msra.mxu0 %v6915
    %7922 = vmatpush.bf16.msra.mxu0 %v6908
    %7923 = vmatmul.bf16.gmra.mxu0 %v4575
    %v7924 = vpop.f32.mrf.mxu0
    %v7925 = vadd.f32 %v7912, %v7924
    %v7926 = vpop.f32.mrf.mxu0
    %7927 = vdwg.mxu0
    %7928 = vmatpush.bf16.msra.mxu0 %v6566
    %7929 = vmatpush.bf16.msra.mxu0 %v6559
    %7930 = vmatpush.bf16.msra.mxu0 %v6552
    %7931 = vmatpush.bf16.msra.mxu0 %v6545
    %7932 = vmatpush.bf16.msra.mxu0 %v6538
    %7933 = vmatpush.bf16.msra.mxu0 %v6531
    %7934 = vmatpush.bf16.msra.mxu0 %v6524
    %7935 = vmatpush.bf16.msra.mxu0 %v6517
    %7936 = vmatmul.bf16.gmra.mxu0 %v4568
    %v7937 = vpop.f32.mrf.mxu0
    %v7938 = vadd.f32 %v5095, %v7937
    %v7939 = vpop.f32.mrf.mxu0
    %7940 = vdwg.mxu0
    %7941 = vmatpush.bf16.msra.mxu0 %v6622
    %7942 = vmatpush.bf16.msra.mxu0 %v6615
    %7943 = vmatpush.bf16.msra.mxu0 %v6608
    %7944 = vmatpush.bf16.msra.mxu0 %v6601
    %7945 = vmatpush.bf16.msra.mxu0 %v6594
    %7946 = vmatpush.bf16.msra.mxu0 %v6587
    %7947 = vmatpush.bf16.msra.mxu0 %v6580
    %7948 = vmatpush.bf16.msra.mxu0 %v6573
    %7949 = vmatmul.bf16.gmra.mxu0 %v4569
    %v7950 = vpop.f32.mrf.mxu0
    %v7951 = vadd.f32 %v7938, %v7950
    %v7952 = vpop.f32.mrf.mxu0
    %7953 = vdwg.mxu0
    %7954 = vmatpush.bf16.msra.mxu0 %v6678
    %7955 = vmatpush.bf16.msra.mxu0 %v6671
    %7956 = vmatpush.bf16.msra.mxu0 %v6664
    %7957 = vmatpush.bf16.msra.mxu0 %v6657
    %7958 = vmatpush.bf16.msra.mxu0 %v6650
    %7959 = vmatpush.bf16.msra.mxu0 %v6643
    %7960 = vmatpush.bf16.msra.mxu0 %v6636
    %7961 = vmatpush.bf16.msra.mxu0 %v6629
    %7962 = vmatmul.bf16.gmra.mxu0 %v4570
    %v7963 = vpop.f32.mrf.mxu0
    %v7964 = vadd.f32 %v7951, %v7963
    %v7965 = vpop.f32.mrf.mxu0
    %7966 = vdwg.mxu0
    %7967 = vmatpush.bf16.msra.mxu0 %v6734
    %7968 = vmatpush.bf16.msra.mxu0 %v6727
    %7969 = vmatpush.bf16.msra.mxu0 %v6720
    %7970 = vmatpush.bf16.msra.mxu0 %v6713
    %7971 = vmatpush.bf16.msra.mxu0 %v6706
    %7972 = vmatpush.bf16.msra.mxu0 %v6699
    %7973 = vmatpush.bf16.msra.mxu0 %v6692
    %7974 = vmatpush.bf16.msra.mxu0 %v6685
    %7975 = vmatmul.bf16.gmra.mxu0 %v4571
    %v7976 = vpop.f32.mrf.mxu0
    %v7977 = vadd.f32 %v7964, %v7976
    %v7978 = vpop.f32.mrf.mxu0
    %7979 = vdwg.mxu0
    %7980 = vmatpush.bf16.msra.mxu0 %v6790
    %7981 = vmatpush.bf16.msra.mxu0 %v6783
    %7982 = vmatpush.bf16.msra.mxu0 %v6776
    %7983 = vmatpush.bf16.msra.mxu0 %v6769
    %7984 = vmatpush.bf16.msra.mxu0 %v6762
    %7985 = vmatpush.bf16.msra.mxu0 %v6755
    %7986 = vmatpush.bf16.msra.mxu0 %v6748
    %7987 = vmatpush.bf16.msra.mxu0 %v6741
    %7988 = vmatmul.bf16.gmra.mxu0 %v4572
    %v7989 = vpop.f32.mrf.mxu0
    %v7990 = vadd.f32 %v7977, %v7989
    %v7991 = vpop.f32.mrf.mxu0
    %7992 = vdwg.mxu0
    %7993 = vmatpush.bf16.msra.mxu0 %v6846
    %7994 = vmatpush.bf16.msra.mxu0 %v6839
    %7995 = vmatpush.bf16.msra.mxu0 %v6832
    %7996 = vmatpush.bf16.msra.mxu0 %v6825
    %7997 = vmatpush.bf16.msra.mxu0 %v6818
    %7998 = vmatpush.bf16.msra.mxu0 %v6811
    %7999 = vmatpush.bf16.msra.mxu0 %v6804
    %8000 = vmatpush.bf16.msra.mxu0 %v6797
    %8001 = vmatmul.bf16.gmra.mxu0 %v4573
    %v8002 = vpop.f32.mrf.mxu0
    %v8003 = vadd.f32 %v7990, %v8002
    %v8004 = vpop.f32.mrf.mxu0
    %8005 = vdwg.mxu0
    %8006 = vmatpush.bf16.msra.mxu0 %v6902
    %8007 = vmatpush.bf16.msra.mxu0 %v6895
    %8008 = vmatpush.bf16.msra.mxu0 %v6888
    %8009 = vmatpush.bf16.msra.mxu0 %v6881
    %8010 = vmatpush.bf16.msra.mxu0 %v6874
    %8011 = vmatpush.bf16.msra.mxu0 %v6867
    %8012 = vmatpush.bf16.msra.mxu0 %v6860
    %8013 = vmatpush.bf16.msra.mxu0 %v6853
    %8014 = vmatmul.bf16.gmra.mxu0 %v4574
    %v8015 = vpop.f32.mrf.mxu0
    %v8016 = vadd.f32 %v8003, %v8015
    %v8017 = vpop.f32.mrf.mxu0
    %8018 = vdwg.mxu0
    %8019 = vmatpush.bf16.msra.mxu0 %v6958
    %8020 = vmatpush.bf16.msra.mxu0 %v6951
    %8021 = vmatpush.bf16.msra.mxu0 %v6944
    %8022 = vmatpush.bf16.msra.mxu0 %v6937
    %8023 = vmatpush.bf16.msra.mxu0 %v6930
    %8024 = vmatpush.bf16.msra.mxu0 %v6923
    %8025 = vmatpush.bf16.msra.mxu0 %v6916
    %8026 = vmatpush.bf16.msra.mxu0 %v6909
    %8027 = vmatmul.bf16.gmra.mxu0 %v4575
    %v8028 = vpop.f32.mrf.mxu0
    %v8029 = vadd.f32 %v8016, %v8028
    %v8030 = vpop.f32.mrf.mxu0
    %8031 = vdwg.mxu0
    %8032 = vmatpush.bf16.msra.mxu0 %v6567
    %8033 = vmatpush.bf16.msra.mxu0 %v6560
    %8034 = vmatpush.bf16.msra.mxu0 %v6553
    %8035 = vmatpush.bf16.msra.mxu0 %v6546
    %8036 = vmatpush.bf16.msra.mxu0 %v6539
    %8037 = vmatpush.bf16.msra.mxu0 %v6532
    %8038 = vmatpush.bf16.msra.mxu0 %v6525
    %8039 = vmatpush.bf16.msra.mxu0 %v6518
    %8040 = vmatmul.bf16.gmra.mxu0 %v4568
    %v8041 = vpop.f32.mrf.mxu0
    %v8042 = vadd.f32 %v5096, %v8041
    %v8043 = vpop.f32.mrf.mxu0
    %8044 = vdwg.mxu0
    %8045 = vmatpush.bf16.msra.mxu0 %v6623
    %8046 = vmatpush.bf16.msra.mxu0 %v6616
    %8047 = vmatpush.bf16.msra.mxu0 %v6609
    %8048 = vmatpush.bf16.msra.mxu0 %v6602
    %8049 = vmatpush.bf16.msra.mxu0 %v6595
    %8050 = vmatpush.bf16.msra.mxu0 %v6588
    %8051 = vmatpush.bf16.msra.mxu0 %v6581
    %8052 = vmatpush.bf16.msra.mxu0 %v6574
    %8053 = vmatmul.bf16.gmra.mxu0 %v4569
    %v8054 = vpop.f32.mrf.mxu0
    %v8055 = vadd.f32 %v8042, %v8054
    %v8056 = vpop.f32.mrf.mxu0
    %8057 = vdwg.mxu0
    %8058 = vmatpush.bf16.msra.mxu0 %v6679
    %8059 = vmatpush.bf16.msra.mxu0 %v6672
    %8060 = vmatpush.bf16.msra.mxu0 %v6665
    %8061 = vmatpush.bf16.msra.mxu0 %v6658
    %8062 = vmatpush.bf16.msra.mxu0 %v6651
    %8063 = vmatpush.bf16.msra.mxu0 %v6644
    %8064 = vmatpush.bf16.msra.mxu0 %v6637
    %8065 = vmatpush.bf16.msra.mxu0 %v6630
    %8066 = vmatmul.bf16.gmra.mxu0 %v4570
    %v8067 = vpop.f32.mrf.mxu0
    %v8068 = vadd.f32 %v8055, %v8067
    %v8069 = vpop.f32.mrf.mxu0
    %8070 = vdwg.mxu0
    %8071 = vmatpush.bf16.msra.mxu0 %v6735
    %8072 = vmatpush.bf16.msra.mxu0 %v6728
    %8073 = vmatpush.bf16.msra.mxu0 %v6721
    %8074 = vmatpush.bf16.msra.mxu0 %v6714
    %8075 = vmatpush.bf16.msra.mxu0 %v6707
    %8076 = vmatpush.bf16.msra.mxu0 %v6700
    %8077 = vmatpush.bf16.msra.mxu0 %v6693
    %8078 = vmatpush.bf16.msra.mxu0 %v6686
    %8079 = vmatmul.bf16.gmra.mxu0 %v4571
    %v8080 = vpop.f32.mrf.mxu0
    %v8081 = vadd.f32 %v8068, %v8080
    %v8082 = vpop.f32.mrf.mxu0
    %8083 = vdwg.mxu0
    %8084 = vmatpush.bf16.msra.mxu0 %v6791
    %8085 = vmatpush.bf16.msra.mxu0 %v6784
    %8086 = vmatpush.bf16.msra.mxu0 %v6777
    %8087 = vmatpush.bf16.msra.mxu0 %v6770
    %8088 = vmatpush.bf16.msra.mxu0 %v6763
    %8089 = vmatpush.bf16.msra.mxu0 %v6756
    %8090 = vmatpush.bf16.msra.mxu0 %v6749
    %8091 = vmatpush.bf16.msra.mxu0 %v6742
    %8092 = vmatmul.bf16.gmra.mxu0 %v4572
    %v8093 = vpop.f32.mrf.mxu0
    %v8094 = vadd.f32 %v8081, %v8093
    %v8095 = vpop.f32.mrf.mxu0
    %8096 = vdwg.mxu0
    %8097 = vmatpush.bf16.msra.mxu0 %v6847
    %8098 = vmatpush.bf16.msra.mxu0 %v6840
    %8099 = vmatpush.bf16.msra.mxu0 %v6833
    %8100 = vmatpush.bf16.msra.mxu0 %v6826
    %8101 = vmatpush.bf16.msra.mxu0 %v6819
    %8102 = vmatpush.bf16.msra.mxu0 %v6812
    %8103 = vmatpush.bf16.msra.mxu0 %v6805
    %8104 = vmatpush.bf16.msra.mxu0 %v6798
    %8105 = vmatmul.bf16.gmra.mxu0 %v4573
    %v8106 = vpop.f32.mrf.mxu0
    %v8107 = vadd.f32 %v8094, %v8106
    %v8108 = vpop.f32.mrf.mxu0
    %8109 = vdwg.mxu0
    %8110 = vmatpush.bf16.msra.mxu0 %v6903
    %8111 = vmatpush.bf16.msra.mxu0 %v6896
    %8112 = vmatpush.bf16.msra.mxu0 %v6889
    %8113 = vmatpush.bf16.msra.mxu0 %v6882
    %8114 = vmatpush.bf16.msra.mxu0 %v6875
    %8115 = vmatpush.bf16.msra.mxu0 %v6868
    %8116 = vmatpush.bf16.msra.mxu0 %v6861
    %8117 = vmatpush.bf16.msra.mxu0 %v6854
    %8118 = vmatmul.bf16.gmra.mxu0 %v4574
    %v8119 = vpop.f32.mrf.mxu0
    %v8120 = vadd.f32 %v8107, %v8119
    %v8121 = vpop.f32.mrf.mxu0
    %8122 = vdwg.mxu0
    %8123 = vmatpush.bf16.msra.mxu0 %v6959
    %8124 = vmatpush.bf16.msra.mxu0 %v6952
    %8125 = vmatpush.bf16.msra.mxu0 %v6945
    %8126 = vmatpush.bf16.msra.mxu0 %v6938
    %8127 = vmatpush.bf16.msra.mxu0 %v6931
    %8128 = vmatpush.bf16.msra.mxu0 %v6924
    %8129 = vmatpush.bf16.msra.mxu0 %v6917
    %8130 = vmatpush.bf16.msra.mxu0 %v6910
    %8131 = vmatmul.bf16.gmra.mxu0 %v4575
    %v8132 = vpop.f32.mrf.mxu0
    %v8133 = vadd.f32 %v8120, %v8132
    %v8134 = vpop.f32.mrf.mxu0
    %8135 = vdwg.mxu0
    %v8136 = vtanh.pop %v7509
    %v8137 = vtanh.pop %v7613
    %v8138 = vtanh.pop %v7717
    %v8139 = vtanh.pop %v7821
    %v8140 = vtanh.pop %v7925
    %v8141 = vtanh.pop %v8029
    %v8142 = vtanh.pop %v8133
    %v8143 = vpack.c.bf16 %v8137, %v8136
    %v8144 = vpack.c.bf16 %v8139, %v8138
    %v8145 = vpack.c.bf16 %v8141, %v8140
    %v8146 = vpack.c.bf16 %v8142, %v8142
    %8147 = vst [vmem:[#allocation13] sm:$0xff] %v8143
    %8148 = vst [vmem:[#allocation13 + $0x8] sm:$0xff] %v8144
    %8149 = vst [vmem:[#allocation13 + $0x10] sm:$0xff] %v8145
    %8150 = vst [vmem:[#allocation13 + $0x18] sm:$0xf] %v8146
    // Predicated region
    $region54: #{_generator_fwd_jit.1} parent=1 // pred_check
      _
    $region55: #{_generator_fwd_jit.1} parent=1 // pred_check_branch
      %8152 = sbr.rel (0) target = $region57
    $region56: #{_generator_fwd_jit.1} parent=1 // pred_region
      %8154 = vsyncadd [#allocation4], 0
      %s8156 = sshll.u32 [#allocation13], 4
      %s8157 = int_to_ptr.vmem [resolvable:$true] %s8156
      %s8158 = sshll.u32 %s7, 4
      %s8159 = int_to_ptr.hbm [resolvable:$true] %s8158
      %8161 = dma.vmem_to_hbm [thread:$0]  %s8157, 448, %s8159, [#allocation4]
    $region57: #{_generator_fwd_jit.1} parent=1 // pred_fallthru
      _
    // Predicated region
    $region58: #{_generator_fwd_jit.1} parent=1 // pred_check
      _
    $region59: #{_generator_fwd_jit.1} parent=1 // pred_check_branch
      %8163 = sbr.rel (0) target = $region61
    $region60: #{_generator_fwd_jit.1} parent=1 // pred_region
      %8165 = dma.done [#allocation4], 448
    $region61: #{_generator_fwd_jit.1} parent=1 // pred_fallthru
      _
    %8166 = vsyncpa [#allocation3], 1
    %8167 = vsyncpa [#allocation6], 1
    %8168 = vsyncpa [#allocation9], 1
    %8169 = vsyncpa [#allocation12], 1
    %8170 = vsyncpa [#allocation4], 1

</llo_original>
